<compile_context>
chip_gen: v6e
topology: v6e:2x2x1
jax: 0.10.0
libtpu: 0.0.40
codegen_flags: <defaults>
</compile_context>

<pallas_src>
import functools
import math

import jax
import jax.numpy as jnp
import numpy as np
from jax.experimental import pallas as pl
from jax.experimental.pallas import tpu as pltpu


# ------------------------------ Pallas kernel --------------------------------
def _pos_embed_kernel(nm_ref, l_ref, u_ref, fo_ref, o_ref, *,
                      tile_h, num_pos_feats, normalize, scale):
    """One (batch, H-tile) block per grid step.

    nm_ref: [1, H, W]        bf16, 1.0 where NOT masked (full image, revisited).
    l_ref : [tile_h, H]      bf16, rows of the lower-triangular cumsum operator.
    u_ref : [W, W]           bf16, upper-triangular cumsum operator.
    fo_ref: [2, npf]         f32, row 0 = inv_freq, row 1 = sin/cos phase offset.
    o_ref : [1, tile_h, W, 2*npf] f32 channels-last positional embedding tile.
    """
    npf = num_pos_feats
    W = nm_ref.shape[2]

    nm_full = nm_ref[0]                                    # [H, W]

    row0 = pl.program_id(1) * tile_h
    if tile_h % 8 == 0:
        row0 = pl.multiple_of(row0, tile_h)
    nm_tile = nm_ref[0, pl.ds(row0, tile_h), :]            # [tile_h, W]

    # cumsum over H for this row-tile:  L[tile rows, :] @ nm   -> [tile_h, W]
    y_embed = jnp.dot(l_ref[...], nm_full, preferred_element_type=jnp.float32)
    # cumsum over W for this row-tile:  nm[tile rows, :] @ U   -> [tile_h, W]
    x_embed = jnp.dot(nm_tile, u_ref[...], preferred_element_type=jnp.float32)

    if normalize:
        eps = 1e-6
        # y denominator: full-column sums of not_mask (cumsum value at row H-1).
        y_last = jnp.sum(nm_full.astype(jnp.float32), axis=0, keepdims=True)  # [1, W]
        # x denominator: cumsum value at the last column for these rows.
        x_last = x_embed[:, W - 1:W]                                           # [tile_h, 1]
        y_embed = y_embed * (scale / (y_last + eps))
        x_embed = x_embed * (scale / (x_last + eps))

    inv_freq = fo_ref[0:1, :].reshape(1, 1, npf)           # [1, 1, npf]
    phase = fo_ref[1:2, :].reshape(1, 1, npf)              # 0 (sin) or pi/2 (cos)

    # One transcendental per output element: cos(x) == sin(x + pi/2).
    pos_y = jnp.sin(y_embed[:, :, None] * inv_freq + phase)   # [tile_h, W, npf]
    pos_x = jnp.sin(x_embed[:, :, None] * inv_freq + phase)   # [tile_h, W, npf]

    # Lane-aligned channel halves: [y-features | x-features].
    o_ref[0, :, :, 0:npf] = pos_y
    o_ref[0, :, :, npf:2 * npf] = pos_x


# --------------------------------- wrapper ------------------------------------
def _pick_block_h(H, W, num_pos_feats, budget_bytes=1 << 20):
    """Largest H-tile (multiple of 8, dividing H) whose f32 output block fits budget."""
    if H % 8 != 0:
        return H  # full-extent block dims are always legal
    row_bytes = W * 2 * num_pos_feats * 4
    best = 8
    for cand in range(8, H + 1, 8):
        if H % cand == 0 and cand * row_bytes <= budget_bytes:
            best = cand
    return best


@functools.partial(jax.jit, static_argnames=("num_pos_feats", "temperature",
                                              "normalize", "scale", "block_h"))
def position_embedding_sine(tensor, mask, num_pos_feats=128, temperature=10000,
                            normalize=False, scale=None, block_h=None):
    """Matches PositionEmbeddingSine.forward(tensor, mask).

    tensor: [N, C, H, W] (values unused, kept for signature fidelity).
    mask:   [N, H, W] bool.
    returns pos: [N, 2*num_pos_feats, H, W] float32.
    """
    del tensor  # only used for device placement in the PyTorch module
    if scale is not None and not normalize:
        raise ValueError("normalize should be True if scale is passed")
    if scale is None:
        scale = 2 * math.pi

    N, H, W = mask.shape
    npf = num_pos_feats

    if block_h is None:
        block_h = _pick_block_h(H, W, npf)
    assert H % block_h == 0, "block_h must divide H"
    n_h = H // block_h

    # not_mask: exact 0/1, bf16 is exact for these values -> full-rate MXU.
    not_mask = (~mask).astype(jnp.bfloat16)                        # [N, H, W]

    # ---- batch-invariant constants, built once on the host (hoisted out of the
    # sequential grid loop) and DMA'd once (constant index_map => no re-fetch).
    tri_l = jnp.asarray(np.tril(np.ones((H, H), np.float32)), jnp.bfloat16)  # [H, H]
    tri_u = jnp.asarray(np.triu(np.ones((W, W), np.float32)), jnp.bfloat16)  # [W, W]
    d = np.arange(npf, dtype=np.float64)
    dim_t = float(temperature) ** (2.0 * np.floor(d / 2.0) / float(npf))
    inv_freq = (1.0 / dim_t).astype(np.float32)
    phase = ((d % 2) * (np.pi / 2.0)).astype(np.float32)           # 0 -> sin, pi/2 -> cos
    fo = jnp.asarray(np.stack([inv_freq, phase], axis=0))          # [2, npf] f32

    out = pl.pallas_call(
        functools.partial(_pos_embed_kernel, tile_h=block_h, num_pos_feats=npf,
                          normalize=normalize, scale=float(scale)),
        out_shape=jax.ShapeDtypeStruct((N, H, W, 2 * npf), jnp.float32),
        grid=(N, n_h),
        in_specs=[
            pl.BlockSpec((1, H, W), lambda n, h: (n, 0, 0)),         # not_mask (full image)
            pl.BlockSpec((block_h, H), lambda n, h: (h, 0)),         # tril rows for this tile
            pl.BlockSpec((W, W), lambda n, h: (0, 0)),               # triu (constant)
            pl.BlockSpec((2, npf), lambda n, h: (0, 0)),             # inv_freq / phase (constant)
        ],
        out_specs=pl.BlockSpec((1, block_h, W, 2 * npf), lambda n, h: (n, h, 0, 0)),
        compiler_params=pltpu.CompilerParams(
            dimension_semantics=("parallel", "parallel")),
    )(not_mask, tri_l, tri_u, fo)

    # channels-last lane-dense kernel output -> NCHW, matching the PyTorch module.
    return out.transpose(0, 3, 1, 2)


# ---------------------------- numpy reference ---------------------------------
def _reference_pos_embedding(mask, num_pos_feats, temperature, normalize, scale):
    not_mask = ~mask
    y_embed = np.cumsum(not_mask, axis=1, dtype=np.float32)
    x_embed = np.cumsum(not_mask, axis=2, dtype=np.float32)
    if normalize:
        eps = 1e-6
        y_embed = y_embed / (y_embed[:, -1:, :] + eps) * scale
        x_embed = x_embed / (x_embed[:, :, -1:] + eps) * scale
    dim_t = np.arange(num_pos_feats, dtype=np.float32)
    dim_t = temperature ** (2 * np.floor(dim_t / 2) / num_pos_feats)
    pos_x = x_embed[:, :, :, None] / dim_t
    pos_y = y_embed[:, :, :, None] / dim_t
    pos_x = np.stack((np.sin(pos_x[:, :, :, 0::2]), np.cos(pos_x[:, :, :, 1::2])),
                     axis=4).reshape(*pos_x.shape[:3], -1)
    pos_y = np.stack((np.sin(pos_y[:, :, :, 0::2]), np.cos(pos_y[:, :, :, 1::2])),
                     axis=4).reshape(*pos_y.shape[:3], -1)
    pos = np.concatenate((pos_y, pos_x), axis=3).transpose(0, 3, 1, 2)
    return pos.astype(np.float32)


# ------------------------------------ main -------------------------------------
if __name__ == "__main__":
    key = jax.random.PRNGKey(0)
    N, C, H, W = 2, 4, 16, 16
    k1, _ = jax.random.split(key)
    x = jax.random.normal(k1, (N, C, H, W), jnp.float32)

    # deterministic padding-style masks: image n is valid in a top-left region
    valid_h = jnp.array([H, 11])
    valid_w = jnp.array([W, 13])
    rows = jnp.arange(H)[None, :, None]
    cols = jnp.arange(W)[None, None, :]
    mask = (rows >= valid_h[:, None, None]) | (cols >= valid_w[:, None, None])  # [N,H,W] bool

    # default constructor args: num_pos_feats=128, temperature=10000, normalize=False
    pos = jax.block_until_ready(position_embedding_sine(x, mask))
    assert pos.shape == (N, 256, H, W)
    ref = _reference_pos_embedding(np.asarray(mask), 128, 10000.0, False, 2 * math.pi)
    err = float(np.max(np.abs(np.asarray(pos) - ref)))
    assert err < 1e-3, f"normalize=False max abs err {err}"

    # normalize=True branch, forcing a multi-tile H grid (block_h=8) to exercise
    # the tiled index maps / dynamic row slice.
    pos_n = jax.block_until_ready(position_embedding_sine(x, mask, normalize=True,
                                                          block_h=8))
    ref_n = _reference_pos_embedding(np.asarray(mask), 128, 10000.0, True, 2 * math.pi)
    err_n = float(np.max(np.abs(np.asarray(pos_n) - ref_n)))
    assert err_n < 1e-3, f"normalize=True max abs err {err_n}"

    print("KERNEL_OK")
</pallas_src>

<mosaic_0001>
module attributes {stable_mosaic.version = 11 : i64} {
  func.func @_pos_embed_kernel(%arg0: i32, %arg1: i32, %arg2: memref<1x16x16xbf16, #tpu.memory_space<vmem>>, %arg3: memref<16x16xbf16, #tpu.memory_space<vmem>>, %arg4: memref<16x16xbf16, #tpu.memory_space<vmem>>, %arg5: memref<2x128xf32, #tpu.memory_space<vmem>>, %arg6: memref<1x16x16x256xf32, #tpu.memory_space<vmem>>) attributes {dimension_semantics = [#tpu.dimension_semantics<parallel>, #tpu.dimension_semantics<parallel>], iteration_bounds = array<i64: 2, 1>, scalar_prefetch = 0 : i64, scratch_operands = 0 : i64, tpu.core_type = #tpu.core_type<tc>, window_params = [{transform_indices = @transform_0, window_bounds = array<i64: 1, 16, 16>}, {transform_indices = @transform_1, window_bounds = array<i64: 16, 16>}, {pipeline_mode = #tpu.pipeline_mode<synchronous>, transform_indices = @transform_2, window_bounds = array<i64: 16, 16>}, {pipeline_mode = #tpu.pipeline_mode<synchronous>, transform_indices = @transform_3, window_bounds = array<i64: 2, 128>}, {transform_indices = @transform_4, window_bounds = array<i64: 1, 16, 16, 256>}]} {
    %c0 = arith.constant 0 : index
    %c0_0 = arith.constant 0 : index
    %c0_1 = arith.constant 0 : index
    %0 = vector.load %arg2[%c0, %c0_0, %c0_1] : memref<1x16x16xbf16, #tpu.memory_space<vmem>>, vector<1x16x16xbf16>
    %1 = vector.shape_cast %0 : vector<1x16x16xbf16> to vector<16x16xbf16>
    %c16_i32 = arith.constant 16 : i32
    %2 = arith.muli %arg1, %c16_i32 : i32
    %3 = tpu.assume_multiple %2, 16 : i32
    %c0_2 = arith.constant 0 : index
    %4 = arith.index_cast %3 : i32 to index
    %c0_3 = arith.constant 0 : index
    %5 = vector.load %arg2[%c0_2, %4, %c0_3] : memref<1x16x16xbf16, #tpu.memory_space<vmem>>, vector<1x16x16xbf16>
    %6 = vector.shape_cast %5 : vector<1x16x16xbf16> to vector<16x16xbf16>
    %c0_4 = arith.constant 0 : index
    %c0_5 = arith.constant 0 : index
    %7 = vector.load %arg3[%c0_4, %c0_5] : memref<16x16xbf16, #tpu.memory_space<vmem>>, vector<16x16xbf16>
    %cst = arith.constant dense<0.000000e+00> : vector<16x16xf32>
    %8 = tpu.matmul %7, %1, %cst {dimension_numbers = #tpu.dot_dimension_numbers<[1], [0], [0], [1], [0, 0, 1, 1], [], []>} : vector<16x16xbf16>, vector<16x16xbf16>, vector<16x16xf32> -> vector<16x16xf32>
    %c0_6 = arith.constant 0 : index
    %c0_7 = arith.constant 0 : index
    %9 = vector.load %arg4[%c0_6, %c0_7] : memref<16x16xbf16, #tpu.memory_space<vmem>>, vector<16x16xbf16>
    %cst_8 = arith.constant dense<0.000000e+00> : vector<16x16xf32>
    %10 = tpu.matmul %6, %9, %cst_8 {dimension_numbers = #tpu.dot_dimension_numbers<[1], [0], [0], [1], [0, 0, 1, 1], [], []>} : vector<16x16xbf16>, vector<16x16xbf16>, vector<16x16xf32> -> vector<16x16xf32>
    %c0_9 = arith.constant 0 : index
    %c0_10 = arith.constant 0 : index
    %11 = vector.load %arg5[%c0_9, %c0_10] : memref<2x128xf32, #tpu.memory_space<vmem>>, vector<1x128xf32>
    %12 = vector.shape_cast %11 : vector<1x128xf32> to vector<1x1x128xf32>
    %c1 = arith.constant 1 : index
    %c0_11 = arith.constant 0 : index
    %13 = vector.load %arg5[%c1, %c0_11] : memref<2x128xf32, #tpu.memory_space<vmem>>, vector<1x128xf32>
    %14 = vector.shape_cast %13 : vector<1x128xf32> to vector<1x1x128xf32>
    %15 = vector.shape_cast %8 : vector<16x16xf32> to vector<16x16x1xf32>
    %16 = vector.broadcast %15 : vector<16x16x1xf32> to vector<16x16x128xf32>
    %17 = vector.broadcast %12 : vector<1x1x128xf32> to vector<16x16x128xf32>
    %18 = arith.mulf %16, %17 : vector<16x16x128xf32>
    %19 = vector.broadcast %14 : vector<1x1x128xf32> to vector<16x16x128xf32>
    %20 = arith.addf %18, %19 : vector<16x16x128xf32>
    %21 = math.sin %20 : vector<16x16x128xf32>
    %22 = vector.shape_cast %10 : vector<16x16xf32> to vector<16x16x1xf32>
    %23 = vector.broadcast %22 : vector<16x16x1xf32> to vector<16x16x128xf32>
    %24 = vector.broadcast %12 : vector<1x1x128xf32> to vector<16x16x128xf32>
    %25 = arith.mulf %23, %24 : vector<16x16x128xf32>
    %26 = vector.broadcast %14 : vector<1x1x128xf32> to vector<16x16x128xf32>
    %27 = arith.addf %25, %26 : vector<16x16x128xf32>
    %28 = math.sin %27 : vector<16x16x128xf32>
    %c0_12 = arith.constant 0 : index
    %c0_13 = arith.constant 0 : index
    %c0_14 = arith.constant 0 : index
    %c0_15 = arith.constant 0 : index
    %29 = vector.load %arg6[%c0_12, %c0_13, %c0_14, %c0_15] : memref<1x16x16x256xf32, #tpu.memory_space<vmem>>, vector<1x16x16x128xf32>
    %30 = vector.shape_cast %29 : vector<1x16x16x128xf32> to vector<16x16x128xf32>
    %31 = vector.shape_cast %21 : vector<16x16x128xf32> to vector<1x16x16x128xf32>
    tpu.vector_store %arg6[%c0_12, %c0_13, %c0_14, %c0_15], %31 {strides = array<i32>} : memref<1x16x16x256xf32, #tpu.memory_space<vmem>>, vector<1x16x16x128xf32>,
    %c0_16 = arith.constant 0 : index
    %c0_17 = arith.constant 0 : index
    %c0_18 = arith.constant 0 : index
    %c128 = arith.constant 128 : index
    %32 = vector.load %arg6[%c0_16, %c0_17, %c0_18, %c128] : memref<1x16x16x256xf32, #tpu.memory_space<vmem>>, vector<1x16x16x128xf32>
    %33 = vector.shape_cast %32 : vector<1x16x16x128xf32> to vector<16x16x128xf32>
    %34 = vector.shape_cast %28 : vector<16x16x128xf32> to vector<1x16x16x128xf32>
    tpu.vector_store %arg6[%c0_16, %c0_17, %c0_18, %c128], %34 {strides = array<i32>} : memref<1x16x16x256xf32, #tpu.memory_space<vmem>>, vector<1x16x16x128xf32>,
    return
  }
  func.func @transform_0(%arg0: i32, %arg1: i32) -> (i32, i32, i32) {
    %c0_i32 = arith.constant 0 : i32
    %c0_i32_0 = arith.constant 0 : i32
    %c0_i32_1 = arith.constant 0 : i32
    return %arg0, %c0_i32, %c0_i32_0 : i32, i32, i32
  }
  func.func @transform_1(%arg0: i32, %arg1: i32) -> (i32, i32) {
    %c0_i32 = arith.constant 0 : i32
    %c0_i32_0 = arith.constant 0 : i32
    return %arg1, %c0_i32 : i32, i32
  }
  func.func @transform_2(%arg0: i32, %arg1: i32) -> (i32, i32) {
    %c0_i32 = arith.constant 0 : i32
    %c0_i32_0 = arith.constant 0 : i32
    %c0_i32_1 = arith.constant 0 : i32
    return %c0_i32, %c0_i32_0 : i32, i32
  }
  func.func @transform_3(%arg0: i32, %arg1: i32) -> (i32, i32) {
    %c0_i32 = arith.constant 0 : i32
    %c0_i32_0 = arith.constant 0 : i32
    %c0_i32_1 = arith.constant 0 : i32
    return %c0_i32, %c0_i32_0 : i32, i32
  }
  func.func @transform_4(%arg0: i32, %arg1: i32) -> (i32, i32, i32, i32) {
    %c0_i32 = arith.constant 0 : i32
    %c0_i32_0 = arith.constant 0 : i32
    %c0_i32_1 = arith.constant 0 : i32
    return %arg0, %arg1, %c0_i32, %c0_i32_0 : i32, i32, i32, i32
  }
}

</mosaic_0001>

<llo_original>
// kernel: position_embedding_sine.1
$region0: #{position_embedding_sine.1}
  #allocation0 [shape = 'u32[]', space=smem, size = 0x4, offset = 0x4, fixed_abs, tag = 'smem constant byte address 0x4 - core index']
  #allocation1 [shape = 'u32[144,128]{1,0:T(1,128)}', space=vmem, size = 0x12000, scoped, tag = 'internal scratch']
  %s0 = inlined_call_operand.vmem [shape: bf16[2,16,16], index: 0, kind: input, shape index: {}]
  %s1 = inlined_call_operand.vmem [shape: bf16[16,16], index: 1, kind: input, shape index: {}]
  %s2 = inlined_call_operand.vmem [shape: bf16[16,16], index: 2, kind: input, shape index: {}]
  %s3 = inlined_call_operand.vmem [shape: f32[2,128], index: 3, kind: input, shape index: {}]
  %s4 = inlined_call_operand.hbm [shape: f32[2,16,16,256], index: 4, kind: output, shape index: {}]
  %s5 = sld [smem:[#allocation0]]
  $region49: #{position_embedding_sine.1} parent=0
    _
  %s7 = ssub.s32 1, %s5
  %s8 = scalar_select 0, %s7, %s5
  $region1: #{position_embedding_sine.1} parent=0
    #allocation2 [shape = 'u8[524288]{0}', space=vmem, size = 0x80000, scoped, tag = 'output window, operand 0']
    #allocation3 [shape = 's32[2]{0}', space=sflag, size = 0x8, scoped, tag = 'scoped memory for position_embedding_sine.1']
    %9 = vsyncpa [#allocation3], 0
    %s10 = scalar_lea.sflag [#allocation3], 1
    %11 = vsyncpa %s10, 0
    loop: start=0, step=1, limit=4
    $region2: #{position_embedding_sine.1} parent=1 // loop_pre_header
      _
    $region3: #{position_embedding_sine.1} parent=1 // loop_header
      %s13 = sphi 0, %s17
      %p14 = scmp.ge.s32.totalorder %s13, 4
      %s20 = sphi 0, %s32
      %s21 = sphi 0, %s28
      %s22 = sphi 0, %s20
      %s23 = sphi 0, %s21
      %s24 = sphi 0, %s22
      %s25 = sphi 0, %s23
      %s35 = sphi 0, %s37
      %s38 = sphi 0, %s35
      %s39 = sphi 0, %s38
      %s55 = sphi 0, %s39
      %s61 = sphi 0, %s63
      %s64 = sphi 0, %s61
      %s65 = sphi 0, %s64
      %s81 = sphi 0, %s65
      %s85 = sphi 0, %s85
      %s87 = sphi 0, %s85
      %s88 = sphi 0, %s87
      %s102 = sphi 0, %s88
      %s106 = sphi 0, %s106
      %s108 = sphi 0, %s106
      %s109 = sphi 0, %s108
      %s123 = sphi 0, %s109
      %s131 = sphi 0, %s133
      %s134 = sphi 0, %s131
      %s135 = sphi 0, %s134
      %s151 = sphi 0, %s135
    $region4: #{position_embedding_sine.1} parent=1 // loop_header_branch
      %16 = sbr.rel (%p14) target = $region8
    $region5: #{position_embedding_sine.1} parent=1 // loop_body
      %s18 = ssub.s32 %s13, 1
      %s19 = ssub.s32 %s13, 2
      %s26 = sadd.s32 1, %s21
      %p27 = scmp.ge.s32.totalorder %s26, 1
      %s28 = scalar_select %p27, 0, %s26
      %s29 = sadd.s32 1, %s20
      %s30 = scalar_select %p27, %s29, %s20
      %p31 = scmp.ge.s32.totalorder %s30, 2
      %s32 = scalar_select %p31, 0, %s30
      %s33 = ssub.s32 %s20, %s32
      %p34 = scmp.eq.s32.totalorder %s33, 0
      %s36 = sadd.s32 %s35, 1
      %s37 = scalar_select %p34, %s35, %s36
      %p40 = pneg %p34
      %p41 = scmp.eq.s32.totalorder %s13, 1
      %p42 = por %p40, %p41
      %p43 = scmp.ne.s32.totalorder %s35, %s38
      %p44 = scmp.eq.s32.totalorder %s13, 0
      %p45 = por %p43, %p44
      %p46 = scmp.ne.s32.totalorder %s35, %s38
      %p47 = scmp.eq.s32.totalorder %s18, 1
      %p48 = por %p46, %p47
      %p49 = scmp.ne.s32.totalorder %s38, %s39
      %p50 = scmp.eq.s32.totalorder %s18, 0
      %p51 = por %p49, %p50
      %p52 = scmp.ne.s32.totalorder %s38, %s39
      %p53 = scmp.eq.s32.totalorder %s19, 1
      %p54 = por %p52, %p53
      %p56 = scmp.ne.s32.totalorder %s39, %s55
      %p57 = scmp.eq.s32.totalorder %s19, 0
      %p58 = por %p56, %p57
      %s59 = ssub.s32 %s21, %s28
      %p60 = scmp.eq.s32.totalorder %s59, 0
      %s62 = sadd.s32 %s61, 1
      %s63 = scalar_select %p60, %s61, %s62
      %p66 = pneg %p60
      %p67 = scmp.eq.s32.totalorder %s13, 1
      %p68 = por %p66, %p67
      %p69 = scmp.ne.s32.totalorder %s61, %s64
      %p70 = scmp.eq.s32.totalorder %s13, 0
      %p71 = por %p69, %p70
      %p72 = scmp.ne.s32.totalorder %s61, %s64
      %p73 = scmp.eq.s32.totalorder %s18, 1
      %p74 = por %p72, %p73
      %p75 = scmp.ne.s32.totalorder %s64, %s65
      %p76 = scmp.eq.s32.totalorder %s18, 0
      %p77 = por %p75, %p76
      %p78 = scmp.ne.s32.totalorder %s64, %s65
      %p79 = scmp.eq.s32.totalorder %s19, 1
      %p80 = por %p78, %p79
      %p82 = scmp.ne.s32.totalorder %s65, %s81
      %p83 = scmp.eq.s32.totalorder %s19, 0
      %p84 = por %p82, %p83
      %s86 = sadd.s32 %s85, 1
      %p89 = scmp.eq.s32.totalorder %s13, 1
      %p90 = scmp.ne.s32.totalorder %s85, %s87
      %p91 = scmp.eq.s32.totalorder %s13, 0
      %p92 = por %p90, %p91
      %p93 = scmp.ne.s32.totalorder %s85, %s87
      %p94 = scmp.eq.s32.totalorder %s18, 1
      %p95 = por %p93, %p94
      %p96 = scmp.ne.s32.totalorder %s87, %s88
      %p97 = scmp.eq.s32.totalorder %s18, 0
      %p98 = por %p96, %p97
      %p99 = scmp.ne.s32.totalorder %s87, %s88
      %p100 = scmp.eq.s32.totalorder %s19, 1
      %p101 = por %p99, %p100
      %p103 = scmp.ne.s32.totalorder %s88, %s102
      %p104 = scmp.eq.s32.totalorder %s19, 0
      %p105 = por %p103, %p104
      %s107 = sadd.s32 %s106, 1
      %p110 = scmp.eq.s32.totalorder %s13, 1
      %p111 = scmp.ne.s32.totalorder %s106, %s108
      %p112 = scmp.eq.s32.totalorder %s13, 0
      %p113 = por %p111, %p112
      %p114 = scmp.ne.s32.totalorder %s106, %s108
      %p115 = scmp.eq.s32.totalorder %s18, 1
      %p116 = por %p114, %p115
      %p117 = scmp.ne.s32.totalorder %s108, %s109
      %p118 = scmp.eq.s32.totalorder %s18, 0
      %p119 = por %p117, %p118
      %p120 = scmp.ne.s32.totalorder %s108, %s109
      %p121 = scmp.eq.s32.totalorder %s19, 1
      %p122 = por %p120, %p121
      %p124 = scmp.ne.s32.totalorder %s109, %s123
      %p125 = scmp.eq.s32.totalorder %s19, 0
      %p126 = por %p124, %p125
      %s127 = ssub.s32 %s20, %s32
      %s128 = ssub.s32 %s21, %s28
      %s129 = sor.u32 %s127, %s128
      %p130 = scmp.eq.s32.totalorder %s129, 0
      %s132 = sadd.s32 %s131, 1
      %s133 = scalar_select %p130, %s131, %s132
      %p136 = pneg %p130
      %p137 = scmp.eq.s32.totalorder %s13, 1
      %p138 = por %p136, %p137
      %p139 = scmp.ne.s32.totalorder %s131, %s134
      %p140 = scmp.eq.s32.totalorder %s13, 0
      %p141 = por %p139, %p140
      %p142 = scmp.ne.s32.totalorder %s131, %s134
      %p143 = scmp.eq.s32.totalorder %s18, 1
      %p144 = por %p142, %p143
      %p145 = scmp.ne.s32.totalorder %s134, %s135
      %p146 = scmp.eq.s32.totalorder %s18, 0
      %p147 = por %p145, %p146
      %p148 = scmp.ne.s32.totalorder %s134, %s135
      %p149 = scmp.eq.s32.totalorder %s19, 1
      %p150 = por %p148, %p149
      %p152 = scmp.ne.s32.totalorder %s135, %s151
      %p153 = scmp.eq.s32.totalorder %s19, 0
      %p154 = por %p152, %p153
      %p155 = scmp.le.s32.totalorder 1, %s13
      %p156 = scmp.lt.s32.totalorder %s13, 3
      %p157 = pnand %p155, %p156
      %p158 = pneg %p157
      // Predicated region
      $region9: #{position_embedding_sine.1} parent=5 // pred_check
        _
      $region10: #{position_embedding_sine.1} parent=5 // pred_check_branch
        %160 = sbr.rel (%p157) target = $region12
      $region11: #{position_embedding_sine.1} parent=5 // pred_region
        %s161 = ssub.s32 %s13, 1
        // Predicated region
        $region13: #{position_embedding_sine.1} parent=11 // pred_check
          %p162 = pneg %p77
        $region14: #{position_embedding_sine.1} parent=11 // pred_check_branch
          %164 = sbr.rel (%p162) target = $region16
        $region15: #{position_embedding_sine.1} parent=11 // pred_region
          %s165 = smul.u32 2, %s23
          %p166 = scmp.lt.s32.totalorder %s165, 1
          %s167 = scalar_select %p166, %s165, 1
          %s168 = smul.addr %s167, 4
          %s169 = scalar_lea.vmem %s1, %s168
          %s170 = smul.u32 2, %s23
        $region16: #{position_embedding_sine.1} parent=11 // pred_fallthru
          _
        // Predicated region
        $region17: #{position_embedding_sine.1} parent=11 // pred_check
          %p171 = pneg %p98
        $region18: #{position_embedding_sine.1} parent=11 // pred_check_branch
          %173 = sbr.rel (%p171) target = $region20
        $region19: #{position_embedding_sine.1} parent=11 // pred_region
          _
        $region20: #{position_embedding_sine.1} parent=11 // pred_fallthru
          _
        // Predicated region
        $region21: #{position_embedding_sine.1} parent=11 // pred_check
          %p174 = pneg %p119
        $region22: #{position_embedding_sine.1} parent=11 // pred_check_branch
          %176 = sbr.rel (%p174) target = $region24
        $region23: #{position_embedding_sine.1} parent=11 // pred_region
          _
        $region24: #{position_embedding_sine.1} parent=11 // pred_fallthru
          _
      $region12: #{position_embedding_sine.1} parent=5 // pred_fallthru
        _
      %p177 = scmp.lt.s32.totalorder %s13, 2
      // Predicated region
      $region25: #{position_embedding_sine.1} parent=5 // pred_check
        %p178 = pneg %p177
      $region26: #{position_embedding_sine.1} parent=5 // pred_check_branch
        %180 = sbr.rel (%p178) target = $region28
      $region27: #{position_embedding_sine.1} parent=5 // pred_region
        // Predicated region
        $region29: #{position_embedding_sine.1} parent=27 // pred_check
          %p181 = pneg %p45
        $region30: #{position_embedding_sine.1} parent=27 // pred_check_branch
          %183 = sbr.rel (%p181) target = $region32
        $region31: #{position_embedding_sine.1} parent=27 // pred_region
          %p184 = scmp.lt.s32.totalorder %s20, 1
          %s185 = scalar_select %p184, %s20, 1
          %s186 = smul.addr %s185, 2
          %s187 = smul.addr %s186, 4
          %s188 = scalar_lea.vmem %s0, %s187
        $region32: #{position_embedding_sine.1} parent=27 // pred_fallthru
          _
      $region28: #{position_embedding_sine.1} parent=5 // pred_fallthru
        _
      %p189 = scmp.le.s32.totalorder 1, %s13
      %p190 = scmp.lt.s32.totalorder %s13, 3
      %p191 = pnand %p189, %p190
      %p192 = pneg %p191
      // Predicated region
      $region33: #{position_embedding_sine.1} parent=5 // pred_check
        _
      $region34: #{position_embedding_sine.1} parent=5 // pred_check_branch
        %194 = sbr.rel (%p191) target = $region36
      $region35: #{position_embedding_sine.1} parent=5 // pred_region
        %s195 = ssub.s32 %s13, 1
        %p196 = scmp.lt.s32.totalorder %s22, 1
        %s197 = scalar_select %p196, %s22, 1
        %s198 = smul.addr %s197, 2
        %s199 = smul.addr %s198, 4
        %s200 = scalar_lea.vmem %s0, %s199
        %p201 = pneg %p51
        %p202 = pneg %p48
        %s203 = smul.u32 2, %s23
        %p204 = scmp.lt.s32.totalorder %s203, 1
        %s205 = scalar_select %p204, %s203, 1
        %s206 = smul.addr %s205, 4
        %s207 = scalar_lea.vmem %s1, %s206
        %p208 = pneg %p77
        %p209 = pneg %p74
        %p210 = pneg %p98
        %p211 = pneg %p95
        %p212 = pneg %p119
        %p213 = pneg %p116
        %p214 = pneg %p147
        %p215 = pneg %p144
        %s216 = sand.u32 %s134, 1
        %s217 = scalar_lea.sflag [#allocation3], %s216
        %s218 = sand.u32 %s134, 1
        %s219 = smul.addr %s218, 512
        %s220 = scalar_lea.vmem [#allocation2], %s219
        %p221 = scmp.lt.s32.totalorder %s22, 1
        %s222 = scalar_select %p221, %s22, 1
        %s223 = smul.addr %s222, 2
        %s224 = smul.addr %s223, 4
        %s225 = scalar_lea.vmem %s0, %s224
        %s226 = smul.u32 2, %s23
        %p227 = scmp.lt.s32.totalorder %s226, 1
        %s228 = scalar_select %p227, %s226, 1
        %s229 = smul.addr %s228, 4
        %s230 = scalar_lea.vmem %s1, %s229
        %s231 = smul.u32 2, %s23
        %s232 = smul.u32 16, %s23
        %v234 = vld [vmem:[%s225] sm:$0xf]
        %v235 = vld [vmem:[%s225 + $0x4] sm:$0xf]
        %s236 = smul.u32 %s23, 16
        %s237 = sshra.s32 %s236, 3
        %s238 = sand.u32 %s236, 7
        %s239 = smul.addr %s237, 4
        %s240 = scalar_lea.vmem %s225, %s239
        %v241 = vld [vmem:[%s240] sm:$0xf]
        %v242 = vld [vmem:[%s240 + $0x4] sm:$0xf]
        %v243 = vld [vmem:[%s230] sm:$0xf]
        %v244 = vld [vmem:[%s230 + $0x4] sm:$0xf]
        %v247 = vunpack.c.l.b16 %v243
        %v248 = vunpack.c.l.b16 %v244
        %v249 = vpack.c.b16 %v248, %v247
        %v252 = vunpack.c.l.b16 %v234
        %v253 = vunpack.c.l.b16 %v235
        %v254 = vpack.c.b16 %v253, %v252
        %vm256 = vcmask 130048
        %v258 = vsel %vm256, %v249, 0
        %260 = vmatprep.subr.bf16.mxu0 0
        %261 = vmatpush1.bf16.msra.mxu0 0
        %262 = vmatprep.subr.bf16.mxu0 0
        %263 = vmatpush1.bf16.msra.mxu0 0
        %264 = vmatprep.subr.bf16.mxu0 0
        %265 = vmatpush1.bf16.msra.mxu0 0
        %266 = vmatprep.subr.bf16.mxu0 0
        %267 = vmatpush1.bf16.msra.mxu0 0
        %268 = vmatprep.subr.bf16.mxu0 0
        %269 = vmatpush1.bf16.msra.mxu0 0
        %270 = vmatprep.subr.bf16.mxu0 0
        %271 = vmatpush1.bf16.msra.mxu0 0
        %272 = vmatprep.subr.bf16.mxu0 0
        %273 = vmatpush1.bf16.msra.mxu0 0
        %274 = vmatprep.subr.bf16.mxu0 0
        %275 = vmatpush1.bf16.msra.mxu0 %v254
        %276 = vmatprep.subr.bf16.mxu0 0
        %277 = vmatpush2.bf16.msra.mxu0 0
        %278 = vmatprep.subr.bf16.mxu0 0
        %279 = vmatpush2.bf16.msra.mxu0 0
        %280 = vmatprep.subr.bf16.mxu0 0
        %281 = vmatpush2.bf16.msra.mxu0 0
        %282 = vmatprep.subr.bf16.mxu0 0
        %283 = vmatpush2.bf16.msra.mxu0 0
        %284 = vmatprep.subr.bf16.mxu0 0
        %285 = vmatpush2.bf16.msra.mxu0 0
        %286 = vmatprep.subr.bf16.mxu0 0
        %287 = vmatpush2.bf16.msra.mxu0 0
        %288 = vmatprep.subr.bf16.mxu0 0
        %289 = vmatpush2.bf16.msra.mxu0 0
        %290 = vmatprep.subr.bf16.mxu0 0
        %291 = vmatpush2.bf16.msra.mxu0 0
        %292 = vmatprep.mubr.bf16.mxu0 0
        %293 = vmatmul.mubr.bf16.gmra.mxu0 %v258
        %v294 = vpop.f32.mrf.mxu0
        %v295 = vadd.f32 0.0, %v294
        %v296 = vpop.f32.mrf.mxu0
        %v297 = vpop.f32.mrf.mxu0
        %v298 = vadd.f32 0.0, %v297
        %v299 = vpop.f32.mrf.mxu0
        %300 = vdwg.mxu0
        %v301 = vld [vmem:[%s2] sm:$0xf]
        %v302 = vld [vmem:[%s2 + $0x4] sm:$0xf]
        %v305 = vunpack.c.l.b16 %v241
        %v306 = vunpack.c.l.b16 %v242
        %v307 = vpack.c.b16 %v306, %v305
        %v310 = vunpack.c.l.b16 %v301
        %v311 = vunpack.c.l.b16 %v302
        %v312 = vpack.c.b16 %v311, %v310
        %v315 = vsel %vm256, %v307, 0
        %317 = vmatprep.subr.bf16.mxu0 0
        %318 = vmatpush1.bf16.msra.mxu0 0
        %319 = vmatprep.subr.bf16.mxu0 0
        %320 = vmatpush1.bf16.msra.mxu0 0
        %321 = vmatprep.subr.bf16.mxu0 0
        %322 = vmatpush1.bf16.msra.mxu0 0
        %323 = vmatprep.subr.bf16.mxu0 0
        %324 = vmatpush1.bf16.msra.mxu0 0
        %325 = vmatprep.subr.bf16.mxu0 0
        %326 = vmatpush1.bf16.msra.mxu0 0
        %327 = vmatprep.subr.bf16.mxu0 0
        %328 = vmatpush1.bf16.msra.mxu0 0
        %329 = vmatprep.subr.bf16.mxu0 0
        %330 = vmatpush1.bf16.msra.mxu0 0
        %331 = vmatprep.subr.bf16.mxu0 0
        %332 = vmatpush1.bf16.msra.mxu0 %v312
        %333 = vmatprep.subr.bf16.mxu0 0
        %334 = vmatpush2.bf16.msra.mxu0 0
        %335 = vmatprep.subr.bf16.mxu0 0
        %336 = vmatpush2.bf16.msra.mxu0 0
        %337 = vmatprep.subr.bf16.mxu0 0
        %338 = vmatpush2.bf16.msra.mxu0 0
        %339 = vmatprep.subr.bf16.mxu0 0
        %340 = vmatpush2.bf16.msra.mxu0 0
        %341 = vmatprep.subr.bf16.mxu0 0
        %342 = vmatpush2.bf16.msra.mxu0 0
        %343 = vmatprep.subr.bf16.mxu0 0
        %344 = vmatpush2.bf16.msra.mxu0 0
        %345 = vmatprep.subr.bf16.mxu0 0
        %346 = vmatpush2.bf16.msra.mxu0 0
        %347 = vmatprep.subr.bf16.mxu0 0
        %348 = vmatpush2.bf16.msra.mxu0 0
        %349 = vmatprep.mubr.bf16.mxu0 0
        %350 = vmatmul.mubr.bf16.gmra.mxu0 %v315
        %v351 = vpop.f32.mrf.mxu0
        %v352 = vadd.f32 0.0, %v351
        %v353 = vpop.f32.mrf.mxu0
        %v354 = vpop.f32.mrf.mxu0
        %v355 = vadd.f32 0.0, %v354
        %v356 = vpop.f32.mrf.mxu0
        %357 = vdwg.mxu0
        %v358 = vld [vmem:[%s3] sm:$0x1]
        %v359 = vld [vmem:[%s3 + $0x1] sm:$0x1]
        %v360 = vlaneseq
        %v361 = vshrl.u32 %v360, 7
        %v362 = vsub.s32 0, %v361
        %v363 = vrot.slane %v295, %v362
        %365 = vbcast.lane.b32.xlu0 %v363, 256
        %v366 = vpop.permute.xlu0 %365
        %s368 = sor.u32 256, 8
        %369 = vbcast.lane.b32.xlu0 %v363, %s368
        %v370 = vpop.permute.xlu0 %369
        %v371 = vlaneseq
        %v372 = vshrl.u32 %v371, 7
        %v373 = vsub.s32 1, %v372
        %v374 = vrot.slane %v295, %v373
        %376 = vbcast.lane.b32.xlu0 %v374, 256
        %v377 = vpop.permute.xlu0 %376
        %s379 = sor.u32 256, 8
        %380 = vbcast.lane.b32.xlu0 %v374, %s379
        %v381 = vpop.permute.xlu0 %380
        %v382 = vlaneseq
        %v383 = vshrl.u32 %v382, 7
        %v384 = vsub.s32 2, %v383
        %v385 = vrot.slane %v295, %v384
        %387 = vbcast.lane.b32.xlu0 %v385, 256
        %v388 = vpop.permute.xlu0 %387
        %s390 = sor.u32 256, 8
        %391 = vbcast.lane.b32.xlu0 %v385, %s390
        %v392 = vpop.permute.xlu0 %391
        %v393 = vlaneseq
        %v394 = vshrl.u32 %v393, 7
        %v395 = vsub.s32 3, %v394
        %v396 = vrot.slane %v295, %v395
        %398 = vbcast.lane.b32.xlu0 %v396, 256
        %v399 = vpop.permute.xlu0 %398
        %s401 = sor.u32 256, 8
        %402 = vbcast.lane.b32.xlu0 %v396, %s401
        %v403 = vpop.permute.xlu0 %402
        %v404 = vlaneseq
        %v405 = vshrl.u32 %v404, 7
        %v406 = vsub.s32 4, %v405
        %v407 = vrot.slane %v295, %v406
        %409 = vbcast.lane.b32.xlu0 %v407, 256
        %v410 = vpop.permute.xlu0 %409
        %s412 = sor.u32 256, 8
        %413 = vbcast.lane.b32.xlu0 %v407, %s412
        %v414 = vpop.permute.xlu0 %413
        %v415 = vlaneseq
        %v416 = vshrl.u32 %v415, 7
        %v417 = vsub.s32 5, %v416
        %v418 = vrot.slane %v295, %v417
        %420 = vbcast.lane.b32.xlu0 %v418, 256
        %v421 = vpop.permute.xlu0 %420
        %s423 = sor.u32 256, 8
        %424 = vbcast.lane.b32.xlu0 %v418, %s423
        %v425 = vpop.permute.xlu0 %424
        %v426 = vlaneseq
        %v427 = vshrl.u32 %v426, 7
        %v428 = vsub.s32 6, %v427
        %v429 = vrot.slane %v295, %v428
        %431 = vbcast.lane.b32.xlu0 %v429, 256
        %v432 = vpop.permute.xlu0 %431
        %s434 = sor.u32 256, 8
        %435 = vbcast.lane.b32.xlu0 %v429, %s434
        %v436 = vpop.permute.xlu0 %435
        %v437 = vlaneseq
        %v438 = vshrl.u32 %v437, 7
        %v439 = vsub.s32 7, %v438
        %v440 = vrot.slane %v295, %v439
        %442 = vbcast.lane.b32.xlu0 %v440, 256
        %v443 = vpop.permute.xlu0 %442
        %s445 = sor.u32 256, 8
        %446 = vbcast.lane.b32.xlu0 %v440, %s445
        %v447 = vpop.permute.xlu0 %446
        %v448 = vlaneseq
        %v449 = vshrl.u32 %v448, 7
        %v450 = vsub.s32 0, %v449
        %v451 = vrot.slane %v298, %v450
        %453 = vbcast.lane.b32.xlu0 %v451, 256
        %v454 = vpop.permute.xlu0 %453
        %s456 = sor.u32 256, 8
        %457 = vbcast.lane.b32.xlu0 %v451, %s456
        %v458 = vpop.permute.xlu0 %457
        %v459 = vlaneseq
        %v460 = vshrl.u32 %v459, 7
        %v461 = vsub.s32 1, %v460
        %v462 = vrot.slane %v298, %v461
        %464 = vbcast.lane.b32.xlu0 %v462, 256
        %v465 = vpop.permute.xlu0 %464
        %s467 = sor.u32 256, 8
        %468 = vbcast.lane.b32.xlu0 %v462, %s467
        %v469 = vpop.permute.xlu0 %468
        %v470 = vlaneseq
        %v471 = vshrl.u32 %v470, 7
        %v472 = vsub.s32 2, %v471
        %v473 = vrot.slane %v298, %v472
        %475 = vbcast.lane.b32.xlu0 %v473, 256
        %v476 = vpop.permute.xlu0 %475
        %s478 = sor.u32 256, 8
        %479 = vbcast.lane.b32.xlu0 %v473, %s478
        %v480 = vpop.permute.xlu0 %479
        %v481 = vlaneseq
        %v482 = vshrl.u32 %v481, 7
        %v483 = vsub.s32 3, %v482
        %v484 = vrot.slane %v298, %v483
        %486 = vbcast.lane.b32.xlu0 %v484, 256
        %v487 = vpop.permute.xlu0 %486
        %s489 = sor.u32 256, 8
        %490 = vbcast.lane.b32.xlu0 %v484, %s489
        %v491 = vpop.permute.xlu0 %490
        %v492 = vlaneseq
        %v493 = vshrl.u32 %v492, 7
        %v494 = vsub.s32 4, %v493
        %v495 = vrot.slane %v298, %v494
        %497 = vbcast.lane.b32.xlu0 %v495, 256
        %v498 = vpop.permute.xlu0 %497
        %s500 = sor.u32 256, 8
        %501 = vbcast.lane.b32.xlu0 %v495, %s500
        %v502 = vpop.permute.xlu0 %501
        %v503 = vlaneseq
        %v504 = vshrl.u32 %v503, 7
        %v505 = vsub.s32 5, %v504
        %v506 = vrot.slane %v298, %v505
        %508 = vbcast.lane.b32.xlu0 %v506, 256
        %v509 = vpop.permute.xlu0 %508
        %s511 = sor.u32 256, 8
        %512 = vbcast.lane.b32.xlu0 %v506, %s511
        %v513 = vpop.permute.xlu0 %512
        %v514 = vlaneseq
        %v515 = vshrl.u32 %v514, 7
        %v516 = vsub.s32 6, %v515
        %v517 = vrot.slane %v298, %v516
        %519 = vbcast.lane.b32.xlu0 %v517, 256
        %v520 = vpop.permute.xlu0 %519
        %s522 = sor.u32 256, 8
        %523 = vbcast.lane.b32.xlu0 %v517, %s522
        %v524 = vpop.permute.xlu0 %523
        %v525 = vlaneseq
        %v526 = vshrl.u32 %v525, 7
        %v527 = vsub.s32 7, %v526
        %v528 = vrot.slane %v298, %v527
        %530 = vbcast.lane.b32.xlu0 %v528, 256
        %v531 = vpop.permute.xlu0 %530
        %s533 = sor.u32 256, 8
        %534 = vbcast.lane.b32.xlu0 %v528, %s533
        %v535 = vpop.permute.xlu0 %534
        %v536 = vlaneseq
        %v537 = vshrl.u32 %v536, 7
        %v538 = vsub.s32 0, %v537
        %v539 = vrot.slane %v358, %v538
        %v540 = vmul.f32 %v366, %v539
        %v541 = vmul.f32 %v370, %v539
        %v542 = vmul.f32 %v377, %v539
        %v543 = vmul.f32 %v381, %v539
        %v544 = vmul.f32 %v388, %v539
        %v545 = vmul.f32 %v392, %v539
        %v546 = vmul.f32 %v399, %v539
        %v547 = vmul.f32 %v403, %v539
        %v548 = vmul.f32 %v410, %v539
        %v549 = vmul.f32 %v414, %v539
        %v550 = vmul.f32 %v421, %v539
        %v551 = vmul.f32 %v425, %v539
        %v552 = vmul.f32 %v432, %v539
        %v553 = vmul.f32 %v436, %v539
        %v554 = vmul.f32 %v443, %v539
        %v555 = vmul.f32 %v447, %v539
        %v556 = vmul.f32 %v454, %v539
        %v557 = vmul.f32 %v458, %v539
        %v558 = vmul.f32 %v465, %v539
        %v559 = vmul.f32 %v469, %v539
        %v560 = vmul.f32 %v476, %v539
        %v561 = vmul.f32 %v480, %v539
        %v562 = vmul.f32 %v487, %v539
        %v563 = vmul.f32 %v491, %v539
        %v564 = vmul.f32 %v498, %v539
        %v565 = vmul.f32 %v502, %v539
        %v566 = vmul.f32 %v509, %v539
        %v567 = vmul.f32 %v513, %v539
        %v568 = vmul.f32 %v520, %v539
        %v569 = vmul.f32 %v524, %v539
        %v570 = vmul.f32 %v531, %v539
        %v571 = vmul.f32 %v535, %v539
        %v572 = vlaneseq
        %v573 = vshrl.u32 %v572, 7
        %v574 = vsub.s32 0, %v573
        %v575 = vrot.slane %v359, %v574
        %v576 = vadd.f32 %v540, %v575
        %v577 = vadd.f32 %v541, %v575
        %v578 = vadd.f32 %v542, %v575
        %v579 = vadd.f32 %v543, %v575
        %v580 = vadd.f32 %v544, %v575
        %v581 = vadd.f32 %v545, %v575
        %v582 = vadd.f32 %v546, %v575
        %v583 = vadd.f32 %v547, %v575
        %v584 = vadd.f32 %v548, %v575
        %v585 = vadd.f32 %v549, %v575
        %v586 = vadd.f32 %v550, %v575
        %v587 = vadd.f32 %v551, %v575
        %v588 = vadd.f32 %v552, %v575
        %v589 = vadd.f32 %v553, %v575
        %v590 = vadd.f32 %v554, %v575
        %v591 = vadd.f32 %v555, %v575
        %v592 = vadd.f32 %v556, %v575
        %v593 = vadd.f32 %v557, %v575
        %v594 = vadd.f32 %v558, %v575
        %v595 = vadd.f32 %v559, %v575
        %v596 = vadd.f32 %v560, %v575
        %v597 = vadd.f32 %v561, %v575
        %v598 = vadd.f32 %v562, %v575
        %v599 = vadd.f32 %v563, %v575
        %v600 = vadd.f32 %v564, %v575
        %v601 = vadd.f32 %v565, %v575
        %v602 = vadd.f32 %v566, %v575
        %v603 = vadd.f32 %v567, %v575
        %v604 = vadd.f32 %v568, %v575
        %v605 = vadd.f32 %v569, %v575
        %v606 = vadd.f32 %v570, %v575
        %v607 = vadd.f32 %v571, %v575
        %v608 = vand.u32 2147483647, %v576
        %vm609 = vcmp.le.f32.partialorder %v608, 0.7853982
        %vm610 = vcmp.lt.s32.totalorder %v576, 0
        %v611 = vand.u32 %v576, 2139095040
        %v612 = vshrl.u32 %v611, 23
        %v613 = vsub.s32 %v612, 127
        %v614 = vand.u32 2147483647, %v576
        %v615 = vand.u32 %v614, 8388607
        %v616 = vor.u32 %v615, 8388608
        %v617 = vsub.s32 0, %v616
        %v618 = vadd.s32 %v613, 1
        %vm619 = vcmp.gt.s32.totalorder %v618, 0
        %v620 = vsel %vm619, %v618, 0
        %v621 = vshrl.u32 %v620, 5
        %v622 = vand.u32 %v620, 31
        %v623 = vsub.s32 32, %v622
        %v624 = vshrl.u32 683565275, %v623
        %v625 = vshll.u32 683565275, %v622
        %v626 = vshrl.u32 2475754826, %v623
        %v627 = vor.u32 %v625, %v626
        %v628 = vshll.u32 2475754826, %v622
        %v629 = vshrl.u32 2131351028, %v623
        %v630 = vor.u32 %v628, %v629
        %v631 = vshll.u32 2131351028, %v622
        %v632 = vshrl.u32 2102212464, %v623
        %v633 = vor.u32 %v631, %v632
        %v634 = vshll.u32 2102212464, %v622
        %v635 = vshrl.u32 920167782, %v623
        %v636 = vor.u32 %v634, %v635
        %v637 = vshll.u32 920167782, %v622
        %v638 = vshrl.u32 1326507024, %v623
        %v639 = vor.u32 %v637, %v638
        %vm640 = vcmp.lt.s32.totalorder %v621, 1
        %vm641 = vcmp.lt.s32.totalorder %v621, 2
        %vm642 = vcmp.lt.s32.totalorder %v621, 3
        %vm643 = vcmp.lt.s32.totalorder %v621, 4
        %v644 = vsel %vm640, %v624, %v627
        %v645 = vsel %vm643, %v633, 2102212464
        %v646 = vsel %vm642, %v630, %v645
        %v647 = vsel %vm641, %v644, %v646
        %v648 = vsel %vm640, %v627, %v630
        %v649 = vsel %vm643, %v636, 920167782
        %v650 = vsel %vm642, %v633, %v649
        %v651 = vsel %vm641, %v648, %v650
        %v652 = vsel %vm640, %v630, %v633
        %v653 = vsel %vm643, %v639, 1326507024
        %v654 = vsel %vm642, %v636, %v653
        %v655 = vsel %vm641, %v652, %v654
        %v656 = vshll.u32 %v616, 8
        %v657 = vmul.u32.u64.compose %v656, %v655
        %v658 = vextract.low.u32 %v657
        %v659 = vextract.high.u32 %v657
        %v660 = vmul.u32.u64.compose %v656, %v651
        %v661 = vextract.low.u32 %v660
        %v662 = vextract.high.u32 %v660
        %v663 = vmul.u32 %v656, %v647
        %v664 = vadd.s32 %v659, %v661
        %vm665 = vc.u32 %v659, %v661
        %v666 = vadd.s32 %v662, 1
        %v667 = vsel %vm665, %v666, %v662
        %v668 = vadd.s32 %v663, %v667
        %v669 = vadd.s32 %v668, 536870912
        %v670 = vshrl.u32 %v669, 30
        %v671 = vshll.u32 %v670, 30
        %v672 = vsub.s32 %v668, %v671
        %vm673 = vcmp.lt.s32.totalorder %v672, 0
        %v674 = vsub.s32 0, %v672
        %v675 = vsel %vm673, %v674, %v672
        %v676 = vclz %v675
        %v677 = vsub.s32 %v676, 2
        %vm678 = vcmp.gt.s32.totalorder 0, %v677
        %v679 = vsel %vm678, 0, %v677
        %v680 = vsub.s32 32, %v679
        %v681 = vshll.u32 %v672, %v679
        %v682 = vshrl.u32 %v664, %v680
        %v683 = vor.u32 %v681, %v682
        %v684 = vsub.s32 4294967266, %v679
        %v685 = vadd.s32 %v684, 127
        %v686 = vshll.u32 %v685, 23
        %v687 = vor.u32 4788187, %v686
        %v688 = vand.u32 2147483647, %v687
        %v690 = vcvt.s32.f32 %v683
        %v691 = vmul.f32 %v690, %v688
        %v692 = vxor.u32 %v691, 2147483648
        %v693 = vsel %vm610, %v692, %v691
        %v694 = vsub.s32 4, %v670
        %v695 = vsel %vm610, %v694, %v670
        %v696 = vsel %vm609, %v576, %v693
        %v697 = vsel %vm609, 0, %v695
        %v698 = vcosq.f32.pop %v696
        %v699 = vsinq.f32.pop %v696
        %vm700 = vweird.f32 %v576
        %v701 = vadd.s32 %v697, 3
        %v702 = vand.u32 %v701, 3
        %vm703 = vcmp.lt.s32.totalorder %v702, 2
        %vm704 = vcmp.eq.s32.totalorder %v702, 0
        %v705 = vxor.u32 %v699, 2147483648
        %v706 = vsel %vm704, %v698, %v705
        %vm707 = vcmp.eq.s32.totalorder %v702, 2
        %v708 = vxor.u32 %v698, 2147483648
        %v709 = vsel %vm707, %v708, %v699
        %v710 = vsel %vm703, %v706, %v709
        %v711 = vsel %vm700, nan, %v710
        %v712 = vand.u32 2147483647, %v577
        %vm713 = vcmp.le.f32.partialorder %v712, 0.7853982
        %vm714 = vcmp.lt.s32.totalorder %v577, 0
        %v715 = vand.u32 %v577, 2139095040
        %v716 = vshrl.u32 %v715, 23
        %v717 = vsub.s32 %v716, 127
        %v718 = vand.u32 2147483647, %v577
        %v719 = vand.u32 %v718, 8388607
        %v720 = vor.u32 %v719, 8388608
        %v721 = vsub.s32 0, %v720
        %v722 = vadd.s32 %v717, 1
        %vm723 = vcmp.gt.s32.totalorder %v722, 0
        %v724 = vsel %vm723, %v722, 0
        %v725 = vshrl.u32 %v724, 5
        %v726 = vand.u32 %v724, 31
        %v727 = vsub.s32 32, %v726
        %v728 = vshrl.u32 683565275, %v727
        %v729 = vshll.u32 683565275, %v726
        %v730 = vshrl.u32 2475754826, %v727
        %v731 = vor.u32 %v729, %v730
        %v732 = vshll.u32 2475754826, %v726
        %v733 = vshrl.u32 2131351028, %v727
        %v734 = vor.u32 %v732, %v733
        %v735 = vshll.u32 2131351028, %v726
        %v736 = vshrl.u32 2102212464, %v727
        %v737 = vor.u32 %v735, %v736
        %v738 = vshll.u32 2102212464, %v726
        %v739 = vshrl.u32 920167782, %v727
        %v740 = vor.u32 %v738, %v739
        %v741 = vshll.u32 920167782, %v726
        %v742 = vshrl.u32 1326507024, %v727
        %v743 = vor.u32 %v741, %v742
        %vm744 = vcmp.lt.s32.totalorder %v725, 1
        %vm745 = vcmp.lt.s32.totalorder %v725, 2
        %vm746 = vcmp.lt.s32.totalorder %v725, 3
        %vm747 = vcmp.lt.s32.totalorder %v725, 4
        %v748 = vsel %vm744, %v728, %v731
        %v749 = vsel %vm747, %v737, 2102212464
        %v750 = vsel %vm746, %v734, %v749
        %v751 = vsel %vm745, %v748, %v750
        %v752 = vsel %vm744, %v731, %v734
        %v753 = vsel %vm747, %v740, 920167782
        %v754 = vsel %vm746, %v737, %v753
        %v755 = vsel %vm745, %v752, %v754
        %v756 = vsel %vm744, %v734, %v737
        %v757 = vsel %vm747, %v743, 1326507024
        %v758 = vsel %vm746, %v740, %v757
        %v759 = vsel %vm745, %v756, %v758
        %v760 = vshll.u32 %v720, 8
        %v761 = vmul.u32.u64.compose %v760, %v759
        %v762 = vextract.low.u32 %v761
        %v763 = vextract.high.u32 %v761
        %v764 = vmul.u32.u64.compose %v760, %v755
        %v765 = vextract.low.u32 %v764
        %v766 = vextract.high.u32 %v764
        %v767 = vmul.u32 %v760, %v751
        %v768 = vadd.s32 %v763, %v765
        %vm769 = vc.u32 %v763, %v765
        %v770 = vadd.s32 %v766, 1
        %v771 = vsel %vm769, %v770, %v766
        %v772 = vadd.s32 %v767, %v771
        %v773 = vadd.s32 %v772, 536870912
        %v774 = vshrl.u32 %v773, 30
        %v775 = vshll.u32 %v774, 30
        %v776 = vsub.s32 %v772, %v775
        %vm777 = vcmp.lt.s32.totalorder %v776, 0
        %v778 = vsub.s32 0, %v776
        %v779 = vsel %vm777, %v778, %v776
        %v780 = vclz %v779
        %v781 = vsub.s32 %v780, 2
        %vm782 = vcmp.gt.s32.totalorder 0, %v781
        %v783 = vsel %vm782, 0, %v781
        %v784 = vsub.s32 32, %v783
        %v785 = vshll.u32 %v776, %v783
        %v786 = vshrl.u32 %v768, %v784
        %v787 = vor.u32 %v785, %v786
        %v788 = vsub.s32 4294967266, %v783
        %v789 = vadd.s32 %v788, 127
        %v790 = vshll.u32 %v789, 23
        %v791 = vor.u32 4788187, %v790
        %v792 = vand.u32 2147483647, %v791
        %v794 = vcvt.s32.f32 %v787
        %v795 = vmul.f32 %v794, %v792
        %v796 = vxor.u32 %v795, 2147483648
        %v797 = vsel %vm714, %v796, %v795
        %v798 = vsub.s32 4, %v774
        %v799 = vsel %vm714, %v798, %v774
        %v800 = vsel %vm713, %v577, %v797
        %v801 = vsel %vm713, 0, %v799
        %v802 = vcosq.f32.pop %v800
        %v803 = vsinq.f32.pop %v800
        %vm804 = vweird.f32 %v577
        %v805 = vadd.s32 %v801, 3
        %v806 = vand.u32 %v805, 3
        %vm807 = vcmp.lt.s32.totalorder %v806, 2
        %vm808 = vcmp.eq.s32.totalorder %v806, 0
        %v809 = vxor.u32 %v803, 2147483648
        %v810 = vsel %vm808, %v802, %v809
        %vm811 = vcmp.eq.s32.totalorder %v806, 2
        %v812 = vxor.u32 %v802, 2147483648
        %v813 = vsel %vm811, %v812, %v803
        %v814 = vsel %vm807, %v810, %v813
        %v815 = vsel %vm804, nan, %v814
        %v816 = vand.u32 2147483647, %v578
        %vm817 = vcmp.le.f32.partialorder %v816, 0.7853982
        %vm818 = vcmp.lt.s32.totalorder %v578, 0
        %v819 = vand.u32 %v578, 2139095040
        %v820 = vshrl.u32 %v819, 23
        %v821 = vsub.s32 %v820, 127
        %v822 = vand.u32 2147483647, %v578
        %v823 = vand.u32 %v822, 8388607
        %v824 = vor.u32 %v823, 8388608
        %v825 = vsub.s32 0, %v824
        %v826 = vadd.s32 %v821, 1
        %vm827 = vcmp.gt.s32.totalorder %v826, 0
        %v828 = vsel %vm827, %v826, 0
        %v829 = vshrl.u32 %v828, 5
        %v830 = vand.u32 %v828, 31
        %v831 = vsub.s32 32, %v830
        %v832 = vshrl.u32 683565275, %v831
        %v833 = vshll.u32 683565275, %v830
        %v834 = vshrl.u32 2475754826, %v831
        %v835 = vor.u32 %v833, %v834
        %v836 = vshll.u32 2475754826, %v830
        %v837 = vshrl.u32 2131351028, %v831
        %v838 = vor.u32 %v836, %v837
        %v839 = vshll.u32 2131351028, %v830
        %v840 = vshrl.u32 2102212464, %v831
        %v841 = vor.u32 %v839, %v840
        %v842 = vshll.u32 2102212464, %v830
        %v843 = vshrl.u32 920167782, %v831
        %v844 = vor.u32 %v842, %v843
        %v845 = vshll.u32 920167782, %v830
        %v846 = vshrl.u32 1326507024, %v831
        %v847 = vor.u32 %v845, %v846
        %vm848 = vcmp.lt.s32.totalorder %v829, 1
        %vm849 = vcmp.lt.s32.totalorder %v829, 2
        %vm850 = vcmp.lt.s32.totalorder %v829, 3
        %vm851 = vcmp.lt.s32.totalorder %v829, 4
        %v852 = vsel %vm848, %v832, %v835
        %v853 = vsel %vm851, %v841, 2102212464
        %v854 = vsel %vm850, %v838, %v853
        %v855 = vsel %vm849, %v852, %v854
        %v856 = vsel %vm848, %v835, %v838
        %v857 = vsel %vm851, %v844, 920167782
        %v858 = vsel %vm850, %v841, %v857
        %v859 = vsel %vm849, %v856, %v858
        %v860 = vsel %vm848, %v838, %v841
        %v861 = vsel %vm851, %v847, 1326507024
        %v862 = vsel %vm850, %v844, %v861
        %v863 = vsel %vm849, %v860, %v862
        %v864 = vshll.u32 %v824, 8
        %v865 = vmul.u32.u64.compose %v864, %v863
        %v866 = vextract.low.u32 %v865
        %v867 = vextract.high.u32 %v865
        %v868 = vmul.u32.u64.compose %v864, %v859
        %v869 = vextract.low.u32 %v868
        %v870 = vextract.high.u32 %v868
        %v871 = vmul.u32 %v864, %v855
        %v872 = vadd.s32 %v867, %v869
        %vm873 = vc.u32 %v867, %v869
        %v874 = vadd.s32 %v870, 1
        %v875 = vsel %vm873, %v874, %v870
        %v876 = vadd.s32 %v871, %v875
        %v877 = vadd.s32 %v876, 536870912
        %v878 = vshrl.u32 %v877, 30
        %v879 = vshll.u32 %v878, 30
        %v880 = vsub.s32 %v876, %v879
        %vm881 = vcmp.lt.s32.totalorder %v880, 0
        %v882 = vsub.s32 0, %v880
        %v883 = vsel %vm881, %v882, %v880
        %v884 = vclz %v883
        %v885 = vsub.s32 %v884, 2
        %vm886 = vcmp.gt.s32.totalorder 0, %v885
        %v887 = vsel %vm886, 0, %v885
        %v888 = vsub.s32 32, %v887
        %v889 = vshll.u32 %v880, %v887
        %v890 = vshrl.u32 %v872, %v888
        %v891 = vor.u32 %v889, %v890
        %v892 = vsub.s32 4294967266, %v887
        %v893 = vadd.s32 %v892, 127
        %v894 = vshll.u32 %v893, 23
        %v895 = vor.u32 4788187, %v894
        %v896 = vand.u32 2147483647, %v895
        %v898 = vcvt.s32.f32 %v891
        %v899 = vmul.f32 %v898, %v896
        %v900 = vxor.u32 %v899, 2147483648
        %v901 = vsel %vm818, %v900, %v899
        %v902 = vsub.s32 4, %v878
        %v903 = vsel %vm818, %v902, %v878
        %v904 = vsel %vm817, %v578, %v901
        %v905 = vsel %vm817, 0, %v903
        %v906 = vcosq.f32.pop %v904
        %v907 = vsinq.f32.pop %v904
        %vm908 = vweird.f32 %v578
        %v909 = vadd.s32 %v905, 3
        %v910 = vand.u32 %v909, 3
        %vm911 = vcmp.lt.s32.totalorder %v910, 2
        %vm912 = vcmp.eq.s32.totalorder %v910, 0
        %v913 = vxor.u32 %v907, 2147483648
        %v914 = vsel %vm912, %v906, %v913
        %vm915 = vcmp.eq.s32.totalorder %v910, 2
        %v916 = vxor.u32 %v906, 2147483648
        %v917 = vsel %vm915, %v916, %v907
        %v918 = vsel %vm911, %v914, %v917
        %v919 = vsel %vm908, nan, %v918
        %v920 = vand.u32 2147483647, %v579
        %vm921 = vcmp.le.f32.partialorder %v920, 0.7853982
        %vm922 = vcmp.lt.s32.totalorder %v579, 0
        %v923 = vand.u32 %v579, 2139095040
        %v924 = vshrl.u32 %v923, 23
        %v925 = vsub.s32 %v924, 127
        %v926 = vand.u32 2147483647, %v579
        %v927 = vand.u32 %v926, 8388607
        %v928 = vor.u32 %v927, 8388608
        %v929 = vsub.s32 0, %v928
        %v930 = vadd.s32 %v925, 1
        %vm931 = vcmp.gt.s32.totalorder %v930, 0
        %v932 = vsel %vm931, %v930, 0
        %v933 = vshrl.u32 %v932, 5
        %v934 = vand.u32 %v932, 31
        %v935 = vsub.s32 32, %v934
        %v936 = vshrl.u32 683565275, %v935
        %v937 = vshll.u32 683565275, %v934
        %v938 = vshrl.u32 2475754826, %v935
        %v939 = vor.u32 %v937, %v938
        %v940 = vshll.u32 2475754826, %v934
        %v941 = vshrl.u32 2131351028, %v935
        %v942 = vor.u32 %v940, %v941
        %v943 = vshll.u32 2131351028, %v934
        %v944 = vshrl.u32 2102212464, %v935
        %v945 = vor.u32 %v943, %v944
        %v946 = vshll.u32 2102212464, %v934
        %v947 = vshrl.u32 920167782, %v935
        %v948 = vor.u32 %v946, %v947
        %v949 = vshll.u32 920167782, %v934
        %v950 = vshrl.u32 1326507024, %v935
        %v951 = vor.u32 %v949, %v950
        %vm952 = vcmp.lt.s32.totalorder %v933, 1
        %vm953 = vcmp.lt.s32.totalorder %v933, 2
        %vm954 = vcmp.lt.s32.totalorder %v933, 3
        %vm955 = vcmp.lt.s32.totalorder %v933, 4
        %v956 = vsel %vm952, %v936, %v939
        %v957 = vsel %vm955, %v945, 2102212464
        %v958 = vsel %vm954, %v942, %v957
        %v959 = vsel %vm953, %v956, %v958
        %v960 = vsel %vm952, %v939, %v942
        %v961 = vsel %vm955, %v948, 920167782
        %v962 = vsel %vm954, %v945, %v961
        %v963 = vsel %vm953, %v960, %v962
        %v964 = vsel %vm952, %v942, %v945
        %v965 = vsel %vm955, %v951, 1326507024
        %v966 = vsel %vm954, %v948, %v965
        %v967 = vsel %vm953, %v964, %v966
        %v968 = vshll.u32 %v928, 8
        %v969 = vmul.u32.u64.compose %v968, %v967
        %v970 = vextract.low.u32 %v969
        %v971 = vextract.high.u32 %v969
        %v972 = vmul.u32.u64.compose %v968, %v963
        %v973 = vextract.low.u32 %v972
        %v974 = vextract.high.u32 %v972
        %v975 = vmul.u32 %v968, %v959
        %v976 = vadd.s32 %v971, %v973
        %vm977 = vc.u32 %v971, %v973
        %v978 = vadd.s32 %v974, 1
        %v979 = vsel %vm977, %v978, %v974
        %v980 = vadd.s32 %v975, %v979
        %v981 = vadd.s32 %v980, 536870912
        %v982 = vshrl.u32 %v981, 30
        %v983 = vshll.u32 %v982, 30
        %v984 = vsub.s32 %v980, %v983
        %vm985 = vcmp.lt.s32.totalorder %v984, 0
        %v986 = vsub.s32 0, %v984
        %v987 = vsel %vm985, %v986, %v984
        %v988 = vclz %v987
        %v989 = vsub.s32 %v988, 2
        %vm990 = vcmp.gt.s32.totalorder 0, %v989
        %v991 = vsel %vm990, 0, %v989
        %v992 = vsub.s32 32, %v991
        %v993 = vshll.u32 %v984, %v991
        %v994 = vshrl.u32 %v976, %v992
        %v995 = vor.u32 %v993, %v994
        %v996 = vsub.s32 4294967266, %v991
        %v997 = vadd.s32 %v996, 127
        %v998 = vshll.u32 %v997, 23
        %v999 = vor.u32 4788187, %v998
        %v1000 = vand.u32 2147483647, %v999
        %v1002 = vcvt.s32.f32 %v995
        %v1003 = vmul.f32 %v1002, %v1000
        %v1004 = vxor.u32 %v1003, 2147483648
        %v1005 = vsel %vm922, %v1004, %v1003
        %v1006 = vsub.s32 4, %v982
        %v1007 = vsel %vm922, %v1006, %v982
        %v1008 = vsel %vm921, %v579, %v1005
        %v1009 = vsel %vm921, 0, %v1007
        %v1010 = vcosq.f32.pop %v1008
        %v1011 = vsinq.f32.pop %v1008
        %vm1012 = vweird.f32 %v579
        %v1013 = vadd.s32 %v1009, 3
        %v1014 = vand.u32 %v1013, 3
        %vm1015 = vcmp.lt.s32.totalorder %v1014, 2
        %vm1016 = vcmp.eq.s32.totalorder %v1014, 0
        %v1017 = vxor.u32 %v1011, 2147483648
        %v1018 = vsel %vm1016, %v1010, %v1017
        %vm1019 = vcmp.eq.s32.totalorder %v1014, 2
        %v1020 = vxor.u32 %v1010, 2147483648
        %v1021 = vsel %vm1019, %v1020, %v1011
        %v1022 = vsel %vm1015, %v1018, %v1021
        %v1023 = vsel %vm1012, nan, %v1022
        %v1024 = vand.u32 2147483647, %v580
        %vm1025 = vcmp.le.f32.partialorder %v1024, 0.7853982
        %vm1026 = vcmp.lt.s32.totalorder %v580, 0
        %v1027 = vand.u32 %v580, 2139095040
        %v1028 = vshrl.u32 %v1027, 23
        %v1029 = vsub.s32 %v1028, 127
        %v1030 = vand.u32 2147483647, %v580
        %v1031 = vand.u32 %v1030, 8388607
        %v1032 = vor.u32 %v1031, 8388608
        %v1033 = vsub.s32 0, %v1032
        %v1034 = vadd.s32 %v1029, 1
        %vm1035 = vcmp.gt.s32.totalorder %v1034, 0
        %v1036 = vsel %vm1035, %v1034, 0
        %v1037 = vshrl.u32 %v1036, 5
        %v1038 = vand.u32 %v1036, 31
        %v1039 = vsub.s32 32, %v1038
        %v1040 = vshrl.u32 683565275, %v1039
        %v1041 = vshll.u32 683565275, %v1038
        %v1042 = vshrl.u32 2475754826, %v1039
        %v1043 = vor.u32 %v1041, %v1042
        %v1044 = vshll.u32 2475754826, %v1038
        %v1045 = vshrl.u32 2131351028, %v1039
        %v1046 = vor.u32 %v1044, %v1045
        %v1047 = vshll.u32 2131351028, %v1038
        %v1048 = vshrl.u32 2102212464, %v1039
        %v1049 = vor.u32 %v1047, %v1048
        %v1050 = vshll.u32 2102212464, %v1038
        %v1051 = vshrl.u32 920167782, %v1039
        %v1052 = vor.u32 %v1050, %v1051
        %v1053 = vshll.u32 920167782, %v1038
        %v1054 = vshrl.u32 1326507024, %v1039
        %v1055 = vor.u32 %v1053, %v1054
        %vm1056 = vcmp.lt.s32.totalorder %v1037, 1
        %vm1057 = vcmp.lt.s32.totalorder %v1037, 2
        %vm1058 = vcmp.lt.s32.totalorder %v1037, 3
        %vm1059 = vcmp.lt.s32.totalorder %v1037, 4
        %v1060 = vsel %vm1056, %v1040, %v1043
        %v1061 = vsel %vm1059, %v1049, 2102212464
        %v1062 = vsel %vm1058, %v1046, %v1061
        %v1063 = vsel %vm1057, %v1060, %v1062
        %v1064 = vsel %vm1056, %v1043, %v1046
        %v1065 = vsel %vm1059, %v1052, 920167782
        %v1066 = vsel %vm1058, %v1049, %v1065
        %v1067 = vsel %vm1057, %v1064, %v1066
        %v1068 = vsel %vm1056, %v1046, %v1049
        %v1069 = vsel %vm1059, %v1055, 1326507024
        %v1070 = vsel %vm1058, %v1052, %v1069
        %v1071 = vsel %vm1057, %v1068, %v1070
        %v1072 = vshll.u32 %v1032, 8
        %v1073 = vmul.u32.u64.compose %v1072, %v1071
        %v1074 = vextract.low.u32 %v1073
        %v1075 = vextract.high.u32 %v1073
        %v1076 = vmul.u32.u64.compose %v1072, %v1067
        %v1077 = vextract.low.u32 %v1076
        %v1078 = vextract.high.u32 %v1076
        %v1079 = vmul.u32 %v1072, %v1063
        %v1080 = vadd.s32 %v1075, %v1077
        %vm1081 = vc.u32 %v1075, %v1077
        %v1082 = vadd.s32 %v1078, 1
        %v1083 = vsel %vm1081, %v1082, %v1078
        %v1084 = vadd.s32 %v1079, %v1083
        %v1085 = vadd.s32 %v1084, 536870912
        %v1086 = vshrl.u32 %v1085, 30
        %v1087 = vshll.u32 %v1086, 30
        %v1088 = vsub.s32 %v1084, %v1087
        %vm1089 = vcmp.lt.s32.totalorder %v1088, 0
        %v1090 = vsub.s32 0, %v1088
        %v1091 = vsel %vm1089, %v1090, %v1088
        %v1092 = vclz %v1091
        %v1093 = vsub.s32 %v1092, 2
        %vm1094 = vcmp.gt.s32.totalorder 0, %v1093
        %v1095 = vsel %vm1094, 0, %v1093
        %v1096 = vsub.s32 32, %v1095
        %v1097 = vshll.u32 %v1088, %v1095
        %v1098 = vshrl.u32 %v1080, %v1096
        %v1099 = vor.u32 %v1097, %v1098
        %v1100 = vsub.s32 4294967266, %v1095
        %v1101 = vadd.s32 %v1100, 127
        %v1102 = vshll.u32 %v1101, 23
        %v1103 = vor.u32 4788187, %v1102
        %v1104 = vand.u32 2147483647, %v1103
        %v1106 = vcvt.s32.f32 %v1099
        %v1107 = vmul.f32 %v1106, %v1104
        %v1108 = vxor.u32 %v1107, 2147483648
        %v1109 = vsel %vm1026, %v1108, %v1107
        %v1110 = vsub.s32 4, %v1086
        %v1111 = vsel %vm1026, %v1110, %v1086
        %v1112 = vsel %vm1025, %v580, %v1109
        %v1113 = vsel %vm1025, 0, %v1111
        %v1114 = vcosq.f32.pop %v1112
        %v1115 = vsinq.f32.pop %v1112
        %vm1116 = vweird.f32 %v580
        %v1117 = vadd.s32 %v1113, 3
        %v1118 = vand.u32 %v1117, 3
        %vm1119 = vcmp.lt.s32.totalorder %v1118, 2
        %vm1120 = vcmp.eq.s32.totalorder %v1118, 0
        %v1121 = vxor.u32 %v1115, 2147483648
        %v1122 = vsel %vm1120, %v1114, %v1121
        %vm1123 = vcmp.eq.s32.totalorder %v1118, 2
        %v1124 = vxor.u32 %v1114, 2147483648
        %v1125 = vsel %vm1123, %v1124, %v1115
        %v1126 = vsel %vm1119, %v1122, %v1125
        %v1127 = vsel %vm1116, nan, %v1126
        %v1128 = vand.u32 2147483647, %v581
        %vm1129 = vcmp.le.f32.partialorder %v1128, 0.7853982
        %vm1130 = vcmp.lt.s32.totalorder %v581, 0
        %v1131 = vand.u32 %v581, 2139095040
        %v1132 = vshrl.u32 %v1131, 23
        %v1133 = vsub.s32 %v1132, 127
        %v1134 = vand.u32 2147483647, %v581
        %v1135 = vand.u32 %v1134, 8388607
        %v1136 = vor.u32 %v1135, 8388608
        %v1137 = vsub.s32 0, %v1136
        %v1138 = vadd.s32 %v1133, 1
        %vm1139 = vcmp.gt.s32.totalorder %v1138, 0
        %v1140 = vsel %vm1139, %v1138, 0
        %v1141 = vshrl.u32 %v1140, 5
        %v1142 = vand.u32 %v1140, 31
        %v1143 = vsub.s32 32, %v1142
        %v1144 = vshrl.u32 683565275, %v1143
        %v1145 = vshll.u32 683565275, %v1142
        %v1146 = vshrl.u32 2475754826, %v1143
        %v1147 = vor.u32 %v1145, %v1146
        %v1148 = vshll.u32 2475754826, %v1142
        %v1149 = vshrl.u32 2131351028, %v1143
        %v1150 = vor.u32 %v1148, %v1149
        %v1151 = vshll.u32 2131351028, %v1142
        %v1152 = vshrl.u32 2102212464, %v1143
        %v1153 = vor.u32 %v1151, %v1152
        %v1154 = vshll.u32 2102212464, %v1142
        %v1155 = vshrl.u32 920167782, %v1143
        %v1156 = vor.u32 %v1154, %v1155
        %v1157 = vshll.u32 920167782, %v1142
        %v1158 = vshrl.u32 1326507024, %v1143
        %v1159 = vor.u32 %v1157, %v1158
        %vm1160 = vcmp.lt.s32.totalorder %v1141, 1
        %vm1161 = vcmp.lt.s32.totalorder %v1141, 2
        %vm1162 = vcmp.lt.s32.totalorder %v1141, 3
        %vm1163 = vcmp.lt.s32.totalorder %v1141, 4
        %v1164 = vsel %vm1160, %v1144, %v1147
        %v1165 = vsel %vm1163, %v1153, 2102212464
        %v1166 = vsel %vm1162, %v1150, %v1165
        %v1167 = vsel %vm1161, %v1164, %v1166
        %v1168 = vsel %vm1160, %v1147, %v1150
        %v1169 = vsel %vm1163, %v1156, 920167782
        %v1170 = vsel %vm1162, %v1153, %v1169
        %v1171 = vsel %vm1161, %v1168, %v1170
        %v1172 = vsel %vm1160, %v1150, %v1153
        %v1173 = vsel %vm1163, %v1159, 1326507024
        %v1174 = vsel %vm1162, %v1156, %v1173
        %v1175 = vsel %vm1161, %v1172, %v1174
        %v1176 = vshll.u32 %v1136, 8
        %v1177 = vmul.u32.u64.compose %v1176, %v1175
        %v1178 = vextract.low.u32 %v1177
        %v1179 = vextract.high.u32 %v1177
        %v1180 = vmul.u32.u64.compose %v1176, %v1171
        %v1181 = vextract.low.u32 %v1180
        %v1182 = vextract.high.u32 %v1180
        %v1183 = vmul.u32 %v1176, %v1167
        %v1184 = vadd.s32 %v1179, %v1181
        %vm1185 = vc.u32 %v1179, %v1181
        %v1186 = vadd.s32 %v1182, 1
        %v1187 = vsel %vm1185, %v1186, %v1182
        %v1188 = vadd.s32 %v1183, %v1187
        %v1189 = vadd.s32 %v1188, 536870912
        %v1190 = vshrl.u32 %v1189, 30
        %v1191 = vshll.u32 %v1190, 30
        %v1192 = vsub.s32 %v1188, %v1191
        %vm1193 = vcmp.lt.s32.totalorder %v1192, 0
        %v1194 = vsub.s32 0, %v1192
        %v1195 = vsel %vm1193, %v1194, %v1192
        %v1196 = vclz %v1195
        %v1197 = vsub.s32 %v1196, 2
        %vm1198 = vcmp.gt.s32.totalorder 0, %v1197
        %v1199 = vsel %vm1198, 0, %v1197
        %v1200 = vsub.s32 32, %v1199
        %v1201 = vshll.u32 %v1192, %v1199
        %v1202 = vshrl.u32 %v1184, %v1200
        %v1203 = vor.u32 %v1201, %v1202
        %v1204 = vsub.s32 4294967266, %v1199
        %v1205 = vadd.s32 %v1204, 127
        %v1206 = vshll.u32 %v1205, 23
        %v1207 = vor.u32 4788187, %v1206
        %v1208 = vand.u32 2147483647, %v1207
        %v1210 = vcvt.s32.f32 %v1203
        %v1211 = vmul.f32 %v1210, %v1208
        %v1212 = vxor.u32 %v1211, 2147483648
        %v1213 = vsel %vm1130, %v1212, %v1211
        %v1214 = vsub.s32 4, %v1190
        %v1215 = vsel %vm1130, %v1214, %v1190
        %v1216 = vsel %vm1129, %v581, %v1213
        %v1217 = vsel %vm1129, 0, %v1215
        %v1218 = vcosq.f32.pop %v1216
        %v1219 = vsinq.f32.pop %v1216
        %vm1220 = vweird.f32 %v581
        %v1221 = vadd.s32 %v1217, 3
        %v1222 = vand.u32 %v1221, 3
        %vm1223 = vcmp.lt.s32.totalorder %v1222, 2
        %vm1224 = vcmp.eq.s32.totalorder %v1222, 0
        %v1225 = vxor.u32 %v1219, 2147483648
        %v1226 = vsel %vm1224, %v1218, %v1225
        %vm1227 = vcmp.eq.s32.totalorder %v1222, 2
        %v1228 = vxor.u32 %v1218, 2147483648
        %v1229 = vsel %vm1227, %v1228, %v1219
        %v1230 = vsel %vm1223, %v1226, %v1229
        %v1231 = vsel %vm1220, nan, %v1230
        %v1232 = vand.u32 2147483647, %v582
        %vm1233 = vcmp.le.f32.partialorder %v1232, 0.7853982
        %vm1234 = vcmp.lt.s32.totalorder %v582, 0
        %v1235 = vand.u32 %v582, 2139095040
        %v1236 = vshrl.u32 %v1235, 23
        %v1237 = vsub.s32 %v1236, 127
        %v1238 = vand.u32 2147483647, %v582
        %v1239 = vand.u32 %v1238, 8388607
        %v1240 = vor.u32 %v1239, 8388608
        %v1241 = vsub.s32 0, %v1240
        %v1242 = vadd.s32 %v1237, 1
        %vm1243 = vcmp.gt.s32.totalorder %v1242, 0
        %v1244 = vsel %vm1243, %v1242, 0
        %v1245 = vshrl.u32 %v1244, 5
        %v1246 = vand.u32 %v1244, 31
        %v1247 = vsub.s32 32, %v1246
        %v1248 = vshrl.u32 683565275, %v1247
        %v1249 = vshll.u32 683565275, %v1246
        %v1250 = vshrl.u32 2475754826, %v1247
        %v1251 = vor.u32 %v1249, %v1250
        %v1252 = vshll.u32 2475754826, %v1246
        %v1253 = vshrl.u32 2131351028, %v1247
        %v1254 = vor.u32 %v1252, %v1253
        %v1255 = vshll.u32 2131351028, %v1246
        %v1256 = vshrl.u32 2102212464, %v1247
        %v1257 = vor.u32 %v1255, %v1256
        %v1258 = vshll.u32 2102212464, %v1246
        %v1259 = vshrl.u32 920167782, %v1247
        %v1260 = vor.u32 %v1258, %v1259
        %v1261 = vshll.u32 920167782, %v1246
        %v1262 = vshrl.u32 1326507024, %v1247
        %v1263 = vor.u32 %v1261, %v1262
        %vm1264 = vcmp.lt.s32.totalorder %v1245, 1
        %vm1265 = vcmp.lt.s32.totalorder %v1245, 2
        %vm1266 = vcmp.lt.s32.totalorder %v1245, 3
        %vm1267 = vcmp.lt.s32.totalorder %v1245, 4
        %v1268 = vsel %vm1264, %v1248, %v1251
        %v1269 = vsel %vm1267, %v1257, 2102212464
        %v1270 = vsel %vm1266, %v1254, %v1269
        %v1271 = vsel %vm1265, %v1268, %v1270
        %v1272 = vsel %vm1264, %v1251, %v1254
        %v1273 = vsel %vm1267, %v1260, 920167782
        %v1274 = vsel %vm1266, %v1257, %v1273
        %v1275 = vsel %vm1265, %v1272, %v1274
        %v1276 = vsel %vm1264, %v1254, %v1257
        %v1277 = vsel %vm1267, %v1263, 1326507024
        %v1278 = vsel %vm1266, %v1260, %v1277
        %v1279 = vsel %vm1265, %v1276, %v1278
        %v1280 = vshll.u32 %v1240, 8
        %v1281 = vmul.u32.u64.compose %v1280, %v1279
        %v1282 = vextract.low.u32 %v1281
        %v1283 = vextract.high.u32 %v1281
        %v1284 = vmul.u32.u64.compose %v1280, %v1275
        %v1285 = vextract.low.u32 %v1284
        %v1286 = vextract.high.u32 %v1284
        %v1287 = vmul.u32 %v1280, %v1271
        %v1288 = vadd.s32 %v1283, %v1285
        %vm1289 = vc.u32 %v1283, %v1285
        %v1290 = vadd.s32 %v1286, 1
        %v1291 = vsel %vm1289, %v1290, %v1286
        %v1292 = vadd.s32 %v1287, %v1291
        %v1293 = vadd.s32 %v1292, 536870912
        %v1294 = vshrl.u32 %v1293, 30
        %v1295 = vshll.u32 %v1294, 30
        %v1296 = vsub.s32 %v1292, %v1295
        %vm1297 = vcmp.lt.s32.totalorder %v1296, 0
        %v1298 = vsub.s32 0, %v1296
        %v1299 = vsel %vm1297, %v1298, %v1296
        %v1300 = vclz %v1299
        %v1301 = vsub.s32 %v1300, 2
        %vm1302 = vcmp.gt.s32.totalorder 0, %v1301
        %v1303 = vsel %vm1302, 0, %v1301
        %v1304 = vsub.s32 32, %v1303
        %v1305 = vshll.u32 %v1296, %v1303
        %v1306 = vshrl.u32 %v1288, %v1304
        %v1307 = vor.u32 %v1305, %v1306
        %v1308 = vsub.s32 4294967266, %v1303
        %v1309 = vadd.s32 %v1308, 127
        %v1310 = vshll.u32 %v1309, 23
        %v1311 = vor.u32 4788187, %v1310
        %v1312 = vand.u32 2147483647, %v1311
        %v1314 = vcvt.s32.f32 %v1307
        %v1315 = vmul.f32 %v1314, %v1312
        %v1316 = vxor.u32 %v1315, 2147483648
        %v1317 = vsel %vm1234, %v1316, %v1315
        %v1318 = vsub.s32 4, %v1294
        %v1319 = vsel %vm1234, %v1318, %v1294
        %v1320 = vsel %vm1233, %v582, %v1317
        %v1321 = vsel %vm1233, 0, %v1319
        %v1322 = vcosq.f32.pop %v1320
        %v1323 = vsinq.f32.pop %v1320
        %vm1324 = vweird.f32 %v582
        %v1325 = vadd.s32 %v1321, 3
        %v1326 = vand.u32 %v1325, 3
        %vm1327 = vcmp.lt.s32.totalorder %v1326, 2
        %vm1328 = vcmp.eq.s32.totalorder %v1326, 0
        %v1329 = vxor.u32 %v1323, 2147483648
        %v1330 = vsel %vm1328, %v1322, %v1329
        %vm1331 = vcmp.eq.s32.totalorder %v1326, 2
        %v1332 = vxor.u32 %v1322, 2147483648
        %v1333 = vsel %vm1331, %v1332, %v1323
        %v1334 = vsel %vm1327, %v1330, %v1333
        %v1335 = vsel %vm1324, nan, %v1334
        %v1336 = vand.u32 2147483647, %v583
        %vm1337 = vcmp.le.f32.partialorder %v1336, 0.7853982
        %vm1338 = vcmp.lt.s32.totalorder %v583, 0
        %v1339 = vand.u32 %v583, 2139095040
        %v1340 = vshrl.u32 %v1339, 23
        %v1341 = vsub.s32 %v1340, 127
        %v1342 = vand.u32 2147483647, %v583
        %v1343 = vand.u32 %v1342, 8388607
        %v1344 = vor.u32 %v1343, 8388608
        %v1345 = vsub.s32 0, %v1344
        %v1346 = vadd.s32 %v1341, 1
        %vm1347 = vcmp.gt.s32.totalorder %v1346, 0
        %v1348 = vsel %vm1347, %v1346, 0
        %v1349 = vshrl.u32 %v1348, 5
        %v1350 = vand.u32 %v1348, 31
        %v1351 = vsub.s32 32, %v1350
        %v1352 = vshrl.u32 683565275, %v1351
        %v1353 = vshll.u32 683565275, %v1350
        %v1354 = vshrl.u32 2475754826, %v1351
        %v1355 = vor.u32 %v1353, %v1354
        %v1356 = vshll.u32 2475754826, %v1350
        %v1357 = vshrl.u32 2131351028, %v1351
        %v1358 = vor.u32 %v1356, %v1357
        %v1359 = vshll.u32 2131351028, %v1350
        %v1360 = vshrl.u32 2102212464, %v1351
        %v1361 = vor.u32 %v1359, %v1360
        %v1362 = vshll.u32 2102212464, %v1350
        %v1363 = vshrl.u32 920167782, %v1351
        %v1364 = vor.u32 %v1362, %v1363
        %v1365 = vshll.u32 920167782, %v1350
        %v1366 = vshrl.u32 1326507024, %v1351
        %v1367 = vor.u32 %v1365, %v1366
        %vm1368 = vcmp.lt.s32.totalorder %v1349, 1
        %vm1369 = vcmp.lt.s32.totalorder %v1349, 2
        %vm1370 = vcmp.lt.s32.totalorder %v1349, 3
        %vm1371 = vcmp.lt.s32.totalorder %v1349, 4
        %v1372 = vsel %vm1368, %v1352, %v1355
        %v1373 = vsel %vm1371, %v1361, 2102212464
        %v1374 = vsel %vm1370, %v1358, %v1373
        %v1375 = vsel %vm1369, %v1372, %v1374
        %v1376 = vsel %vm1368, %v1355, %v1358
        %v1377 = vsel %vm1371, %v1364, 920167782
        %v1378 = vsel %vm1370, %v1361, %v1377
        %v1379 = vsel %vm1369, %v1376, %v1378
        %v1380 = vsel %vm1368, %v1358, %v1361
        %v1381 = vsel %vm1371, %v1367, 1326507024
        %v1382 = vsel %vm1370, %v1364, %v1381
        %v1383 = vsel %vm1369, %v1380, %v1382
        %v1384 = vshll.u32 %v1344, 8
        %v1385 = vmul.u32.u64.compose %v1384, %v1383
        %v1386 = vextract.low.u32 %v1385
        %v1387 = vextract.high.u32 %v1385
        %v1388 = vmul.u32.u64.compose %v1384, %v1379
        %v1389 = vextract.low.u32 %v1388
        %v1390 = vextract.high.u32 %v1388
        %v1391 = vmul.u32 %v1384, %v1375
        %v1392 = vadd.s32 %v1387, %v1389
        %vm1393 = vc.u32 %v1387, %v1389
        %v1394 = vadd.s32 %v1390, 1
        %v1395 = vsel %vm1393, %v1394, %v1390
        %v1396 = vadd.s32 %v1391, %v1395
        %v1397 = vadd.s32 %v1396, 536870912
        %v1398 = vshrl.u32 %v1397, 30
        %v1399 = vshll.u32 %v1398, 30
        %v1400 = vsub.s32 %v1396, %v1399
        %vm1401 = vcmp.lt.s32.totalorder %v1400, 0
        %v1402 = vsub.s32 0, %v1400
        %v1403 = vsel %vm1401, %v1402, %v1400
        %v1404 = vclz %v1403
        %v1405 = vsub.s32 %v1404, 2
        %vm1406 = vcmp.gt.s32.totalorder 0, %v1405
        %v1407 = vsel %vm1406, 0, %v1405
        %v1408 = vsub.s32 32, %v1407
        %v1409 = vshll.u32 %v1400, %v1407
        %v1410 = vshrl.u32 %v1392, %v1408
        %v1411 = vor.u32 %v1409, %v1410
        %v1412 = vsub.s32 4294967266, %v1407
        %v1413 = vadd.s32 %v1412, 127
        %v1414 = vshll.u32 %v1413, 23
        %v1415 = vor.u32 4788187, %v1414
        %v1416 = vand.u32 2147483647, %v1415
        %v1418 = vcvt.s32.f32 %v1411
        %v1419 = vmul.f32 %v1418, %v1416
        %v1420 = vxor.u32 %v1419, 2147483648
        %v1421 = vsel %vm1338, %v1420, %v1419
        %v1422 = vsub.s32 4, %v1398
        %v1423 = vsel %vm1338, %v1422, %v1398
        %v1424 = vsel %vm1337, %v583, %v1421
        %v1425 = vsel %vm1337, 0, %v1423
        %v1426 = vcosq.f32.pop %v1424
        %v1427 = vsinq.f32.pop %v1424
        %vm1428 = vweird.f32 %v583
        %v1429 = vadd.s32 %v1425, 3
        %v1430 = vand.u32 %v1429, 3
        %vm1431 = vcmp.lt.s32.totalorder %v1430, 2
        %vm1432 = vcmp.eq.s32.totalorder %v1430, 0
        %v1433 = vxor.u32 %v1427, 2147483648
        %v1434 = vsel %vm1432, %v1426, %v1433
        %vm1435 = vcmp.eq.s32.totalorder %v1430, 2
        %v1436 = vxor.u32 %v1426, 2147483648
        %v1437 = vsel %vm1435, %v1436, %v1427
        %v1438 = vsel %vm1431, %v1434, %v1437
        %v1439 = vsel %vm1428, nan, %v1438
        %v1440 = vand.u32 2147483647, %v584
        %vm1441 = vcmp.le.f32.partialorder %v1440, 0.7853982
        %vm1442 = vcmp.lt.s32.totalorder %v584, 0
        %v1443 = vand.u32 %v584, 2139095040
        %v1444 = vshrl.u32 %v1443, 23
        %v1445 = vsub.s32 %v1444, 127
        %v1446 = vand.u32 2147483647, %v584
        %v1447 = vand.u32 %v1446, 8388607
        %v1448 = vor.u32 %v1447, 8388608
        %v1449 = vsub.s32 0, %v1448
        %v1450 = vadd.s32 %v1445, 1
        %vm1451 = vcmp.gt.s32.totalorder %v1450, 0
        %v1452 = vsel %vm1451, %v1450, 0
        %v1453 = vshrl.u32 %v1452, 5
        %v1454 = vand.u32 %v1452, 31
        %v1455 = vsub.s32 32, %v1454
        %v1456 = vshrl.u32 683565275, %v1455
        %v1457 = vshll.u32 683565275, %v1454
        %v1458 = vshrl.u32 2475754826, %v1455
        %v1459 = vor.u32 %v1457, %v1458
        %v1460 = vshll.u32 2475754826, %v1454
        %v1461 = vshrl.u32 2131351028, %v1455
        %v1462 = vor.u32 %v1460, %v1461
        %v1463 = vshll.u32 2131351028, %v1454
        %v1464 = vshrl.u32 2102212464, %v1455
        %v1465 = vor.u32 %v1463, %v1464
        %v1466 = vshll.u32 2102212464, %v1454
        %v1467 = vshrl.u32 920167782, %v1455
        %v1468 = vor.u32 %v1466, %v1467
        %v1469 = vshll.u32 920167782, %v1454
        %v1470 = vshrl.u32 1326507024, %v1455
        %v1471 = vor.u32 %v1469, %v1470
        %vm1472 = vcmp.lt.s32.totalorder %v1453, 1
        %vm1473 = vcmp.lt.s32.totalorder %v1453, 2
        %vm1474 = vcmp.lt.s32.totalorder %v1453, 3
        %vm1475 = vcmp.lt.s32.totalorder %v1453, 4
        %v1476 = vsel %vm1472, %v1456, %v1459
        %v1477 = vsel %vm1475, %v1465, 2102212464
        %v1478 = vsel %vm1474, %v1462, %v1477
        %v1479 = vsel %vm1473, %v1476, %v1478
        %v1480 = vsel %vm1472, %v1459, %v1462
        %v1481 = vsel %vm1475, %v1468, 920167782
        %v1482 = vsel %vm1474, %v1465, %v1481
        %v1483 = vsel %vm1473, %v1480, %v1482
        %v1484 = vsel %vm1472, %v1462, %v1465
        %v1485 = vsel %vm1475, %v1471, 1326507024
        %v1486 = vsel %vm1474, %v1468, %v1485
        %v1487 = vsel %vm1473, %v1484, %v1486
        %v1488 = vshll.u32 %v1448, 8
        %v1489 = vmul.u32.u64.compose %v1488, %v1487
        %v1490 = vextract.low.u32 %v1489
        %v1491 = vextract.high.u32 %v1489
        %v1492 = vmul.u32.u64.compose %v1488, %v1483
        %v1493 = vextract.low.u32 %v1492
        %v1494 = vextract.high.u32 %v1492
        %v1495 = vmul.u32 %v1488, %v1479
        %v1496 = vadd.s32 %v1491, %v1493
        %vm1497 = vc.u32 %v1491, %v1493
        %v1498 = vadd.s32 %v1494, 1
        %v1499 = vsel %vm1497, %v1498, %v1494
        %v1500 = vadd.s32 %v1495, %v1499
        %v1501 = vadd.s32 %v1500, 536870912
        %v1502 = vshrl.u32 %v1501, 30
        %v1503 = vshll.u32 %v1502, 30
        %v1504 = vsub.s32 %v1500, %v1503
        %vm1505 = vcmp.lt.s32.totalorder %v1504, 0
        %v1506 = vsub.s32 0, %v1504
        %v1507 = vsel %vm1505, %v1506, %v1504
        %v1508 = vclz %v1507
        %v1509 = vsub.s32 %v1508, 2
        %vm1510 = vcmp.gt.s32.totalorder 0, %v1509
        %v1511 = vsel %vm1510, 0, %v1509
        %v1512 = vsub.s32 32, %v1511
        %v1513 = vshll.u32 %v1504, %v1511
        %v1514 = vshrl.u32 %v1496, %v1512
        %v1515 = vor.u32 %v1513, %v1514
        %v1516 = vsub.s32 4294967266, %v1511
        %v1517 = vadd.s32 %v1516, 127
        %v1518 = vshll.u32 %v1517, 23
        %v1519 = vor.u32 4788187, %v1518
        %v1520 = vand.u32 2147483647, %v1519
        %v1522 = vcvt.s32.f32 %v1515
        %v1523 = vmul.f32 %v1522, %v1520
        %v1524 = vxor.u32 %v1523, 2147483648
        %v1525 = vsel %vm1442, %v1524, %v1523
        %v1526 = vsub.s32 4, %v1502
        %v1527 = vsel %vm1442, %v1526, %v1502
        %v1528 = vsel %vm1441, %v584, %v1525
        %v1529 = vsel %vm1441, 0, %v1527
        %v1530 = vcosq.f32.pop %v1528
        %v1531 = vsinq.f32.pop %v1528
        %vm1532 = vweird.f32 %v584
        %v1533 = vadd.s32 %v1529, 3
        %v1534 = vand.u32 %v1533, 3
        %vm1535 = vcmp.lt.s32.totalorder %v1534, 2
        %vm1536 = vcmp.eq.s32.totalorder %v1534, 0
        %v1537 = vxor.u32 %v1531, 2147483648
        %v1538 = vsel %vm1536, %v1530, %v1537
        %vm1539 = vcmp.eq.s32.totalorder %v1534, 2
        %v1540 = vxor.u32 %v1530, 2147483648
        %v1541 = vsel %vm1539, %v1540, %v1531
        %v1542 = vsel %vm1535, %v1538, %v1541
        %v1543 = vsel %vm1532, nan, %v1542
        %v1544 = vand.u32 2147483647, %v585
        %vm1545 = vcmp.le.f32.partialorder %v1544, 0.7853982
        %vm1546 = vcmp.lt.s32.totalorder %v585, 0
        %v1547 = vand.u32 %v585, 2139095040
        %v1548 = vshrl.u32 %v1547, 23
        %v1549 = vsub.s32 %v1548, 127
        %v1550 = vand.u32 2147483647, %v585
        %v1551 = vand.u32 %v1550, 8388607
        %v1552 = vor.u32 %v1551, 8388608
        %v1553 = vsub.s32 0, %v1552
        %v1554 = vadd.s32 %v1549, 1
        %vm1555 = vcmp.gt.s32.totalorder %v1554, 0
        %v1556 = vsel %vm1555, %v1554, 0
        %v1557 = vshrl.u32 %v1556, 5
        %v1558 = vand.u32 %v1556, 31
        %v1559 = vsub.s32 32, %v1558
        %v1560 = vshrl.u32 683565275, %v1559
        %v1561 = vshll.u32 683565275, %v1558
        %v1562 = vshrl.u32 2475754826, %v1559
        %v1563 = vor.u32 %v1561, %v1562
        %v1564 = vshll.u32 2475754826, %v1558
        %v1565 = vshrl.u32 2131351028, %v1559
        %v1566 = vor.u32 %v1564, %v1565
        %v1567 = vshll.u32 2131351028, %v1558
        %v1568 = vshrl.u32 2102212464, %v1559
        %v1569 = vor.u32 %v1567, %v1568
        %v1570 = vshll.u32 2102212464, %v1558
        %v1571 = vshrl.u32 920167782, %v1559
        %v1572 = vor.u32 %v1570, %v1571
        %v1573 = vshll.u32 920167782, %v1558
        %v1574 = vshrl.u32 1326507024, %v1559
        %v1575 = vor.u32 %v1573, %v1574
        %vm1576 = vcmp.lt.s32.totalorder %v1557, 1
        %vm1577 = vcmp.lt.s32.totalorder %v1557, 2
        %vm1578 = vcmp.lt.s32.totalorder %v1557, 3
        %vm1579 = vcmp.lt.s32.totalorder %v1557, 4
        %v1580 = vsel %vm1576, %v1560, %v1563
        %v1581 = vsel %vm1579, %v1569, 2102212464
        %v1582 = vsel %vm1578, %v1566, %v1581
        %v1583 = vsel %vm1577, %v1580, %v1582
        %v1584 = vsel %vm1576, %v1563, %v1566
        %v1585 = vsel %vm1579, %v1572, 920167782
        %v1586 = vsel %vm1578, %v1569, %v1585
        %v1587 = vsel %vm1577, %v1584, %v1586
        %v1588 = vsel %vm1576, %v1566, %v1569
        %v1589 = vsel %vm1579, %v1575, 1326507024
        %v1590 = vsel %vm1578, %v1572, %v1589
        %v1591 = vsel %vm1577, %v1588, %v1590
        %v1592 = vshll.u32 %v1552, 8
        %v1593 = vmul.u32.u64.compose %v1592, %v1591
        %v1594 = vextract.low.u32 %v1593
        %v1595 = vextract.high.u32 %v1593
        %v1596 = vmul.u32.u64.compose %v1592, %v1587
        %v1597 = vextract.low.u32 %v1596
        %v1598 = vextract.high.u32 %v1596
        %v1599 = vmul.u32 %v1592, %v1583
        %v1600 = vadd.s32 %v1595, %v1597
        %vm1601 = vc.u32 %v1595, %v1597
        %v1602 = vadd.s32 %v1598, 1
        %v1603 = vsel %vm1601, %v1602, %v1598
        %v1604 = vadd.s32 %v1599, %v1603
        %v1605 = vadd.s32 %v1604, 536870912
        %v1606 = vshrl.u32 %v1605, 30
        %v1607 = vshll.u32 %v1606, 30
        %v1608 = vsub.s32 %v1604, %v1607
        %vm1609 = vcmp.lt.s32.totalorder %v1608, 0
        %v1610 = vsub.s32 0, %v1608
        %v1611 = vsel %vm1609, %v1610, %v1608
        %v1612 = vclz %v1611
        %v1613 = vsub.s32 %v1612, 2
        %vm1614 = vcmp.gt.s32.totalorder 0, %v1613
        %v1615 = vsel %vm1614, 0, %v1613
        %v1616 = vsub.s32 32, %v1615
        %v1617 = vshll.u32 %v1608, %v1615
        %v1618 = vshrl.u32 %v1600, %v1616
        %v1619 = vor.u32 %v1617, %v1618
        %v1620 = vsub.s32 4294967266, %v1615
        %v1621 = vadd.s32 %v1620, 127
        %v1622 = vshll.u32 %v1621, 23
        %v1623 = vor.u32 4788187, %v1622
        %v1624 = vand.u32 2147483647, %v1623
        %v1626 = vcvt.s32.f32 %v1619
        %v1627 = vmul.f32 %v1626, %v1624
        %v1628 = vxor.u32 %v1627, 2147483648
        %v1629 = vsel %vm1546, %v1628, %v1627
        %v1630 = vsub.s32 4, %v1606
        %v1631 = vsel %vm1546, %v1630, %v1606
        %v1632 = vsel %vm1545, %v585, %v1629
        %v1633 = vsel %vm1545, 0, %v1631
        %v1634 = vcosq.f32.pop %v1632
        %v1635 = vsinq.f32.pop %v1632
        %vm1636 = vweird.f32 %v585
        %v1637 = vadd.s32 %v1633, 3
        %v1638 = vand.u32 %v1637, 3
        %vm1639 = vcmp.lt.s32.totalorder %v1638, 2
        %vm1640 = vcmp.eq.s32.totalorder %v1638, 0
        %v1641 = vxor.u32 %v1635, 2147483648
        %v1642 = vsel %vm1640, %v1634, %v1641
        %vm1643 = vcmp.eq.s32.totalorder %v1638, 2
        %v1644 = vxor.u32 %v1634, 2147483648
        %v1645 = vsel %vm1643, %v1644, %v1635
        %v1646 = vsel %vm1639, %v1642, %v1645
        %v1647 = vsel %vm1636, nan, %v1646
        %v1648 = vand.u32 2147483647, %v586
        %vm1649 = vcmp.le.f32.partialorder %v1648, 0.7853982
        %vm1650 = vcmp.lt.s32.totalorder %v586, 0
        %v1651 = vand.u32 %v586, 2139095040
        %v1652 = vshrl.u32 %v1651, 23
        %v1653 = vsub.s32 %v1652, 127
        %v1654 = vand.u32 2147483647, %v586
        %v1655 = vand.u32 %v1654, 8388607
        %v1656 = vor.u32 %v1655, 8388608
        %v1657 = vsub.s32 0, %v1656
        %v1658 = vadd.s32 %v1653, 1
        %vm1659 = vcmp.gt.s32.totalorder %v1658, 0
        %v1660 = vsel %vm1659, %v1658, 0
        %v1661 = vshrl.u32 %v1660, 5
        %v1662 = vand.u32 %v1660, 31
        %v1663 = vsub.s32 32, %v1662
        %v1664 = vshrl.u32 683565275, %v1663
        %v1665 = vshll.u32 683565275, %v1662
        %v1666 = vshrl.u32 2475754826, %v1663
        %v1667 = vor.u32 %v1665, %v1666
        %v1668 = vshll.u32 2475754826, %v1662
        %v1669 = vshrl.u32 2131351028, %v1663
        %v1670 = vor.u32 %v1668, %v1669
        %v1671 = vshll.u32 2131351028, %v1662
        %v1672 = vshrl.u32 2102212464, %v1663
        %v1673 = vor.u32 %v1671, %v1672
        %v1674 = vshll.u32 2102212464, %v1662
        %v1675 = vshrl.u32 920167782, %v1663
        %v1676 = vor.u32 %v1674, %v1675
        %v1677 = vshll.u32 920167782, %v1662
        %v1678 = vshrl.u32 1326507024, %v1663
        %v1679 = vor.u32 %v1677, %v1678
        %vm1680 = vcmp.lt.s32.totalorder %v1661, 1
        %vm1681 = vcmp.lt.s32.totalorder %v1661, 2
        %vm1682 = vcmp.lt.s32.totalorder %v1661, 3
        %vm1683 = vcmp.lt.s32.totalorder %v1661, 4
        %v1684 = vsel %vm1680, %v1664, %v1667
        %v1685 = vsel %vm1683, %v1673, 2102212464
        %v1686 = vsel %vm1682, %v1670, %v1685
        %v1687 = vsel %vm1681, %v1684, %v1686
        %v1688 = vsel %vm1680, %v1667, %v1670
        %v1689 = vsel %vm1683, %v1676, 920167782
        %v1690 = vsel %vm1682, %v1673, %v1689
        %v1691 = vsel %vm1681, %v1688, %v1690
        %v1692 = vsel %vm1680, %v1670, %v1673
        %v1693 = vsel %vm1683, %v1679, 1326507024
        %v1694 = vsel %vm1682, %v1676, %v1693
        %v1695 = vsel %vm1681, %v1692, %v1694
        %v1696 = vshll.u32 %v1656, 8
        %v1697 = vmul.u32.u64.compose %v1696, %v1695
        %v1698 = vextract.low.u32 %v1697
        %v1699 = vextract.high.u32 %v1697
        %v1700 = vmul.u32.u64.compose %v1696, %v1691
        %v1701 = vextract.low.u32 %v1700
        %v1702 = vextract.high.u32 %v1700
        %v1703 = vmul.u32 %v1696, %v1687
        %v1704 = vadd.s32 %v1699, %v1701
        %vm1705 = vc.u32 %v1699, %v1701
        %v1706 = vadd.s32 %v1702, 1
        %v1707 = vsel %vm1705, %v1706, %v1702
        %v1708 = vadd.s32 %v1703, %v1707
        %v1709 = vadd.s32 %v1708, 536870912
        %v1710 = vshrl.u32 %v1709, 30
        %v1711 = vshll.u32 %v1710, 30
        %v1712 = vsub.s32 %v1708, %v1711
        %vm1713 = vcmp.lt.s32.totalorder %v1712, 0
        %v1714 = vsub.s32 0, %v1712
        %v1715 = vsel %vm1713, %v1714, %v1712
        %v1716 = vclz %v1715
        %v1717 = vsub.s32 %v1716, 2
        %vm1718 = vcmp.gt.s32.totalorder 0, %v1717
        %v1719 = vsel %vm1718, 0, %v1717
        %v1720 = vsub.s32 32, %v1719
        %v1721 = vshll.u32 %v1712, %v1719
        %v1722 = vshrl.u32 %v1704, %v1720
        %v1723 = vor.u32 %v1721, %v1722
        %v1724 = vsub.s32 4294967266, %v1719
        %v1725 = vadd.s32 %v1724, 127
        %v1726 = vshll.u32 %v1725, 23
        %v1727 = vor.u32 4788187, %v1726
        %v1728 = vand.u32 2147483647, %v1727
        %v1730 = vcvt.s32.f32 %v1723
        %v1731 = vmul.f32 %v1730, %v1728
        %v1732 = vxor.u32 %v1731, 2147483648
        %v1733 = vsel %vm1650, %v1732, %v1731
        %v1734 = vsub.s32 4, %v1710
        %v1735 = vsel %vm1650, %v1734, %v1710
        %v1736 = vsel %vm1649, %v586, %v1733
        %v1737 = vsel %vm1649, 0, %v1735
        %v1738 = vcosq.f32.pop %v1736
        %v1739 = vsinq.f32.pop %v1736
        %vm1740 = vweird.f32 %v586
        %v1741 = vadd.s32 %v1737, 3
        %v1742 = vand.u32 %v1741, 3
        %vm1743 = vcmp.lt.s32.totalorder %v1742, 2
        %vm1744 = vcmp.eq.s32.totalorder %v1742, 0
        %v1745 = vxor.u32 %v1739, 2147483648
        %v1746 = vsel %vm1744, %v1738, %v1745
        %vm1747 = vcmp.eq.s32.totalorder %v1742, 2
        %v1748 = vxor.u32 %v1738, 2147483648
        %v1749 = vsel %vm1747, %v1748, %v1739
        %v1750 = vsel %vm1743, %v1746, %v1749
        %v1751 = vsel %vm1740, nan, %v1750
        %v1752 = vand.u32 2147483647, %v587
        %vm1753 = vcmp.le.f32.partialorder %v1752, 0.7853982
        %vm1754 = vcmp.lt.s32.totalorder %v587, 0
        %v1755 = vand.u32 %v587, 2139095040
        %v1756 = vshrl.u32 %v1755, 23
        %v1757 = vsub.s32 %v1756, 127
        %v1758 = vand.u32 2147483647, %v587
        %v1759 = vand.u32 %v1758, 8388607
        %v1760 = vor.u32 %v1759, 8388608
        %v1761 = vsub.s32 0, %v1760
        %v1762 = vadd.s32 %v1757, 1
        %vm1763 = vcmp.gt.s32.totalorder %v1762, 0
        %v1764 = vsel %vm1763, %v1762, 0
        %v1765 = vshrl.u32 %v1764, 5
        %v1766 = vand.u32 %v1764, 31
        %v1767 = vsub.s32 32, %v1766
        %v1768 = vshrl.u32 683565275, %v1767
        %v1769 = vshll.u32 683565275, %v1766
        %v1770 = vshrl.u32 2475754826, %v1767
        %v1771 = vor.u32 %v1769, %v1770
        %v1772 = vshll.u32 2475754826, %v1766
        %v1773 = vshrl.u32 2131351028, %v1767
        %v1774 = vor.u32 %v1772, %v1773
        %v1775 = vshll.u32 2131351028, %v1766
        %v1776 = vshrl.u32 2102212464, %v1767
        %v1777 = vor.u32 %v1775, %v1776
        %v1778 = vshll.u32 2102212464, %v1766
        %v1779 = vshrl.u32 920167782, %v1767
        %v1780 = vor.u32 %v1778, %v1779
        %v1781 = vshll.u32 920167782, %v1766
        %v1782 = vshrl.u32 1326507024, %v1767
        %v1783 = vor.u32 %v1781, %v1782
        %vm1784 = vcmp.lt.s32.totalorder %v1765, 1
        %vm1785 = vcmp.lt.s32.totalorder %v1765, 2
        %vm1786 = vcmp.lt.s32.totalorder %v1765, 3
        %vm1787 = vcmp.lt.s32.totalorder %v1765, 4
        %v1788 = vsel %vm1784, %v1768, %v1771
        %v1789 = vsel %vm1787, %v1777, 2102212464
        %v1790 = vsel %vm1786, %v1774, %v1789
        %v1791 = vsel %vm1785, %v1788, %v1790
        %v1792 = vsel %vm1784, %v1771, %v1774
        %v1793 = vsel %vm1787, %v1780, 920167782
        %v1794 = vsel %vm1786, %v1777, %v1793
        %v1795 = vsel %vm1785, %v1792, %v1794
        %v1796 = vsel %vm1784, %v1774, %v1777
        %v1797 = vsel %vm1787, %v1783, 1326507024
        %v1798 = vsel %vm1786, %v1780, %v1797
        %v1799 = vsel %vm1785, %v1796, %v1798
        %v1800 = vshll.u32 %v1760, 8
        %v1801 = vmul.u32.u64.compose %v1800, %v1799
        %v1802 = vextract.low.u32 %v1801
        %v1803 = vextract.high.u32 %v1801
        %v1804 = vmul.u32.u64.compose %v1800, %v1795
        %v1805 = vextract.low.u32 %v1804
        %v1806 = vextract.high.u32 %v1804
        %v1807 = vmul.u32 %v1800, %v1791
        %v1808 = vadd.s32 %v1803, %v1805
        %vm1809 = vc.u32 %v1803, %v1805
        %v1810 = vadd.s32 %v1806, 1
        %v1811 = vsel %vm1809, %v1810, %v1806
        %v1812 = vadd.s32 %v1807, %v1811
        %v1813 = vadd.s32 %v1812, 536870912
        %v1814 = vshrl.u32 %v1813, 30
        %v1815 = vshll.u32 %v1814, 30
        %v1816 = vsub.s32 %v1812, %v1815
        %vm1817 = vcmp.lt.s32.totalorder %v1816, 0
        %v1818 = vsub.s32 0, %v1816
        %v1819 = vsel %vm1817, %v1818, %v1816
        %v1820 = vclz %v1819
        %v1821 = vsub.s32 %v1820, 2
        %vm1822 = vcmp.gt.s32.totalorder 0, %v1821
        %v1823 = vsel %vm1822, 0, %v1821
        %v1824 = vsub.s32 32, %v1823
        %v1825 = vshll.u32 %v1816, %v1823
        %v1826 = vshrl.u32 %v1808, %v1824
        %v1827 = vor.u32 %v1825, %v1826
        %v1828 = vsub.s32 4294967266, %v1823
        %v1829 = vadd.s32 %v1828, 127
        %v1830 = vshll.u32 %v1829, 23
        %v1831 = vor.u32 4788187, %v1830
        %v1832 = vand.u32 2147483647, %v1831
        %v1834 = vcvt.s32.f32 %v1827
        %v1835 = vmul.f32 %v1834, %v1832
        %v1836 = vxor.u32 %v1835, 2147483648
        %v1837 = vsel %vm1754, %v1836, %v1835
        %v1838 = vsub.s32 4, %v1814
        %v1839 = vsel %vm1754, %v1838, %v1814
        %v1840 = vsel %vm1753, %v587, %v1837
        %v1841 = vsel %vm1753, 0, %v1839
        %v1842 = vcosq.f32.pop %v1840
        %v1843 = vsinq.f32.pop %v1840
        %vm1844 = vweird.f32 %v587
        %v1845 = vadd.s32 %v1841, 3
        %v1846 = vand.u32 %v1845, 3
        %vm1847 = vcmp.lt.s32.totalorder %v1846, 2
        %vm1848 = vcmp.eq.s32.totalorder %v1846, 0
        %v1849 = vxor.u32 %v1843, 2147483648
        %v1850 = vsel %vm1848, %v1842, %v1849
        %vm1851 = vcmp.eq.s32.totalorder %v1846, 2
        %v1852 = vxor.u32 %v1842, 2147483648
        %v1853 = vsel %vm1851, %v1852, %v1843
        %v1854 = vsel %vm1847, %v1850, %v1853
        %v1855 = vsel %vm1844, nan, %v1854
        %v1856 = vand.u32 2147483647, %v588
        %vm1857 = vcmp.le.f32.partialorder %v1856, 0.7853982
        %vm1858 = vcmp.lt.s32.totalorder %v588, 0
        %v1859 = vand.u32 %v588, 2139095040
        %v1860 = vshrl.u32 %v1859, 23
        %v1861 = vsub.s32 %v1860, 127
        %v1862 = vand.u32 2147483647, %v588
        %v1863 = vand.u32 %v1862, 8388607
        %v1864 = vor.u32 %v1863, 8388608
        %v1865 = vsub.s32 0, %v1864
        %v1866 = vadd.s32 %v1861, 1
        %vm1867 = vcmp.gt.s32.totalorder %v1866, 0
        %v1868 = vsel %vm1867, %v1866, 0
        %v1869 = vshrl.u32 %v1868, 5
        %v1870 = vand.u32 %v1868, 31
        %v1871 = vsub.s32 32, %v1870
        %v1872 = vshrl.u32 683565275, %v1871
        %v1873 = vshll.u32 683565275, %v1870
        %v1874 = vshrl.u32 2475754826, %v1871
        %v1875 = vor.u32 %v1873, %v1874
        %v1876 = vshll.u32 2475754826, %v1870
        %v1877 = vshrl.u32 2131351028, %v1871
        %v1878 = vor.u32 %v1876, %v1877
        %v1879 = vshll.u32 2131351028, %v1870
        %v1880 = vshrl.u32 2102212464, %v1871
        %v1881 = vor.u32 %v1879, %v1880
        %v1882 = vshll.u32 2102212464, %v1870
        %v1883 = vshrl.u32 920167782, %v1871
        %v1884 = vor.u32 %v1882, %v1883
        %v1885 = vshll.u32 920167782, %v1870
        %v1886 = vshrl.u32 1326507024, %v1871
        %v1887 = vor.u32 %v1885, %v1886
        %vm1888 = vcmp.lt.s32.totalorder %v1869, 1
        %vm1889 = vcmp.lt.s32.totalorder %v1869, 2
        %vm1890 = vcmp.lt.s32.totalorder %v1869, 3
        %vm1891 = vcmp.lt.s32.totalorder %v1869, 4
        %v1892 = vsel %vm1888, %v1872, %v1875
        %v1893 = vsel %vm1891, %v1881, 2102212464
        %v1894 = vsel %vm1890, %v1878, %v1893
        %v1895 = vsel %vm1889, %v1892, %v1894
        %v1896 = vsel %vm1888, %v1875, %v1878
        %v1897 = vsel %vm1891, %v1884, 920167782
        %v1898 = vsel %vm1890, %v1881, %v1897
        %v1899 = vsel %vm1889, %v1896, %v1898
        %v1900 = vsel %vm1888, %v1878, %v1881
        %v1901 = vsel %vm1891, %v1887, 1326507024
        %v1902 = vsel %vm1890, %v1884, %v1901
        %v1903 = vsel %vm1889, %v1900, %v1902
        %v1904 = vshll.u32 %v1864, 8
        %v1905 = vmul.u32.u64.compose %v1904, %v1903
        %v1906 = vextract.low.u32 %v1905
        %v1907 = vextract.high.u32 %v1905
        %v1908 = vmul.u32.u64.compose %v1904, %v1899
        %v1909 = vextract.low.u32 %v1908
        %v1910 = vextract.high.u32 %v1908
        %v1911 = vmul.u32 %v1904, %v1895
        %v1912 = vadd.s32 %v1907, %v1909
        %vm1913 = vc.u32 %v1907, %v1909
        %v1914 = vadd.s32 %v1910, 1
        %v1915 = vsel %vm1913, %v1914, %v1910
        %v1916 = vadd.s32 %v1911, %v1915
        %v1917 = vadd.s32 %v1916, 536870912
        %v1918 = vshrl.u32 %v1917, 30
        %v1919 = vshll.u32 %v1918, 30
        %v1920 = vsub.s32 %v1916, %v1919
        %vm1921 = vcmp.lt.s32.totalorder %v1920, 0
        %v1922 = vsub.s32 0, %v1920
        %v1923 = vsel %vm1921, %v1922, %v1920
        %v1924 = vclz %v1923
        %v1925 = vsub.s32 %v1924, 2
        %vm1926 = vcmp.gt.s32.totalorder 0, %v1925
        %v1927 = vsel %vm1926, 0, %v1925
        %v1928 = vsub.s32 32, %v1927
        %v1929 = vshll.u32 %v1920, %v1927
        %v1930 = vshrl.u32 %v1912, %v1928
        %v1931 = vor.u32 %v1929, %v1930
        %v1932 = vsub.s32 4294967266, %v1927
        %v1933 = vadd.s32 %v1932, 127
        %v1934 = vshll.u32 %v1933, 23
        %v1935 = vor.u32 4788187, %v1934
        %v1936 = vand.u32 2147483647, %v1935
        %v1938 = vcvt.s32.f32 %v1931
        %v1939 = vmul.f32 %v1938, %v1936
        %v1940 = vxor.u32 %v1939, 2147483648
        %v1941 = vsel %vm1858, %v1940, %v1939
        %v1942 = vsub.s32 4, %v1918
        %v1943 = vsel %vm1858, %v1942, %v1918
        %v1944 = vsel %vm1857, %v588, %v1941
        %v1945 = vsel %vm1857, 0, %v1943
        %v1946 = vcosq.f32.pop %v1944
        %v1947 = vsinq.f32.pop %v1944
        %vm1948 = vweird.f32 %v588
        %v1949 = vadd.s32 %v1945, 3
        %v1950 = vand.u32 %v1949, 3
        %vm1951 = vcmp.lt.s32.totalorder %v1950, 2
        %vm1952 = vcmp.eq.s32.totalorder %v1950, 0
        %v1953 = vxor.u32 %v1947, 2147483648
        %v1954 = vsel %vm1952, %v1946, %v1953
        %vm1955 = vcmp.eq.s32.totalorder %v1950, 2
        %v1956 = vxor.u32 %v1946, 2147483648
        %v1957 = vsel %vm1955, %v1956, %v1947
        %v1958 = vsel %vm1951, %v1954, %v1957
        %v1959 = vsel %vm1948, nan, %v1958
        %v1960 = vand.u32 2147483647, %v589
        %vm1961 = vcmp.le.f32.partialorder %v1960, 0.7853982
        %vm1962 = vcmp.lt.s32.totalorder %v589, 0
        %v1963 = vand.u32 %v589, 2139095040
        %v1964 = vshrl.u32 %v1963, 23
        %v1965 = vsub.s32 %v1964, 127
        %v1966 = vand.u32 2147483647, %v589
        %v1967 = vand.u32 %v1966, 8388607
        %v1968 = vor.u32 %v1967, 8388608
        %v1969 = vsub.s32 0, %v1968
        %v1970 = vadd.s32 %v1965, 1
        %vm1971 = vcmp.gt.s32.totalorder %v1970, 0
        %v1972 = vsel %vm1971, %v1970, 0
        %v1973 = vshrl.u32 %v1972, 5
        %v1974 = vand.u32 %v1972, 31
        %v1975 = vsub.s32 32, %v1974
        %v1976 = vshrl.u32 683565275, %v1975
        %v1977 = vshll.u32 683565275, %v1974
        %v1978 = vshrl.u32 2475754826, %v1975
        %v1979 = vor.u32 %v1977, %v1978
        %v1980 = vshll.u32 2475754826, %v1974
        %v1981 = vshrl.u32 2131351028, %v1975
        %v1982 = vor.u32 %v1980, %v1981
        %v1983 = vshll.u32 2131351028, %v1974
        %v1984 = vshrl.u32 2102212464, %v1975
        %v1985 = vor.u32 %v1983, %v1984
        %v1986 = vshll.u32 2102212464, %v1974
        %v1987 = vshrl.u32 920167782, %v1975
        %v1988 = vor.u32 %v1986, %v1987
        %v1989 = vshll.u32 920167782, %v1974
        %v1990 = vshrl.u32 1326507024, %v1975
        %v1991 = vor.u32 %v1989, %v1990
        %vm1992 = vcmp.lt.s32.totalorder %v1973, 1
        %vm1993 = vcmp.lt.s32.totalorder %v1973, 2
        %vm1994 = vcmp.lt.s32.totalorder %v1973, 3
        %vm1995 = vcmp.lt.s32.totalorder %v1973, 4
        %v1996 = vsel %vm1992, %v1976, %v1979
        %v1997 = vsel %vm1995, %v1985, 2102212464
        %v1998 = vsel %vm1994, %v1982, %v1997
        %v1999 = vsel %vm1993, %v1996, %v1998
        %v2000 = vsel %vm1992, %v1979, %v1982
        %v2001 = vsel %vm1995, %v1988, 920167782
        %v2002 = vsel %vm1994, %v1985, %v2001
        %v2003 = vsel %vm1993, %v2000, %v2002
        %v2004 = vsel %vm1992, %v1982, %v1985
        %v2005 = vsel %vm1995, %v1991, 1326507024
        %v2006 = vsel %vm1994, %v1988, %v2005
        %v2007 = vsel %vm1993, %v2004, %v2006
        %v2008 = vshll.u32 %v1968, 8
        %v2009 = vmul.u32.u64.compose %v2008, %v2007
        %v2010 = vextract.low.u32 %v2009
        %v2011 = vextract.high.u32 %v2009
        %v2012 = vmul.u32.u64.compose %v2008, %v2003
        %v2013 = vextract.low.u32 %v2012
        %v2014 = vextract.high.u32 %v2012
        %v2015 = vmul.u32 %v2008, %v1999
        %v2016 = vadd.s32 %v2011, %v2013
        %vm2017 = vc.u32 %v2011, %v2013
        %v2018 = vadd.s32 %v2014, 1
        %v2019 = vsel %vm2017, %v2018, %v2014
        %v2020 = vadd.s32 %v2015, %v2019
        %v2021 = vadd.s32 %v2020, 536870912
        %v2022 = vshrl.u32 %v2021, 30
        %v2023 = vshll.u32 %v2022, 30
        %v2024 = vsub.s32 %v2020, %v2023
        %vm2025 = vcmp.lt.s32.totalorder %v2024, 0
        %v2026 = vsub.s32 0, %v2024
        %v2027 = vsel %vm2025, %v2026, %v2024
        %v2028 = vclz %v2027
        %v2029 = vsub.s32 %v2028, 2
        %vm2030 = vcmp.gt.s32.totalorder 0, %v2029
        %v2031 = vsel %vm2030, 0, %v2029
        %v2032 = vsub.s32 32, %v2031
        %v2033 = vshll.u32 %v2024, %v2031
        %v2034 = vshrl.u32 %v2016, %v2032
        %v2035 = vor.u32 %v2033, %v2034
        %v2036 = vsub.s32 4294967266, %v2031
        %v2037 = vadd.s32 %v2036, 127
        %v2038 = vshll.u32 %v2037, 23
        %v2039 = vor.u32 4788187, %v2038
        %v2040 = vand.u32 2147483647, %v2039
        %v2042 = vcvt.s32.f32 %v2035
        %v2043 = vmul.f32 %v2042, %v2040
        %v2044 = vxor.u32 %v2043, 2147483648
        %v2045 = vsel %vm1962, %v2044, %v2043
        %v2046 = vsub.s32 4, %v2022
        %v2047 = vsel %vm1962, %v2046, %v2022
        %v2048 = vsel %vm1961, %v589, %v2045
        %v2049 = vsel %vm1961, 0, %v2047
        %v2050 = vcosq.f32.pop %v2048
        %v2051 = vsinq.f32.pop %v2048
        %vm2052 = vweird.f32 %v589
        %v2053 = vadd.s32 %v2049, 3
        %v2054 = vand.u32 %v2053, 3
        %vm2055 = vcmp.lt.s32.totalorder %v2054, 2
        %vm2056 = vcmp.eq.s32.totalorder %v2054, 0
        %v2057 = vxor.u32 %v2051, 2147483648
        %v2058 = vsel %vm2056, %v2050, %v2057
        %vm2059 = vcmp.eq.s32.totalorder %v2054, 2
        %v2060 = vxor.u32 %v2050, 2147483648
        %v2061 = vsel %vm2059, %v2060, %v2051
        %v2062 = vsel %vm2055, %v2058, %v2061
        %v2063 = vsel %vm2052, nan, %v2062
        %v2064 = vand.u32 2147483647, %v590
        %vm2065 = vcmp.le.f32.partialorder %v2064, 0.7853982
        %vm2066 = vcmp.lt.s32.totalorder %v590, 0
        %v2067 = vand.u32 %v590, 2139095040
        %v2068 = vshrl.u32 %v2067, 23
        %v2069 = vsub.s32 %v2068, 127
        %v2070 = vand.u32 2147483647, %v590
        %v2071 = vand.u32 %v2070, 8388607
        %v2072 = vor.u32 %v2071, 8388608
        %v2073 = vsub.s32 0, %v2072
        %v2074 = vadd.s32 %v2069, 1
        %vm2075 = vcmp.gt.s32.totalorder %v2074, 0
        %v2076 = vsel %vm2075, %v2074, 0
        %v2077 = vshrl.u32 %v2076, 5
        %v2078 = vand.u32 %v2076, 31
        %v2079 = vsub.s32 32, %v2078
        %v2080 = vshrl.u32 683565275, %v2079
        %v2081 = vshll.u32 683565275, %v2078
        %v2082 = vshrl.u32 2475754826, %v2079
        %v2083 = vor.u32 %v2081, %v2082
        %v2084 = vshll.u32 2475754826, %v2078
        %v2085 = vshrl.u32 2131351028, %v2079
        %v2086 = vor.u32 %v2084, %v2085
        %v2087 = vshll.u32 2131351028, %v2078
        %v2088 = vshrl.u32 2102212464, %v2079
        %v2089 = vor.u32 %v2087, %v2088
        %v2090 = vshll.u32 2102212464, %v2078
        %v2091 = vshrl.u32 920167782, %v2079
        %v2092 = vor.u32 %v2090, %v2091
        %v2093 = vshll.u32 920167782, %v2078
        %v2094 = vshrl.u32 1326507024, %v2079
        %v2095 = vor.u32 %v2093, %v2094
        %vm2096 = vcmp.lt.s32.totalorder %v2077, 1
        %vm2097 = vcmp.lt.s32.totalorder %v2077, 2
        %vm2098 = vcmp.lt.s32.totalorder %v2077, 3
        %vm2099 = vcmp.lt.s32.totalorder %v2077, 4
        %v2100 = vsel %vm2096, %v2080, %v2083
        %v2101 = vsel %vm2099, %v2089, 2102212464
        %v2102 = vsel %vm2098, %v2086, %v2101
        %v2103 = vsel %vm2097, %v2100, %v2102
        %v2104 = vsel %vm2096, %v2083, %v2086
        %v2105 = vsel %vm2099, %v2092, 920167782
        %v2106 = vsel %vm2098, %v2089, %v2105
        %v2107 = vsel %vm2097, %v2104, %v2106
        %v2108 = vsel %vm2096, %v2086, %v2089
        %v2109 = vsel %vm2099, %v2095, 1326507024
        %v2110 = vsel %vm2098, %v2092, %v2109
        %v2111 = vsel %vm2097, %v2108, %v2110
        %v2112 = vshll.u32 %v2072, 8
        %v2113 = vmul.u32.u64.compose %v2112, %v2111
        %v2114 = vextract.low.u32 %v2113
        %v2115 = vextract.high.u32 %v2113
        %v2116 = vmul.u32.u64.compose %v2112, %v2107
        %v2117 = vextract.low.u32 %v2116
        %v2118 = vextract.high.u32 %v2116
        %v2119 = vmul.u32 %v2112, %v2103
        %v2120 = vadd.s32 %v2115, %v2117
        %vm2121 = vc.u32 %v2115, %v2117
        %v2122 = vadd.s32 %v2118, 1
        %v2123 = vsel %vm2121, %v2122, %v2118
        %v2124 = vadd.s32 %v2119, %v2123
        %v2125 = vadd.s32 %v2124, 536870912
        %v2126 = vshrl.u32 %v2125, 30
        %v2127 = vshll.u32 %v2126, 30
        %v2128 = vsub.s32 %v2124, %v2127
        %vm2129 = vcmp.lt.s32.totalorder %v2128, 0
        %v2130 = vsub.s32 0, %v2128
        %v2131 = vsel %vm2129, %v2130, %v2128
        %v2132 = vclz %v2131
        %v2133 = vsub.s32 %v2132, 2
        %vm2134 = vcmp.gt.s32.totalorder 0, %v2133
        %v2135 = vsel %vm2134, 0, %v2133
        %v2136 = vsub.s32 32, %v2135
        %v2137 = vshll.u32 %v2128, %v2135
        %v2138 = vshrl.u32 %v2120, %v2136
        %v2139 = vor.u32 %v2137, %v2138
        %v2140 = vsub.s32 4294967266, %v2135
        %v2141 = vadd.s32 %v2140, 127
        %v2142 = vshll.u32 %v2141, 23
        %v2143 = vor.u32 4788187, %v2142
        %v2144 = vand.u32 2147483647, %v2143
        %v2146 = vcvt.s32.f32 %v2139
        %v2147 = vmul.f32 %v2146, %v2144
        %v2148 = vxor.u32 %v2147, 2147483648
        %v2149 = vsel %vm2066, %v2148, %v2147
        %v2150 = vsub.s32 4, %v2126
        %v2151 = vsel %vm2066, %v2150, %v2126
        %v2152 = vsel %vm2065, %v590, %v2149
        %v2153 = vsel %vm2065, 0, %v2151
        %v2154 = vcosq.f32.pop %v2152
        %v2155 = vsinq.f32.pop %v2152
        %vm2156 = vweird.f32 %v590
        %v2157 = vadd.s32 %v2153, 3
        %v2158 = vand.u32 %v2157, 3
        %vm2159 = vcmp.lt.s32.totalorder %v2158, 2
        %vm2160 = vcmp.eq.s32.totalorder %v2158, 0
        %v2161 = vxor.u32 %v2155, 2147483648
        %v2162 = vsel %vm2160, %v2154, %v2161
        %vm2163 = vcmp.eq.s32.totalorder %v2158, 2
        %v2164 = vxor.u32 %v2154, 2147483648
        %v2165 = vsel %vm2163, %v2164, %v2155
        %v2166 = vsel %vm2159, %v2162, %v2165
        %v2167 = vsel %vm2156, nan, %v2166
        %v2168 = vand.u32 2147483647, %v591
        %vm2169 = vcmp.le.f32.partialorder %v2168, 0.7853982
        %vm2170 = vcmp.lt.s32.totalorder %v591, 0
        %v2171 = vand.u32 %v591, 2139095040
        %v2172 = vshrl.u32 %v2171, 23
        %v2173 = vsub.s32 %v2172, 127
        %v2174 = vand.u32 2147483647, %v591
        %v2175 = vand.u32 %v2174, 8388607
        %v2176 = vor.u32 %v2175, 8388608
        %v2177 = vsub.s32 0, %v2176
        %v2178 = vadd.s32 %v2173, 1
        %vm2179 = vcmp.gt.s32.totalorder %v2178, 0
        %v2180 = vsel %vm2179, %v2178, 0
        %v2181 = vshrl.u32 %v2180, 5
        %v2182 = vand.u32 %v2180, 31
        %v2183 = vsub.s32 32, %v2182
        %v2184 = vshrl.u32 683565275, %v2183
        %v2185 = vshll.u32 683565275, %v2182
        %v2186 = vshrl.u32 2475754826, %v2183
        %v2187 = vor.u32 %v2185, %v2186
        %v2188 = vshll.u32 2475754826, %v2182
        %v2189 = vshrl.u32 2131351028, %v2183
        %v2190 = vor.u32 %v2188, %v2189
        %v2191 = vshll.u32 2131351028, %v2182
        %v2192 = vshrl.u32 2102212464, %v2183
        %v2193 = vor.u32 %v2191, %v2192
        %v2194 = vshll.u32 2102212464, %v2182
        %v2195 = vshrl.u32 920167782, %v2183
        %v2196 = vor.u32 %v2194, %v2195
        %v2197 = vshll.u32 920167782, %v2182
        %v2198 = vshrl.u32 1326507024, %v2183
        %v2199 = vor.u32 %v2197, %v2198
        %vm2200 = vcmp.lt.s32.totalorder %v2181, 1
        %vm2201 = vcmp.lt.s32.totalorder %v2181, 2
        %vm2202 = vcmp.lt.s32.totalorder %v2181, 3
        %vm2203 = vcmp.lt.s32.totalorder %v2181, 4
        %v2204 = vsel %vm2200, %v2184, %v2187
        %v2205 = vsel %vm2203, %v2193, 2102212464
        %v2206 = vsel %vm2202, %v2190, %v2205
        %v2207 = vsel %vm2201, %v2204, %v2206
        %v2208 = vsel %vm2200, %v2187, %v2190
        %v2209 = vsel %vm2203, %v2196, 920167782
        %v2210 = vsel %vm2202, %v2193, %v2209
        %v2211 = vsel %vm2201, %v2208, %v2210
        %v2212 = vsel %vm2200, %v2190, %v2193
        %v2213 = vsel %vm2203, %v2199, 1326507024
        %v2214 = vsel %vm2202, %v2196, %v2213
        %v2215 = vsel %vm2201, %v2212, %v2214
        %v2216 = vshll.u32 %v2176, 8
        %v2217 = vmul.u32.u64.compose %v2216, %v2215
        %v2218 = vextract.low.u32 %v2217
        %v2219 = vextract.high.u32 %v2217
        %v2220 = vmul.u32.u64.compose %v2216, %v2211
        %v2221 = vextract.low.u32 %v2220
        %v2222 = vextract.high.u32 %v2220
        %v2223 = vmul.u32 %v2216, %v2207
        %v2224 = vadd.s32 %v2219, %v2221
        %vm2225 = vc.u32 %v2219, %v2221
        %v2226 = vadd.s32 %v2222, 1
        %v2227 = vsel %vm2225, %v2226, %v2222
        %v2228 = vadd.s32 %v2223, %v2227
        %v2229 = vadd.s32 %v2228, 536870912
        %v2230 = vshrl.u32 %v2229, 30
        %v2231 = vshll.u32 %v2230, 30
        %v2232 = vsub.s32 %v2228, %v2231
        %vm2233 = vcmp.lt.s32.totalorder %v2232, 0
        %v2234 = vsub.s32 0, %v2232
        %v2235 = vsel %vm2233, %v2234, %v2232
        %v2236 = vclz %v2235
        %v2237 = vsub.s32 %v2236, 2
        %vm2238 = vcmp.gt.s32.totalorder 0, %v2237
        %v2239 = vsel %vm2238, 0, %v2237
        %v2240 = vsub.s32 32, %v2239
        %v2241 = vshll.u32 %v2232, %v2239
        %v2242 = vshrl.u32 %v2224, %v2240
        %v2243 = vor.u32 %v2241, %v2242
        %v2244 = vsub.s32 4294967266, %v2239
        %v2245 = vadd.s32 %v2244, 127
        %v2246 = vshll.u32 %v2245, 23
        %v2247 = vor.u32 4788187, %v2246
        %v2248 = vand.u32 2147483647, %v2247
        %v2250 = vcvt.s32.f32 %v2243
        %v2251 = vmul.f32 %v2250, %v2248
        %v2252 = vxor.u32 %v2251, 2147483648
        %v2253 = vsel %vm2170, %v2252, %v2251
        %v2254 = vsub.s32 4, %v2230
        %v2255 = vsel %vm2170, %v2254, %v2230
        %v2256 = vsel %vm2169, %v591, %v2253
        %v2257 = vsel %vm2169, 0, %v2255
        %v2258 = vcosq.f32.pop %v2256
        %v2259 = vsinq.f32.pop %v2256
        %vm2260 = vweird.f32 %v591
        %v2261 = vadd.s32 %v2257, 3
        %v2262 = vand.u32 %v2261, 3
        %vm2263 = vcmp.lt.s32.totalorder %v2262, 2
        %vm2264 = vcmp.eq.s32.totalorder %v2262, 0
        %v2265 = vxor.u32 %v2259, 2147483648
        %v2266 = vsel %vm2264, %v2258, %v2265
        %vm2267 = vcmp.eq.s32.totalorder %v2262, 2
        %v2268 = vxor.u32 %v2258, 2147483648
        %v2269 = vsel %vm2267, %v2268, %v2259
        %v2270 = vsel %vm2263, %v2266, %v2269
        %v2271 = vsel %vm2260, nan, %v2270
        %v2272 = vand.u32 2147483647, %v592
        %vm2273 = vcmp.le.f32.partialorder %v2272, 0.7853982
        %vm2274 = vcmp.lt.s32.totalorder %v592, 0
        %v2275 = vand.u32 %v592, 2139095040
        %v2276 = vshrl.u32 %v2275, 23
        %v2277 = vsub.s32 %v2276, 127
        %v2278 = vand.u32 2147483647, %v592
        %v2279 = vand.u32 %v2278, 8388607
        %v2280 = vor.u32 %v2279, 8388608
        %v2281 = vsub.s32 0, %v2280
        %v2282 = vadd.s32 %v2277, 1
        %vm2283 = vcmp.gt.s32.totalorder %v2282, 0
        %v2284 = vsel %vm2283, %v2282, 0
        %v2285 = vshrl.u32 %v2284, 5
        %v2286 = vand.u32 %v2284, 31
        %v2287 = vsub.s32 32, %v2286
        %v2288 = vshrl.u32 683565275, %v2287
        %v2289 = vshll.u32 683565275, %v2286
        %v2290 = vshrl.u32 2475754826, %v2287
        %v2291 = vor.u32 %v2289, %v2290
        %v2292 = vshll.u32 2475754826, %v2286
        %v2293 = vshrl.u32 2131351028, %v2287
        %v2294 = vor.u32 %v2292, %v2293
        %v2295 = vshll.u32 2131351028, %v2286
        %v2296 = vshrl.u32 2102212464, %v2287
        %v2297 = vor.u32 %v2295, %v2296
        %v2298 = vshll.u32 2102212464, %v2286
        %v2299 = vshrl.u32 920167782, %v2287
        %v2300 = vor.u32 %v2298, %v2299
        %v2301 = vshll.u32 920167782, %v2286
        %v2302 = vshrl.u32 1326507024, %v2287
        %v2303 = vor.u32 %v2301, %v2302
        %vm2304 = vcmp.lt.s32.totalorder %v2285, 1
        %vm2305 = vcmp.lt.s32.totalorder %v2285, 2
        %vm2306 = vcmp.lt.s32.totalorder %v2285, 3
        %vm2307 = vcmp.lt.s32.totalorder %v2285, 4
        %v2308 = vsel %vm2304, %v2288, %v2291
        %v2309 = vsel %vm2307, %v2297, 2102212464
        %v2310 = vsel %vm2306, %v2294, %v2309
        %v2311 = vsel %vm2305, %v2308, %v2310
        %v2312 = vsel %vm2304, %v2291, %v2294
        %v2313 = vsel %vm2307, %v2300, 920167782
        %v2314 = vsel %vm2306, %v2297, %v2313
        %v2315 = vsel %vm2305, %v2312, %v2314
        %v2316 = vsel %vm2304, %v2294, %v2297
        %v2317 = vsel %vm2307, %v2303, 1326507024
        %v2318 = vsel %vm2306, %v2300, %v2317
        %v2319 = vsel %vm2305, %v2316, %v2318
        %v2320 = vshll.u32 %v2280, 8
        %v2321 = vmul.u32.u64.compose %v2320, %v2319
        %v2322 = vextract.low.u32 %v2321
        %v2323 = vextract.high.u32 %v2321
        %v2324 = vmul.u32.u64.compose %v2320, %v2315
        %v2325 = vextract.low.u32 %v2324
        %v2326 = vextract.high.u32 %v2324
        %v2327 = vmul.u32 %v2320, %v2311
        %v2328 = vadd.s32 %v2323, %v2325
        %vm2329 = vc.u32 %v2323, %v2325
        %v2330 = vadd.s32 %v2326, 1
        %v2331 = vsel %vm2329, %v2330, %v2326
        %v2332 = vadd.s32 %v2327, %v2331
        %v2333 = vadd.s32 %v2332, 536870912
        %v2334 = vshrl.u32 %v2333, 30
        %v2335 = vshll.u32 %v2334, 30
        %v2336 = vsub.s32 %v2332, %v2335
        %vm2337 = vcmp.lt.s32.totalorder %v2336, 0
        %v2338 = vsub.s32 0, %v2336
        %v2339 = vsel %vm2337, %v2338, %v2336
        %v2340 = vclz %v2339
        %v2341 = vsub.s32 %v2340, 2
        %vm2342 = vcmp.gt.s32.totalorder 0, %v2341
        %v2343 = vsel %vm2342, 0, %v2341
        %v2344 = vsub.s32 32, %v2343
        %v2345 = vshll.u32 %v2336, %v2343
        %v2346 = vshrl.u32 %v2328, %v2344
        %v2347 = vor.u32 %v2345, %v2346
        %v2348 = vsub.s32 4294967266, %v2343
        %v2349 = vadd.s32 %v2348, 127
        %v2350 = vshll.u32 %v2349, 23
        %v2351 = vor.u32 4788187, %v2350
        %v2352 = vand.u32 2147483647, %v2351
        %v2354 = vcvt.s32.f32 %v2347
        %v2355 = vmul.f32 %v2354, %v2352
        %v2356 = vxor.u32 %v2355, 2147483648
        %v2357 = vsel %vm2274, %v2356, %v2355
        %v2358 = vsub.s32 4, %v2334
        %v2359 = vsel %vm2274, %v2358, %v2334
        %v2360 = vsel %vm2273, %v592, %v2357
        %v2361 = vsel %vm2273, 0, %v2359
        %v2362 = vcosq.f32.pop %v2360
        %v2363 = vsinq.f32.pop %v2360
        %vm2364 = vweird.f32 %v592
        %v2365 = vadd.s32 %v2361, 3
        %v2366 = vand.u32 %v2365, 3
        %vm2367 = vcmp.lt.s32.totalorder %v2366, 2
        %vm2368 = vcmp.eq.s32.totalorder %v2366, 0
        %v2369 = vxor.u32 %v2363, 2147483648
        %v2370 = vsel %vm2368, %v2362, %v2369
        %vm2371 = vcmp.eq.s32.totalorder %v2366, 2
        %v2372 = vxor.u32 %v2362, 2147483648
        %v2373 = vsel %vm2371, %v2372, %v2363
        %v2374 = vsel %vm2367, %v2370, %v2373
        %v2375 = vsel %vm2364, nan, %v2374
        %v2376 = vand.u32 2147483647, %v593
        %vm2377 = vcmp.le.f32.partialorder %v2376, 0.7853982
        %vm2378 = vcmp.lt.s32.totalorder %v593, 0
        %v2379 = vand.u32 %v593, 2139095040
        %v2380 = vshrl.u32 %v2379, 23
        %v2381 = vsub.s32 %v2380, 127
        %v2382 = vand.u32 2147483647, %v593
        %v2383 = vand.u32 %v2382, 8388607
        %v2384 = vor.u32 %v2383, 8388608
        %v2385 = vsub.s32 0, %v2384
        %v2386 = vadd.s32 %v2381, 1
        %vm2387 = vcmp.gt.s32.totalorder %v2386, 0
        %v2388 = vsel %vm2387, %v2386, 0
        %v2389 = vshrl.u32 %v2388, 5
        %v2390 = vand.u32 %v2388, 31
        %v2391 = vsub.s32 32, %v2390
        %v2392 = vshrl.u32 683565275, %v2391
        %v2393 = vshll.u32 683565275, %v2390
        %v2394 = vshrl.u32 2475754826, %v2391
        %v2395 = vor.u32 %v2393, %v2394
        %v2396 = vshll.u32 2475754826, %v2390
        %v2397 = vshrl.u32 2131351028, %v2391
        %v2398 = vor.u32 %v2396, %v2397
        %v2399 = vshll.u32 2131351028, %v2390
        %v2400 = vshrl.u32 2102212464, %v2391
        %v2401 = vor.u32 %v2399, %v2400
        %v2402 = vshll.u32 2102212464, %v2390
        %v2403 = vshrl.u32 920167782, %v2391
        %v2404 = vor.u32 %v2402, %v2403
        %v2405 = vshll.u32 920167782, %v2390
        %v2406 = vshrl.u32 1326507024, %v2391
        %v2407 = vor.u32 %v2405, %v2406
        %vm2408 = vcmp.lt.s32.totalorder %v2389, 1
        %vm2409 = vcmp.lt.s32.totalorder %v2389, 2
        %vm2410 = vcmp.lt.s32.totalorder %v2389, 3
        %vm2411 = vcmp.lt.s32.totalorder %v2389, 4
        %v2412 = vsel %vm2408, %v2392, %v2395
        %v2413 = vsel %vm2411, %v2401, 2102212464
        %v2414 = vsel %vm2410, %v2398, %v2413
        %v2415 = vsel %vm2409, %v2412, %v2414
        %v2416 = vsel %vm2408, %v2395, %v2398
        %v2417 = vsel %vm2411, %v2404, 920167782
        %v2418 = vsel %vm2410, %v2401, %v2417
        %v2419 = vsel %vm2409, %v2416, %v2418
        %v2420 = vsel %vm2408, %v2398, %v2401
        %v2421 = vsel %vm2411, %v2407, 1326507024
        %v2422 = vsel %vm2410, %v2404, %v2421
        %v2423 = vsel %vm2409, %v2420, %v2422
        %v2424 = vshll.u32 %v2384, 8
        %v2425 = vmul.u32.u64.compose %v2424, %v2423
        %v2426 = vextract.low.u32 %v2425
        %v2427 = vextract.high.u32 %v2425
        %v2428 = vmul.u32.u64.compose %v2424, %v2419
        %v2429 = vextract.low.u32 %v2428
        %v2430 = vextract.high.u32 %v2428
        %v2431 = vmul.u32 %v2424, %v2415
        %v2432 = vadd.s32 %v2427, %v2429
        %vm2433 = vc.u32 %v2427, %v2429
        %v2434 = vadd.s32 %v2430, 1
        %v2435 = vsel %vm2433, %v2434, %v2430
        %v2436 = vadd.s32 %v2431, %v2435
        %v2437 = vadd.s32 %v2436, 536870912
        %v2438 = vshrl.u32 %v2437, 30
        %v2439 = vshll.u32 %v2438, 30
        %v2440 = vsub.s32 %v2436, %v2439
        %vm2441 = vcmp.lt.s32.totalorder %v2440, 0
        %v2442 = vsub.s32 0, %v2440
        %v2443 = vsel %vm2441, %v2442, %v2440
        %v2444 = vclz %v2443
        %v2445 = vsub.s32 %v2444, 2
        %vm2446 = vcmp.gt.s32.totalorder 0, %v2445
        %v2447 = vsel %vm2446, 0, %v2445
        %v2448 = vsub.s32 32, %v2447
        %v2449 = vshll.u32 %v2440, %v2447
        %v2450 = vshrl.u32 %v2432, %v2448
        %v2451 = vor.u32 %v2449, %v2450
        %v2452 = vsub.s32 4294967266, %v2447
        %v2453 = vadd.s32 %v2452, 127
        %v2454 = vshll.u32 %v2453, 23
        %v2455 = vor.u32 4788187, %v2454
        %v2456 = vand.u32 2147483647, %v2455
        %v2458 = vcvt.s32.f32 %v2451
        %v2459 = vmul.f32 %v2458, %v2456
        %v2460 = vxor.u32 %v2459, 2147483648
        %v2461 = vsel %vm2378, %v2460, %v2459
        %v2462 = vsub.s32 4, %v2438
        %v2463 = vsel %vm2378, %v2462, %v2438
        %v2464 = vsel %vm2377, %v593, %v2461
        %v2465 = vsel %vm2377, 0, %v2463
        %v2466 = vcosq.f32.pop %v2464
        %v2467 = vsinq.f32.pop %v2464
        %vm2468 = vweird.f32 %v593
        %v2469 = vadd.s32 %v2465, 3
        %v2470 = vand.u32 %v2469, 3
        %vm2471 = vcmp.lt.s32.totalorder %v2470, 2
        %vm2472 = vcmp.eq.s32.totalorder %v2470, 0
        %v2473 = vxor.u32 %v2467, 2147483648
        %v2474 = vsel %vm2472, %v2466, %v2473
        %vm2475 = vcmp.eq.s32.totalorder %v2470, 2
        %v2476 = vxor.u32 %v2466, 2147483648
        %v2477 = vsel %vm2475, %v2476, %v2467
        %v2478 = vsel %vm2471, %v2474, %v2477
        %v2479 = vsel %vm2468, nan, %v2478
        %v2480 = vand.u32 2147483647, %v594
        %vm2481 = vcmp.le.f32.partialorder %v2480, 0.7853982
        %vm2482 = vcmp.lt.s32.totalorder %v594, 0
        %v2483 = vand.u32 %v594, 2139095040
        %v2484 = vshrl.u32 %v2483, 23
        %v2485 = vsub.s32 %v2484, 127
        %v2486 = vand.u32 2147483647, %v594
        %v2487 = vand.u32 %v2486, 8388607
        %v2488 = vor.u32 %v2487, 8388608
        %v2489 = vsub.s32 0, %v2488
        %v2490 = vadd.s32 %v2485, 1
        %vm2491 = vcmp.gt.s32.totalorder %v2490, 0
        %v2492 = vsel %vm2491, %v2490, 0
        %v2493 = vshrl.u32 %v2492, 5
        %v2494 = vand.u32 %v2492, 31
        %v2495 = vsub.s32 32, %v2494
        %v2496 = vshrl.u32 683565275, %v2495
        %v2497 = vshll.u32 683565275, %v2494
        %v2498 = vshrl.u32 2475754826, %v2495
        %v2499 = vor.u32 %v2497, %v2498
        %v2500 = vshll.u32 2475754826, %v2494
        %v2501 = vshrl.u32 2131351028, %v2495
        %v2502 = vor.u32 %v2500, %v2501
        %v2503 = vshll.u32 2131351028, %v2494
        %v2504 = vshrl.u32 2102212464, %v2495
        %v2505 = vor.u32 %v2503, %v2504
        %v2506 = vshll.u32 2102212464, %v2494
        %v2507 = vshrl.u32 920167782, %v2495
        %v2508 = vor.u32 %v2506, %v2507
        %v2509 = vshll.u32 920167782, %v2494
        %v2510 = vshrl.u32 1326507024, %v2495
        %v2511 = vor.u32 %v2509, %v2510
        %vm2512 = vcmp.lt.s32.totalorder %v2493, 1
        %vm2513 = vcmp.lt.s32.totalorder %v2493, 2
        %vm2514 = vcmp.lt.s32.totalorder %v2493, 3
        %vm2515 = vcmp.lt.s32.totalorder %v2493, 4
        %v2516 = vsel %vm2512, %v2496, %v2499
        %v2517 = vsel %vm2515, %v2505, 2102212464
        %v2518 = vsel %vm2514, %v2502, %v2517
        %v2519 = vsel %vm2513, %v2516, %v2518
        %v2520 = vsel %vm2512, %v2499, %v2502
        %v2521 = vsel %vm2515, %v2508, 920167782
        %v2522 = vsel %vm2514, %v2505, %v2521
        %v2523 = vsel %vm2513, %v2520, %v2522
        %v2524 = vsel %vm2512, %v2502, %v2505
        %v2525 = vsel %vm2515, %v2511, 1326507024
        %v2526 = vsel %vm2514, %v2508, %v2525
        %v2527 = vsel %vm2513, %v2524, %v2526
        %v2528 = vshll.u32 %v2488, 8
        %v2529 = vmul.u32.u64.compose %v2528, %v2527
        %v2530 = vextract.low.u32 %v2529
        %v2531 = vextract.high.u32 %v2529
        %v2532 = vmul.u32.u64.compose %v2528, %v2523
        %v2533 = vextract.low.u32 %v2532
        %v2534 = vextract.high.u32 %v2532
        %v2535 = vmul.u32 %v2528, %v2519
        %v2536 = vadd.s32 %v2531, %v2533
        %vm2537 = vc.u32 %v2531, %v2533
        %v2538 = vadd.s32 %v2534, 1
        %v2539 = vsel %vm2537, %v2538, %v2534
        %v2540 = vadd.s32 %v2535, %v2539
        %v2541 = vadd.s32 %v2540, 536870912
        %v2542 = vshrl.u32 %v2541, 30
        %v2543 = vshll.u32 %v2542, 30
        %v2544 = vsub.s32 %v2540, %v2543
        %vm2545 = vcmp.lt.s32.totalorder %v2544, 0
        %v2546 = vsub.s32 0, %v2544
        %v2547 = vsel %vm2545, %v2546, %v2544
        %v2548 = vclz %v2547
        %v2549 = vsub.s32 %v2548, 2
        %vm2550 = vcmp.gt.s32.totalorder 0, %v2549
        %v2551 = vsel %vm2550, 0, %v2549
        %v2552 = vsub.s32 32, %v2551
        %v2553 = vshll.u32 %v2544, %v2551
        %v2554 = vshrl.u32 %v2536, %v2552
        %v2555 = vor.u32 %v2553, %v2554
        %v2556 = vsub.s32 4294967266, %v2551
        %v2557 = vadd.s32 %v2556, 127
        %v2558 = vshll.u32 %v2557, 23
        %v2559 = vor.u32 4788187, %v2558
        %v2560 = vand.u32 2147483647, %v2559
        %v2562 = vcvt.s32.f32 %v2555
        %v2563 = vmul.f32 %v2562, %v2560
        %v2564 = vxor.u32 %v2563, 2147483648
        %v2565 = vsel %vm2482, %v2564, %v2563
        %v2566 = vsub.s32 4, %v2542
        %v2567 = vsel %vm2482, %v2566, %v2542
        %v2568 = vsel %vm2481, %v594, %v2565
        %v2569 = vsel %vm2481, 0, %v2567
        %v2570 = vcosq.f32.pop %v2568
        %v2571 = vsinq.f32.pop %v2568
        %vm2572 = vweird.f32 %v594
        %v2573 = vadd.s32 %v2569, 3
        %v2574 = vand.u32 %v2573, 3
        %vm2575 = vcmp.lt.s32.totalorder %v2574, 2
        %vm2576 = vcmp.eq.s32.totalorder %v2574, 0
        %v2577 = vxor.u32 %v2571, 2147483648
        %v2578 = vsel %vm2576, %v2570, %v2577
        %vm2579 = vcmp.eq.s32.totalorder %v2574, 2
        %v2580 = vxor.u32 %v2570, 2147483648
        %v2581 = vsel %vm2579, %v2580, %v2571
        %v2582 = vsel %vm2575, %v2578, %v2581
        %v2583 = vsel %vm2572, nan, %v2582
        %v2584 = vand.u32 2147483647, %v595
        %vm2585 = vcmp.le.f32.partialorder %v2584, 0.7853982
        %vm2586 = vcmp.lt.s32.totalorder %v595, 0
        %v2587 = vand.u32 %v595, 2139095040
        %v2588 = vshrl.u32 %v2587, 23
        %v2589 = vsub.s32 %v2588, 127
        %v2590 = vand.u32 2147483647, %v595
        %v2591 = vand.u32 %v2590, 8388607
        %v2592 = vor.u32 %v2591, 8388608
        %v2593 = vsub.s32 0, %v2592
        %v2594 = vadd.s32 %v2589, 1
        %vm2595 = vcmp.gt.s32.totalorder %v2594, 0
        %v2596 = vsel %vm2595, %v2594, 0
        %v2597 = vshrl.u32 %v2596, 5
        %v2598 = vand.u32 %v2596, 31
        %v2599 = vsub.s32 32, %v2598
        %v2600 = vshrl.u32 683565275, %v2599
        %v2601 = vshll.u32 683565275, %v2598
        %v2602 = vshrl.u32 2475754826, %v2599
        %v2603 = vor.u32 %v2601, %v2602
        %v2604 = vshll.u32 2475754826, %v2598
        %v2605 = vshrl.u32 2131351028, %v2599
        %v2606 = vor.u32 %v2604, %v2605
        %v2607 = vshll.u32 2131351028, %v2598
        %v2608 = vshrl.u32 2102212464, %v2599
        %v2609 = vor.u32 %v2607, %v2608
        %v2610 = vshll.u32 2102212464, %v2598
        %v2611 = vshrl.u32 920167782, %v2599
        %v2612 = vor.u32 %v2610, %v2611
        %v2613 = vshll.u32 920167782, %v2598
        %v2614 = vshrl.u32 1326507024, %v2599
        %v2615 = vor.u32 %v2613, %v2614
        %vm2616 = vcmp.lt.s32.totalorder %v2597, 1
        %vm2617 = vcmp.lt.s32.totalorder %v2597, 2
        %vm2618 = vcmp.lt.s32.totalorder %v2597, 3
        %vm2619 = vcmp.lt.s32.totalorder %v2597, 4
        %v2620 = vsel %vm2616, %v2600, %v2603
        %v2621 = vsel %vm2619, %v2609, 2102212464
        %v2622 = vsel %vm2618, %v2606, %v2621
        %v2623 = vsel %vm2617, %v2620, %v2622
        %v2624 = vsel %vm2616, %v2603, %v2606
        %v2625 = vsel %vm2619, %v2612, 920167782
        %v2626 = vsel %vm2618, %v2609, %v2625
        %v2627 = vsel %vm2617, %v2624, %v2626
        %v2628 = vsel %vm2616, %v2606, %v2609
        %v2629 = vsel %vm2619, %v2615, 1326507024
        %v2630 = vsel %vm2618, %v2612, %v2629
        %v2631 = vsel %vm2617, %v2628, %v2630
        %v2632 = vshll.u32 %v2592, 8
        %v2633 = vmul.u32.u64.compose %v2632, %v2631
        %v2634 = vextract.low.u32 %v2633
        %v2635 = vextract.high.u32 %v2633
        %v2636 = vmul.u32.u64.compose %v2632, %v2627
        %v2637 = vextract.low.u32 %v2636
        %v2638 = vextract.high.u32 %v2636
        %v2639 = vmul.u32 %v2632, %v2623
        %v2640 = vadd.s32 %v2635, %v2637
        %vm2641 = vc.u32 %v2635, %v2637
        %v2642 = vadd.s32 %v2638, 1
        %v2643 = vsel %vm2641, %v2642, %v2638
        %v2644 = vadd.s32 %v2639, %v2643
        %v2645 = vadd.s32 %v2644, 536870912
        %v2646 = vshrl.u32 %v2645, 30
        %v2647 = vshll.u32 %v2646, 30
        %v2648 = vsub.s32 %v2644, %v2647
        %vm2649 = vcmp.lt.s32.totalorder %v2648, 0
        %v2650 = vsub.s32 0, %v2648
        %v2651 = vsel %vm2649, %v2650, %v2648
        %v2652 = vclz %v2651
        %v2653 = vsub.s32 %v2652, 2
        %vm2654 = vcmp.gt.s32.totalorder 0, %v2653
        %v2655 = vsel %vm2654, 0, %v2653
        %v2656 = vsub.s32 32, %v2655
        %v2657 = vshll.u32 %v2648, %v2655
        %v2658 = vshrl.u32 %v2640, %v2656
        %v2659 = vor.u32 %v2657, %v2658
        %v2660 = vsub.s32 4294967266, %v2655
        %v2661 = vadd.s32 %v2660, 127
        %v2662 = vshll.u32 %v2661, 23
        %v2663 = vor.u32 4788187, %v2662
        %v2664 = vand.u32 2147483647, %v2663
        %v2666 = vcvt.s32.f32 %v2659
        %v2667 = vmul.f32 %v2666, %v2664
        %v2668 = vxor.u32 %v2667, 2147483648
        %v2669 = vsel %vm2586, %v2668, %v2667
        %v2670 = vsub.s32 4, %v2646
        %v2671 = vsel %vm2586, %v2670, %v2646
        %v2672 = vsel %vm2585, %v595, %v2669
        %v2673 = vsel %vm2585, 0, %v2671
        %v2674 = vcosq.f32.pop %v2672
        %v2675 = vsinq.f32.pop %v2672
        %vm2676 = vweird.f32 %v595
        %v2677 = vadd.s32 %v2673, 3
        %v2678 = vand.u32 %v2677, 3
        %vm2679 = vcmp.lt.s32.totalorder %v2678, 2
        %vm2680 = vcmp.eq.s32.totalorder %v2678, 0
        %v2681 = vxor.u32 %v2675, 2147483648
        %v2682 = vsel %vm2680, %v2674, %v2681
        %vm2683 = vcmp.eq.s32.totalorder %v2678, 2
        %v2684 = vxor.u32 %v2674, 2147483648
        %v2685 = vsel %vm2683, %v2684, %v2675
        %v2686 = vsel %vm2679, %v2682, %v2685
        %v2687 = vsel %vm2676, nan, %v2686
        %v2688 = vand.u32 2147483647, %v596
        %vm2689 = vcmp.le.f32.partialorder %v2688, 0.7853982
        %vm2690 = vcmp.lt.s32.totalorder %v596, 0
        %v2691 = vand.u32 %v596, 2139095040
        %v2692 = vshrl.u32 %v2691, 23
        %v2693 = vsub.s32 %v2692, 127
        %v2694 = vand.u32 2147483647, %v596
        %v2695 = vand.u32 %v2694, 8388607
        %v2696 = vor.u32 %v2695, 8388608
        %v2697 = vsub.s32 0, %v2696
        %v2698 = vadd.s32 %v2693, 1
        %vm2699 = vcmp.gt.s32.totalorder %v2698, 0
        %v2700 = vsel %vm2699, %v2698, 0
        %v2701 = vshrl.u32 %v2700, 5
        %v2702 = vand.u32 %v2700, 31
        %v2703 = vsub.s32 32, %v2702
        %v2704 = vshrl.u32 683565275, %v2703
        %v2705 = vshll.u32 683565275, %v2702
        %v2706 = vshrl.u32 2475754826, %v2703
        %v2707 = vor.u32 %v2705, %v2706
        %v2708 = vshll.u32 2475754826, %v2702
        %v2709 = vshrl.u32 2131351028, %v2703
        %v2710 = vor.u32 %v2708, %v2709
        %v2711 = vshll.u32 2131351028, %v2702
        %v2712 = vshrl.u32 2102212464, %v2703
        %v2713 = vor.u32 %v2711, %v2712
        %v2714 = vshll.u32 2102212464, %v2702
        %v2715 = vshrl.u32 920167782, %v2703
        %v2716 = vor.u32 %v2714, %v2715
        %v2717 = vshll.u32 920167782, %v2702
        %v2718 = vshrl.u32 1326507024, %v2703
        %v2719 = vor.u32 %v2717, %v2718
        %vm2720 = vcmp.lt.s32.totalorder %v2701, 1
        %vm2721 = vcmp.lt.s32.totalorder %v2701, 2
        %vm2722 = vcmp.lt.s32.totalorder %v2701, 3
        %vm2723 = vcmp.lt.s32.totalorder %v2701, 4
        %v2724 = vsel %vm2720, %v2704, %v2707
        %v2725 = vsel %vm2723, %v2713, 2102212464
        %v2726 = vsel %vm2722, %v2710, %v2725
        %v2727 = vsel %vm2721, %v2724, %v2726
        %v2728 = vsel %vm2720, %v2707, %v2710
        %v2729 = vsel %vm2723, %v2716, 920167782
        %v2730 = vsel %vm2722, %v2713, %v2729
        %v2731 = vsel %vm2721, %v2728, %v2730
        %v2732 = vsel %vm2720, %v2710, %v2713
        %v2733 = vsel %vm2723, %v2719, 1326507024
        %v2734 = vsel %vm2722, %v2716, %v2733
        %v2735 = vsel %vm2721, %v2732, %v2734
        %v2736 = vshll.u32 %v2696, 8
        %v2737 = vmul.u32.u64.compose %v2736, %v2735
        %v2738 = vextract.low.u32 %v2737
        %v2739 = vextract.high.u32 %v2737
        %v2740 = vmul.u32.u64.compose %v2736, %v2731
        %v2741 = vextract.low.u32 %v2740
        %v2742 = vextract.high.u32 %v2740
        %v2743 = vmul.u32 %v2736, %v2727
        %v2744 = vadd.s32 %v2739, %v2741
        %vm2745 = vc.u32 %v2739, %v2741
        %v2746 = vadd.s32 %v2742, 1
        %v2747 = vsel %vm2745, %v2746, %v2742
        %v2748 = vadd.s32 %v2743, %v2747
        %v2749 = vadd.s32 %v2748, 536870912
        %v2750 = vshrl.u32 %v2749, 30
        %v2751 = vshll.u32 %v2750, 30
        %v2752 = vsub.s32 %v2748, %v2751
        %vm2753 = vcmp.lt.s32.totalorder %v2752, 0
        %v2754 = vsub.s32 0, %v2752
        %v2755 = vsel %vm2753, %v2754, %v2752
        %v2756 = vclz %v2755
        %v2757 = vsub.s32 %v2756, 2
        %vm2758 = vcmp.gt.s32.totalorder 0, %v2757
        %v2759 = vsel %vm2758, 0, %v2757
        %v2760 = vsub.s32 32, %v2759
        %v2761 = vshll.u32 %v2752, %v2759
        %v2762 = vshrl.u32 %v2744, %v2760
        %v2763 = vor.u32 %v2761, %v2762
        %v2764 = vsub.s32 4294967266, %v2759
        %v2765 = vadd.s32 %v2764, 127
        %v2766 = vshll.u32 %v2765, 23
        %v2767 = vor.u32 4788187, %v2766
        %v2768 = vand.u32 2147483647, %v2767
        %v2770 = vcvt.s32.f32 %v2763
        %v2771 = vmul.f32 %v2770, %v2768
        %v2772 = vxor.u32 %v2771, 2147483648
        %v2773 = vsel %vm2690, %v2772, %v2771
        %v2774 = vsub.s32 4, %v2750
        %v2775 = vsel %vm2690, %v2774, %v2750
        %v2776 = vsel %vm2689, %v596, %v2773
        %v2777 = vsel %vm2689, 0, %v2775
        %v2778 = vcosq.f32.pop %v2776
        %v2779 = vsinq.f32.pop %v2776
        %vm2780 = vweird.f32 %v596
        %v2781 = vadd.s32 %v2777, 3
        %v2782 = vand.u32 %v2781, 3
        %vm2783 = vcmp.lt.s32.totalorder %v2782, 2
        %vm2784 = vcmp.eq.s32.totalorder %v2782, 0
        %v2785 = vxor.u32 %v2779, 2147483648
        %v2786 = vsel %vm2784, %v2778, %v2785
        %vm2787 = vcmp.eq.s32.totalorder %v2782, 2
        %v2788 = vxor.u32 %v2778, 2147483648
        %v2789 = vsel %vm2787, %v2788, %v2779
        %v2790 = vsel %vm2783, %v2786, %v2789
        %v2791 = vsel %vm2780, nan, %v2790
        %v2792 = vand.u32 2147483647, %v597
        %vm2793 = vcmp.le.f32.partialorder %v2792, 0.7853982
        %vm2794 = vcmp.lt.s32.totalorder %v597, 0
        %v2795 = vand.u32 %v597, 2139095040
        %v2796 = vshrl.u32 %v2795, 23
        %v2797 = vsub.s32 %v2796, 127
        %v2798 = vand.u32 2147483647, %v597
        %v2799 = vand.u32 %v2798, 8388607
        %v2800 = vor.u32 %v2799, 8388608
        %v2801 = vsub.s32 0, %v2800
        %v2802 = vadd.s32 %v2797, 1
        %vm2803 = vcmp.gt.s32.totalorder %v2802, 0
        %v2804 = vsel %vm2803, %v2802, 0
        %v2805 = vshrl.u32 %v2804, 5
        %v2806 = vand.u32 %v2804, 31
        %v2807 = vsub.s32 32, %v2806
        %v2808 = vshrl.u32 683565275, %v2807
        %v2809 = vshll.u32 683565275, %v2806
        %v2810 = vshrl.u32 2475754826, %v2807
        %v2811 = vor.u32 %v2809, %v2810
        %v2812 = vshll.u32 2475754826, %v2806
        %v2813 = vshrl.u32 2131351028, %v2807
        %v2814 = vor.u32 %v2812, %v2813
        %v2815 = vshll.u32 2131351028, %v2806
        %v2816 = vshrl.u32 2102212464, %v2807
        %v2817 = vor.u32 %v2815, %v2816
        %v2818 = vshll.u32 2102212464, %v2806
        %v2819 = vshrl.u32 920167782, %v2807
        %v2820 = vor.u32 %v2818, %v2819
        %v2821 = vshll.u32 920167782, %v2806
        %v2822 = vshrl.u32 1326507024, %v2807
        %v2823 = vor.u32 %v2821, %v2822
        %vm2824 = vcmp.lt.s32.totalorder %v2805, 1
        %vm2825 = vcmp.lt.s32.totalorder %v2805, 2
        %vm2826 = vcmp.lt.s32.totalorder %v2805, 3
        %vm2827 = vcmp.lt.s32.totalorder %v2805, 4
        %v2828 = vsel %vm2824, %v2808, %v2811
        %v2829 = vsel %vm2827, %v2817, 2102212464
        %v2830 = vsel %vm2826, %v2814, %v2829
        %v2831 = vsel %vm2825, %v2828, %v2830
        %v2832 = vsel %vm2824, %v2811, %v2814
        %v2833 = vsel %vm2827, %v2820, 920167782
        %v2834 = vsel %vm2826, %v2817, %v2833
        %v2835 = vsel %vm2825, %v2832, %v2834
        %v2836 = vsel %vm2824, %v2814, %v2817
        %v2837 = vsel %vm2827, %v2823, 1326507024
        %v2838 = vsel %vm2826, %v2820, %v2837
        %v2839 = vsel %vm2825, %v2836, %v2838
        %v2840 = vshll.u32 %v2800, 8
        %v2841 = vmul.u32.u64.compose %v2840, %v2839
        %v2842 = vextract.low.u32 %v2841
        %v2843 = vextract.high.u32 %v2841
        %v2844 = vmul.u32.u64.compose %v2840, %v2835
        %v2845 = vextract.low.u32 %v2844
        %v2846 = vextract.high.u32 %v2844
        %v2847 = vmul.u32 %v2840, %v2831
        %v2848 = vadd.s32 %v2843, %v2845
        %vm2849 = vc.u32 %v2843, %v2845
        %v2850 = vadd.s32 %v2846, 1
        %v2851 = vsel %vm2849, %v2850, %v2846
        %v2852 = vadd.s32 %v2847, %v2851
        %v2853 = vadd.s32 %v2852, 536870912
        %v2854 = vshrl.u32 %v2853, 30
        %v2855 = vshll.u32 %v2854, 30
        %v2856 = vsub.s32 %v2852, %v2855
        %vm2857 = vcmp.lt.s32.totalorder %v2856, 0
        %v2858 = vsub.s32 0, %v2856
        %v2859 = vsel %vm2857, %v2858, %v2856
        %v2860 = vclz %v2859
        %v2861 = vsub.s32 %v2860, 2
        %vm2862 = vcmp.gt.s32.totalorder 0, %v2861
        %v2863 = vsel %vm2862, 0, %v2861
        %v2864 = vsub.s32 32, %v2863
        %v2865 = vshll.u32 %v2856, %v2863
        %v2866 = vshrl.u32 %v2848, %v2864
        %v2867 = vor.u32 %v2865, %v2866
        %v2868 = vsub.s32 4294967266, %v2863
        %v2869 = vadd.s32 %v2868, 127
        %v2870 = vshll.u32 %v2869, 23
        %v2871 = vor.u32 4788187, %v2870
        %v2872 = vand.u32 2147483647, %v2871
        %v2874 = vcvt.s32.f32 %v2867
        %v2875 = vmul.f32 %v2874, %v2872
        %v2876 = vxor.u32 %v2875, 2147483648
        %v2877 = vsel %vm2794, %v2876, %v2875
        %v2878 = vsub.s32 4, %v2854
        %v2879 = vsel %vm2794, %v2878, %v2854
        %v2880 = vsel %vm2793, %v597, %v2877
        %v2881 = vsel %vm2793, 0, %v2879
        %v2882 = vcosq.f32.pop %v2880
        %v2883 = vsinq.f32.pop %v2880
        %vm2884 = vweird.f32 %v597
        %v2885 = vadd.s32 %v2881, 3
        %v2886 = vand.u32 %v2885, 3
        %vm2887 = vcmp.lt.s32.totalorder %v2886, 2
        %vm2888 = vcmp.eq.s32.totalorder %v2886, 0
        %v2889 = vxor.u32 %v2883, 2147483648
        %v2890 = vsel %vm2888, %v2882, %v2889
        %vm2891 = vcmp.eq.s32.totalorder %v2886, 2
        %v2892 = vxor.u32 %v2882, 2147483648
        %v2893 = vsel %vm2891, %v2892, %v2883
        %v2894 = vsel %vm2887, %v2890, %v2893
        %v2895 = vsel %vm2884, nan, %v2894
        %v2896 = vand.u32 2147483647, %v598
        %vm2897 = vcmp.le.f32.partialorder %v2896, 0.7853982
        %vm2898 = vcmp.lt.s32.totalorder %v598, 0
        %v2899 = vand.u32 %v598, 2139095040
        %v2900 = vshrl.u32 %v2899, 23
        %v2901 = vsub.s32 %v2900, 127
        %v2902 = vand.u32 2147483647, %v598
        %v2903 = vand.u32 %v2902, 8388607
        %v2904 = vor.u32 %v2903, 8388608
        %v2905 = vsub.s32 0, %v2904
        %v2906 = vadd.s32 %v2901, 1
        %vm2907 = vcmp.gt.s32.totalorder %v2906, 0
        %v2908 = vsel %vm2907, %v2906, 0
        %v2909 = vshrl.u32 %v2908, 5
        %v2910 = vand.u32 %v2908, 31
        %v2911 = vsub.s32 32, %v2910
        %v2912 = vshrl.u32 683565275, %v2911
        %v2913 = vshll.u32 683565275, %v2910
        %v2914 = vshrl.u32 2475754826, %v2911
        %v2915 = vor.u32 %v2913, %v2914
        %v2916 = vshll.u32 2475754826, %v2910
        %v2917 = vshrl.u32 2131351028, %v2911
        %v2918 = vor.u32 %v2916, %v2917
        %v2919 = vshll.u32 2131351028, %v2910
        %v2920 = vshrl.u32 2102212464, %v2911
        %v2921 = vor.u32 %v2919, %v2920
        %v2922 = vshll.u32 2102212464, %v2910
        %v2923 = vshrl.u32 920167782, %v2911
        %v2924 = vor.u32 %v2922, %v2923
        %v2925 = vshll.u32 920167782, %v2910
        %v2926 = vshrl.u32 1326507024, %v2911
        %v2927 = vor.u32 %v2925, %v2926
        %vm2928 = vcmp.lt.s32.totalorder %v2909, 1
        %vm2929 = vcmp.lt.s32.totalorder %v2909, 2
        %vm2930 = vcmp.lt.s32.totalorder %v2909, 3
        %vm2931 = vcmp.lt.s32.totalorder %v2909, 4
        %v2932 = vsel %vm2928, %v2912, %v2915
        %v2933 = vsel %vm2931, %v2921, 2102212464
        %v2934 = vsel %vm2930, %v2918, %v2933
        %v2935 = vsel %vm2929, %v2932, %v2934
        %v2936 = vsel %vm2928, %v2915, %v2918
        %v2937 = vsel %vm2931, %v2924, 920167782
        %v2938 = vsel %vm2930, %v2921, %v2937
        %v2939 = vsel %vm2929, %v2936, %v2938
        %v2940 = vsel %vm2928, %v2918, %v2921
        %v2941 = vsel %vm2931, %v2927, 1326507024
        %v2942 = vsel %vm2930, %v2924, %v2941
        %v2943 = vsel %vm2929, %v2940, %v2942
        %v2944 = vshll.u32 %v2904, 8
        %v2945 = vmul.u32.u64.compose %v2944, %v2943
        %v2946 = vextract.low.u32 %v2945
        %v2947 = vextract.high.u32 %v2945
        %v2948 = vmul.u32.u64.compose %v2944, %v2939
        %v2949 = vextract.low.u32 %v2948
        %v2950 = vextract.high.u32 %v2948
        %v2951 = vmul.u32 %v2944, %v2935
        %v2952 = vadd.s32 %v2947, %v2949
        %vm2953 = vc.u32 %v2947, %v2949
        %v2954 = vadd.s32 %v2950, 1
        %v2955 = vsel %vm2953, %v2954, %v2950
        %v2956 = vadd.s32 %v2951, %v2955
        %v2957 = vadd.s32 %v2956, 536870912
        %v2958 = vshrl.u32 %v2957, 30
        %v2959 = vshll.u32 %v2958, 30
        %v2960 = vsub.s32 %v2956, %v2959
        %vm2961 = vcmp.lt.s32.totalorder %v2960, 0
        %v2962 = vsub.s32 0, %v2960
        %v2963 = vsel %vm2961, %v2962, %v2960
        %v2964 = vclz %v2963
        %v2965 = vsub.s32 %v2964, 2
        %vm2966 = vcmp.gt.s32.totalorder 0, %v2965
        %v2967 = vsel %vm2966, 0, %v2965
        %v2968 = vsub.s32 32, %v2967
        %v2969 = vshll.u32 %v2960, %v2967
        %v2970 = vshrl.u32 %v2952, %v2968
        %v2971 = vor.u32 %v2969, %v2970
        %v2972 = vsub.s32 4294967266, %v2967
        %v2973 = vadd.s32 %v2972, 127
        %v2974 = vshll.u32 %v2973, 23
        %v2975 = vor.u32 4788187, %v2974
        %v2976 = vand.u32 2147483647, %v2975
        %v2978 = vcvt.s32.f32 %v2971
        %v2979 = vmul.f32 %v2978, %v2976
        %v2980 = vxor.u32 %v2979, 2147483648
        %v2981 = vsel %vm2898, %v2980, %v2979
        %v2982 = vsub.s32 4, %v2958
        %v2983 = vsel %vm2898, %v2982, %v2958
        %v2984 = vsel %vm2897, %v598, %v2981
        %v2985 = vsel %vm2897, 0, %v2983
        %v2986 = vcosq.f32.pop %v2984
        %v2987 = vsinq.f32.pop %v2984
        %vm2988 = vweird.f32 %v598
        %v2989 = vadd.s32 %v2985, 3
        %v2990 = vand.u32 %v2989, 3
        %vm2991 = vcmp.lt.s32.totalorder %v2990, 2
        %vm2992 = vcmp.eq.s32.totalorder %v2990, 0
        %v2993 = vxor.u32 %v2987, 2147483648
        %v2994 = vsel %vm2992, %v2986, %v2993
        %vm2995 = vcmp.eq.s32.totalorder %v2990, 2
        %v2996 = vxor.u32 %v2986, 2147483648
        %v2997 = vsel %vm2995, %v2996, %v2987
        %v2998 = vsel %vm2991, %v2994, %v2997
        %v2999 = vsel %vm2988, nan, %v2998
        %v3000 = vand.u32 2147483647, %v599
        %vm3001 = vcmp.le.f32.partialorder %v3000, 0.7853982
        %vm3002 = vcmp.lt.s32.totalorder %v599, 0
        %v3003 = vand.u32 %v599, 2139095040
        %v3004 = vshrl.u32 %v3003, 23
        %v3005 = vsub.s32 %v3004, 127
        %v3006 = vand.u32 2147483647, %v599
        %v3007 = vand.u32 %v3006, 8388607
        %v3008 = vor.u32 %v3007, 8388608
        %v3009 = vsub.s32 0, %v3008
        %v3010 = vadd.s32 %v3005, 1
        %vm3011 = vcmp.gt.s32.totalorder %v3010, 0
        %v3012 = vsel %vm3011, %v3010, 0
        %v3013 = vshrl.u32 %v3012, 5
        %v3014 = vand.u32 %v3012, 31
        %v3015 = vsub.s32 32, %v3014
        %v3016 = vshrl.u32 683565275, %v3015
        %v3017 = vshll.u32 683565275, %v3014
        %v3018 = vshrl.u32 2475754826, %v3015
        %v3019 = vor.u32 %v3017, %v3018
        %v3020 = vshll.u32 2475754826, %v3014
        %v3021 = vshrl.u32 2131351028, %v3015
        %v3022 = vor.u32 %v3020, %v3021
        %v3023 = vshll.u32 2131351028, %v3014
        %v3024 = vshrl.u32 2102212464, %v3015
        %v3025 = vor.u32 %v3023, %v3024
        %v3026 = vshll.u32 2102212464, %v3014
        %v3027 = vshrl.u32 920167782, %v3015
        %v3028 = vor.u32 %v3026, %v3027
        %v3029 = vshll.u32 920167782, %v3014
        %v3030 = vshrl.u32 1326507024, %v3015
        %v3031 = vor.u32 %v3029, %v3030
        %vm3032 = vcmp.lt.s32.totalorder %v3013, 1
        %vm3033 = vcmp.lt.s32.totalorder %v3013, 2
        %vm3034 = vcmp.lt.s32.totalorder %v3013, 3
        %vm3035 = vcmp.lt.s32.totalorder %v3013, 4
        %v3036 = vsel %vm3032, %v3016, %v3019
        %v3037 = vsel %vm3035, %v3025, 2102212464
        %v3038 = vsel %vm3034, %v3022, %v3037
        %v3039 = vsel %vm3033, %v3036, %v3038
        %v3040 = vsel %vm3032, %v3019, %v3022
        %v3041 = vsel %vm3035, %v3028, 920167782
        %v3042 = vsel %vm3034, %v3025, %v3041
        %v3043 = vsel %vm3033, %v3040, %v3042
        %v3044 = vsel %vm3032, %v3022, %v3025
        %v3045 = vsel %vm3035, %v3031, 1326507024
        %v3046 = vsel %vm3034, %v3028, %v3045
        %v3047 = vsel %vm3033, %v3044, %v3046
        %v3048 = vshll.u32 %v3008, 8
        %v3049 = vmul.u32.u64.compose %v3048, %v3047
        %v3050 = vextract.low.u32 %v3049
        %v3051 = vextract.high.u32 %v3049
        %v3052 = vmul.u32.u64.compose %v3048, %v3043
        %v3053 = vextract.low.u32 %v3052
        %v3054 = vextract.high.u32 %v3052
        %v3055 = vmul.u32 %v3048, %v3039
        %v3056 = vadd.s32 %v3051, %v3053
        %vm3057 = vc.u32 %v3051, %v3053
        %v3058 = vadd.s32 %v3054, 1
        %v3059 = vsel %vm3057, %v3058, %v3054
        %v3060 = vadd.s32 %v3055, %v3059
        %v3061 = vadd.s32 %v3060, 536870912
        %v3062 = vshrl.u32 %v3061, 30
        %v3063 = vshll.u32 %v3062, 30
        %v3064 = vsub.s32 %v3060, %v3063
        %vm3065 = vcmp.lt.s32.totalorder %v3064, 0
        %v3066 = vsub.s32 0, %v3064
        %v3067 = vsel %vm3065, %v3066, %v3064
        %v3068 = vclz %v3067
        %v3069 = vsub.s32 %v3068, 2
        %vm3070 = vcmp.gt.s32.totalorder 0, %v3069
        %v3071 = vsel %vm3070, 0, %v3069
        %v3072 = vsub.s32 32, %v3071
        %v3073 = vshll.u32 %v3064, %v3071
        %v3074 = vshrl.u32 %v3056, %v3072
        %v3075 = vor.u32 %v3073, %v3074
        %v3076 = vsub.s32 4294967266, %v3071
        %v3077 = vadd.s32 %v3076, 127
        %v3078 = vshll.u32 %v3077, 23
        %v3079 = vor.u32 4788187, %v3078
        %v3080 = vand.u32 2147483647, %v3079
        %v3082 = vcvt.s32.f32 %v3075
        %v3083 = vmul.f32 %v3082, %v3080
        %v3084 = vxor.u32 %v3083, 2147483648
        %v3085 = vsel %vm3002, %v3084, %v3083
        %v3086 = vsub.s32 4, %v3062
        %v3087 = vsel %vm3002, %v3086, %v3062
        %v3088 = vsel %vm3001, %v599, %v3085
        %v3089 = vsel %vm3001, 0, %v3087
        %v3090 = vcosq.f32.pop %v3088
        %v3091 = vsinq.f32.pop %v3088
        %vm3092 = vweird.f32 %v599
        %v3093 = vadd.s32 %v3089, 3
        %v3094 = vand.u32 %v3093, 3
        %vm3095 = vcmp.lt.s32.totalorder %v3094, 2
        %vm3096 = vcmp.eq.s32.totalorder %v3094, 0
        %v3097 = vxor.u32 %v3091, 2147483648
        %v3098 = vsel %vm3096, %v3090, %v3097
        %vm3099 = vcmp.eq.s32.totalorder %v3094, 2
        %v3100 = vxor.u32 %v3090, 2147483648
        %v3101 = vsel %vm3099, %v3100, %v3091
        %v3102 = vsel %vm3095, %v3098, %v3101
        %v3103 = vsel %vm3092, nan, %v3102
        %v3104 = vand.u32 2147483647, %v600
        %vm3105 = vcmp.le.f32.partialorder %v3104, 0.7853982
        %vm3106 = vcmp.lt.s32.totalorder %v600, 0
        %v3107 = vand.u32 %v600, 2139095040
        %v3108 = vshrl.u32 %v3107, 23
        %v3109 = vsub.s32 %v3108, 127
        %v3110 = vand.u32 2147483647, %v600
        %v3111 = vand.u32 %v3110, 8388607
        %v3112 = vor.u32 %v3111, 8388608
        %v3113 = vsub.s32 0, %v3112
        %v3114 = vadd.s32 %v3109, 1
        %vm3115 = vcmp.gt.s32.totalorder %v3114, 0
        %v3116 = vsel %vm3115, %v3114, 0
        %v3117 = vshrl.u32 %v3116, 5
        %v3118 = vand.u32 %v3116, 31
        %v3119 = vsub.s32 32, %v3118
        %v3120 = vshrl.u32 683565275, %v3119
        %v3121 = vshll.u32 683565275, %v3118
        %v3122 = vshrl.u32 2475754826, %v3119
        %v3123 = vor.u32 %v3121, %v3122
        %v3124 = vshll.u32 2475754826, %v3118
        %v3125 = vshrl.u32 2131351028, %v3119
        %v3126 = vor.u32 %v3124, %v3125
        %v3127 = vshll.u32 2131351028, %v3118
        %v3128 = vshrl.u32 2102212464, %v3119
        %v3129 = vor.u32 %v3127, %v3128
        %v3130 = vshll.u32 2102212464, %v3118
        %v3131 = vshrl.u32 920167782, %v3119
        %v3132 = vor.u32 %v3130, %v3131
        %v3133 = vshll.u32 920167782, %v3118
        %v3134 = vshrl.u32 1326507024, %v3119
        %v3135 = vor.u32 %v3133, %v3134
        %vm3136 = vcmp.lt.s32.totalorder %v3117, 1
        %vm3137 = vcmp.lt.s32.totalorder %v3117, 2
        %vm3138 = vcmp.lt.s32.totalorder %v3117, 3
        %vm3139 = vcmp.lt.s32.totalorder %v3117, 4
        %v3140 = vsel %vm3136, %v3120, %v3123
        %v3141 = vsel %vm3139, %v3129, 2102212464
        %v3142 = vsel %vm3138, %v3126, %v3141
        %v3143 = vsel %vm3137, %v3140, %v3142
        %v3144 = vsel %vm3136, %v3123, %v3126
        %v3145 = vsel %vm3139, %v3132, 920167782
        %v3146 = vsel %vm3138, %v3129, %v3145
        %v3147 = vsel %vm3137, %v3144, %v3146
        %v3148 = vsel %vm3136, %v3126, %v3129
        %v3149 = vsel %vm3139, %v3135, 1326507024
        %v3150 = vsel %vm3138, %v3132, %v3149
        %v3151 = vsel %vm3137, %v3148, %v3150
        %v3152 = vshll.u32 %v3112, 8
        %v3153 = vmul.u32.u64.compose %v3152, %v3151
        %v3154 = vextract.low.u32 %v3153
        %v3155 = vextract.high.u32 %v3153
        %v3156 = vmul.u32.u64.compose %v3152, %v3147
        %v3157 = vextract.low.u32 %v3156
        %v3158 = vextract.high.u32 %v3156
        %v3159 = vmul.u32 %v3152, %v3143
        %v3160 = vadd.s32 %v3155, %v3157
        %vm3161 = vc.u32 %v3155, %v3157
        %v3162 = vadd.s32 %v3158, 1
        %v3163 = vsel %vm3161, %v3162, %v3158
        %v3164 = vadd.s32 %v3159, %v3163
        %v3165 = vadd.s32 %v3164, 536870912
        %v3166 = vshrl.u32 %v3165, 30
        %v3167 = vshll.u32 %v3166, 30
        %v3168 = vsub.s32 %v3164, %v3167
        %vm3169 = vcmp.lt.s32.totalorder %v3168, 0
        %v3170 = vsub.s32 0, %v3168
        %v3171 = vsel %vm3169, %v3170, %v3168
        %v3172 = vclz %v3171
        %v3173 = vsub.s32 %v3172, 2
        %vm3174 = vcmp.gt.s32.totalorder 0, %v3173
        %v3175 = vsel %vm3174, 0, %v3173
        %v3176 = vsub.s32 32, %v3175
        %v3177 = vshll.u32 %v3168, %v3175
        %v3178 = vshrl.u32 %v3160, %v3176
        %v3179 = vor.u32 %v3177, %v3178
        %v3180 = vsub.s32 4294967266, %v3175
        %v3181 = vadd.s32 %v3180, 127
        %v3182 = vshll.u32 %v3181, 23
        %v3183 = vor.u32 4788187, %v3182
        %v3184 = vand.u32 2147483647, %v3183
        %v3186 = vcvt.s32.f32 %v3179
        %v3187 = vmul.f32 %v3186, %v3184
        %v3188 = vxor.u32 %v3187, 2147483648
        %v3189 = vsel %vm3106, %v3188, %v3187
        %v3190 = vsub.s32 4, %v3166
        %v3191 = vsel %vm3106, %v3190, %v3166
        %v3192 = vsel %vm3105, %v600, %v3189
        %v3193 = vsel %vm3105, 0, %v3191
        %v3194 = vcosq.f32.pop %v3192
        %v3195 = vsinq.f32.pop %v3192
        %vm3196 = vweird.f32 %v600
        %v3197 = vadd.s32 %v3193, 3
        %v3198 = vand.u32 %v3197, 3
        %vm3199 = vcmp.lt.s32.totalorder %v3198, 2
        %vm3200 = vcmp.eq.s32.totalorder %v3198, 0
        %v3201 = vxor.u32 %v3195, 2147483648
        %v3202 = vsel %vm3200, %v3194, %v3201
        %vm3203 = vcmp.eq.s32.totalorder %v3198, 2
        %v3204 = vxor.u32 %v3194, 2147483648
        %v3205 = vsel %vm3203, %v3204, %v3195
        %v3206 = vsel %vm3199, %v3202, %v3205
        %v3207 = vsel %vm3196, nan, %v3206
        %v3208 = vand.u32 2147483647, %v601
        %vm3209 = vcmp.le.f32.partialorder %v3208, 0.7853982
        %vm3210 = vcmp.lt.s32.totalorder %v601, 0
        %v3211 = vand.u32 %v601, 2139095040
        %v3212 = vshrl.u32 %v3211, 23
        %v3213 = vsub.s32 %v3212, 127
        %v3214 = vand.u32 2147483647, %v601
        %v3215 = vand.u32 %v3214, 8388607
        %v3216 = vor.u32 %v3215, 8388608
        %v3217 = vsub.s32 0, %v3216
        %v3218 = vadd.s32 %v3213, 1
        %vm3219 = vcmp.gt.s32.totalorder %v3218, 0
        %v3220 = vsel %vm3219, %v3218, 0
        %v3221 = vshrl.u32 %v3220, 5
        %v3222 = vand.u32 %v3220, 31
        %v3223 = vsub.s32 32, %v3222
        %v3224 = vshrl.u32 683565275, %v3223
        %v3225 = vshll.u32 683565275, %v3222
        %v3226 = vshrl.u32 2475754826, %v3223
        %v3227 = vor.u32 %v3225, %v3226
        %v3228 = vshll.u32 2475754826, %v3222
        %v3229 = vshrl.u32 2131351028, %v3223
        %v3230 = vor.u32 %v3228, %v3229
        %v3231 = vshll.u32 2131351028, %v3222
        %v3232 = vshrl.u32 2102212464, %v3223
        %v3233 = vor.u32 %v3231, %v3232
        %v3234 = vshll.u32 2102212464, %v3222
        %v3235 = vshrl.u32 920167782, %v3223
        %v3236 = vor.u32 %v3234, %v3235
        %v3237 = vshll.u32 920167782, %v3222
        %v3238 = vshrl.u32 1326507024, %v3223
        %v3239 = vor.u32 %v3237, %v3238
        %vm3240 = vcmp.lt.s32.totalorder %v3221, 1
        %vm3241 = vcmp.lt.s32.totalorder %v3221, 2
        %vm3242 = vcmp.lt.s32.totalorder %v3221, 3
        %vm3243 = vcmp.lt.s32.totalorder %v3221, 4
        %v3244 = vsel %vm3240, %v3224, %v3227
        %v3245 = vsel %vm3243, %v3233, 2102212464
        %v3246 = vsel %vm3242, %v3230, %v3245
        %v3247 = vsel %vm3241, %v3244, %v3246
        %v3248 = vsel %vm3240, %v3227, %v3230
        %v3249 = vsel %vm3243, %v3236, 920167782
        %v3250 = vsel %vm3242, %v3233, %v3249
        %v3251 = vsel %vm3241, %v3248, %v3250
        %v3252 = vsel %vm3240, %v3230, %v3233
        %v3253 = vsel %vm3243, %v3239, 1326507024
        %v3254 = vsel %vm3242, %v3236, %v3253
        %v3255 = vsel %vm3241, %v3252, %v3254
        %v3256 = vshll.u32 %v3216, 8
        %v3257 = vmul.u32.u64.compose %v3256, %v3255
        %v3258 = vextract.low.u32 %v3257
        %v3259 = vextract.high.u32 %v3257
        %v3260 = vmul.u32.u64.compose %v3256, %v3251
        %v3261 = vextract.low.u32 %v3260
        %v3262 = vextract.high.u32 %v3260
        %v3263 = vmul.u32 %v3256, %v3247
        %v3264 = vadd.s32 %v3259, %v3261
        %vm3265 = vc.u32 %v3259, %v3261
        %v3266 = vadd.s32 %v3262, 1
        %v3267 = vsel %vm3265, %v3266, %v3262
        %v3268 = vadd.s32 %v3263, %v3267
        %v3269 = vadd.s32 %v3268, 536870912
        %v3270 = vshrl.u32 %v3269, 30
        %v3271 = vshll.u32 %v3270, 30
        %v3272 = vsub.s32 %v3268, %v3271
        %vm3273 = vcmp.lt.s32.totalorder %v3272, 0
        %v3274 = vsub.s32 0, %v3272
        %v3275 = vsel %vm3273, %v3274, %v3272
        %v3276 = vclz %v3275
        %v3277 = vsub.s32 %v3276, 2
        %vm3278 = vcmp.gt.s32.totalorder 0, %v3277
        %v3279 = vsel %vm3278, 0, %v3277
        %v3280 = vsub.s32 32, %v3279
        %v3281 = vshll.u32 %v3272, %v3279
        %v3282 = vshrl.u32 %v3264, %v3280
        %v3283 = vor.u32 %v3281, %v3282
        %v3284 = vsub.s32 4294967266, %v3279
        %v3285 = vadd.s32 %v3284, 127
        %v3286 = vshll.u32 %v3285, 23
        %v3287 = vor.u32 4788187, %v3286
        %v3288 = vand.u32 2147483647, %v3287
        %v3290 = vcvt.s32.f32 %v3283
        %v3291 = vmul.f32 %v3290, %v3288
        %v3292 = vxor.u32 %v3291, 2147483648
        %v3293 = vsel %vm3210, %v3292, %v3291
        %v3294 = vsub.s32 4, %v3270
        %v3295 = vsel %vm3210, %v3294, %v3270
        %v3296 = vsel %vm3209, %v601, %v3293
        %v3297 = vsel %vm3209, 0, %v3295
        %v3298 = vcosq.f32.pop %v3296
        %v3299 = vsinq.f32.pop %v3296
        %vm3300 = vweird.f32 %v601
        %v3301 = vadd.s32 %v3297, 3
        %v3302 = vand.u32 %v3301, 3
        %vm3303 = vcmp.lt.s32.totalorder %v3302, 2
        %vm3304 = vcmp.eq.s32.totalorder %v3302, 0
        %v3305 = vxor.u32 %v3299, 2147483648
        %v3306 = vsel %vm3304, %v3298, %v3305
        %vm3307 = vcmp.eq.s32.totalorder %v3302, 2
        %v3308 = vxor.u32 %v3298, 2147483648
        %v3309 = vsel %vm3307, %v3308, %v3299
        %v3310 = vsel %vm3303, %v3306, %v3309
        %v3311 = vsel %vm3300, nan, %v3310
        %v3312 = vand.u32 2147483647, %v602
        %vm3313 = vcmp.le.f32.partialorder %v3312, 0.7853982
        %vm3314 = vcmp.lt.s32.totalorder %v602, 0
        %v3315 = vand.u32 %v602, 2139095040
        %v3316 = vshrl.u32 %v3315, 23
        %v3317 = vsub.s32 %v3316, 127
        %v3318 = vand.u32 2147483647, %v602
        %v3319 = vand.u32 %v3318, 8388607
        %v3320 = vor.u32 %v3319, 8388608
        %v3321 = vsub.s32 0, %v3320
        %v3322 = vadd.s32 %v3317, 1
        %vm3323 = vcmp.gt.s32.totalorder %v3322, 0
        %v3324 = vsel %vm3323, %v3322, 0
        %v3325 = vshrl.u32 %v3324, 5
        %v3326 = vand.u32 %v3324, 31
        %v3327 = vsub.s32 32, %v3326
        %v3328 = vshrl.u32 683565275, %v3327
        %v3329 = vshll.u32 683565275, %v3326
        %v3330 = vshrl.u32 2475754826, %v3327
        %v3331 = vor.u32 %v3329, %v3330
        %v3332 = vshll.u32 2475754826, %v3326
        %v3333 = vshrl.u32 2131351028, %v3327
        %v3334 = vor.u32 %v3332, %v3333
        %v3335 = vshll.u32 2131351028, %v3326
        %v3336 = vshrl.u32 2102212464, %v3327
        %v3337 = vor.u32 %v3335, %v3336
        %v3338 = vshll.u32 2102212464, %v3326
        %v3339 = vshrl.u32 920167782, %v3327
        %v3340 = vor.u32 %v3338, %v3339
        %v3341 = vshll.u32 920167782, %v3326
        %v3342 = vshrl.u32 1326507024, %v3327
        %v3343 = vor.u32 %v3341, %v3342
        %vm3344 = vcmp.lt.s32.totalorder %v3325, 1
        %vm3345 = vcmp.lt.s32.totalorder %v3325, 2
        %vm3346 = vcmp.lt.s32.totalorder %v3325, 3
        %vm3347 = vcmp.lt.s32.totalorder %v3325, 4
        %v3348 = vsel %vm3344, %v3328, %v3331
        %v3349 = vsel %vm3347, %v3337, 2102212464
        %v3350 = vsel %vm3346, %v3334, %v3349
        %v3351 = vsel %vm3345, %v3348, %v3350
        %v3352 = vsel %vm3344, %v3331, %v3334
        %v3353 = vsel %vm3347, %v3340, 920167782
        %v3354 = vsel %vm3346, %v3337, %v3353
        %v3355 = vsel %vm3345, %v3352, %v3354
        %v3356 = vsel %vm3344, %v3334, %v3337
        %v3357 = vsel %vm3347, %v3343, 1326507024
        %v3358 = vsel %vm3346, %v3340, %v3357
        %v3359 = vsel %vm3345, %v3356, %v3358
        %v3360 = vshll.u32 %v3320, 8
        %v3361 = vmul.u32.u64.compose %v3360, %v3359
        %v3362 = vextract.low.u32 %v3361
        %v3363 = vextract.high.u32 %v3361
        %v3364 = vmul.u32.u64.compose %v3360, %v3355
        %v3365 = vextract.low.u32 %v3364
        %v3366 = vextract.high.u32 %v3364
        %v3367 = vmul.u32 %v3360, %v3351
        %v3368 = vadd.s32 %v3363, %v3365
        %vm3369 = vc.u32 %v3363, %v3365
        %v3370 = vadd.s32 %v3366, 1
        %v3371 = vsel %vm3369, %v3370, %v3366
        %v3372 = vadd.s32 %v3367, %v3371
        %v3373 = vadd.s32 %v3372, 536870912
        %v3374 = vshrl.u32 %v3373, 30
        %v3375 = vshll.u32 %v3374, 30
        %v3376 = vsub.s32 %v3372, %v3375
        %vm3377 = vcmp.lt.s32.totalorder %v3376, 0
        %v3378 = vsub.s32 0, %v3376
        %v3379 = vsel %vm3377, %v3378, %v3376
        %v3380 = vclz %v3379
        %v3381 = vsub.s32 %v3380, 2
        %vm3382 = vcmp.gt.s32.totalorder 0, %v3381
        %v3383 = vsel %vm3382, 0, %v3381
        %v3384 = vsub.s32 32, %v3383
        %v3385 = vshll.u32 %v3376, %v3383
        %v3386 = vshrl.u32 %v3368, %v3384
        %v3387 = vor.u32 %v3385, %v3386
        %v3388 = vsub.s32 4294967266, %v3383
        %v3389 = vadd.s32 %v3388, 127
        %v3390 = vshll.u32 %v3389, 23
        %v3391 = vor.u32 4788187, %v3390
        %v3392 = vand.u32 2147483647, %v3391
        %v3394 = vcvt.s32.f32 %v3387
        %v3395 = vmul.f32 %v3394, %v3392
        %v3396 = vxor.u32 %v3395, 2147483648
        %v3397 = vsel %vm3314, %v3396, %v3395
        %v3398 = vsub.s32 4, %v3374
        %v3399 = vsel %vm3314, %v3398, %v3374
        %v3400 = vsel %vm3313, %v602, %v3397
        %v3401 = vsel %vm3313, 0, %v3399
        %v3402 = vcosq.f32.pop %v3400
        %v3403 = vsinq.f32.pop %v3400
        %vm3404 = vweird.f32 %v602
        %v3405 = vadd.s32 %v3401, 3
        %v3406 = vand.u32 %v3405, 3
        %vm3407 = vcmp.lt.s32.totalorder %v3406, 2
        %vm3408 = vcmp.eq.s32.totalorder %v3406, 0
        %v3409 = vxor.u32 %v3403, 2147483648
        %v3410 = vsel %vm3408, %v3402, %v3409
        %vm3411 = vcmp.eq.s32.totalorder %v3406, 2
        %v3412 = vxor.u32 %v3402, 2147483648
        %v3413 = vsel %vm3411, %v3412, %v3403
        %v3414 = vsel %vm3407, %v3410, %v3413
        %v3415 = vsel %vm3404, nan, %v3414
        %v3416 = vand.u32 2147483647, %v603
        %vm3417 = vcmp.le.f32.partialorder %v3416, 0.7853982
        %vm3418 = vcmp.lt.s32.totalorder %v603, 0
        %v3419 = vand.u32 %v603, 2139095040
        %v3420 = vshrl.u32 %v3419, 23
        %v3421 = vsub.s32 %v3420, 127
        %v3422 = vand.u32 2147483647, %v603
        %v3423 = vand.u32 %v3422, 8388607
        %v3424 = vor.u32 %v3423, 8388608
        %v3425 = vsub.s32 0, %v3424
        %v3426 = vadd.s32 %v3421, 1
        %vm3427 = vcmp.gt.s32.totalorder %v3426, 0
        %v3428 = vsel %vm3427, %v3426, 0
        %v3429 = vshrl.u32 %v3428, 5
        %v3430 = vand.u32 %v3428, 31
        %v3431 = vsub.s32 32, %v3430
        %v3432 = vshrl.u32 683565275, %v3431
        %v3433 = vshll.u32 683565275, %v3430
        %v3434 = vshrl.u32 2475754826, %v3431
        %v3435 = vor.u32 %v3433, %v3434
        %v3436 = vshll.u32 2475754826, %v3430
        %v3437 = vshrl.u32 2131351028, %v3431
        %v3438 = vor.u32 %v3436, %v3437
        %v3439 = vshll.u32 2131351028, %v3430
        %v3440 = vshrl.u32 2102212464, %v3431
        %v3441 = vor.u32 %v3439, %v3440
        %v3442 = vshll.u32 2102212464, %v3430
        %v3443 = vshrl.u32 920167782, %v3431
        %v3444 = vor.u32 %v3442, %v3443
        %v3445 = vshll.u32 920167782, %v3430
        %v3446 = vshrl.u32 1326507024, %v3431
        %v3447 = vor.u32 %v3445, %v3446
        %vm3448 = vcmp.lt.s32.totalorder %v3429, 1
        %vm3449 = vcmp.lt.s32.totalorder %v3429, 2
        %vm3450 = vcmp.lt.s32.totalorder %v3429, 3
        %vm3451 = vcmp.lt.s32.totalorder %v3429, 4
        %v3452 = vsel %vm3448, %v3432, %v3435
        %v3453 = vsel %vm3451, %v3441, 2102212464
        %v3454 = vsel %vm3450, %v3438, %v3453
        %v3455 = vsel %vm3449, %v3452, %v3454
        %v3456 = vsel %vm3448, %v3435, %v3438
        %v3457 = vsel %vm3451, %v3444, 920167782
        %v3458 = vsel %vm3450, %v3441, %v3457
        %v3459 = vsel %vm3449, %v3456, %v3458
        %v3460 = vsel %vm3448, %v3438, %v3441
        %v3461 = vsel %vm3451, %v3447, 1326507024
        %v3462 = vsel %vm3450, %v3444, %v3461
        %v3463 = vsel %vm3449, %v3460, %v3462
        %v3464 = vshll.u32 %v3424, 8
        %v3465 = vmul.u32.u64.compose %v3464, %v3463
        %v3466 = vextract.low.u32 %v3465
        %v3467 = vextract.high.u32 %v3465
        %v3468 = vmul.u32.u64.compose %v3464, %v3459
        %v3469 = vextract.low.u32 %v3468
        %v3470 = vextract.high.u32 %v3468
        %v3471 = vmul.u32 %v3464, %v3455
        %v3472 = vadd.s32 %v3467, %v3469
        %vm3473 = vc.u32 %v3467, %v3469
        %v3474 = vadd.s32 %v3470, 1
        %v3475 = vsel %vm3473, %v3474, %v3470
        %v3476 = vadd.s32 %v3471, %v3475
        %v3477 = vadd.s32 %v3476, 536870912
        %v3478 = vshrl.u32 %v3477, 30
        %v3479 = vshll.u32 %v3478, 30
        %v3480 = vsub.s32 %v3476, %v3479
        %vm3481 = vcmp.lt.s32.totalorder %v3480, 0
        %v3482 = vsub.s32 0, %v3480
        %v3483 = vsel %vm3481, %v3482, %v3480
        %v3484 = vclz %v3483
        %v3485 = vsub.s32 %v3484, 2
        %vm3486 = vcmp.gt.s32.totalorder 0, %v3485
        %v3487 = vsel %vm3486, 0, %v3485
        %v3488 = vsub.s32 32, %v3487
        %v3489 = vshll.u32 %v3480, %v3487
        %v3490 = vshrl.u32 %v3472, %v3488
        %v3491 = vor.u32 %v3489, %v3490
        %v3492 = vsub.s32 4294967266, %v3487
        %v3493 = vadd.s32 %v3492, 127
        %v3494 = vshll.u32 %v3493, 23
        %v3495 = vor.u32 4788187, %v3494
        %v3496 = vand.u32 2147483647, %v3495
        %v3498 = vcvt.s32.f32 %v3491
        %v3499 = vmul.f32 %v3498, %v3496
        %v3500 = vxor.u32 %v3499, 2147483648
        %v3501 = vsel %vm3418, %v3500, %v3499
        %v3502 = vsub.s32 4, %v3478
        %v3503 = vsel %vm3418, %v3502, %v3478
        %v3504 = vsel %vm3417, %v603, %v3501
        %v3505 = vsel %vm3417, 0, %v3503
        %v3506 = vcosq.f32.pop %v3504
        %v3507 = vsinq.f32.pop %v3504
        %vm3508 = vweird.f32 %v603
        %v3509 = vadd.s32 %v3505, 3
        %v3510 = vand.u32 %v3509, 3
        %vm3511 = vcmp.lt.s32.totalorder %v3510, 2
        %vm3512 = vcmp.eq.s32.totalorder %v3510, 0
        %v3513 = vxor.u32 %v3507, 2147483648
        %v3514 = vsel %vm3512, %v3506, %v3513
        %vm3515 = vcmp.eq.s32.totalorder %v3510, 2
        %v3516 = vxor.u32 %v3506, 2147483648
        %v3517 = vsel %vm3515, %v3516, %v3507
        %v3518 = vsel %vm3511, %v3514, %v3517
        %v3519 = vsel %vm3508, nan, %v3518
        %v3520 = vand.u32 2147483647, %v604
        %vm3521 = vcmp.le.f32.partialorder %v3520, 0.7853982
        %vm3522 = vcmp.lt.s32.totalorder %v604, 0
        %v3523 = vand.u32 %v604, 2139095040
        %v3524 = vshrl.u32 %v3523, 23
        %v3525 = vsub.s32 %v3524, 127
        %v3526 = vand.u32 2147483647, %v604
        %v3527 = vand.u32 %v3526, 8388607
        %v3528 = vor.u32 %v3527, 8388608
        %v3529 = vsub.s32 0, %v3528
        %v3530 = vadd.s32 %v3525, 1
        %vm3531 = vcmp.gt.s32.totalorder %v3530, 0
        %v3532 = vsel %vm3531, %v3530, 0
        %v3533 = vshrl.u32 %v3532, 5
        %v3534 = vand.u32 %v3532, 31
        %v3535 = vsub.s32 32, %v3534
        %v3536 = vshrl.u32 683565275, %v3535
        %v3537 = vshll.u32 683565275, %v3534
        %v3538 = vshrl.u32 2475754826, %v3535
        %v3539 = vor.u32 %v3537, %v3538
        %v3540 = vshll.u32 2475754826, %v3534
        %v3541 = vshrl.u32 2131351028, %v3535
        %v3542 = vor.u32 %v3540, %v3541
        %v3543 = vshll.u32 2131351028, %v3534
        %v3544 = vshrl.u32 2102212464, %v3535
        %v3545 = vor.u32 %v3543, %v3544
        %v3546 = vshll.u32 2102212464, %v3534
        %v3547 = vshrl.u32 920167782, %v3535
        %v3548 = vor.u32 %v3546, %v3547
        %v3549 = vshll.u32 920167782, %v3534
        %v3550 = vshrl.u32 1326507024, %v3535
        %v3551 = vor.u32 %v3549, %v3550
        %vm3552 = vcmp.lt.s32.totalorder %v3533, 1
        %vm3553 = vcmp.lt.s32.totalorder %v3533, 2
        %vm3554 = vcmp.lt.s32.totalorder %v3533, 3
        %vm3555 = vcmp.lt.s32.totalorder %v3533, 4
        %v3556 = vsel %vm3552, %v3536, %v3539
        %v3557 = vsel %vm3555, %v3545, 2102212464
        %v3558 = vsel %vm3554, %v3542, %v3557
        %v3559 = vsel %vm3553, %v3556, %v3558
        %v3560 = vsel %vm3552, %v3539, %v3542
        %v3561 = vsel %vm3555, %v3548, 920167782
        %v3562 = vsel %vm3554, %v3545, %v3561
        %v3563 = vsel %vm3553, %v3560, %v3562
        %v3564 = vsel %vm3552, %v3542, %v3545
        %v3565 = vsel %vm3555, %v3551, 1326507024
        %v3566 = vsel %vm3554, %v3548, %v3565
        %v3567 = vsel %vm3553, %v3564, %v3566
        %v3568 = vshll.u32 %v3528, 8
        %v3569 = vmul.u32.u64.compose %v3568, %v3567
        %v3570 = vextract.low.u32 %v3569
        %v3571 = vextract.high.u32 %v3569
        %v3572 = vmul.u32.u64.compose %v3568, %v3563
        %v3573 = vextract.low.u32 %v3572
        %v3574 = vextract.high.u32 %v3572
        %v3575 = vmul.u32 %v3568, %v3559
        %v3576 = vadd.s32 %v3571, %v3573
        %vm3577 = vc.u32 %v3571, %v3573
        %v3578 = vadd.s32 %v3574, 1
        %v3579 = vsel %vm3577, %v3578, %v3574
        %v3580 = vadd.s32 %v3575, %v3579
        %v3581 = vadd.s32 %v3580, 536870912
        %v3582 = vshrl.u32 %v3581, 30
        %v3583 = vshll.u32 %v3582, 30
        %v3584 = vsub.s32 %v3580, %v3583
        %vm3585 = vcmp.lt.s32.totalorder %v3584, 0
        %v3586 = vsub.s32 0, %v3584
        %v3587 = vsel %vm3585, %v3586, %v3584
        %v3588 = vclz %v3587
        %v3589 = vsub.s32 %v3588, 2
        %vm3590 = vcmp.gt.s32.totalorder 0, %v3589
        %v3591 = vsel %vm3590, 0, %v3589
        %v3592 = vsub.s32 32, %v3591
        %v3593 = vshll.u32 %v3584, %v3591
        %v3594 = vshrl.u32 %v3576, %v3592
        %v3595 = vor.u32 %v3593, %v3594
        %v3596 = vsub.s32 4294967266, %v3591
        %v3597 = vadd.s32 %v3596, 127
        %v3598 = vshll.u32 %v3597, 23
        %v3599 = vor.u32 4788187, %v3598
        %v3600 = vand.u32 2147483647, %v3599
        %v3602 = vcvt.s32.f32 %v3595
        %v3603 = vmul.f32 %v3602, %v3600
        %v3604 = vxor.u32 %v3603, 2147483648
        %v3605 = vsel %vm3522, %v3604, %v3603
        %v3606 = vsub.s32 4, %v3582
        %v3607 = vsel %vm3522, %v3606, %v3582
        %v3608 = vsel %vm3521, %v604, %v3605
        %v3609 = vsel %vm3521, 0, %v3607
        %v3610 = vcosq.f32.pop %v3608
        %v3611 = vsinq.f32.pop %v3608
        %vm3612 = vweird.f32 %v604
        %v3613 = vadd.s32 %v3609, 3
        %v3614 = vand.u32 %v3613, 3
        %vm3615 = vcmp.lt.s32.totalorder %v3614, 2
        %vm3616 = vcmp.eq.s32.totalorder %v3614, 0
        %v3617 = vxor.u32 %v3611, 2147483648
        %v3618 = vsel %vm3616, %v3610, %v3617
        %vm3619 = vcmp.eq.s32.totalorder %v3614, 2
        %v3620 = vxor.u32 %v3610, 2147483648
        %v3621 = vsel %vm3619, %v3620, %v3611
        %v3622 = vsel %vm3615, %v3618, %v3621
        %v3623 = vsel %vm3612, nan, %v3622
        %v3624 = vand.u32 2147483647, %v605
        %vm3625 = vcmp.le.f32.partialorder %v3624, 0.7853982
        %vm3626 = vcmp.lt.s32.totalorder %v605, 0
        %v3627 = vand.u32 %v605, 2139095040
        %v3628 = vshrl.u32 %v3627, 23
        %v3629 = vsub.s32 %v3628, 127
        %v3630 = vand.u32 2147483647, %v605
        %v3631 = vand.u32 %v3630, 8388607
        %v3632 = vor.u32 %v3631, 8388608
        %v3633 = vsub.s32 0, %v3632
        %v3634 = vadd.s32 %v3629, 1
        %vm3635 = vcmp.gt.s32.totalorder %v3634, 0
        %v3636 = vsel %vm3635, %v3634, 0
        %v3637 = vshrl.u32 %v3636, 5
        %v3638 = vand.u32 %v3636, 31
        %v3639 = vsub.s32 32, %v3638
        %v3640 = vshrl.u32 683565275, %v3639
        %v3641 = vshll.u32 683565275, %v3638
        %v3642 = vshrl.u32 2475754826, %v3639
        %v3643 = vor.u32 %v3641, %v3642
        %v3644 = vshll.u32 2475754826, %v3638
        %v3645 = vshrl.u32 2131351028, %v3639
        %v3646 = vor.u32 %v3644, %v3645
        %v3647 = vshll.u32 2131351028, %v3638
        %v3648 = vshrl.u32 2102212464, %v3639
        %v3649 = vor.u32 %v3647, %v3648
        %v3650 = vshll.u32 2102212464, %v3638
        %v3651 = vshrl.u32 920167782, %v3639
        %v3652 = vor.u32 %v3650, %v3651
        %v3653 = vshll.u32 920167782, %v3638
        %v3654 = vshrl.u32 1326507024, %v3639
        %v3655 = vor.u32 %v3653, %v3654
        %vm3656 = vcmp.lt.s32.totalorder %v3637, 1
        %vm3657 = vcmp.lt.s32.totalorder %v3637, 2
        %vm3658 = vcmp.lt.s32.totalorder %v3637, 3
        %vm3659 = vcmp.lt.s32.totalorder %v3637, 4
        %v3660 = vsel %vm3656, %v3640, %v3643
        %v3661 = vsel %vm3659, %v3649, 2102212464
        %v3662 = vsel %vm3658, %v3646, %v3661
        %v3663 = vsel %vm3657, %v3660, %v3662
        %v3664 = vsel %vm3656, %v3643, %v3646
        %v3665 = vsel %vm3659, %v3652, 920167782
        %v3666 = vsel %vm3658, %v3649, %v3665
        %v3667 = vsel %vm3657, %v3664, %v3666
        %v3668 = vsel %vm3656, %v3646, %v3649
        %v3669 = vsel %vm3659, %v3655, 1326507024
        %v3670 = vsel %vm3658, %v3652, %v3669
        %v3671 = vsel %vm3657, %v3668, %v3670
        %v3672 = vshll.u32 %v3632, 8
        %v3673 = vmul.u32.u64.compose %v3672, %v3671
        %v3674 = vextract.low.u32 %v3673
        %v3675 = vextract.high.u32 %v3673
        %v3676 = vmul.u32.u64.compose %v3672, %v3667
        %v3677 = vextract.low.u32 %v3676
        %v3678 = vextract.high.u32 %v3676
        %v3679 = vmul.u32 %v3672, %v3663
        %v3680 = vadd.s32 %v3675, %v3677
        %vm3681 = vc.u32 %v3675, %v3677
        %v3682 = vadd.s32 %v3678, 1
        %v3683 = vsel %vm3681, %v3682, %v3678
        %v3684 = vadd.s32 %v3679, %v3683
        %v3685 = vadd.s32 %v3684, 536870912
        %v3686 = vshrl.u32 %v3685, 30
        %v3687 = vshll.u32 %v3686, 30
        %v3688 = vsub.s32 %v3684, %v3687
        %vm3689 = vcmp.lt.s32.totalorder %v3688, 0
        %v3690 = vsub.s32 0, %v3688
        %v3691 = vsel %vm3689, %v3690, %v3688
        %v3692 = vclz %v3691
        %v3693 = vsub.s32 %v3692, 2
        %vm3694 = vcmp.gt.s32.totalorder 0, %v3693
        %v3695 = vsel %vm3694, 0, %v3693
        %v3696 = vsub.s32 32, %v3695
        %v3697 = vshll.u32 %v3688, %v3695
        %v3698 = vshrl.u32 %v3680, %v3696
        %v3699 = vor.u32 %v3697, %v3698
        %v3700 = vsub.s32 4294967266, %v3695
        %v3701 = vadd.s32 %v3700, 127
        %v3702 = vshll.u32 %v3701, 23
        %v3703 = vor.u32 4788187, %v3702
        %v3704 = vand.u32 2147483647, %v3703
        %v3706 = vcvt.s32.f32 %v3699
        %v3707 = vmul.f32 %v3706, %v3704
        %v3708 = vxor.u32 %v3707, 2147483648
        %v3709 = vsel %vm3626, %v3708, %v3707
        %v3710 = vsub.s32 4, %v3686
        %v3711 = vsel %vm3626, %v3710, %v3686
        %v3712 = vsel %vm3625, %v605, %v3709
        %v3713 = vsel %vm3625, 0, %v3711
        %v3714 = vcosq.f32.pop %v3712
        %v3715 = vsinq.f32.pop %v3712
        %vm3716 = vweird.f32 %v605
        %v3717 = vadd.s32 %v3713, 3
        %v3718 = vand.u32 %v3717, 3
        %vm3719 = vcmp.lt.s32.totalorder %v3718, 2
        %vm3720 = vcmp.eq.s32.totalorder %v3718, 0
        %v3721 = vxor.u32 %v3715, 2147483648
        %v3722 = vsel %vm3720, %v3714, %v3721
        %vm3723 = vcmp.eq.s32.totalorder %v3718, 2
        %v3724 = vxor.u32 %v3714, 2147483648
        %v3725 = vsel %vm3723, %v3724, %v3715
        %v3726 = vsel %vm3719, %v3722, %v3725
        %v3727 = vsel %vm3716, nan, %v3726
        %v3728 = vand.u32 2147483647, %v606
        %vm3729 = vcmp.le.f32.partialorder %v3728, 0.7853982
        %vm3730 = vcmp.lt.s32.totalorder %v606, 0
        %v3731 = vand.u32 %v606, 2139095040
        %v3732 = vshrl.u32 %v3731, 23
        %v3733 = vsub.s32 %v3732, 127
        %v3734 = vand.u32 2147483647, %v606
        %v3735 = vand.u32 %v3734, 8388607
        %v3736 = vor.u32 %v3735, 8388608
        %v3737 = vsub.s32 0, %v3736
        %v3738 = vadd.s32 %v3733, 1
        %vm3739 = vcmp.gt.s32.totalorder %v3738, 0
        %v3740 = vsel %vm3739, %v3738, 0
        %v3741 = vshrl.u32 %v3740, 5
        %v3742 = vand.u32 %v3740, 31
        %v3743 = vsub.s32 32, %v3742
        %v3744 = vshrl.u32 683565275, %v3743
        %v3745 = vshll.u32 683565275, %v3742
        %v3746 = vshrl.u32 2475754826, %v3743
        %v3747 = vor.u32 %v3745, %v3746
        %v3748 = vshll.u32 2475754826, %v3742
        %v3749 = vshrl.u32 2131351028, %v3743
        %v3750 = vor.u32 %v3748, %v3749
        %v3751 = vshll.u32 2131351028, %v3742
        %v3752 = vshrl.u32 2102212464, %v3743
        %v3753 = vor.u32 %v3751, %v3752
        %v3754 = vshll.u32 2102212464, %v3742
        %v3755 = vshrl.u32 920167782, %v3743
        %v3756 = vor.u32 %v3754, %v3755
        %v3757 = vshll.u32 920167782, %v3742
        %v3758 = vshrl.u32 1326507024, %v3743
        %v3759 = vor.u32 %v3757, %v3758
        %vm3760 = vcmp.lt.s32.totalorder %v3741, 1
        %vm3761 = vcmp.lt.s32.totalorder %v3741, 2
        %vm3762 = vcmp.lt.s32.totalorder %v3741, 3
        %vm3763 = vcmp.lt.s32.totalorder %v3741, 4
        %v3764 = vsel %vm3760, %v3744, %v3747
        %v3765 = vsel %vm3763, %v3753, 2102212464
        %v3766 = vsel %vm3762, %v3750, %v3765
        %v3767 = vsel %vm3761, %v3764, %v3766
        %v3768 = vsel %vm3760, %v3747, %v3750
        %v3769 = vsel %vm3763, %v3756, 920167782
        %v3770 = vsel %vm3762, %v3753, %v3769
        %v3771 = vsel %vm3761, %v3768, %v3770
        %v3772 = vsel %vm3760, %v3750, %v3753
        %v3773 = vsel %vm3763, %v3759, 1326507024
        %v3774 = vsel %vm3762, %v3756, %v3773
        %v3775 = vsel %vm3761, %v3772, %v3774
        %v3776 = vshll.u32 %v3736, 8
        %v3777 = vmul.u32.u64.compose %v3776, %v3775
        %v3778 = vextract.low.u32 %v3777
        %v3779 = vextract.high.u32 %v3777
        %v3780 = vmul.u32.u64.compose %v3776, %v3771
        %v3781 = vextract.low.u32 %v3780
        %v3782 = vextract.high.u32 %v3780
        %v3783 = vmul.u32 %v3776, %v3767
        %v3784 = vadd.s32 %v3779, %v3781
        %vm3785 = vc.u32 %v3779, %v3781
        %v3786 = vadd.s32 %v3782, 1
        %v3787 = vsel %vm3785, %v3786, %v3782
        %v3788 = vadd.s32 %v3783, %v3787
        %v3789 = vadd.s32 %v3788, 536870912
        %v3790 = vshrl.u32 %v3789, 30
        %v3791 = vshll.u32 %v3790, 30
        %v3792 = vsub.s32 %v3788, %v3791
        %vm3793 = vcmp.lt.s32.totalorder %v3792, 0
        %v3794 = vsub.s32 0, %v3792
        %v3795 = vsel %vm3793, %v3794, %v3792
        %v3796 = vclz %v3795
        %v3797 = vsub.s32 %v3796, 2
        %vm3798 = vcmp.gt.s32.totalorder 0, %v3797
        %v3799 = vsel %vm3798, 0, %v3797
        %v3800 = vsub.s32 32, %v3799
        %v3801 = vshll.u32 %v3792, %v3799
        %v3802 = vshrl.u32 %v3784, %v3800
        %v3803 = vor.u32 %v3801, %v3802
        %v3804 = vsub.s32 4294967266, %v3799
        %v3805 = vadd.s32 %v3804, 127
        %v3806 = vshll.u32 %v3805, 23
        %v3807 = vor.u32 4788187, %v3806
        %v3808 = vand.u32 2147483647, %v3807
        %v3810 = vcvt.s32.f32 %v3803
        %v3811 = vmul.f32 %v3810, %v3808
        %v3812 = vxor.u32 %v3811, 2147483648
        %v3813 = vsel %vm3730, %v3812, %v3811
        %v3814 = vsub.s32 4, %v3790
        %v3815 = vsel %vm3730, %v3814, %v3790
        %v3816 = vsel %vm3729, %v606, %v3813
        %v3817 = vsel %vm3729, 0, %v3815
        %v3818 = vcosq.f32.pop %v3816
        %v3819 = vsinq.f32.pop %v3816
        %vm3820 = vweird.f32 %v606
        %v3821 = vadd.s32 %v3817, 3
        %v3822 = vand.u32 %v3821, 3
        %vm3823 = vcmp.lt.s32.totalorder %v3822, 2
        %vm3824 = vcmp.eq.s32.totalorder %v3822, 0
        %v3825 = vxor.u32 %v3819, 2147483648
        %v3826 = vsel %vm3824, %v3818, %v3825
        %vm3827 = vcmp.eq.s32.totalorder %v3822, 2
        %v3828 = vxor.u32 %v3818, 2147483648
        %v3829 = vsel %vm3827, %v3828, %v3819
        %v3830 = vsel %vm3823, %v3826, %v3829
        %v3831 = vsel %vm3820, nan, %v3830
        %v3832 = vand.u32 2147483647, %v607
        %vm3833 = vcmp.le.f32.partialorder %v3832, 0.7853982
        %vm3834 = vcmp.lt.s32.totalorder %v607, 0
        %v3835 = vand.u32 %v607, 2139095040
        %v3836 = vshrl.u32 %v3835, 23
        %v3837 = vsub.s32 %v3836, 127
        %v3838 = vand.u32 2147483647, %v607
        %v3839 = vand.u32 %v3838, 8388607
        %v3840 = vor.u32 %v3839, 8388608
        %v3841 = vsub.s32 0, %v3840
        %v3842 = vadd.s32 %v3837, 1
        %vm3843 = vcmp.gt.s32.totalorder %v3842, 0
        %v3844 = vsel %vm3843, %v3842, 0
        %v3845 = vshrl.u32 %v3844, 5
        %v3846 = vand.u32 %v3844, 31
        %v3847 = vsub.s32 32, %v3846
        %v3848 = vshrl.u32 683565275, %v3847
        %v3849 = vshll.u32 683565275, %v3846
        %v3850 = vshrl.u32 2475754826, %v3847
        %v3851 = vor.u32 %v3849, %v3850
        %v3852 = vshll.u32 2475754826, %v3846
        %v3853 = vshrl.u32 2131351028, %v3847
        %v3854 = vor.u32 %v3852, %v3853
        %v3855 = vshll.u32 2131351028, %v3846
        %v3856 = vshrl.u32 2102212464, %v3847
        %v3857 = vor.u32 %v3855, %v3856
        %v3858 = vshll.u32 2102212464, %v3846
        %v3859 = vshrl.u32 920167782, %v3847
        %v3860 = vor.u32 %v3858, %v3859
        %v3861 = vshll.u32 920167782, %v3846
        %v3862 = vshrl.u32 1326507024, %v3847
        %v3863 = vor.u32 %v3861, %v3862
        %vm3864 = vcmp.lt.s32.totalorder %v3845, 1
        %vm3865 = vcmp.lt.s32.totalorder %v3845, 2
        %vm3866 = vcmp.lt.s32.totalorder %v3845, 3
        %vm3867 = vcmp.lt.s32.totalorder %v3845, 4
        %v3868 = vsel %vm3864, %v3848, %v3851
        %v3869 = vsel %vm3867, %v3857, 2102212464
        %v3870 = vsel %vm3866, %v3854, %v3869
        %v3871 = vsel %vm3865, %v3868, %v3870
        %v3872 = vsel %vm3864, %v3851, %v3854
        %v3873 = vsel %vm3867, %v3860, 920167782
        %v3874 = vsel %vm3866, %v3857, %v3873
        %v3875 = vsel %vm3865, %v3872, %v3874
        %v3876 = vsel %vm3864, %v3854, %v3857
        %v3877 = vsel %vm3867, %v3863, 1326507024
        %v3878 = vsel %vm3866, %v3860, %v3877
        %v3879 = vsel %vm3865, %v3876, %v3878
        %v3880 = vshll.u32 %v3840, 8
        %v3881 = vmul.u32.u64.compose %v3880, %v3879
        %v3882 = vextract.low.u32 %v3881
        %v3883 = vextract.high.u32 %v3881
        %v3884 = vmul.u32.u64.compose %v3880, %v3875
        %v3885 = vextract.low.u32 %v3884
        %v3886 = vextract.high.u32 %v3884
        %v3887 = vmul.u32 %v3880, %v3871
        %v3888 = vadd.s32 %v3883, %v3885
        %vm3889 = vc.u32 %v3883, %v3885
        %v3890 = vadd.s32 %v3886, 1
        %v3891 = vsel %vm3889, %v3890, %v3886
        %v3892 = vadd.s32 %v3887, %v3891
        %v3893 = vadd.s32 %v3892, 536870912
        %v3894 = vshrl.u32 %v3893, 30
        %v3895 = vshll.u32 %v3894, 30
        %v3896 = vsub.s32 %v3892, %v3895
        %vm3897 = vcmp.lt.s32.totalorder %v3896, 0
        %v3898 = vsub.s32 0, %v3896
        %v3899 = vsel %vm3897, %v3898, %v3896
        %v3900 = vclz %v3899
        %v3901 = vsub.s32 %v3900, 2
        %vm3902 = vcmp.gt.s32.totalorder 0, %v3901
        %v3903 = vsel %vm3902, 0, %v3901
        %v3904 = vsub.s32 32, %v3903
        %v3905 = vshll.u32 %v3896, %v3903
        %v3906 = vshrl.u32 %v3888, %v3904
        %v3907 = vor.u32 %v3905, %v3906
        %v3908 = vsub.s32 4294967266, %v3903
        %v3909 = vadd.s32 %v3908, 127
        %v3910 = vshll.u32 %v3909, 23
        %v3911 = vor.u32 4788187, %v3910
        %v3912 = vand.u32 2147483647, %v3911
        %v3914 = vcvt.s32.f32 %v3907
        %v3915 = vmul.f32 %v3914, %v3912
        %v3916 = vxor.u32 %v3915, 2147483648
        %v3917 = vsel %vm3834, %v3916, %v3915
        %v3918 = vsub.s32 4, %v3894
        %v3919 = vsel %vm3834, %v3918, %v3894
        %v3920 = vsel %vm3833, %v607, %v3917
        %v3921 = vsel %vm3833, 0, %v3919
        %v3922 = vcosq.f32.pop %v3920
        %v3923 = vsinq.f32.pop %v3920
        %vm3924 = vweird.f32 %v607
        %v3925 = vadd.s32 %v3921, 3
        %v3926 = vand.u32 %v3925, 3
        %vm3927 = vcmp.lt.s32.totalorder %v3926, 2
        %vm3928 = vcmp.eq.s32.totalorder %v3926, 0
        %v3929 = vxor.u32 %v3923, 2147483648
        %v3930 = vsel %vm3928, %v3922, %v3929
        %vm3931 = vcmp.eq.s32.totalorder %v3926, 2
        %v3932 = vxor.u32 %v3922, 2147483648
        %v3933 = vsel %vm3931, %v3932, %v3923
        %v3934 = vsel %vm3927, %v3930, %v3933
        %v3935 = vsel %vm3924, nan, %v3934
        %v3936 = vlaneseq
        %v3937 = vshrl.u32 %v3936, 7
        %v3938 = vsub.s32 0, %v3937
        %v3939 = vrot.slane %v352, %v3938
        %3941 = vbcast.lane.b32.xlu0 %v3939, 256
        %v3942 = vpop.permute.xlu0 %3941
        %s3944 = sor.u32 256, 8
        %3945 = vbcast.lane.b32.xlu0 %v3939, %s3944
        %v3946 = vpop.permute.xlu0 %3945
        %v3947 = vlaneseq
        %v3948 = vshrl.u32 %v3947, 7
        %v3949 = vsub.s32 1, %v3948
        %v3950 = vrot.slane %v352, %v3949
        %3952 = vbcast.lane.b32.xlu0 %v3950, 256
        %v3953 = vpop.permute.xlu0 %3952
        %s3955 = sor.u32 256, 8
        %3956 = vbcast.lane.b32.xlu0 %v3950, %s3955
        %v3957 = vpop.permute.xlu0 %3956
        %v3958 = vlaneseq
        %v3959 = vshrl.u32 %v3958, 7
        %v3960 = vsub.s32 2, %v3959
        %v3961 = vrot.slane %v352, %v3960
        %3963 = vbcast.lane.b32.xlu0 %v3961, 256
        %v3964 = vpop.permute.xlu0 %3963
        %s3966 = sor.u32 256, 8
        %3967 = vbcast.lane.b32.xlu0 %v3961, %s3966
        %v3968 = vpop.permute.xlu0 %3967
        %v3969 = vlaneseq
        %v3970 = vshrl.u32 %v3969, 7
        %v3971 = vsub.s32 3, %v3970
        %v3972 = vrot.slane %v352, %v3971
        %3974 = vbcast.lane.b32.xlu0 %v3972, 256
        %v3975 = vpop.permute.xlu0 %3974
        %s3977 = sor.u32 256, 8
        %3978 = vbcast.lane.b32.xlu0 %v3972, %s3977
        %v3979 = vpop.permute.xlu0 %3978
        %v3980 = vlaneseq
        %v3981 = vshrl.u32 %v3980, 7
        %v3982 = vsub.s32 4, %v3981
        %v3983 = vrot.slane %v352, %v3982
        %3985 = vbcast.lane.b32.xlu0 %v3983, 256
        %v3986 = vpop.permute.xlu0 %3985
        %s3988 = sor.u32 256, 8
        %3989 = vbcast.lane.b32.xlu0 %v3983, %s3988
        %v3990 = vpop.permute.xlu0 %3989
        %v3991 = vlaneseq
        %v3992 = vshrl.u32 %v3991, 7
        %v3993 = vsub.s32 5, %v3992
        %v3994 = vrot.slane %v352, %v3993
        %3996 = vbcast.lane.b32.xlu0 %v3994, 256
        %v3997 = vpop.permute.xlu0 %3996
        %s3999 = sor.u32 256, 8
        %4000 = vbcast.lane.b32.xlu0 %v3994, %s3999
        %v4001 = vpop.permute.xlu0 %4000
        %v4002 = vlaneseq
        %v4003 = vshrl.u32 %v4002, 7
        %v4004 = vsub.s32 6, %v4003
        %v4005 = vrot.slane %v352, %v4004
        %4007 = vbcast.lane.b32.xlu0 %v4005, 256
        %v4008 = vpop.permute.xlu0 %4007
        %s4010 = sor.u32 256, 8
        %4011 = vbcast.lane.b32.xlu0 %v4005, %s4010
        %v4012 = vpop.permute.xlu0 %4011
        %v4013 = vlaneseq
        %v4014 = vshrl.u32 %v4013, 7
        %v4015 = vsub.s32 7, %v4014
        %v4016 = vrot.slane %v352, %v4015
        %4018 = vbcast.lane.b32.xlu0 %v4016, 256
        %v4019 = vpop.permute.xlu0 %4018
        %s4021 = sor.u32 256, 8
        %4022 = vbcast.lane.b32.xlu0 %v4016, %s4021
        %v4023 = vpop.permute.xlu0 %4022
        %v4024 = vlaneseq
        %v4025 = vshrl.u32 %v4024, 7
        %v4026 = vsub.s32 0, %v4025
        %v4027 = vrot.slane %v355, %v4026
        %4029 = vbcast.lane.b32.xlu0 %v4027, 256
        %v4030 = vpop.permute.xlu0 %4029
        %s4032 = sor.u32 256, 8
        %4033 = vbcast.lane.b32.xlu0 %v4027, %s4032
        %v4034 = vpop.permute.xlu0 %4033
        %v4035 = vlaneseq
        %v4036 = vshrl.u32 %v4035, 7
        %v4037 = vsub.s32 1, %v4036
        %v4038 = vrot.slane %v355, %v4037
        %4040 = vbcast.lane.b32.xlu0 %v4038, 256
        %v4041 = vpop.permute.xlu0 %4040
        %s4043 = sor.u32 256, 8
        %4044 = vbcast.lane.b32.xlu0 %v4038, %s4043
        %v4045 = vpop.permute.xlu0 %4044
        %v4046 = vlaneseq
        %v4047 = vshrl.u32 %v4046, 7
        %v4048 = vsub.s32 2, %v4047
        %v4049 = vrot.slane %v355, %v4048
        %4051 = vbcast.lane.b32.xlu0 %v4049, 256
        %v4052 = vpop.permute.xlu0 %4051
        %s4054 = sor.u32 256, 8
        %4055 = vbcast.lane.b32.xlu0 %v4049, %s4054
        %v4056 = vpop.permute.xlu0 %4055
        %v4057 = vlaneseq
        %v4058 = vshrl.u32 %v4057, 7
        %v4059 = vsub.s32 3, %v4058
        %v4060 = vrot.slane %v355, %v4059
        %4062 = vbcast.lane.b32.xlu0 %v4060, 256
        %v4063 = vpop.permute.xlu0 %4062
        %s4065 = sor.u32 256, 8
        %4066 = vbcast.lane.b32.xlu0 %v4060, %s4065
        %v4067 = vpop.permute.xlu0 %4066
        %v4068 = vlaneseq
        %v4069 = vshrl.u32 %v4068, 7
        %v4070 = vsub.s32 4, %v4069
        %v4071 = vrot.slane %v355, %v4070
        %4073 = vbcast.lane.b32.xlu0 %v4071, 256
        %v4074 = vpop.permute.xlu0 %4073
        %s4076 = sor.u32 256, 8
        %4077 = vbcast.lane.b32.xlu0 %v4071, %s4076
        %v4078 = vpop.permute.xlu0 %4077
        %v4079 = vlaneseq
        %v4080 = vshrl.u32 %v4079, 7
        %v4081 = vsub.s32 5, %v4080
        %v4082 = vrot.slane %v355, %v4081
        %4084 = vbcast.lane.b32.xlu0 %v4082, 256
        %v4085 = vpop.permute.xlu0 %4084
        %s4087 = sor.u32 256, 8
        %4088 = vbcast.lane.b32.xlu0 %v4082, %s4087
        %v4089 = vpop.permute.xlu0 %4088
        %v4090 = vlaneseq
        %v4091 = vshrl.u32 %v4090, 7
        %v4092 = vsub.s32 6, %v4091
        %v4093 = vrot.slane %v355, %v4092
        %4095 = vbcast.lane.b32.xlu0 %v4093, 256
        %v4096 = vpop.permute.xlu0 %4095
        %s4098 = sor.u32 256, 8
        %4099 = vbcast.lane.b32.xlu0 %v4093, %s4098
        %v4100 = vpop.permute.xlu0 %4099
        %v4101 = vlaneseq
        %v4102 = vshrl.u32 %v4101, 7
        %v4103 = vsub.s32 7, %v4102
        %v4104 = vrot.slane %v355, %v4103
        %4106 = vbcast.lane.b32.xlu0 %v4104, 256
        %v4107 = vpop.permute.xlu0 %4106
        %s4109 = sor.u32 256, 8
        %4110 = vbcast.lane.b32.xlu0 %v4104, %s4109
        %v4111 = vpop.permute.xlu0 %4110
        %v4112 = vmul.f32 %v3942, %v539
        %v4113 = vmul.f32 %v3946, %v539
        %v4114 = vmul.f32 %v3953, %v539
        %v4115 = vmul.f32 %v3957, %v539
        %v4116 = vmul.f32 %v3964, %v539
        %v4117 = vmul.f32 %v3968, %v539
        %v4118 = vmul.f32 %v3975, %v539
        %v4119 = vmul.f32 %v3979, %v539
        %v4120 = vmul.f32 %v3986, %v539
        %v4121 = vmul.f32 %v3990, %v539
        %v4122 = vmul.f32 %v3997, %v539
        %v4123 = vmul.f32 %v4001, %v539
        %v4124 = vmul.f32 %v4008, %v539
        %v4125 = vmul.f32 %v4012, %v539
        %v4126 = vmul.f32 %v4019, %v539
        %v4127 = vmul.f32 %v4023, %v539
        %v4128 = vmul.f32 %v4030, %v539
        %v4129 = vmul.f32 %v4034, %v539
        %v4130 = vmul.f32 %v4041, %v539
        %v4131 = vmul.f32 %v4045, %v539
        %v4132 = vmul.f32 %v4052, %v539
        %v4133 = vmul.f32 %v4056, %v539
        %v4134 = vmul.f32 %v4063, %v539
        %v4135 = vmul.f32 %v4067, %v539
        %v4136 = vmul.f32 %v4074, %v539
        %v4137 = vmul.f32 %v4078, %v539
        %v4138 = vmul.f32 %v4085, %v539
        %v4139 = vmul.f32 %v4089, %v539
        %v4140 = vmul.f32 %v4096, %v539
        %v4141 = vmul.f32 %v4100, %v539
        %v4142 = vmul.f32 %v4107, %v539
        %v4143 = vmul.f32 %v4111, %v539
        %v4144 = vadd.f32 %v4112, %v575
        %v4145 = vadd.f32 %v4113, %v575
        %v4146 = vadd.f32 %v4114, %v575
        %v4147 = vadd.f32 %v4115, %v575
        %v4148 = vadd.f32 %v4116, %v575
        %v4149 = vadd.f32 %v4117, %v575
        %v4150 = vadd.f32 %v4118, %v575
        %v4151 = vadd.f32 %v4119, %v575
        %v4152 = vadd.f32 %v4120, %v575
        %v4153 = vadd.f32 %v4121, %v575
        %v4154 = vadd.f32 %v4122, %v575
        %v4155 = vadd.f32 %v4123, %v575
        %v4156 = vadd.f32 %v4124, %v575
        %v4157 = vadd.f32 %v4125, %v575
        %v4158 = vadd.f32 %v4126, %v575
        %v4159 = vadd.f32 %v4127, %v575
        %v4160 = vadd.f32 %v4128, %v575
        %v4161 = vadd.f32 %v4129, %v575
        %v4162 = vadd.f32 %v4130, %v575
        %v4163 = vadd.f32 %v4131, %v575
        %v4164 = vadd.f32 %v4132, %v575
        %v4165 = vadd.f32 %v4133, %v575
        %v4166 = vadd.f32 %v4134, %v575
        %v4167 = vadd.f32 %v4135, %v575
        %v4168 = vadd.f32 %v4136, %v575
        %v4169 = vadd.f32 %v4137, %v575
        %v4170 = vadd.f32 %v4138, %v575
        %v4171 = vadd.f32 %v4139, %v575
        %v4172 = vadd.f32 %v4140, %v575
        %v4173 = vadd.f32 %v4141, %v575
        %v4174 = vadd.f32 %v4142, %v575
        %v4175 = vadd.f32 %v4143, %v575
        %v4176 = vand.u32 2147483647, %v4144
        %vm4177 = vcmp.le.f32.partialorder %v4176, 0.7853982
        %vm4178 = vcmp.lt.s32.totalorder %v4144, 0
        %v4179 = vand.u32 %v4144, 2139095040
        %v4180 = vshrl.u32 %v4179, 23
        %v4181 = vsub.s32 %v4180, 127
        %v4182 = vand.u32 2147483647, %v4144
        %v4183 = vand.u32 %v4182, 8388607
        %v4184 = vor.u32 %v4183, 8388608
        %v4185 = vsub.s32 0, %v4184
        %v4186 = vadd.s32 %v4181, 1
        %vm4187 = vcmp.gt.s32.totalorder %v4186, 0
        %v4188 = vsel %vm4187, %v4186, 0
        %v4189 = vshrl.u32 %v4188, 5
        %v4190 = vand.u32 %v4188, 31
        %v4191 = vsub.s32 32, %v4190
        %v4192 = vshrl.u32 683565275, %v4191
        %v4193 = vshll.u32 683565275, %v4190
        %v4194 = vshrl.u32 2475754826, %v4191
        %v4195 = vor.u32 %v4193, %v4194
        %v4196 = vshll.u32 2475754826, %v4190
        %v4197 = vshrl.u32 2131351028, %v4191
        %v4198 = vor.u32 %v4196, %v4197
        %v4199 = vshll.u32 2131351028, %v4190
        %v4200 = vshrl.u32 2102212464, %v4191
        %v4201 = vor.u32 %v4199, %v4200
        %v4202 = vshll.u32 2102212464, %v4190
        %v4203 = vshrl.u32 920167782, %v4191
        %v4204 = vor.u32 %v4202, %v4203
        %v4205 = vshll.u32 920167782, %v4190
        %v4206 = vshrl.u32 1326507024, %v4191
        %v4207 = vor.u32 %v4205, %v4206
        %vm4208 = vcmp.lt.s32.totalorder %v4189, 1
        %vm4209 = vcmp.lt.s32.totalorder %v4189, 2
        %vm4210 = vcmp.lt.s32.totalorder %v4189, 3
        %vm4211 = vcmp.lt.s32.totalorder %v4189, 4
        %v4212 = vsel %vm4208, %v4192, %v4195
        %v4213 = vsel %vm4211, %v4201, 2102212464
        %v4214 = vsel %vm4210, %v4198, %v4213
        %v4215 = vsel %vm4209, %v4212, %v4214
        %v4216 = vsel %vm4208, %v4195, %v4198
        %v4217 = vsel %vm4211, %v4204, 920167782
        %v4218 = vsel %vm4210, %v4201, %v4217
        %v4219 = vsel %vm4209, %v4216, %v4218
        %v4220 = vsel %vm4208, %v4198, %v4201
        %v4221 = vsel %vm4211, %v4207, 1326507024
        %v4222 = vsel %vm4210, %v4204, %v4221
        %v4223 = vsel %vm4209, %v4220, %v4222
        %v4224 = vshll.u32 %v4184, 8
        %v4225 = vmul.u32.u64.compose %v4224, %v4223
        %v4226 = vextract.low.u32 %v4225
        %v4227 = vextract.high.u32 %v4225
        %v4228 = vmul.u32.u64.compose %v4224, %v4219
        %v4229 = vextract.low.u32 %v4228
        %v4230 = vextract.high.u32 %v4228
        %v4231 = vmul.u32 %v4224, %v4215
        %v4232 = vadd.s32 %v4227, %v4229
        %vm4233 = vc.u32 %v4227, %v4229
        %v4234 = vadd.s32 %v4230, 1
        %v4235 = vsel %vm4233, %v4234, %v4230
        %v4236 = vadd.s32 %v4231, %v4235
        %v4237 = vadd.s32 %v4236, 536870912
        %v4238 = vshrl.u32 %v4237, 30
        %v4239 = vshll.u32 %v4238, 30
        %v4240 = vsub.s32 %v4236, %v4239
        %vm4241 = vcmp.lt.s32.totalorder %v4240, 0
        %v4242 = vsub.s32 0, %v4240
        %v4243 = vsel %vm4241, %v4242, %v4240
        %v4244 = vclz %v4243
        %v4245 = vsub.s32 %v4244, 2
        %vm4246 = vcmp.gt.s32.totalorder 0, %v4245
        %v4247 = vsel %vm4246, 0, %v4245
        %v4248 = vsub.s32 32, %v4247
        %v4249 = vshll.u32 %v4240, %v4247
        %v4250 = vshrl.u32 %v4232, %v4248
        %v4251 = vor.u32 %v4249, %v4250
        %v4252 = vsub.s32 4294967266, %v4247
        %v4253 = vadd.s32 %v4252, 127
        %v4254 = vshll.u32 %v4253, 23
        %v4255 = vor.u32 4788187, %v4254
        %v4256 = vand.u32 2147483647, %v4255
        %v4258 = vcvt.s32.f32 %v4251
        %v4259 = vmul.f32 %v4258, %v4256
        %v4260 = vxor.u32 %v4259, 2147483648
        %v4261 = vsel %vm4178, %v4260, %v4259
        %v4262 = vsub.s32 4, %v4238
        %v4263 = vsel %vm4178, %v4262, %v4238
        %v4264 = vsel %vm4177, %v4144, %v4261
        %v4265 = vsel %vm4177, 0, %v4263
        %v4266 = vcosq.f32.pop %v4264
        %v4267 = vsinq.f32.pop %v4264
        %vm4268 = vweird.f32 %v4144
        %v4269 = vadd.s32 %v4265, 3
        %v4270 = vand.u32 %v4269, 3
        %vm4271 = vcmp.lt.s32.totalorder %v4270, 2
        %vm4272 = vcmp.eq.s32.totalorder %v4270, 0
        %v4273 = vxor.u32 %v4267, 2147483648
        %v4274 = vsel %vm4272, %v4266, %v4273
        %vm4275 = vcmp.eq.s32.totalorder %v4270, 2
        %v4276 = vxor.u32 %v4266, 2147483648
        %v4277 = vsel %vm4275, %v4276, %v4267
        %v4278 = vsel %vm4271, %v4274, %v4277
        %v4279 = vsel %vm4268, nan, %v4278
        %v4280 = vand.u32 2147483647, %v4145
        %vm4281 = vcmp.le.f32.partialorder %v4280, 0.7853982
        %vm4282 = vcmp.lt.s32.totalorder %v4145, 0
        %v4283 = vand.u32 %v4145, 2139095040
        %v4284 = vshrl.u32 %v4283, 23
        %v4285 = vsub.s32 %v4284, 127
        %v4286 = vand.u32 2147483647, %v4145
        %v4287 = vand.u32 %v4286, 8388607
        %v4288 = vor.u32 %v4287, 8388608
        %v4289 = vsub.s32 0, %v4288
        %v4290 = vadd.s32 %v4285, 1
        %vm4291 = vcmp.gt.s32.totalorder %v4290, 0
        %v4292 = vsel %vm4291, %v4290, 0
        %v4293 = vshrl.u32 %v4292, 5
        %v4294 = vand.u32 %v4292, 31
        %v4295 = vsub.s32 32, %v4294
        %v4296 = vshrl.u32 683565275, %v4295
        %v4297 = vshll.u32 683565275, %v4294
        %v4298 = vshrl.u32 2475754826, %v4295
        %v4299 = vor.u32 %v4297, %v4298
        %v4300 = vshll.u32 2475754826, %v4294
        %v4301 = vshrl.u32 2131351028, %v4295
        %v4302 = vor.u32 %v4300, %v4301
        %v4303 = vshll.u32 2131351028, %v4294
        %v4304 = vshrl.u32 2102212464, %v4295
        %v4305 = vor.u32 %v4303, %v4304
        %v4306 = vshll.u32 2102212464, %v4294
        %v4307 = vshrl.u32 920167782, %v4295
        %v4308 = vor.u32 %v4306, %v4307
        %v4309 = vshll.u32 920167782, %v4294
        %v4310 = vshrl.u32 1326507024, %v4295
        %v4311 = vor.u32 %v4309, %v4310
        %vm4312 = vcmp.lt.s32.totalorder %v4293, 1
        %vm4313 = vcmp.lt.s32.totalorder %v4293, 2
        %vm4314 = vcmp.lt.s32.totalorder %v4293, 3
        %vm4315 = vcmp.lt.s32.totalorder %v4293, 4
        %v4316 = vsel %vm4312, %v4296, %v4299
        %v4317 = vsel %vm4315, %v4305, 2102212464
        %v4318 = vsel %vm4314, %v4302, %v4317
        %v4319 = vsel %vm4313, %v4316, %v4318
        %v4320 = vsel %vm4312, %v4299, %v4302
        %v4321 = vsel %vm4315, %v4308, 920167782
        %v4322 = vsel %vm4314, %v4305, %v4321
        %v4323 = vsel %vm4313, %v4320, %v4322
        %v4324 = vsel %vm4312, %v4302, %v4305
        %v4325 = vsel %vm4315, %v4311, 1326507024
        %v4326 = vsel %vm4314, %v4308, %v4325
        %v4327 = vsel %vm4313, %v4324, %v4326
        %v4328 = vshll.u32 %v4288, 8
        %v4329 = vmul.u32.u64.compose %v4328, %v4327
        %v4330 = vextract.low.u32 %v4329
        %v4331 = vextract.high.u32 %v4329
        %v4332 = vmul.u32.u64.compose %v4328, %v4323
        %v4333 = vextract.low.u32 %v4332
        %v4334 = vextract.high.u32 %v4332
        %v4335 = vmul.u32 %v4328, %v4319
        %v4336 = vadd.s32 %v4331, %v4333
        %vm4337 = vc.u32 %v4331, %v4333
        %v4338 = vadd.s32 %v4334, 1
        %v4339 = vsel %vm4337, %v4338, %v4334
        %v4340 = vadd.s32 %v4335, %v4339
        %v4341 = vadd.s32 %v4340, 536870912
        %v4342 = vshrl.u32 %v4341, 30
        %v4343 = vshll.u32 %v4342, 30
        %v4344 = vsub.s32 %v4340, %v4343
        %vm4345 = vcmp.lt.s32.totalorder %v4344, 0
        %v4346 = vsub.s32 0, %v4344
        %v4347 = vsel %vm4345, %v4346, %v4344
        %v4348 = vclz %v4347
        %v4349 = vsub.s32 %v4348, 2
        %vm4350 = vcmp.gt.s32.totalorder 0, %v4349
        %v4351 = vsel %vm4350, 0, %v4349
        %v4352 = vsub.s32 32, %v4351
        %v4353 = vshll.u32 %v4344, %v4351
        %v4354 = vshrl.u32 %v4336, %v4352
        %v4355 = vor.u32 %v4353, %v4354
        %v4356 = vsub.s32 4294967266, %v4351
        %v4357 = vadd.s32 %v4356, 127
        %v4358 = vshll.u32 %v4357, 23
        %v4359 = vor.u32 4788187, %v4358
        %v4360 = vand.u32 2147483647, %v4359
        %v4362 = vcvt.s32.f32 %v4355
        %v4363 = vmul.f32 %v4362, %v4360
        %v4364 = vxor.u32 %v4363, 2147483648
        %v4365 = vsel %vm4282, %v4364, %v4363
        %v4366 = vsub.s32 4, %v4342
        %v4367 = vsel %vm4282, %v4366, %v4342
        %v4368 = vsel %vm4281, %v4145, %v4365
        %v4369 = vsel %vm4281, 0, %v4367
        %v4370 = vcosq.f32.pop %v4368
        %v4371 = vsinq.f32.pop %v4368
        %vm4372 = vweird.f32 %v4145
        %v4373 = vadd.s32 %v4369, 3
        %v4374 = vand.u32 %v4373, 3
        %vm4375 = vcmp.lt.s32.totalorder %v4374, 2
        %vm4376 = vcmp.eq.s32.totalorder %v4374, 0
        %v4377 = vxor.u32 %v4371, 2147483648
        %v4378 = vsel %vm4376, %v4370, %v4377
        %vm4379 = vcmp.eq.s32.totalorder %v4374, 2
        %v4380 = vxor.u32 %v4370, 2147483648
        %v4381 = vsel %vm4379, %v4380, %v4371
        %v4382 = vsel %vm4375, %v4378, %v4381
        %v4383 = vsel %vm4372, nan, %v4382
        %v4384 = vand.u32 2147483647, %v4146
        %vm4385 = vcmp.le.f32.partialorder %v4384, 0.7853982
        %vm4386 = vcmp.lt.s32.totalorder %v4146, 0
        %v4387 = vand.u32 %v4146, 2139095040
        %v4388 = vshrl.u32 %v4387, 23
        %v4389 = vsub.s32 %v4388, 127
        %v4390 = vand.u32 2147483647, %v4146
        %v4391 = vand.u32 %v4390, 8388607
        %v4392 = vor.u32 %v4391, 8388608
        %v4393 = vsub.s32 0, %v4392
        %v4394 = vadd.s32 %v4389, 1
        %vm4395 = vcmp.gt.s32.totalorder %v4394, 0
        %v4396 = vsel %vm4395, %v4394, 0
        %v4397 = vshrl.u32 %v4396, 5
        %v4398 = vand.u32 %v4396, 31
        %v4399 = vsub.s32 32, %v4398
        %v4400 = vshrl.u32 683565275, %v4399
        %v4401 = vshll.u32 683565275, %v4398
        %v4402 = vshrl.u32 2475754826, %v4399
        %v4403 = vor.u32 %v4401, %v4402
        %v4404 = vshll.u32 2475754826, %v4398
        %v4405 = vshrl.u32 2131351028, %v4399
        %v4406 = vor.u32 %v4404, %v4405
        %v4407 = vshll.u32 2131351028, %v4398
        %v4408 = vshrl.u32 2102212464, %v4399
        %v4409 = vor.u32 %v4407, %v4408
        %v4410 = vshll.u32 2102212464, %v4398
        %v4411 = vshrl.u32 920167782, %v4399
        %v4412 = vor.u32 %v4410, %v4411
        %v4413 = vshll.u32 920167782, %v4398
        %v4414 = vshrl.u32 1326507024, %v4399
        %v4415 = vor.u32 %v4413, %v4414
        %vm4416 = vcmp.lt.s32.totalorder %v4397, 1
        %vm4417 = vcmp.lt.s32.totalorder %v4397, 2
        %vm4418 = vcmp.lt.s32.totalorder %v4397, 3
        %vm4419 = vcmp.lt.s32.totalorder %v4397, 4
        %v4420 = vsel %vm4416, %v4400, %v4403
        %v4421 = vsel %vm4419, %v4409, 2102212464
        %v4422 = vsel %vm4418, %v4406, %v4421
        %v4423 = vsel %vm4417, %v4420, %v4422
        %v4424 = vsel %vm4416, %v4403, %v4406
        %v4425 = vsel %vm4419, %v4412, 920167782
        %v4426 = vsel %vm4418, %v4409, %v4425
        %v4427 = vsel %vm4417, %v4424, %v4426
        %v4428 = vsel %vm4416, %v4406, %v4409
        %v4429 = vsel %vm4419, %v4415, 1326507024
        %v4430 = vsel %vm4418, %v4412, %v4429
        %v4431 = vsel %vm4417, %v4428, %v4430
        %v4432 = vshll.u32 %v4392, 8
        %v4433 = vmul.u32.u64.compose %v4432, %v4431
        %v4434 = vextract.low.u32 %v4433
        %v4435 = vextract.high.u32 %v4433
        %v4436 = vmul.u32.u64.compose %v4432, %v4427
        %v4437 = vextract.low.u32 %v4436
        %v4438 = vextract.high.u32 %v4436
        %v4439 = vmul.u32 %v4432, %v4423
        %v4440 = vadd.s32 %v4435, %v4437
        %vm4441 = vc.u32 %v4435, %v4437
        %v4442 = vadd.s32 %v4438, 1
        %v4443 = vsel %vm4441, %v4442, %v4438
        %v4444 = vadd.s32 %v4439, %v4443
        %v4445 = vadd.s32 %v4444, 536870912
        %v4446 = vshrl.u32 %v4445, 30
        %v4447 = vshll.u32 %v4446, 30
        %v4448 = vsub.s32 %v4444, %v4447
        %vm4449 = vcmp.lt.s32.totalorder %v4448, 0
        %v4450 = vsub.s32 0, %v4448
        %v4451 = vsel %vm4449, %v4450, %v4448
        %v4452 = vclz %v4451
        %v4453 = vsub.s32 %v4452, 2
        %vm4454 = vcmp.gt.s32.totalorder 0, %v4453
        %v4455 = vsel %vm4454, 0, %v4453
        %v4456 = vsub.s32 32, %v4455
        %v4457 = vshll.u32 %v4448, %v4455
        %v4458 = vshrl.u32 %v4440, %v4456
        %v4459 = vor.u32 %v4457, %v4458
        %v4460 = vsub.s32 4294967266, %v4455
        %v4461 = vadd.s32 %v4460, 127
        %v4462 = vshll.u32 %v4461, 23
        %v4463 = vor.u32 4788187, %v4462
        %v4464 = vand.u32 2147483647, %v4463
        %v4466 = vcvt.s32.f32 %v4459
        %v4467 = vmul.f32 %v4466, %v4464
        %v4468 = vxor.u32 %v4467, 2147483648
        %v4469 = vsel %vm4386, %v4468, %v4467
        %v4470 = vsub.s32 4, %v4446
        %v4471 = vsel %vm4386, %v4470, %v4446
        %v4472 = vsel %vm4385, %v4146, %v4469
        %v4473 = vsel %vm4385, 0, %v4471
        %v4474 = vcosq.f32.pop %v4472
        %v4475 = vsinq.f32.pop %v4472
        %vm4476 = vweird.f32 %v4146
        %v4477 = vadd.s32 %v4473, 3
        %v4478 = vand.u32 %v4477, 3
        %vm4479 = vcmp.lt.s32.totalorder %v4478, 2
        %vm4480 = vcmp.eq.s32.totalorder %v4478, 0
        %v4481 = vxor.u32 %v4475, 2147483648
        %v4482 = vsel %vm4480, %v4474, %v4481
        %vm4483 = vcmp.eq.s32.totalorder %v4478, 2
        %v4484 = vxor.u32 %v4474, 2147483648
        %v4485 = vsel %vm4483, %v4484, %v4475
        %v4486 = vsel %vm4479, %v4482, %v4485
        %v4487 = vsel %vm4476, nan, %v4486
        %v4488 = vand.u32 2147483647, %v4147
        %vm4489 = vcmp.le.f32.partialorder %v4488, 0.7853982
        %vm4490 = vcmp.lt.s32.totalorder %v4147, 0
        %v4491 = vand.u32 %v4147, 2139095040
        %v4492 = vshrl.u32 %v4491, 23
        %v4493 = vsub.s32 %v4492, 127
        %v4494 = vand.u32 2147483647, %v4147
        %v4495 = vand.u32 %v4494, 8388607
        %v4496 = vor.u32 %v4495, 8388608
        %v4497 = vsub.s32 0, %v4496
        %v4498 = vadd.s32 %v4493, 1
        %vm4499 = vcmp.gt.s32.totalorder %v4498, 0
        %v4500 = vsel %vm4499, %v4498, 0
        %v4501 = vshrl.u32 %v4500, 5
        %v4502 = vand.u32 %v4500, 31
        %v4503 = vsub.s32 32, %v4502
        %v4504 = vshrl.u32 683565275, %v4503
        %v4505 = vshll.u32 683565275, %v4502
        %v4506 = vshrl.u32 2475754826, %v4503
        %v4507 = vor.u32 %v4505, %v4506
        %v4508 = vshll.u32 2475754826, %v4502
        %v4509 = vshrl.u32 2131351028, %v4503
        %v4510 = vor.u32 %v4508, %v4509
        %v4511 = vshll.u32 2131351028, %v4502
        %v4512 = vshrl.u32 2102212464, %v4503
        %v4513 = vor.u32 %v4511, %v4512
        %v4514 = vshll.u32 2102212464, %v4502
        %v4515 = vshrl.u32 920167782, %v4503
        %v4516 = vor.u32 %v4514, %v4515
        %v4517 = vshll.u32 920167782, %v4502
        %v4518 = vshrl.u32 1326507024, %v4503
        %v4519 = vor.u32 %v4517, %v4518
        %vm4520 = vcmp.lt.s32.totalorder %v4501, 1
        %vm4521 = vcmp.lt.s32.totalorder %v4501, 2
        %vm4522 = vcmp.lt.s32.totalorder %v4501, 3
        %vm4523 = vcmp.lt.s32.totalorder %v4501, 4
        %v4524 = vsel %vm4520, %v4504, %v4507
        %v4525 = vsel %vm4523, %v4513, 2102212464
        %v4526 = vsel %vm4522, %v4510, %v4525
        %v4527 = vsel %vm4521, %v4524, %v4526
        %v4528 = vsel %vm4520, %v4507, %v4510
        %v4529 = vsel %vm4523, %v4516, 920167782
        %v4530 = vsel %vm4522, %v4513, %v4529
        %v4531 = vsel %vm4521, %v4528, %v4530
        %v4532 = vsel %vm4520, %v4510, %v4513
        %v4533 = vsel %vm4523, %v4519, 1326507024
        %v4534 = vsel %vm4522, %v4516, %v4533
        %v4535 = vsel %vm4521, %v4532, %v4534
        %v4536 = vshll.u32 %v4496, 8
        %v4537 = vmul.u32.u64.compose %v4536, %v4535
        %v4538 = vextract.low.u32 %v4537
        %v4539 = vextract.high.u32 %v4537
        %v4540 = vmul.u32.u64.compose %v4536, %v4531
        %v4541 = vextract.low.u32 %v4540
        %v4542 = vextract.high.u32 %v4540
        %v4543 = vmul.u32 %v4536, %v4527
        %v4544 = vadd.s32 %v4539, %v4541
        %vm4545 = vc.u32 %v4539, %v4541
        %v4546 = vadd.s32 %v4542, 1
        %v4547 = vsel %vm4545, %v4546, %v4542
        %v4548 = vadd.s32 %v4543, %v4547
        %v4549 = vadd.s32 %v4548, 536870912
        %v4550 = vshrl.u32 %v4549, 30
        %v4551 = vshll.u32 %v4550, 30
        %v4552 = vsub.s32 %v4548, %v4551
        %vm4553 = vcmp.lt.s32.totalorder %v4552, 0
        %v4554 = vsub.s32 0, %v4552
        %v4555 = vsel %vm4553, %v4554, %v4552
        %v4556 = vclz %v4555
        %v4557 = vsub.s32 %v4556, 2
        %vm4558 = vcmp.gt.s32.totalorder 0, %v4557
        %v4559 = vsel %vm4558, 0, %v4557
        %v4560 = vsub.s32 32, %v4559
        %v4561 = vshll.u32 %v4552, %v4559
        %v4562 = vshrl.u32 %v4544, %v4560
        %v4563 = vor.u32 %v4561, %v4562
        %v4564 = vsub.s32 4294967266, %v4559
        %v4565 = vadd.s32 %v4564, 127
        %v4566 = vshll.u32 %v4565, 23
        %v4567 = vor.u32 4788187, %v4566
        %v4568 = vand.u32 2147483647, %v4567
        %v4570 = vcvt.s32.f32 %v4563
        %v4571 = vmul.f32 %v4570, %v4568
        %v4572 = vxor.u32 %v4571, 2147483648
        %v4573 = vsel %vm4490, %v4572, %v4571
        %v4574 = vsub.s32 4, %v4550
        %v4575 = vsel %vm4490, %v4574, %v4550
        %v4576 = vsel %vm4489, %v4147, %v4573
        %v4577 = vsel %vm4489, 0, %v4575
        %v4578 = vcosq.f32.pop %v4576
        %v4579 = vsinq.f32.pop %v4576
        %vm4580 = vweird.f32 %v4147
        %v4581 = vadd.s32 %v4577, 3
        %v4582 = vand.u32 %v4581, 3
        %vm4583 = vcmp.lt.s32.totalorder %v4582, 2
        %vm4584 = vcmp.eq.s32.totalorder %v4582, 0
        %v4585 = vxor.u32 %v4579, 2147483648
        %v4586 = vsel %vm4584, %v4578, %v4585
        %vm4587 = vcmp.eq.s32.totalorder %v4582, 2
        %v4588 = vxor.u32 %v4578, 2147483648
        %v4589 = vsel %vm4587, %v4588, %v4579
        %v4590 = vsel %vm4583, %v4586, %v4589
        %v4591 = vsel %vm4580, nan, %v4590
        %v4592 = vand.u32 2147483647, %v4148
        %vm4593 = vcmp.le.f32.partialorder %v4592, 0.7853982
        %vm4594 = vcmp.lt.s32.totalorder %v4148, 0
        %v4595 = vand.u32 %v4148, 2139095040
        %v4596 = vshrl.u32 %v4595, 23
        %v4597 = vsub.s32 %v4596, 127
        %v4598 = vand.u32 2147483647, %v4148
        %v4599 = vand.u32 %v4598, 8388607
        %v4600 = vor.u32 %v4599, 8388608
        %v4601 = vsub.s32 0, %v4600
        %v4602 = vadd.s32 %v4597, 1
        %vm4603 = vcmp.gt.s32.totalorder %v4602, 0
        %v4604 = vsel %vm4603, %v4602, 0
        %v4605 = vshrl.u32 %v4604, 5
        %v4606 = vand.u32 %v4604, 31
        %v4607 = vsub.s32 32, %v4606
        %v4608 = vshrl.u32 683565275, %v4607
        %v4609 = vshll.u32 683565275, %v4606
        %v4610 = vshrl.u32 2475754826, %v4607
        %v4611 = vor.u32 %v4609, %v4610
        %v4612 = vshll.u32 2475754826, %v4606
        %v4613 = vshrl.u32 2131351028, %v4607
        %v4614 = vor.u32 %v4612, %v4613
        %v4615 = vshll.u32 2131351028, %v4606
        %v4616 = vshrl.u32 2102212464, %v4607
        %v4617 = vor.u32 %v4615, %v4616
        %v4618 = vshll.u32 2102212464, %v4606
        %v4619 = vshrl.u32 920167782, %v4607
        %v4620 = vor.u32 %v4618, %v4619
        %v4621 = vshll.u32 920167782, %v4606
        %v4622 = vshrl.u32 1326507024, %v4607
        %v4623 = vor.u32 %v4621, %v4622
        %vm4624 = vcmp.lt.s32.totalorder %v4605, 1
        %vm4625 = vcmp.lt.s32.totalorder %v4605, 2
        %vm4626 = vcmp.lt.s32.totalorder %v4605, 3
        %vm4627 = vcmp.lt.s32.totalorder %v4605, 4
        %v4628 = vsel %vm4624, %v4608, %v4611
        %v4629 = vsel %vm4627, %v4617, 2102212464
        %v4630 = vsel %vm4626, %v4614, %v4629
        %v4631 = vsel %vm4625, %v4628, %v4630
        %v4632 = vsel %vm4624, %v4611, %v4614
        %v4633 = vsel %vm4627, %v4620, 920167782
        %v4634 = vsel %vm4626, %v4617, %v4633
        %v4635 = vsel %vm4625, %v4632, %v4634
        %v4636 = vsel %vm4624, %v4614, %v4617
        %v4637 = vsel %vm4627, %v4623, 1326507024
        %v4638 = vsel %vm4626, %v4620, %v4637
        %v4639 = vsel %vm4625, %v4636, %v4638
        %v4640 = vshll.u32 %v4600, 8
        %v4641 = vmul.u32.u64.compose %v4640, %v4639
        %v4642 = vextract.low.u32 %v4641
        %v4643 = vextract.high.u32 %v4641
        %v4644 = vmul.u32.u64.compose %v4640, %v4635
        %v4645 = vextract.low.u32 %v4644
        %v4646 = vextract.high.u32 %v4644
        %v4647 = vmul.u32 %v4640, %v4631
        %v4648 = vadd.s32 %v4643, %v4645
        %vm4649 = vc.u32 %v4643, %v4645
        %v4650 = vadd.s32 %v4646, 1
        %v4651 = vsel %vm4649, %v4650, %v4646
        %v4652 = vadd.s32 %v4647, %v4651
        %v4653 = vadd.s32 %v4652, 536870912
        %v4654 = vshrl.u32 %v4653, 30
        %v4655 = vshll.u32 %v4654, 30
        %v4656 = vsub.s32 %v4652, %v4655
        %vm4657 = vcmp.lt.s32.totalorder %v4656, 0
        %v4658 = vsub.s32 0, %v4656
        %v4659 = vsel %vm4657, %v4658, %v4656
        %v4660 = vclz %v4659
        %v4661 = vsub.s32 %v4660, 2
        %vm4662 = vcmp.gt.s32.totalorder 0, %v4661
        %v4663 = vsel %vm4662, 0, %v4661
        %v4664 = vsub.s32 32, %v4663
        %v4665 = vshll.u32 %v4656, %v4663
        %v4666 = vshrl.u32 %v4648, %v4664
        %v4667 = vor.u32 %v4665, %v4666
        %v4668 = vsub.s32 4294967266, %v4663
        %v4669 = vadd.s32 %v4668, 127
        %v4670 = vshll.u32 %v4669, 23
        %v4671 = vor.u32 4788187, %v4670
        %v4672 = vand.u32 2147483647, %v4671
        %v4674 = vcvt.s32.f32 %v4667
        %v4675 = vmul.f32 %v4674, %v4672
        %v4676 = vxor.u32 %v4675, 2147483648
        %v4677 = vsel %vm4594, %v4676, %v4675
        %v4678 = vsub.s32 4, %v4654
        %v4679 = vsel %vm4594, %v4678, %v4654
        %v4680 = vsel %vm4593, %v4148, %v4677
        %v4681 = vsel %vm4593, 0, %v4679
        %v4682 = vcosq.f32.pop %v4680
        %v4683 = vsinq.f32.pop %v4680
        %vm4684 = vweird.f32 %v4148
        %v4685 = vadd.s32 %v4681, 3
        %v4686 = vand.u32 %v4685, 3
        %vm4687 = vcmp.lt.s32.totalorder %v4686, 2
        %vm4688 = vcmp.eq.s32.totalorder %v4686, 0
        %v4689 = vxor.u32 %v4683, 2147483648
        %v4690 = vsel %vm4688, %v4682, %v4689
        %vm4691 = vcmp.eq.s32.totalorder %v4686, 2
        %v4692 = vxor.u32 %v4682, 2147483648
        %v4693 = vsel %vm4691, %v4692, %v4683
        %v4694 = vsel %vm4687, %v4690, %v4693
        %v4695 = vsel %vm4684, nan, %v4694
        %v4696 = vand.u32 2147483647, %v4149
        %vm4697 = vcmp.le.f32.partialorder %v4696, 0.7853982
        %vm4698 = vcmp.lt.s32.totalorder %v4149, 0
        %v4699 = vand.u32 %v4149, 2139095040
        %v4700 = vshrl.u32 %v4699, 23
        %v4701 = vsub.s32 %v4700, 127
        %v4702 = vand.u32 2147483647, %v4149
        %v4703 = vand.u32 %v4702, 8388607
        %v4704 = vor.u32 %v4703, 8388608
        %v4705 = vsub.s32 0, %v4704
        %v4706 = vadd.s32 %v4701, 1
        %vm4707 = vcmp.gt.s32.totalorder %v4706, 0
        %v4708 = vsel %vm4707, %v4706, 0
        %v4709 = vshrl.u32 %v4708, 5
        %v4710 = vand.u32 %v4708, 31
        %v4711 = vsub.s32 32, %v4710
        %v4712 = vshrl.u32 683565275, %v4711
        %v4713 = vshll.u32 683565275, %v4710
        %v4714 = vshrl.u32 2475754826, %v4711
        %v4715 = vor.u32 %v4713, %v4714
        %v4716 = vshll.u32 2475754826, %v4710
        %v4717 = vshrl.u32 2131351028, %v4711
        %v4718 = vor.u32 %v4716, %v4717
        %v4719 = vshll.u32 2131351028, %v4710
        %v4720 = vshrl.u32 2102212464, %v4711
        %v4721 = vor.u32 %v4719, %v4720
        %v4722 = vshll.u32 2102212464, %v4710
        %v4723 = vshrl.u32 920167782, %v4711
        %v4724 = vor.u32 %v4722, %v4723
        %v4725 = vshll.u32 920167782, %v4710
        %v4726 = vshrl.u32 1326507024, %v4711
        %v4727 = vor.u32 %v4725, %v4726
        %vm4728 = vcmp.lt.s32.totalorder %v4709, 1
        %vm4729 = vcmp.lt.s32.totalorder %v4709, 2
        %vm4730 = vcmp.lt.s32.totalorder %v4709, 3
        %vm4731 = vcmp.lt.s32.totalorder %v4709, 4
        %v4732 = vsel %vm4728, %v4712, %v4715
        %v4733 = vsel %vm4731, %v4721, 2102212464
        %v4734 = vsel %vm4730, %v4718, %v4733
        %v4735 = vsel %vm4729, %v4732, %v4734
        %v4736 = vsel %vm4728, %v4715, %v4718
        %v4737 = vsel %vm4731, %v4724, 920167782
        %v4738 = vsel %vm4730, %v4721, %v4737
        %v4739 = vsel %vm4729, %v4736, %v4738
        %v4740 = vsel %vm4728, %v4718, %v4721
        %v4741 = vsel %vm4731, %v4727, 1326507024
        %v4742 = vsel %vm4730, %v4724, %v4741
        %v4743 = vsel %vm4729, %v4740, %v4742
        %v4744 = vshll.u32 %v4704, 8
        %v4745 = vmul.u32.u64.compose %v4744, %v4743
        %v4746 = vextract.low.u32 %v4745
        %v4747 = vextract.high.u32 %v4745
        %v4748 = vmul.u32.u64.compose %v4744, %v4739
        %v4749 = vextract.low.u32 %v4748
        %v4750 = vextract.high.u32 %v4748
        %v4751 = vmul.u32 %v4744, %v4735
        %v4752 = vadd.s32 %v4747, %v4749
        %vm4753 = vc.u32 %v4747, %v4749
        %v4754 = vadd.s32 %v4750, 1
        %v4755 = vsel %vm4753, %v4754, %v4750
        %v4756 = vadd.s32 %v4751, %v4755
        %v4757 = vadd.s32 %v4756, 536870912
        %v4758 = vshrl.u32 %v4757, 30
        %v4759 = vshll.u32 %v4758, 30
        %v4760 = vsub.s32 %v4756, %v4759
        %vm4761 = vcmp.lt.s32.totalorder %v4760, 0
        %v4762 = vsub.s32 0, %v4760
        %v4763 = vsel %vm4761, %v4762, %v4760
        %v4764 = vclz %v4763
        %v4765 = vsub.s32 %v4764, 2
        %vm4766 = vcmp.gt.s32.totalorder 0, %v4765
        %v4767 = vsel %vm4766, 0, %v4765
        %v4768 = vsub.s32 32, %v4767
        %v4769 = vshll.u32 %v4760, %v4767
        %v4770 = vshrl.u32 %v4752, %v4768
        %v4771 = vor.u32 %v4769, %v4770
        %v4772 = vsub.s32 4294967266, %v4767
        %v4773 = vadd.s32 %v4772, 127
        %v4774 = vshll.u32 %v4773, 23
        %v4775 = vor.u32 4788187, %v4774
        %v4776 = vand.u32 2147483647, %v4775
        %v4778 = vcvt.s32.f32 %v4771
        %v4779 = vmul.f32 %v4778, %v4776
        %v4780 = vxor.u32 %v4779, 2147483648
        %v4781 = vsel %vm4698, %v4780, %v4779
        %v4782 = vsub.s32 4, %v4758
        %v4783 = vsel %vm4698, %v4782, %v4758
        %v4784 = vsel %vm4697, %v4149, %v4781
        %v4785 = vsel %vm4697, 0, %v4783
        %v4786 = vcosq.f32.pop %v4784
        %v4787 = vsinq.f32.pop %v4784
        %vm4788 = vweird.f32 %v4149
        %v4789 = vadd.s32 %v4785, 3
        %v4790 = vand.u32 %v4789, 3
        %vm4791 = vcmp.lt.s32.totalorder %v4790, 2
        %vm4792 = vcmp.eq.s32.totalorder %v4790, 0
        %v4793 = vxor.u32 %v4787, 2147483648
        %v4794 = vsel %vm4792, %v4786, %v4793
        %vm4795 = vcmp.eq.s32.totalorder %v4790, 2
        %v4796 = vxor.u32 %v4786, 2147483648
        %v4797 = vsel %vm4795, %v4796, %v4787
        %v4798 = vsel %vm4791, %v4794, %v4797
        %v4799 = vsel %vm4788, nan, %v4798
        %v4800 = vand.u32 2147483647, %v4150
        %vm4801 = vcmp.le.f32.partialorder %v4800, 0.7853982
        %vm4802 = vcmp.lt.s32.totalorder %v4150, 0
        %v4803 = vand.u32 %v4150, 2139095040
        %v4804 = vshrl.u32 %v4803, 23
        %v4805 = vsub.s32 %v4804, 127
        %v4806 = vand.u32 2147483647, %v4150
        %v4807 = vand.u32 %v4806, 8388607
        %v4808 = vor.u32 %v4807, 8388608
        %v4809 = vsub.s32 0, %v4808
        %v4810 = vadd.s32 %v4805, 1
        %vm4811 = vcmp.gt.s32.totalorder %v4810, 0
        %v4812 = vsel %vm4811, %v4810, 0
        %v4813 = vshrl.u32 %v4812, 5
        %v4814 = vand.u32 %v4812, 31
        %v4815 = vsub.s32 32, %v4814
        %v4816 = vshrl.u32 683565275, %v4815
        %v4817 = vshll.u32 683565275, %v4814
        %v4818 = vshrl.u32 2475754826, %v4815
        %v4819 = vor.u32 %v4817, %v4818
        %v4820 = vshll.u32 2475754826, %v4814
        %v4821 = vshrl.u32 2131351028, %v4815
        %v4822 = vor.u32 %v4820, %v4821
        %v4823 = vshll.u32 2131351028, %v4814
        %v4824 = vshrl.u32 2102212464, %v4815
        %v4825 = vor.u32 %v4823, %v4824
        %v4826 = vshll.u32 2102212464, %v4814
        %v4827 = vshrl.u32 920167782, %v4815
        %v4828 = vor.u32 %v4826, %v4827
        %v4829 = vshll.u32 920167782, %v4814
        %v4830 = vshrl.u32 1326507024, %v4815
        %v4831 = vor.u32 %v4829, %v4830
        %vm4832 = vcmp.lt.s32.totalorder %v4813, 1
        %vm4833 = vcmp.lt.s32.totalorder %v4813, 2
        %vm4834 = vcmp.lt.s32.totalorder %v4813, 3
        %vm4835 = vcmp.lt.s32.totalorder %v4813, 4
        %v4836 = vsel %vm4832, %v4816, %v4819
        %v4837 = vsel %vm4835, %v4825, 2102212464
        %v4838 = vsel %vm4834, %v4822, %v4837
        %v4839 = vsel %vm4833, %v4836, %v4838
        %v4840 = vsel %vm4832, %v4819, %v4822
        %v4841 = vsel %vm4835, %v4828, 920167782
        %v4842 = vsel %vm4834, %v4825, %v4841
        %v4843 = vsel %vm4833, %v4840, %v4842
        %v4844 = vsel %vm4832, %v4822, %v4825
        %v4845 = vsel %vm4835, %v4831, 1326507024
        %v4846 = vsel %vm4834, %v4828, %v4845
        %v4847 = vsel %vm4833, %v4844, %v4846
        %v4848 = vshll.u32 %v4808, 8
        %v4849 = vmul.u32.u64.compose %v4848, %v4847
        %v4850 = vextract.low.u32 %v4849
        %v4851 = vextract.high.u32 %v4849
        %v4852 = vmul.u32.u64.compose %v4848, %v4843
        %v4853 = vextract.low.u32 %v4852
        %v4854 = vextract.high.u32 %v4852
        %v4855 = vmul.u32 %v4848, %v4839
        %v4856 = vadd.s32 %v4851, %v4853
        %vm4857 = vc.u32 %v4851, %v4853
        %v4858 = vadd.s32 %v4854, 1
        %v4859 = vsel %vm4857, %v4858, %v4854
        %v4860 = vadd.s32 %v4855, %v4859
        %v4861 = vadd.s32 %v4860, 536870912
        %v4862 = vshrl.u32 %v4861, 30
        %v4863 = vshll.u32 %v4862, 30
        %v4864 = vsub.s32 %v4860, %v4863
        %vm4865 = vcmp.lt.s32.totalorder %v4864, 0
        %v4866 = vsub.s32 0, %v4864
        %v4867 = vsel %vm4865, %v4866, %v4864
        %v4868 = vclz %v4867
        %v4869 = vsub.s32 %v4868, 2
        %vm4870 = vcmp.gt.s32.totalorder 0, %v4869
        %v4871 = vsel %vm4870, 0, %v4869
        %v4872 = vsub.s32 32, %v4871
        %v4873 = vshll.u32 %v4864, %v4871
        %v4874 = vshrl.u32 %v4856, %v4872
        %v4875 = vor.u32 %v4873, %v4874
        %v4876 = vsub.s32 4294967266, %v4871
        %v4877 = vadd.s32 %v4876, 127
        %v4878 = vshll.u32 %v4877, 23
        %v4879 = vor.u32 4788187, %v4878
        %v4880 = vand.u32 2147483647, %v4879
        %v4882 = vcvt.s32.f32 %v4875
        %v4883 = vmul.f32 %v4882, %v4880
        %v4884 = vxor.u32 %v4883, 2147483648
        %v4885 = vsel %vm4802, %v4884, %v4883
        %v4886 = vsub.s32 4, %v4862
        %v4887 = vsel %vm4802, %v4886, %v4862
        %v4888 = vsel %vm4801, %v4150, %v4885
        %v4889 = vsel %vm4801, 0, %v4887
        %v4890 = vcosq.f32.pop %v4888
        %v4891 = vsinq.f32.pop %v4888
        %vm4892 = vweird.f32 %v4150
        %v4893 = vadd.s32 %v4889, 3
        %v4894 = vand.u32 %v4893, 3
        %vm4895 = vcmp.lt.s32.totalorder %v4894, 2
        %vm4896 = vcmp.eq.s32.totalorder %v4894, 0
        %v4897 = vxor.u32 %v4891, 2147483648
        %v4898 = vsel %vm4896, %v4890, %v4897
        %vm4899 = vcmp.eq.s32.totalorder %v4894, 2
        %v4900 = vxor.u32 %v4890, 2147483648
        %v4901 = vsel %vm4899, %v4900, %v4891
        %v4902 = vsel %vm4895, %v4898, %v4901
        %v4903 = vsel %vm4892, nan, %v4902
        %v4904 = vand.u32 2147483647, %v4151
        %vm4905 = vcmp.le.f32.partialorder %v4904, 0.7853982
        %vm4906 = vcmp.lt.s32.totalorder %v4151, 0
        %v4907 = vand.u32 %v4151, 2139095040
        %v4908 = vshrl.u32 %v4907, 23
        %v4909 = vsub.s32 %v4908, 127
        %v4910 = vand.u32 2147483647, %v4151
        %v4911 = vand.u32 %v4910, 8388607
        %v4912 = vor.u32 %v4911, 8388608
        %v4913 = vsub.s32 0, %v4912
        %v4914 = vadd.s32 %v4909, 1
        %vm4915 = vcmp.gt.s32.totalorder %v4914, 0
        %v4916 = vsel %vm4915, %v4914, 0
        %v4917 = vshrl.u32 %v4916, 5
        %v4918 = vand.u32 %v4916, 31
        %v4919 = vsub.s32 32, %v4918
        %v4920 = vshrl.u32 683565275, %v4919
        %v4921 = vshll.u32 683565275, %v4918
        %v4922 = vshrl.u32 2475754826, %v4919
        %v4923 = vor.u32 %v4921, %v4922
        %v4924 = vshll.u32 2475754826, %v4918
        %v4925 = vshrl.u32 2131351028, %v4919
        %v4926 = vor.u32 %v4924, %v4925
        %v4927 = vshll.u32 2131351028, %v4918
        %v4928 = vshrl.u32 2102212464, %v4919
        %v4929 = vor.u32 %v4927, %v4928
        %v4930 = vshll.u32 2102212464, %v4918
        %v4931 = vshrl.u32 920167782, %v4919
        %v4932 = vor.u32 %v4930, %v4931
        %v4933 = vshll.u32 920167782, %v4918
        %v4934 = vshrl.u32 1326507024, %v4919
        %v4935 = vor.u32 %v4933, %v4934
        %vm4936 = vcmp.lt.s32.totalorder %v4917, 1
        %vm4937 = vcmp.lt.s32.totalorder %v4917, 2
        %vm4938 = vcmp.lt.s32.totalorder %v4917, 3
        %vm4939 = vcmp.lt.s32.totalorder %v4917, 4
        %v4940 = vsel %vm4936, %v4920, %v4923
        %v4941 = vsel %vm4939, %v4929, 2102212464
        %v4942 = vsel %vm4938, %v4926, %v4941
        %v4943 = vsel %vm4937, %v4940, %v4942
        %v4944 = vsel %vm4936, %v4923, %v4926
        %v4945 = vsel %vm4939, %v4932, 920167782
        %v4946 = vsel %vm4938, %v4929, %v4945
        %v4947 = vsel %vm4937, %v4944, %v4946
        %v4948 = vsel %vm4936, %v4926, %v4929
        %v4949 = vsel %vm4939, %v4935, 1326507024
        %v4950 = vsel %vm4938, %v4932, %v4949
        %v4951 = vsel %vm4937, %v4948, %v4950
        %v4952 = vshll.u32 %v4912, 8
        %v4953 = vmul.u32.u64.compose %v4952, %v4951
        %v4954 = vextract.low.u32 %v4953
        %v4955 = vextract.high.u32 %v4953
        %v4956 = vmul.u32.u64.compose %v4952, %v4947
        %v4957 = vextract.low.u32 %v4956
        %v4958 = vextract.high.u32 %v4956
        %v4959 = vmul.u32 %v4952, %v4943
        %v4960 = vadd.s32 %v4955, %v4957
        %vm4961 = vc.u32 %v4955, %v4957
        %v4962 = vadd.s32 %v4958, 1
        %v4963 = vsel %vm4961, %v4962, %v4958
        %v4964 = vadd.s32 %v4959, %v4963
        %v4965 = vadd.s32 %v4964, 536870912
        %v4966 = vshrl.u32 %v4965, 30
        %v4967 = vshll.u32 %v4966, 30
        %v4968 = vsub.s32 %v4964, %v4967
        %vm4969 = vcmp.lt.s32.totalorder %v4968, 0
        %v4970 = vsub.s32 0, %v4968
        %v4971 = vsel %vm4969, %v4970, %v4968
        %v4972 = vclz %v4971
        %v4973 = vsub.s32 %v4972, 2
        %vm4974 = vcmp.gt.s32.totalorder 0, %v4973
        %v4975 = vsel %vm4974, 0, %v4973
        %v4976 = vsub.s32 32, %v4975
        %v4977 = vshll.u32 %v4968, %v4975
        %v4978 = vshrl.u32 %v4960, %v4976
        %v4979 = vor.u32 %v4977, %v4978
        %v4980 = vsub.s32 4294967266, %v4975
        %v4981 = vadd.s32 %v4980, 127
        %v4982 = vshll.u32 %v4981, 23
        %v4983 = vor.u32 4788187, %v4982
        %v4984 = vand.u32 2147483647, %v4983
        %v4986 = vcvt.s32.f32 %v4979
        %v4987 = vmul.f32 %v4986, %v4984
        %v4988 = vxor.u32 %v4987, 2147483648
        %v4989 = vsel %vm4906, %v4988, %v4987
        %v4990 = vsub.s32 4, %v4966
        %v4991 = vsel %vm4906, %v4990, %v4966
        %v4992 = vsel %vm4905, %v4151, %v4989
        %v4993 = vsel %vm4905, 0, %v4991
        %v4994 = vcosq.f32.pop %v4992
        %v4995 = vsinq.f32.pop %v4992
        %vm4996 = vweird.f32 %v4151
        %v4997 = vadd.s32 %v4993, 3
        %v4998 = vand.u32 %v4997, 3
        %vm4999 = vcmp.lt.s32.totalorder %v4998, 2
        %vm5000 = vcmp.eq.s32.totalorder %v4998, 0
        %v5001 = vxor.u32 %v4995, 2147483648
        %v5002 = vsel %vm5000, %v4994, %v5001
        %vm5003 = vcmp.eq.s32.totalorder %v4998, 2
        %v5004 = vxor.u32 %v4994, 2147483648
        %v5005 = vsel %vm5003, %v5004, %v4995
        %v5006 = vsel %vm4999, %v5002, %v5005
        %v5007 = vsel %vm4996, nan, %v5006
        %v5008 = vand.u32 2147483647, %v4152
        %vm5009 = vcmp.le.f32.partialorder %v5008, 0.7853982
        %vm5010 = vcmp.lt.s32.totalorder %v4152, 0
        %v5011 = vand.u32 %v4152, 2139095040
        %v5012 = vshrl.u32 %v5011, 23
        %v5013 = vsub.s32 %v5012, 127
        %v5014 = vand.u32 2147483647, %v4152
        %v5015 = vand.u32 %v5014, 8388607
        %v5016 = vor.u32 %v5015, 8388608
        %v5017 = vsub.s32 0, %v5016
        %v5018 = vadd.s32 %v5013, 1
        %vm5019 = vcmp.gt.s32.totalorder %v5018, 0
        %v5020 = vsel %vm5019, %v5018, 0
        %v5021 = vshrl.u32 %v5020, 5
        %v5022 = vand.u32 %v5020, 31
        %v5023 = vsub.s32 32, %v5022
        %v5024 = vshrl.u32 683565275, %v5023
        %v5025 = vshll.u32 683565275, %v5022
        %v5026 = vshrl.u32 2475754826, %v5023
        %v5027 = vor.u32 %v5025, %v5026
        %v5028 = vshll.u32 2475754826, %v5022
        %v5029 = vshrl.u32 2131351028, %v5023
        %v5030 = vor.u32 %v5028, %v5029
        %v5031 = vshll.u32 2131351028, %v5022
        %v5032 = vshrl.u32 2102212464, %v5023
        %v5033 = vor.u32 %v5031, %v5032
        %v5034 = vshll.u32 2102212464, %v5022
        %v5035 = vshrl.u32 920167782, %v5023
        %v5036 = vor.u32 %v5034, %v5035
        %v5037 = vshll.u32 920167782, %v5022
        %v5038 = vshrl.u32 1326507024, %v5023
        %v5039 = vor.u32 %v5037, %v5038
        %vm5040 = vcmp.lt.s32.totalorder %v5021, 1
        %vm5041 = vcmp.lt.s32.totalorder %v5021, 2
        %vm5042 = vcmp.lt.s32.totalorder %v5021, 3
        %vm5043 = vcmp.lt.s32.totalorder %v5021, 4
        %v5044 = vsel %vm5040, %v5024, %v5027
        %v5045 = vsel %vm5043, %v5033, 2102212464
        %v5046 = vsel %vm5042, %v5030, %v5045
        %v5047 = vsel %vm5041, %v5044, %v5046
        %v5048 = vsel %vm5040, %v5027, %v5030
        %v5049 = vsel %vm5043, %v5036, 920167782
        %v5050 = vsel %vm5042, %v5033, %v5049
        %v5051 = vsel %vm5041, %v5048, %v5050
        %v5052 = vsel %vm5040, %v5030, %v5033
        %v5053 = vsel %vm5043, %v5039, 1326507024
        %v5054 = vsel %vm5042, %v5036, %v5053
        %v5055 = vsel %vm5041, %v5052, %v5054
        %v5056 = vshll.u32 %v5016, 8
        %v5057 = vmul.u32.u64.compose %v5056, %v5055
        %v5058 = vextract.low.u32 %v5057
        %v5059 = vextract.high.u32 %v5057
        %v5060 = vmul.u32.u64.compose %v5056, %v5051
        %v5061 = vextract.low.u32 %v5060
        %v5062 = vextract.high.u32 %v5060
        %v5063 = vmul.u32 %v5056, %v5047
        %v5064 = vadd.s32 %v5059, %v5061
        %vm5065 = vc.u32 %v5059, %v5061
        %v5066 = vadd.s32 %v5062, 1
        %v5067 = vsel %vm5065, %v5066, %v5062
        %v5068 = vadd.s32 %v5063, %v5067
        %v5069 = vadd.s32 %v5068, 536870912
        %v5070 = vshrl.u32 %v5069, 30
        %v5071 = vshll.u32 %v5070, 30
        %v5072 = vsub.s32 %v5068, %v5071
        %vm5073 = vcmp.lt.s32.totalorder %v5072, 0
        %v5074 = vsub.s32 0, %v5072
        %v5075 = vsel %vm5073, %v5074, %v5072
        %v5076 = vclz %v5075
        %v5077 = vsub.s32 %v5076, 2
        %vm5078 = vcmp.gt.s32.totalorder 0, %v5077
        %v5079 = vsel %vm5078, 0, %v5077
        %v5080 = vsub.s32 32, %v5079
        %v5081 = vshll.u32 %v5072, %v5079
        %v5082 = vshrl.u32 %v5064, %v5080
        %v5083 = vor.u32 %v5081, %v5082
        %v5084 = vsub.s32 4294967266, %v5079
        %v5085 = vadd.s32 %v5084, 127
        %v5086 = vshll.u32 %v5085, 23
        %v5087 = vor.u32 4788187, %v5086
        %v5088 = vand.u32 2147483647, %v5087
        %v5090 = vcvt.s32.f32 %v5083
        %v5091 = vmul.f32 %v5090, %v5088
        %v5092 = vxor.u32 %v5091, 2147483648
        %v5093 = vsel %vm5010, %v5092, %v5091
        %v5094 = vsub.s32 4, %v5070
        %v5095 = vsel %vm5010, %v5094, %v5070
        %v5096 = vsel %vm5009, %v4152, %v5093
        %v5097 = vsel %vm5009, 0, %v5095
        %v5098 = vcosq.f32.pop %v5096
        %v5099 = vsinq.f32.pop %v5096
        %vm5100 = vweird.f32 %v4152
        %v5101 = vadd.s32 %v5097, 3
        %v5102 = vand.u32 %v5101, 3
        %vm5103 = vcmp.lt.s32.totalorder %v5102, 2
        %vm5104 = vcmp.eq.s32.totalorder %v5102, 0
        %v5105 = vxor.u32 %v5099, 2147483648
        %v5106 = vsel %vm5104, %v5098, %v5105
        %vm5107 = vcmp.eq.s32.totalorder %v5102, 2
        %v5108 = vxor.u32 %v5098, 2147483648
        %v5109 = vsel %vm5107, %v5108, %v5099
        %v5110 = vsel %vm5103, %v5106, %v5109
        %v5111 = vsel %vm5100, nan, %v5110
        %v5112 = vand.u32 2147483647, %v4153
        %vm5113 = vcmp.le.f32.partialorder %v5112, 0.7853982
        %vm5114 = vcmp.lt.s32.totalorder %v4153, 0
        %v5115 = vand.u32 %v4153, 2139095040
        %v5116 = vshrl.u32 %v5115, 23
        %v5117 = vsub.s32 %v5116, 127
        %v5118 = vand.u32 2147483647, %v4153
        %v5119 = vand.u32 %v5118, 8388607
        %v5120 = vor.u32 %v5119, 8388608
        %v5121 = vsub.s32 0, %v5120
        %v5122 = vadd.s32 %v5117, 1
        %vm5123 = vcmp.gt.s32.totalorder %v5122, 0
        %v5124 = vsel %vm5123, %v5122, 0
        %v5125 = vshrl.u32 %v5124, 5
        %v5126 = vand.u32 %v5124, 31
        %v5127 = vsub.s32 32, %v5126
        %v5128 = vshrl.u32 683565275, %v5127
        %v5129 = vshll.u32 683565275, %v5126
        %v5130 = vshrl.u32 2475754826, %v5127
        %v5131 = vor.u32 %v5129, %v5130
        %v5132 = vshll.u32 2475754826, %v5126
        %v5133 = vshrl.u32 2131351028, %v5127
        %v5134 = vor.u32 %v5132, %v5133
        %v5135 = vshll.u32 2131351028, %v5126
        %v5136 = vshrl.u32 2102212464, %v5127
        %v5137 = vor.u32 %v5135, %v5136
        %v5138 = vshll.u32 2102212464, %v5126
        %v5139 = vshrl.u32 920167782, %v5127
        %v5140 = vor.u32 %v5138, %v5139
        %v5141 = vshll.u32 920167782, %v5126
        %v5142 = vshrl.u32 1326507024, %v5127
        %v5143 = vor.u32 %v5141, %v5142
        %vm5144 = vcmp.lt.s32.totalorder %v5125, 1
        %vm5145 = vcmp.lt.s32.totalorder %v5125, 2
        %vm5146 = vcmp.lt.s32.totalorder %v5125, 3
        %vm5147 = vcmp.lt.s32.totalorder %v5125, 4
        %v5148 = vsel %vm5144, %v5128, %v5131
        %v5149 = vsel %vm5147, %v5137, 2102212464
        %v5150 = vsel %vm5146, %v5134, %v5149
        %v5151 = vsel %vm5145, %v5148, %v5150
        %v5152 = vsel %vm5144, %v5131, %v5134
        %v5153 = vsel %vm5147, %v5140, 920167782
        %v5154 = vsel %vm5146, %v5137, %v5153
        %v5155 = vsel %vm5145, %v5152, %v5154
        %v5156 = vsel %vm5144, %v5134, %v5137
        %v5157 = vsel %vm5147, %v5143, 1326507024
        %v5158 = vsel %vm5146, %v5140, %v5157
        %v5159 = vsel %vm5145, %v5156, %v5158
        %v5160 = vshll.u32 %v5120, 8
        %v5161 = vmul.u32.u64.compose %v5160, %v5159
        %v5162 = vextract.low.u32 %v5161
        %v5163 = vextract.high.u32 %v5161
        %v5164 = vmul.u32.u64.compose %v5160, %v5155
        %v5165 = vextract.low.u32 %v5164
        %v5166 = vextract.high.u32 %v5164
        %v5167 = vmul.u32 %v5160, %v5151
        %v5168 = vadd.s32 %v5163, %v5165
        %vm5169 = vc.u32 %v5163, %v5165
        %v5170 = vadd.s32 %v5166, 1
        %v5171 = vsel %vm5169, %v5170, %v5166
        %v5172 = vadd.s32 %v5167, %v5171
        %v5173 = vadd.s32 %v5172, 536870912
        %v5174 = vshrl.u32 %v5173, 30
        %v5175 = vshll.u32 %v5174, 30
        %v5176 = vsub.s32 %v5172, %v5175
        %vm5177 = vcmp.lt.s32.totalorder %v5176, 0
        %v5178 = vsub.s32 0, %v5176
        %v5179 = vsel %vm5177, %v5178, %v5176
        %v5180 = vclz %v5179
        %v5181 = vsub.s32 %v5180, 2
        %vm5182 = vcmp.gt.s32.totalorder 0, %v5181
        %v5183 = vsel %vm5182, 0, %v5181
        %v5184 = vsub.s32 32, %v5183
        %v5185 = vshll.u32 %v5176, %v5183
        %v5186 = vshrl.u32 %v5168, %v5184
        %v5187 = vor.u32 %v5185, %v5186
        %v5188 = vsub.s32 4294967266, %v5183
        %v5189 = vadd.s32 %v5188, 127
        %v5190 = vshll.u32 %v5189, 23
        %v5191 = vor.u32 4788187, %v5190
        %v5192 = vand.u32 2147483647, %v5191
        %v5194 = vcvt.s32.f32 %v5187
        %v5195 = vmul.f32 %v5194, %v5192
        %v5196 = vxor.u32 %v5195, 2147483648
        %v5197 = vsel %vm5114, %v5196, %v5195
        %v5198 = vsub.s32 4, %v5174
        %v5199 = vsel %vm5114, %v5198, %v5174
        %v5200 = vsel %vm5113, %v4153, %v5197
        %v5201 = vsel %vm5113, 0, %v5199
        %v5202 = vcosq.f32.pop %v5200
        %v5203 = vsinq.f32.pop %v5200
        %vm5204 = vweird.f32 %v4153
        %v5205 = vadd.s32 %v5201, 3
        %v5206 = vand.u32 %v5205, 3
        %vm5207 = vcmp.lt.s32.totalorder %v5206, 2
        %vm5208 = vcmp.eq.s32.totalorder %v5206, 0
        %v5209 = vxor.u32 %v5203, 2147483648
        %v5210 = vsel %vm5208, %v5202, %v5209
        %vm5211 = vcmp.eq.s32.totalorder %v5206, 2
        %v5212 = vxor.u32 %v5202, 2147483648
        %v5213 = vsel %vm5211, %v5212, %v5203
        %v5214 = vsel %vm5207, %v5210, %v5213
        %v5215 = vsel %vm5204, nan, %v5214
        %v5216 = vand.u32 2147483647, %v4154
        %vm5217 = vcmp.le.f32.partialorder %v5216, 0.7853982
        %vm5218 = vcmp.lt.s32.totalorder %v4154, 0
        %v5219 = vand.u32 %v4154, 2139095040
        %v5220 = vshrl.u32 %v5219, 23
        %v5221 = vsub.s32 %v5220, 127
        %v5222 = vand.u32 2147483647, %v4154
        %v5223 = vand.u32 %v5222, 8388607
        %v5224 = vor.u32 %v5223, 8388608
        %v5225 = vsub.s32 0, %v5224
        %v5226 = vadd.s32 %v5221, 1
        %vm5227 = vcmp.gt.s32.totalorder %v5226, 0
        %v5228 = vsel %vm5227, %v5226, 0
        %v5229 = vshrl.u32 %v5228, 5
        %v5230 = vand.u32 %v5228, 31
        %v5231 = vsub.s32 32, %v5230
        %v5232 = vshrl.u32 683565275, %v5231
        %v5233 = vshll.u32 683565275, %v5230
        %v5234 = vshrl.u32 2475754826, %v5231
        %v5235 = vor.u32 %v5233, %v5234
        %v5236 = vshll.u32 2475754826, %v5230
        %v5237 = vshrl.u32 2131351028, %v5231
        %v5238 = vor.u32 %v5236, %v5237
        %v5239 = vshll.u32 2131351028, %v5230
        %v5240 = vshrl.u32 2102212464, %v5231
        %v5241 = vor.u32 %v5239, %v5240
        %v5242 = vshll.u32 2102212464, %v5230
        %v5243 = vshrl.u32 920167782, %v5231
        %v5244 = vor.u32 %v5242, %v5243
        %v5245 = vshll.u32 920167782, %v5230
        %v5246 = vshrl.u32 1326507024, %v5231
        %v5247 = vor.u32 %v5245, %v5246
        %vm5248 = vcmp.lt.s32.totalorder %v5229, 1
        %vm5249 = vcmp.lt.s32.totalorder %v5229, 2
        %vm5250 = vcmp.lt.s32.totalorder %v5229, 3
        %vm5251 = vcmp.lt.s32.totalorder %v5229, 4
        %v5252 = vsel %vm5248, %v5232, %v5235
        %v5253 = vsel %vm5251, %v5241, 2102212464
        %v5254 = vsel %vm5250, %v5238, %v5253
        %v5255 = vsel %vm5249, %v5252, %v5254
        %v5256 = vsel %vm5248, %v5235, %v5238
        %v5257 = vsel %vm5251, %v5244, 920167782
        %v5258 = vsel %vm5250, %v5241, %v5257
        %v5259 = vsel %vm5249, %v5256, %v5258
        %v5260 = vsel %vm5248, %v5238, %v5241
        %v5261 = vsel %vm5251, %v5247, 1326507024
        %v5262 = vsel %vm5250, %v5244, %v5261
        %v5263 = vsel %vm5249, %v5260, %v5262
        %v5264 = vshll.u32 %v5224, 8
        %v5265 = vmul.u32.u64.compose %v5264, %v5263
        %v5266 = vextract.low.u32 %v5265
        %v5267 = vextract.high.u32 %v5265
        %v5268 = vmul.u32.u64.compose %v5264, %v5259
        %v5269 = vextract.low.u32 %v5268
        %v5270 = vextract.high.u32 %v5268
        %v5271 = vmul.u32 %v5264, %v5255
        %v5272 = vadd.s32 %v5267, %v5269
        %vm5273 = vc.u32 %v5267, %v5269
        %v5274 = vadd.s32 %v5270, 1
        %v5275 = vsel %vm5273, %v5274, %v5270
        %v5276 = vadd.s32 %v5271, %v5275
        %v5277 = vadd.s32 %v5276, 536870912
        %v5278 = vshrl.u32 %v5277, 30
        %v5279 = vshll.u32 %v5278, 30
        %v5280 = vsub.s32 %v5276, %v5279
        %vm5281 = vcmp.lt.s32.totalorder %v5280, 0
        %v5282 = vsub.s32 0, %v5280
        %v5283 = vsel %vm5281, %v5282, %v5280
        %v5284 = vclz %v5283
        %v5285 = vsub.s32 %v5284, 2
        %vm5286 = vcmp.gt.s32.totalorder 0, %v5285
        %v5287 = vsel %vm5286, 0, %v5285
        %v5288 = vsub.s32 32, %v5287
        %v5289 = vshll.u32 %v5280, %v5287
        %v5290 = vshrl.u32 %v5272, %v5288
        %v5291 = vor.u32 %v5289, %v5290
        %v5292 = vsub.s32 4294967266, %v5287
        %v5293 = vadd.s32 %v5292, 127
        %v5294 = vshll.u32 %v5293, 23
        %v5295 = vor.u32 4788187, %v5294
        %v5296 = vand.u32 2147483647, %v5295
        %v5298 = vcvt.s32.f32 %v5291
        %v5299 = vmul.f32 %v5298, %v5296
        %v5300 = vxor.u32 %v5299, 2147483648
        %v5301 = vsel %vm5218, %v5300, %v5299
        %v5302 = vsub.s32 4, %v5278
        %v5303 = vsel %vm5218, %v5302, %v5278
        %v5304 = vsel %vm5217, %v4154, %v5301
        %v5305 = vsel %vm5217, 0, %v5303
        %v5306 = vcosq.f32.pop %v5304
        %v5307 = vsinq.f32.pop %v5304
        %vm5308 = vweird.f32 %v4154
        %v5309 = vadd.s32 %v5305, 3
        %v5310 = vand.u32 %v5309, 3
        %vm5311 = vcmp.lt.s32.totalorder %v5310, 2
        %vm5312 = vcmp.eq.s32.totalorder %v5310, 0
        %v5313 = vxor.u32 %v5307, 2147483648
        %v5314 = vsel %vm5312, %v5306, %v5313
        %vm5315 = vcmp.eq.s32.totalorder %v5310, 2
        %v5316 = vxor.u32 %v5306, 2147483648
        %v5317 = vsel %vm5315, %v5316, %v5307
        %v5318 = vsel %vm5311, %v5314, %v5317
        %v5319 = vsel %vm5308, nan, %v5318
        %v5320 = vand.u32 2147483647, %v4155
        %vm5321 = vcmp.le.f32.partialorder %v5320, 0.7853982
        %vm5322 = vcmp.lt.s32.totalorder %v4155, 0
        %v5323 = vand.u32 %v4155, 2139095040
        %v5324 = vshrl.u32 %v5323, 23
        %v5325 = vsub.s32 %v5324, 127
        %v5326 = vand.u32 2147483647, %v4155
        %v5327 = vand.u32 %v5326, 8388607
        %v5328 = vor.u32 %v5327, 8388608
        %v5329 = vsub.s32 0, %v5328
        %v5330 = vadd.s32 %v5325, 1
        %vm5331 = vcmp.gt.s32.totalorder %v5330, 0
        %v5332 = vsel %vm5331, %v5330, 0
        %v5333 = vshrl.u32 %v5332, 5
        %v5334 = vand.u32 %v5332, 31
        %v5335 = vsub.s32 32, %v5334
        %v5336 = vshrl.u32 683565275, %v5335
        %v5337 = vshll.u32 683565275, %v5334
        %v5338 = vshrl.u32 2475754826, %v5335
        %v5339 = vor.u32 %v5337, %v5338
        %v5340 = vshll.u32 2475754826, %v5334
        %v5341 = vshrl.u32 2131351028, %v5335
        %v5342 = vor.u32 %v5340, %v5341
        %v5343 = vshll.u32 2131351028, %v5334
        %v5344 = vshrl.u32 2102212464, %v5335
        %v5345 = vor.u32 %v5343, %v5344
        %v5346 = vshll.u32 2102212464, %v5334
        %v5347 = vshrl.u32 920167782, %v5335
        %v5348 = vor.u32 %v5346, %v5347
        %v5349 = vshll.u32 920167782, %v5334
        %v5350 = vshrl.u32 1326507024, %v5335
        %v5351 = vor.u32 %v5349, %v5350
        %vm5352 = vcmp.lt.s32.totalorder %v5333, 1
        %vm5353 = vcmp.lt.s32.totalorder %v5333, 2
        %vm5354 = vcmp.lt.s32.totalorder %v5333, 3
        %vm5355 = vcmp.lt.s32.totalorder %v5333, 4
        %v5356 = vsel %vm5352, %v5336, %v5339
        %v5357 = vsel %vm5355, %v5345, 2102212464
        %v5358 = vsel %vm5354, %v5342, %v5357
        %v5359 = vsel %vm5353, %v5356, %v5358
        %v5360 = vsel %vm5352, %v5339, %v5342
        %v5361 = vsel %vm5355, %v5348, 920167782
        %v5362 = vsel %vm5354, %v5345, %v5361
        %v5363 = vsel %vm5353, %v5360, %v5362
        %v5364 = vsel %vm5352, %v5342, %v5345
        %v5365 = vsel %vm5355, %v5351, 1326507024
        %v5366 = vsel %vm5354, %v5348, %v5365
        %v5367 = vsel %vm5353, %v5364, %v5366
        %v5368 = vshll.u32 %v5328, 8
        %v5369 = vmul.u32.u64.compose %v5368, %v5367
        %v5370 = vextract.low.u32 %v5369
        %v5371 = vextract.high.u32 %v5369
        %v5372 = vmul.u32.u64.compose %v5368, %v5363
        %v5373 = vextract.low.u32 %v5372
        %v5374 = vextract.high.u32 %v5372
        %v5375 = vmul.u32 %v5368, %v5359
        %v5376 = vadd.s32 %v5371, %v5373
        %vm5377 = vc.u32 %v5371, %v5373
        %v5378 = vadd.s32 %v5374, 1
        %v5379 = vsel %vm5377, %v5378, %v5374
        %v5380 = vadd.s32 %v5375, %v5379
        %v5381 = vadd.s32 %v5380, 536870912
        %v5382 = vshrl.u32 %v5381, 30
        %v5383 = vshll.u32 %v5382, 30
        %v5384 = vsub.s32 %v5380, %v5383
        %vm5385 = vcmp.lt.s32.totalorder %v5384, 0
        %v5386 = vsub.s32 0, %v5384
        %v5387 = vsel %vm5385, %v5386, %v5384
        %v5388 = vclz %v5387
        %v5389 = vsub.s32 %v5388, 2
        %vm5390 = vcmp.gt.s32.totalorder 0, %v5389
        %v5391 = vsel %vm5390, 0, %v5389
        %v5392 = vsub.s32 32, %v5391
        %v5393 = vshll.u32 %v5384, %v5391
        %v5394 = vshrl.u32 %v5376, %v5392
        %v5395 = vor.u32 %v5393, %v5394
        %v5396 = vsub.s32 4294967266, %v5391
        %v5397 = vadd.s32 %v5396, 127
        %v5398 = vshll.u32 %v5397, 23
        %v5399 = vor.u32 4788187, %v5398
        %v5400 = vand.u32 2147483647, %v5399
        %v5402 = vcvt.s32.f32 %v5395
        %v5403 = vmul.f32 %v5402, %v5400
        %v5404 = vxor.u32 %v5403, 2147483648
        %v5405 = vsel %vm5322, %v5404, %v5403
        %v5406 = vsub.s32 4, %v5382
        %v5407 = vsel %vm5322, %v5406, %v5382
        %v5408 = vsel %vm5321, %v4155, %v5405
        %v5409 = vsel %vm5321, 0, %v5407
        %v5410 = vcosq.f32.pop %v5408
        %v5411 = vsinq.f32.pop %v5408
        %vm5412 = vweird.f32 %v4155
        %v5413 = vadd.s32 %v5409, 3
        %v5414 = vand.u32 %v5413, 3
        %vm5415 = vcmp.lt.s32.totalorder %v5414, 2
        %vm5416 = vcmp.eq.s32.totalorder %v5414, 0
        %v5417 = vxor.u32 %v5411, 2147483648
        %v5418 = vsel %vm5416, %v5410, %v5417
        %vm5419 = vcmp.eq.s32.totalorder %v5414, 2
        %v5420 = vxor.u32 %v5410, 2147483648
        %v5421 = vsel %vm5419, %v5420, %v5411
        %v5422 = vsel %vm5415, %v5418, %v5421
        %v5423 = vsel %vm5412, nan, %v5422
        %v5424 = vand.u32 2147483647, %v4156
        %vm5425 = vcmp.le.f32.partialorder %v5424, 0.7853982
        %vm5426 = vcmp.lt.s32.totalorder %v4156, 0
        %v5427 = vand.u32 %v4156, 2139095040
        %v5428 = vshrl.u32 %v5427, 23
        %v5429 = vsub.s32 %v5428, 127
        %v5430 = vand.u32 2147483647, %v4156
        %v5431 = vand.u32 %v5430, 8388607
        %v5432 = vor.u32 %v5431, 8388608
        %v5433 = vsub.s32 0, %v5432
        %v5434 = vadd.s32 %v5429, 1
        %vm5435 = vcmp.gt.s32.totalorder %v5434, 0
        %v5436 = vsel %vm5435, %v5434, 0
        %v5437 = vshrl.u32 %v5436, 5
        %v5438 = vand.u32 %v5436, 31
        %v5439 = vsub.s32 32, %v5438
        %v5440 = vshrl.u32 683565275, %v5439
        %v5441 = vshll.u32 683565275, %v5438
        %v5442 = vshrl.u32 2475754826, %v5439
        %v5443 = vor.u32 %v5441, %v5442
        %v5444 = vshll.u32 2475754826, %v5438
        %v5445 = vshrl.u32 2131351028, %v5439
        %v5446 = vor.u32 %v5444, %v5445
        %v5447 = vshll.u32 2131351028, %v5438
        %v5448 = vshrl.u32 2102212464, %v5439
        %v5449 = vor.u32 %v5447, %v5448
        %v5450 = vshll.u32 2102212464, %v5438
        %v5451 = vshrl.u32 920167782, %v5439
        %v5452 = vor.u32 %v5450, %v5451
        %v5453 = vshll.u32 920167782, %v5438
        %v5454 = vshrl.u32 1326507024, %v5439
        %v5455 = vor.u32 %v5453, %v5454
        %vm5456 = vcmp.lt.s32.totalorder %v5437, 1
        %vm5457 = vcmp.lt.s32.totalorder %v5437, 2
        %vm5458 = vcmp.lt.s32.totalorder %v5437, 3
        %vm5459 = vcmp.lt.s32.totalorder %v5437, 4
        %v5460 = vsel %vm5456, %v5440, %v5443
        %v5461 = vsel %vm5459, %v5449, 2102212464
        %v5462 = vsel %vm5458, %v5446, %v5461
        %v5463 = vsel %vm5457, %v5460, %v5462
        %v5464 = vsel %vm5456, %v5443, %v5446
        %v5465 = vsel %vm5459, %v5452, 920167782
        %v5466 = vsel %vm5458, %v5449, %v5465
        %v5467 = vsel %vm5457, %v5464, %v5466
        %v5468 = vsel %vm5456, %v5446, %v5449
        %v5469 = vsel %vm5459, %v5455, 1326507024
        %v5470 = vsel %vm5458, %v5452, %v5469
        %v5471 = vsel %vm5457, %v5468, %v5470
        %v5472 = vshll.u32 %v5432, 8
        %v5473 = vmul.u32.u64.compose %v5472, %v5471
        %v5474 = vextract.low.u32 %v5473
        %v5475 = vextract.high.u32 %v5473
        %v5476 = vmul.u32.u64.compose %v5472, %v5467
        %v5477 = vextract.low.u32 %v5476
        %v5478 = vextract.high.u32 %v5476
        %v5479 = vmul.u32 %v5472, %v5463
        %v5480 = vadd.s32 %v5475, %v5477
        %vm5481 = vc.u32 %v5475, %v5477
        %v5482 = vadd.s32 %v5478, 1
        %v5483 = vsel %vm5481, %v5482, %v5478
        %v5484 = vadd.s32 %v5479, %v5483
        %v5485 = vadd.s32 %v5484, 536870912
        %v5486 = vshrl.u32 %v5485, 30
        %v5487 = vshll.u32 %v5486, 30
        %v5488 = vsub.s32 %v5484, %v5487
        %vm5489 = vcmp.lt.s32.totalorder %v5488, 0
        %v5490 = vsub.s32 0, %v5488
        %v5491 = vsel %vm5489, %v5490, %v5488
        %v5492 = vclz %v5491
        %v5493 = vsub.s32 %v5492, 2
        %vm5494 = vcmp.gt.s32.totalorder 0, %v5493
        %v5495 = vsel %vm5494, 0, %v5493
        %v5496 = vsub.s32 32, %v5495
        %v5497 = vshll.u32 %v5488, %v5495
        %v5498 = vshrl.u32 %v5480, %v5496
        %v5499 = vor.u32 %v5497, %v5498
        %v5500 = vsub.s32 4294967266, %v5495
        %v5501 = vadd.s32 %v5500, 127
        %v5502 = vshll.u32 %v5501, 23
        %v5503 = vor.u32 4788187, %v5502
        %v5504 = vand.u32 2147483647, %v5503
        %v5506 = vcvt.s32.f32 %v5499
        %v5507 = vmul.f32 %v5506, %v5504
        %v5508 = vxor.u32 %v5507, 2147483648
        %v5509 = vsel %vm5426, %v5508, %v5507
        %v5510 = vsub.s32 4, %v5486
        %v5511 = vsel %vm5426, %v5510, %v5486
        %v5512 = vsel %vm5425, %v4156, %v5509
        %v5513 = vsel %vm5425, 0, %v5511
        %v5514 = vcosq.f32.pop %v5512
        %v5515 = vsinq.f32.pop %v5512
        %vm5516 = vweird.f32 %v4156
        %v5517 = vadd.s32 %v5513, 3
        %v5518 = vand.u32 %v5517, 3
        %vm5519 = vcmp.lt.s32.totalorder %v5518, 2
        %vm5520 = vcmp.eq.s32.totalorder %v5518, 0
        %v5521 = vxor.u32 %v5515, 2147483648
        %v5522 = vsel %vm5520, %v5514, %v5521
        %vm5523 = vcmp.eq.s32.totalorder %v5518, 2
        %v5524 = vxor.u32 %v5514, 2147483648
        %v5525 = vsel %vm5523, %v5524, %v5515
        %v5526 = vsel %vm5519, %v5522, %v5525
        %v5527 = vsel %vm5516, nan, %v5526
        %v5528 = vand.u32 2147483647, %v4157
        %vm5529 = vcmp.le.f32.partialorder %v5528, 0.7853982
        %vm5530 = vcmp.lt.s32.totalorder %v4157, 0
        %v5531 = vand.u32 %v4157, 2139095040
        %v5532 = vshrl.u32 %v5531, 23
        %v5533 = vsub.s32 %v5532, 127
        %v5534 = vand.u32 2147483647, %v4157
        %v5535 = vand.u32 %v5534, 8388607
        %v5536 = vor.u32 %v5535, 8388608
        %v5537 = vsub.s32 0, %v5536
        %v5538 = vadd.s32 %v5533, 1
        %vm5539 = vcmp.gt.s32.totalorder %v5538, 0
        %v5540 = vsel %vm5539, %v5538, 0
        %v5541 = vshrl.u32 %v5540, 5
        %v5542 = vand.u32 %v5540, 31
        %v5543 = vsub.s32 32, %v5542
        %v5544 = vshrl.u32 683565275, %v5543
        %v5545 = vshll.u32 683565275, %v5542
        %v5546 = vshrl.u32 2475754826, %v5543
        %v5547 = vor.u32 %v5545, %v5546
        %v5548 = vshll.u32 2475754826, %v5542
        %v5549 = vshrl.u32 2131351028, %v5543
        %v5550 = vor.u32 %v5548, %v5549
        %v5551 = vshll.u32 2131351028, %v5542
        %v5552 = vshrl.u32 2102212464, %v5543
        %v5553 = vor.u32 %v5551, %v5552
        %v5554 = vshll.u32 2102212464, %v5542
        %v5555 = vshrl.u32 920167782, %v5543
        %v5556 = vor.u32 %v5554, %v5555
        %v5557 = vshll.u32 920167782, %v5542
        %v5558 = vshrl.u32 1326507024, %v5543
        %v5559 = vor.u32 %v5557, %v5558
        %vm5560 = vcmp.lt.s32.totalorder %v5541, 1
        %vm5561 = vcmp.lt.s32.totalorder %v5541, 2
        %vm5562 = vcmp.lt.s32.totalorder %v5541, 3
        %vm5563 = vcmp.lt.s32.totalorder %v5541, 4
        %v5564 = vsel %vm5560, %v5544, %v5547
        %v5565 = vsel %vm5563, %v5553, 2102212464
        %v5566 = vsel %vm5562, %v5550, %v5565
        %v5567 = vsel %vm5561, %v5564, %v5566
        %v5568 = vsel %vm5560, %v5547, %v5550
        %v5569 = vsel %vm5563, %v5556, 920167782
        %v5570 = vsel %vm5562, %v5553, %v5569
        %v5571 = vsel %vm5561, %v5568, %v5570
        %v5572 = vsel %vm5560, %v5550, %v5553
        %v5573 = vsel %vm5563, %v5559, 1326507024
        %v5574 = vsel %vm5562, %v5556, %v5573
        %v5575 = vsel %vm5561, %v5572, %v5574
        %v5576 = vshll.u32 %v5536, 8
        %v5577 = vmul.u32.u64.compose %v5576, %v5575
        %v5578 = vextract.low.u32 %v5577
        %v5579 = vextract.high.u32 %v5577
        %v5580 = vmul.u32.u64.compose %v5576, %v5571
        %v5581 = vextract.low.u32 %v5580
        %v5582 = vextract.high.u32 %v5580
        %v5583 = vmul.u32 %v5576, %v5567
        %v5584 = vadd.s32 %v5579, %v5581
        %vm5585 = vc.u32 %v5579, %v5581
        %v5586 = vadd.s32 %v5582, 1
        %v5587 = vsel %vm5585, %v5586, %v5582
        %v5588 = vadd.s32 %v5583, %v5587
        %v5589 = vadd.s32 %v5588, 536870912
        %v5590 = vshrl.u32 %v5589, 30
        %v5591 = vshll.u32 %v5590, 30
        %v5592 = vsub.s32 %v5588, %v5591
        %vm5593 = vcmp.lt.s32.totalorder %v5592, 0
        %v5594 = vsub.s32 0, %v5592
        %v5595 = vsel %vm5593, %v5594, %v5592
        %v5596 = vclz %v5595
        %v5597 = vsub.s32 %v5596, 2
        %vm5598 = vcmp.gt.s32.totalorder 0, %v5597
        %v5599 = vsel %vm5598, 0, %v5597
        %v5600 = vsub.s32 32, %v5599
        %v5601 = vshll.u32 %v5592, %v5599
        %v5602 = vshrl.u32 %v5584, %v5600
        %v5603 = vor.u32 %v5601, %v5602
        %v5604 = vsub.s32 4294967266, %v5599
        %v5605 = vadd.s32 %v5604, 127
        %v5606 = vshll.u32 %v5605, 23
        %v5607 = vor.u32 4788187, %v5606
        %v5608 = vand.u32 2147483647, %v5607
        %v5610 = vcvt.s32.f32 %v5603
        %v5611 = vmul.f32 %v5610, %v5608
        %v5612 = vxor.u32 %v5611, 2147483648
        %v5613 = vsel %vm5530, %v5612, %v5611
        %v5614 = vsub.s32 4, %v5590
        %v5615 = vsel %vm5530, %v5614, %v5590
        %v5616 = vsel %vm5529, %v4157, %v5613
        %v5617 = vsel %vm5529, 0, %v5615
        %v5618 = vcosq.f32.pop %v5616
        %v5619 = vsinq.f32.pop %v5616
        %vm5620 = vweird.f32 %v4157
        %v5621 = vadd.s32 %v5617, 3
        %v5622 = vand.u32 %v5621, 3
        %vm5623 = vcmp.lt.s32.totalorder %v5622, 2
        %vm5624 = vcmp.eq.s32.totalorder %v5622, 0
        %v5625 = vxor.u32 %v5619, 2147483648
        %v5626 = vsel %vm5624, %v5618, %v5625
        %vm5627 = vcmp.eq.s32.totalorder %v5622, 2
        %v5628 = vxor.u32 %v5618, 2147483648
        %v5629 = vsel %vm5627, %v5628, %v5619
        %v5630 = vsel %vm5623, %v5626, %v5629
        %v5631 = vsel %vm5620, nan, %v5630
        %v5632 = vand.u32 2147483647, %v4158
        %vm5633 = vcmp.le.f32.partialorder %v5632, 0.7853982
        %vm5634 = vcmp.lt.s32.totalorder %v4158, 0
        %v5635 = vand.u32 %v4158, 2139095040
        %v5636 = vshrl.u32 %v5635, 23
        %v5637 = vsub.s32 %v5636, 127
        %v5638 = vand.u32 2147483647, %v4158
        %v5639 = vand.u32 %v5638, 8388607
        %v5640 = vor.u32 %v5639, 8388608
        %v5641 = vsub.s32 0, %v5640
        %v5642 = vadd.s32 %v5637, 1
        %vm5643 = vcmp.gt.s32.totalorder %v5642, 0
        %v5644 = vsel %vm5643, %v5642, 0
        %v5645 = vshrl.u32 %v5644, 5
        %v5646 = vand.u32 %v5644, 31
        %v5647 = vsub.s32 32, %v5646
        %v5648 = vshrl.u32 683565275, %v5647
        %v5649 = vshll.u32 683565275, %v5646
        %v5650 = vshrl.u32 2475754826, %v5647
        %v5651 = vor.u32 %v5649, %v5650
        %v5652 = vshll.u32 2475754826, %v5646
        %v5653 = vshrl.u32 2131351028, %v5647
        %v5654 = vor.u32 %v5652, %v5653
        %v5655 = vshll.u32 2131351028, %v5646
        %v5656 = vshrl.u32 2102212464, %v5647
        %v5657 = vor.u32 %v5655, %v5656
        %v5658 = vshll.u32 2102212464, %v5646
        %v5659 = vshrl.u32 920167782, %v5647
        %v5660 = vor.u32 %v5658, %v5659
        %v5661 = vshll.u32 920167782, %v5646
        %v5662 = vshrl.u32 1326507024, %v5647
        %v5663 = vor.u32 %v5661, %v5662
        %vm5664 = vcmp.lt.s32.totalorder %v5645, 1
        %vm5665 = vcmp.lt.s32.totalorder %v5645, 2
        %vm5666 = vcmp.lt.s32.totalorder %v5645, 3
        %vm5667 = vcmp.lt.s32.totalorder %v5645, 4
        %v5668 = vsel %vm5664, %v5648, %v5651
        %v5669 = vsel %vm5667, %v5657, 2102212464
        %v5670 = vsel %vm5666, %v5654, %v5669
        %v5671 = vsel %vm5665, %v5668, %v5670
        %v5672 = vsel %vm5664, %v5651, %v5654
        %v5673 = vsel %vm5667, %v5660, 920167782
        %v5674 = vsel %vm5666, %v5657, %v5673
        %v5675 = vsel %vm5665, %v5672, %v5674
        %v5676 = vsel %vm5664, %v5654, %v5657
        %v5677 = vsel %vm5667, %v5663, 1326507024
        %v5678 = vsel %vm5666, %v5660, %v5677
        %v5679 = vsel %vm5665, %v5676, %v5678
        %v5680 = vshll.u32 %v5640, 8
        %v5681 = vmul.u32.u64.compose %v5680, %v5679
        %v5682 = vextract.low.u32 %v5681
        %v5683 = vextract.high.u32 %v5681
        %v5684 = vmul.u32.u64.compose %v5680, %v5675
        %v5685 = vextract.low.u32 %v5684
        %v5686 = vextract.high.u32 %v5684
        %v5687 = vmul.u32 %v5680, %v5671
        %v5688 = vadd.s32 %v5683, %v5685
        %vm5689 = vc.u32 %v5683, %v5685
        %v5690 = vadd.s32 %v5686, 1
        %v5691 = vsel %vm5689, %v5690, %v5686
        %v5692 = vadd.s32 %v5687, %v5691
        %v5693 = vadd.s32 %v5692, 536870912
        %v5694 = vshrl.u32 %v5693, 30
        %v5695 = vshll.u32 %v5694, 30
        %v5696 = vsub.s32 %v5692, %v5695
        %vm5697 = vcmp.lt.s32.totalorder %v5696, 0
        %v5698 = vsub.s32 0, %v5696
        %v5699 = vsel %vm5697, %v5698, %v5696
        %v5700 = vclz %v5699
        %v5701 = vsub.s32 %v5700, 2
        %vm5702 = vcmp.gt.s32.totalorder 0, %v5701
        %v5703 = vsel %vm5702, 0, %v5701
        %v5704 = vsub.s32 32, %v5703
        %v5705 = vshll.u32 %v5696, %v5703
        %v5706 = vshrl.u32 %v5688, %v5704
        %v5707 = vor.u32 %v5705, %v5706
        %v5708 = vsub.s32 4294967266, %v5703
        %v5709 = vadd.s32 %v5708, 127
        %v5710 = vshll.u32 %v5709, 23
        %v5711 = vor.u32 4788187, %v5710
        %v5712 = vand.u32 2147483647, %v5711
        %v5714 = vcvt.s32.f32 %v5707
        %v5715 = vmul.f32 %v5714, %v5712
        %v5716 = vxor.u32 %v5715, 2147483648
        %v5717 = vsel %vm5634, %v5716, %v5715
        %v5718 = vsub.s32 4, %v5694
        %v5719 = vsel %vm5634, %v5718, %v5694
        %v5720 = vsel %vm5633, %v4158, %v5717
        %v5721 = vsel %vm5633, 0, %v5719
        %v5722 = vcosq.f32.pop %v5720
        %v5723 = vsinq.f32.pop %v5720
        %vm5724 = vweird.f32 %v4158
        %v5725 = vadd.s32 %v5721, 3
        %v5726 = vand.u32 %v5725, 3
        %vm5727 = vcmp.lt.s32.totalorder %v5726, 2
        %vm5728 = vcmp.eq.s32.totalorder %v5726, 0
        %v5729 = vxor.u32 %v5723, 2147483648
        %v5730 = vsel %vm5728, %v5722, %v5729
        %vm5731 = vcmp.eq.s32.totalorder %v5726, 2
        %v5732 = vxor.u32 %v5722, 2147483648
        %v5733 = vsel %vm5731, %v5732, %v5723
        %v5734 = vsel %vm5727, %v5730, %v5733
        %v5735 = vsel %vm5724, nan, %v5734
        %v5736 = vand.u32 2147483647, %v4159
        %vm5737 = vcmp.le.f32.partialorder %v5736, 0.7853982
        %vm5738 = vcmp.lt.s32.totalorder %v4159, 0
        %v5739 = vand.u32 %v4159, 2139095040
        %v5740 = vshrl.u32 %v5739, 23
        %v5741 = vsub.s32 %v5740, 127
        %v5742 = vand.u32 2147483647, %v4159
        %v5743 = vand.u32 %v5742, 8388607
        %v5744 = vor.u32 %v5743, 8388608
        %v5745 = vsub.s32 0, %v5744
        %v5746 = vadd.s32 %v5741, 1
        %vm5747 = vcmp.gt.s32.totalorder %v5746, 0
        %v5748 = vsel %vm5747, %v5746, 0
        %v5749 = vshrl.u32 %v5748, 5
        %v5750 = vand.u32 %v5748, 31
        %v5751 = vsub.s32 32, %v5750
        %v5752 = vshrl.u32 683565275, %v5751
        %v5753 = vshll.u32 683565275, %v5750
        %v5754 = vshrl.u32 2475754826, %v5751
        %v5755 = vor.u32 %v5753, %v5754
        %v5756 = vshll.u32 2475754826, %v5750
        %v5757 = vshrl.u32 2131351028, %v5751
        %v5758 = vor.u32 %v5756, %v5757
        %v5759 = vshll.u32 2131351028, %v5750
        %v5760 = vshrl.u32 2102212464, %v5751
        %v5761 = vor.u32 %v5759, %v5760
        %v5762 = vshll.u32 2102212464, %v5750
        %v5763 = vshrl.u32 920167782, %v5751
        %v5764 = vor.u32 %v5762, %v5763
        %v5765 = vshll.u32 920167782, %v5750
        %v5766 = vshrl.u32 1326507024, %v5751
        %v5767 = vor.u32 %v5765, %v5766
        %vm5768 = vcmp.lt.s32.totalorder %v5749, 1
        %vm5769 = vcmp.lt.s32.totalorder %v5749, 2
        %vm5770 = vcmp.lt.s32.totalorder %v5749, 3
        %vm5771 = vcmp.lt.s32.totalorder %v5749, 4
        %v5772 = vsel %vm5768, %v5752, %v5755
        %v5773 = vsel %vm5771, %v5761, 2102212464
        %v5774 = vsel %vm5770, %v5758, %v5773
        %v5775 = vsel %vm5769, %v5772, %v5774
        %v5776 = vsel %vm5768, %v5755, %v5758
        %v5777 = vsel %vm5771, %v5764, 920167782
        %v5778 = vsel %vm5770, %v5761, %v5777
        %v5779 = vsel %vm5769, %v5776, %v5778
        %v5780 = vsel %vm5768, %v5758, %v5761
        %v5781 = vsel %vm5771, %v5767, 1326507024
        %v5782 = vsel %vm5770, %v5764, %v5781
        %v5783 = vsel %vm5769, %v5780, %v5782
        %v5784 = vshll.u32 %v5744, 8
        %v5785 = vmul.u32.u64.compose %v5784, %v5783
        %v5786 = vextract.low.u32 %v5785
        %v5787 = vextract.high.u32 %v5785
        %v5788 = vmul.u32.u64.compose %v5784, %v5779
        %v5789 = vextract.low.u32 %v5788
        %v5790 = vextract.high.u32 %v5788
        %v5791 = vmul.u32 %v5784, %v5775
        %v5792 = vadd.s32 %v5787, %v5789
        %vm5793 = vc.u32 %v5787, %v5789
        %v5794 = vadd.s32 %v5790, 1
        %v5795 = vsel %vm5793, %v5794, %v5790
        %v5796 = vadd.s32 %v5791, %v5795
        %v5797 = vadd.s32 %v5796, 536870912
        %v5798 = vshrl.u32 %v5797, 30
        %v5799 = vshll.u32 %v5798, 30
        %v5800 = vsub.s32 %v5796, %v5799
        %vm5801 = vcmp.lt.s32.totalorder %v5800, 0
        %v5802 = vsub.s32 0, %v5800
        %v5803 = vsel %vm5801, %v5802, %v5800
        %v5804 = vclz %v5803
        %v5805 = vsub.s32 %v5804, 2
        %vm5806 = vcmp.gt.s32.totalorder 0, %v5805
        %v5807 = vsel %vm5806, 0, %v5805
        %v5808 = vsub.s32 32, %v5807
        %v5809 = vshll.u32 %v5800, %v5807
        %v5810 = vshrl.u32 %v5792, %v5808
        %v5811 = vor.u32 %v5809, %v5810
        %v5812 = vsub.s32 4294967266, %v5807
        %v5813 = vadd.s32 %v5812, 127
        %v5814 = vshll.u32 %v5813, 23
        %v5815 = vor.u32 4788187, %v5814
        %v5816 = vand.u32 2147483647, %v5815
        %v5818 = vcvt.s32.f32 %v5811
        %v5819 = vmul.f32 %v5818, %v5816
        %v5820 = vxor.u32 %v5819, 2147483648
        %v5821 = vsel %vm5738, %v5820, %v5819
        %v5822 = vsub.s32 4, %v5798
        %v5823 = vsel %vm5738, %v5822, %v5798
        %v5824 = vsel %vm5737, %v4159, %v5821
        %v5825 = vsel %vm5737, 0, %v5823
        %v5826 = vcosq.f32.pop %v5824
        %v5827 = vsinq.f32.pop %v5824
        %vm5828 = vweird.f32 %v4159
        %v5829 = vadd.s32 %v5825, 3
        %v5830 = vand.u32 %v5829, 3
        %vm5831 = vcmp.lt.s32.totalorder %v5830, 2
        %vm5832 = vcmp.eq.s32.totalorder %v5830, 0
        %v5833 = vxor.u32 %v5827, 2147483648
        %v5834 = vsel %vm5832, %v5826, %v5833
        %vm5835 = vcmp.eq.s32.totalorder %v5830, 2
        %v5836 = vxor.u32 %v5826, 2147483648
        %v5837 = vsel %vm5835, %v5836, %v5827
        %v5838 = vsel %vm5831, %v5834, %v5837
        %v5839 = vsel %vm5828, nan, %v5838
        %v5840 = vand.u32 2147483647, %v4160
        %vm5841 = vcmp.le.f32.partialorder %v5840, 0.7853982
        %vm5842 = vcmp.lt.s32.totalorder %v4160, 0
        %v5843 = vand.u32 %v4160, 2139095040
        %v5844 = vshrl.u32 %v5843, 23
        %v5845 = vsub.s32 %v5844, 127
        %v5846 = vand.u32 2147483647, %v4160
        %v5847 = vand.u32 %v5846, 8388607
        %v5848 = vor.u32 %v5847, 8388608
        %v5849 = vsub.s32 0, %v5848
        %v5850 = vadd.s32 %v5845, 1
        %vm5851 = vcmp.gt.s32.totalorder %v5850, 0
        %v5852 = vsel %vm5851, %v5850, 0
        %v5853 = vshrl.u32 %v5852, 5
        %v5854 = vand.u32 %v5852, 31
        %v5855 = vsub.s32 32, %v5854
        %v5856 = vshrl.u32 683565275, %v5855
        %v5857 = vshll.u32 683565275, %v5854
        %v5858 = vshrl.u32 2475754826, %v5855
        %v5859 = vor.u32 %v5857, %v5858
        %v5860 = vshll.u32 2475754826, %v5854
        %v5861 = vshrl.u32 2131351028, %v5855
        %v5862 = vor.u32 %v5860, %v5861
        %v5863 = vshll.u32 2131351028, %v5854
        %v5864 = vshrl.u32 2102212464, %v5855
        %v5865 = vor.u32 %v5863, %v5864
        %v5866 = vshll.u32 2102212464, %v5854
        %v5867 = vshrl.u32 920167782, %v5855
        %v5868 = vor.u32 %v5866, %v5867
        %v5869 = vshll.u32 920167782, %v5854
        %v5870 = vshrl.u32 1326507024, %v5855
        %v5871 = vor.u32 %v5869, %v5870
        %vm5872 = vcmp.lt.s32.totalorder %v5853, 1
        %vm5873 = vcmp.lt.s32.totalorder %v5853, 2
        %vm5874 = vcmp.lt.s32.totalorder %v5853, 3
        %vm5875 = vcmp.lt.s32.totalorder %v5853, 4
        %v5876 = vsel %vm5872, %v5856, %v5859
        %v5877 = vsel %vm5875, %v5865, 2102212464
        %v5878 = vsel %vm5874, %v5862, %v5877
        %v5879 = vsel %vm5873, %v5876, %v5878
        %v5880 = vsel %vm5872, %v5859, %v5862
        %v5881 = vsel %vm5875, %v5868, 920167782
        %v5882 = vsel %vm5874, %v5865, %v5881
        %v5883 = vsel %vm5873, %v5880, %v5882
        %v5884 = vsel %vm5872, %v5862, %v5865
        %v5885 = vsel %vm5875, %v5871, 1326507024
        %v5886 = vsel %vm5874, %v5868, %v5885
        %v5887 = vsel %vm5873, %v5884, %v5886
        %v5888 = vshll.u32 %v5848, 8
        %v5889 = vmul.u32.u64.compose %v5888, %v5887
        %v5890 = vextract.low.u32 %v5889
        %v5891 = vextract.high.u32 %v5889
        %v5892 = vmul.u32.u64.compose %v5888, %v5883
        %v5893 = vextract.low.u32 %v5892
        %v5894 = vextract.high.u32 %v5892
        %v5895 = vmul.u32 %v5888, %v5879
        %v5896 = vadd.s32 %v5891, %v5893
        %vm5897 = vc.u32 %v5891, %v5893
        %v5898 = vadd.s32 %v5894, 1
        %v5899 = vsel %vm5897, %v5898, %v5894
        %v5900 = vadd.s32 %v5895, %v5899
        %v5901 = vadd.s32 %v5900, 536870912
        %v5902 = vshrl.u32 %v5901, 30
        %v5903 = vshll.u32 %v5902, 30
        %v5904 = vsub.s32 %v5900, %v5903
        %vm5905 = vcmp.lt.s32.totalorder %v5904, 0
        %v5906 = vsub.s32 0, %v5904
        %v5907 = vsel %vm5905, %v5906, %v5904
        %v5908 = vclz %v5907
        %v5909 = vsub.s32 %v5908, 2
        %vm5910 = vcmp.gt.s32.totalorder 0, %v5909
        %v5911 = vsel %vm5910, 0, %v5909
        %v5912 = vsub.s32 32, %v5911
        %v5913 = vshll.u32 %v5904, %v5911
        %v5914 = vshrl.u32 %v5896, %v5912
        %v5915 = vor.u32 %v5913, %v5914
        %v5916 = vsub.s32 4294967266, %v5911
        %v5917 = vadd.s32 %v5916, 127
        %v5918 = vshll.u32 %v5917, 23
        %v5919 = vor.u32 4788187, %v5918
        %v5920 = vand.u32 2147483647, %v5919
        %v5922 = vcvt.s32.f32 %v5915
        %v5923 = vmul.f32 %v5922, %v5920
        %v5924 = vxor.u32 %v5923, 2147483648
        %v5925 = vsel %vm5842, %v5924, %v5923
        %v5926 = vsub.s32 4, %v5902
        %v5927 = vsel %vm5842, %v5926, %v5902
        %v5928 = vsel %vm5841, %v4160, %v5925
        %v5929 = vsel %vm5841, 0, %v5927
        %v5930 = vcosq.f32.pop %v5928
        %v5931 = vsinq.f32.pop %v5928
        %vm5932 = vweird.f32 %v4160
        %v5933 = vadd.s32 %v5929, 3
        %v5934 = vand.u32 %v5933, 3
        %vm5935 = vcmp.lt.s32.totalorder %v5934, 2
        %vm5936 = vcmp.eq.s32.totalorder %v5934, 0
        %v5937 = vxor.u32 %v5931, 2147483648
        %v5938 = vsel %vm5936, %v5930, %v5937
        %vm5939 = vcmp.eq.s32.totalorder %v5934, 2
        %v5940 = vxor.u32 %v5930, 2147483648
        %v5941 = vsel %vm5939, %v5940, %v5931
        %v5942 = vsel %vm5935, %v5938, %v5941
        %v5943 = vsel %vm5932, nan, %v5942
        %v5944 = vand.u32 2147483647, %v4161
        %vm5945 = vcmp.le.f32.partialorder %v5944, 0.7853982
        %vm5946 = vcmp.lt.s32.totalorder %v4161, 0
        %v5947 = vand.u32 %v4161, 2139095040
        %v5948 = vshrl.u32 %v5947, 23
        %v5949 = vsub.s32 %v5948, 127
        %v5950 = vand.u32 2147483647, %v4161
        %v5951 = vand.u32 %v5950, 8388607
        %v5952 = vor.u32 %v5951, 8388608
        %v5953 = vsub.s32 0, %v5952
        %v5954 = vadd.s32 %v5949, 1
        %vm5955 = vcmp.gt.s32.totalorder %v5954, 0
        %v5956 = vsel %vm5955, %v5954, 0
        %v5957 = vshrl.u32 %v5956, 5
        %v5958 = vand.u32 %v5956, 31
        %v5959 = vsub.s32 32, %v5958
        %v5960 = vshrl.u32 683565275, %v5959
        %v5961 = vshll.u32 683565275, %v5958
        %v5962 = vshrl.u32 2475754826, %v5959
        %v5963 = vor.u32 %v5961, %v5962
        %v5964 = vshll.u32 2475754826, %v5958
        %v5965 = vshrl.u32 2131351028, %v5959
        %v5966 = vor.u32 %v5964, %v5965
        %v5967 = vshll.u32 2131351028, %v5958
        %v5968 = vshrl.u32 2102212464, %v5959
        %v5969 = vor.u32 %v5967, %v5968
        %v5970 = vshll.u32 2102212464, %v5958
        %v5971 = vshrl.u32 920167782, %v5959
        %v5972 = vor.u32 %v5970, %v5971
        %v5973 = vshll.u32 920167782, %v5958
        %v5974 = vshrl.u32 1326507024, %v5959
        %v5975 = vor.u32 %v5973, %v5974
        %vm5976 = vcmp.lt.s32.totalorder %v5957, 1
        %vm5977 = vcmp.lt.s32.totalorder %v5957, 2
        %vm5978 = vcmp.lt.s32.totalorder %v5957, 3
        %vm5979 = vcmp.lt.s32.totalorder %v5957, 4
        %v5980 = vsel %vm5976, %v5960, %v5963
        %v5981 = vsel %vm5979, %v5969, 2102212464
        %v5982 = vsel %vm5978, %v5966, %v5981
        %v5983 = vsel %vm5977, %v5980, %v5982
        %v5984 = vsel %vm5976, %v5963, %v5966
        %v5985 = vsel %vm5979, %v5972, 920167782
        %v5986 = vsel %vm5978, %v5969, %v5985
        %v5987 = vsel %vm5977, %v5984, %v5986
        %v5988 = vsel %vm5976, %v5966, %v5969
        %v5989 = vsel %vm5979, %v5975, 1326507024
        %v5990 = vsel %vm5978, %v5972, %v5989
        %v5991 = vsel %vm5977, %v5988, %v5990
        %v5992 = vshll.u32 %v5952, 8
        %v5993 = vmul.u32.u64.compose %v5992, %v5991
        %v5994 = vextract.low.u32 %v5993
        %v5995 = vextract.high.u32 %v5993
        %v5996 = vmul.u32.u64.compose %v5992, %v5987
        %v5997 = vextract.low.u32 %v5996
        %v5998 = vextract.high.u32 %v5996
        %v5999 = vmul.u32 %v5992, %v5983
        %v6000 = vadd.s32 %v5995, %v5997
        %vm6001 = vc.u32 %v5995, %v5997
        %v6002 = vadd.s32 %v5998, 1
        %v6003 = vsel %vm6001, %v6002, %v5998
        %v6004 = vadd.s32 %v5999, %v6003
        %v6005 = vadd.s32 %v6004, 536870912
        %v6006 = vshrl.u32 %v6005, 30
        %v6007 = vshll.u32 %v6006, 30
        %v6008 = vsub.s32 %v6004, %v6007
        %vm6009 = vcmp.lt.s32.totalorder %v6008, 0
        %v6010 = vsub.s32 0, %v6008
        %v6011 = vsel %vm6009, %v6010, %v6008
        %v6012 = vclz %v6011
        %v6013 = vsub.s32 %v6012, 2
        %vm6014 = vcmp.gt.s32.totalorder 0, %v6013
        %v6015 = vsel %vm6014, 0, %v6013
        %v6016 = vsub.s32 32, %v6015
        %v6017 = vshll.u32 %v6008, %v6015
        %v6018 = vshrl.u32 %v6000, %v6016
        %v6019 = vor.u32 %v6017, %v6018
        %v6020 = vsub.s32 4294967266, %v6015
        %v6021 = vadd.s32 %v6020, 127
        %v6022 = vshll.u32 %v6021, 23
        %v6023 = vor.u32 4788187, %v6022
        %v6024 = vand.u32 2147483647, %v6023
        %v6026 = vcvt.s32.f32 %v6019
        %v6027 = vmul.f32 %v6026, %v6024
        %v6028 = vxor.u32 %v6027, 2147483648
        %v6029 = vsel %vm5946, %v6028, %v6027
        %v6030 = vsub.s32 4, %v6006
        %v6031 = vsel %vm5946, %v6030, %v6006
        %v6032 = vsel %vm5945, %v4161, %v6029
        %v6033 = vsel %vm5945, 0, %v6031
        %v6034 = vcosq.f32.pop %v6032
        %v6035 = vsinq.f32.pop %v6032
        %vm6036 = vweird.f32 %v4161
        %v6037 = vadd.s32 %v6033, 3
        %v6038 = vand.u32 %v6037, 3
        %vm6039 = vcmp.lt.s32.totalorder %v6038, 2
        %vm6040 = vcmp.eq.s32.totalorder %v6038, 0
        %v6041 = vxor.u32 %v6035, 2147483648
        %v6042 = vsel %vm6040, %v6034, %v6041
        %vm6043 = vcmp.eq.s32.totalorder %v6038, 2
        %v6044 = vxor.u32 %v6034, 2147483648
        %v6045 = vsel %vm6043, %v6044, %v6035
        %v6046 = vsel %vm6039, %v6042, %v6045
        %v6047 = vsel %vm6036, nan, %v6046
        %v6048 = vand.u32 2147483647, %v4162
        %vm6049 = vcmp.le.f32.partialorder %v6048, 0.7853982
        %vm6050 = vcmp.lt.s32.totalorder %v4162, 0
        %v6051 = vand.u32 %v4162, 2139095040
        %v6052 = vshrl.u32 %v6051, 23
        %v6053 = vsub.s32 %v6052, 127
        %v6054 = vand.u32 2147483647, %v4162
        %v6055 = vand.u32 %v6054, 8388607
        %v6056 = vor.u32 %v6055, 8388608
        %v6057 = vsub.s32 0, %v6056
        %v6058 = vadd.s32 %v6053, 1
        %vm6059 = vcmp.gt.s32.totalorder %v6058, 0
        %v6060 = vsel %vm6059, %v6058, 0
        %v6061 = vshrl.u32 %v6060, 5
        %v6062 = vand.u32 %v6060, 31
        %v6063 = vsub.s32 32, %v6062
        %v6064 = vshrl.u32 683565275, %v6063
        %v6065 = vshll.u32 683565275, %v6062
        %v6066 = vshrl.u32 2475754826, %v6063
        %v6067 = vor.u32 %v6065, %v6066
        %v6068 = vshll.u32 2475754826, %v6062
        %v6069 = vshrl.u32 2131351028, %v6063
        %v6070 = vor.u32 %v6068, %v6069
        %v6071 = vshll.u32 2131351028, %v6062
        %v6072 = vshrl.u32 2102212464, %v6063
        %v6073 = vor.u32 %v6071, %v6072
        %v6074 = vshll.u32 2102212464, %v6062
        %v6075 = vshrl.u32 920167782, %v6063
        %v6076 = vor.u32 %v6074, %v6075
        %v6077 = vshll.u32 920167782, %v6062
        %v6078 = vshrl.u32 1326507024, %v6063
        %v6079 = vor.u32 %v6077, %v6078
        %vm6080 = vcmp.lt.s32.totalorder %v6061, 1
        %vm6081 = vcmp.lt.s32.totalorder %v6061, 2
        %vm6082 = vcmp.lt.s32.totalorder %v6061, 3
        %vm6083 = vcmp.lt.s32.totalorder %v6061, 4
        %v6084 = vsel %vm6080, %v6064, %v6067
        %v6085 = vsel %vm6083, %v6073, 2102212464
        %v6086 = vsel %vm6082, %v6070, %v6085
        %v6087 = vsel %vm6081, %v6084, %v6086
        %v6088 = vsel %vm6080, %v6067, %v6070
        %v6089 = vsel %vm6083, %v6076, 920167782
        %v6090 = vsel %vm6082, %v6073, %v6089
        %v6091 = vsel %vm6081, %v6088, %v6090
        %v6092 = vsel %vm6080, %v6070, %v6073
        %v6093 = vsel %vm6083, %v6079, 1326507024
        %v6094 = vsel %vm6082, %v6076, %v6093
        %v6095 = vsel %vm6081, %v6092, %v6094
        %v6096 = vshll.u32 %v6056, 8
        %v6097 = vmul.u32.u64.compose %v6096, %v6095
        %v6098 = vextract.low.u32 %v6097
        %v6099 = vextract.high.u32 %v6097
        %v6100 = vmul.u32.u64.compose %v6096, %v6091
        %v6101 = vextract.low.u32 %v6100
        %v6102 = vextract.high.u32 %v6100
        %v6103 = vmul.u32 %v6096, %v6087
        %v6104 = vadd.s32 %v6099, %v6101
        %vm6105 = vc.u32 %v6099, %v6101
        %v6106 = vadd.s32 %v6102, 1
        %v6107 = vsel %vm6105, %v6106, %v6102
        %v6108 = vadd.s32 %v6103, %v6107
        %v6109 = vadd.s32 %v6108, 536870912
        %v6110 = vshrl.u32 %v6109, 30
        %v6111 = vshll.u32 %v6110, 30
        %v6112 = vsub.s32 %v6108, %v6111
        %vm6113 = vcmp.lt.s32.totalorder %v6112, 0
        %v6114 = vsub.s32 0, %v6112
        %v6115 = vsel %vm6113, %v6114, %v6112
        %v6116 = vclz %v6115
        %v6117 = vsub.s32 %v6116, 2
        %vm6118 = vcmp.gt.s32.totalorder 0, %v6117
        %v6119 = vsel %vm6118, 0, %v6117
        %v6120 = vsub.s32 32, %v6119
        %v6121 = vshll.u32 %v6112, %v6119
        %v6122 = vshrl.u32 %v6104, %v6120
        %v6123 = vor.u32 %v6121, %v6122
        %v6124 = vsub.s32 4294967266, %v6119
        %v6125 = vadd.s32 %v6124, 127
        %v6126 = vshll.u32 %v6125, 23
        %v6127 = vor.u32 4788187, %v6126
        %v6128 = vand.u32 2147483647, %v6127
        %v6130 = vcvt.s32.f32 %v6123
        %v6131 = vmul.f32 %v6130, %v6128
        %v6132 = vxor.u32 %v6131, 2147483648
        %v6133 = vsel %vm6050, %v6132, %v6131
        %v6134 = vsub.s32 4, %v6110
        %v6135 = vsel %vm6050, %v6134, %v6110
        %v6136 = vsel %vm6049, %v4162, %v6133
        %v6137 = vsel %vm6049, 0, %v6135
        %v6138 = vcosq.f32.pop %v6136
        %v6139 = vsinq.f32.pop %v6136
        %vm6140 = vweird.f32 %v4162
        %v6141 = vadd.s32 %v6137, 3
        %v6142 = vand.u32 %v6141, 3
        %vm6143 = vcmp.lt.s32.totalorder %v6142, 2
        %vm6144 = vcmp.eq.s32.totalorder %v6142, 0
        %v6145 = vxor.u32 %v6139, 2147483648
        %v6146 = vsel %vm6144, %v6138, %v6145
        %vm6147 = vcmp.eq.s32.totalorder %v6142, 2
        %v6148 = vxor.u32 %v6138, 2147483648
        %v6149 = vsel %vm6147, %v6148, %v6139
        %v6150 = vsel %vm6143, %v6146, %v6149
        %v6151 = vsel %vm6140, nan, %v6150
        %v6152 = vand.u32 2147483647, %v4163
        %vm6153 = vcmp.le.f32.partialorder %v6152, 0.7853982
        %vm6154 = vcmp.lt.s32.totalorder %v4163, 0
        %v6155 = vand.u32 %v4163, 2139095040
        %v6156 = vshrl.u32 %v6155, 23
        %v6157 = vsub.s32 %v6156, 127
        %v6158 = vand.u32 2147483647, %v4163
        %v6159 = vand.u32 %v6158, 8388607
        %v6160 = vor.u32 %v6159, 8388608
        %v6161 = vsub.s32 0, %v6160
        %v6162 = vadd.s32 %v6157, 1
        %vm6163 = vcmp.gt.s32.totalorder %v6162, 0
        %v6164 = vsel %vm6163, %v6162, 0
        %v6165 = vshrl.u32 %v6164, 5
        %v6166 = vand.u32 %v6164, 31
        %v6167 = vsub.s32 32, %v6166
        %v6168 = vshrl.u32 683565275, %v6167
        %v6169 = vshll.u32 683565275, %v6166
        %v6170 = vshrl.u32 2475754826, %v6167
        %v6171 = vor.u32 %v6169, %v6170
        %v6172 = vshll.u32 2475754826, %v6166
        %v6173 = vshrl.u32 2131351028, %v6167
        %v6174 = vor.u32 %v6172, %v6173
        %v6175 = vshll.u32 2131351028, %v6166
        %v6176 = vshrl.u32 2102212464, %v6167
        %v6177 = vor.u32 %v6175, %v6176
        %v6178 = vshll.u32 2102212464, %v6166
        %v6179 = vshrl.u32 920167782, %v6167
        %v6180 = vor.u32 %v6178, %v6179
        %v6181 = vshll.u32 920167782, %v6166
        %v6182 = vshrl.u32 1326507024, %v6167
        %v6183 = vor.u32 %v6181, %v6182
        %vm6184 = vcmp.lt.s32.totalorder %v6165, 1
        %vm6185 = vcmp.lt.s32.totalorder %v6165, 2
        %vm6186 = vcmp.lt.s32.totalorder %v6165, 3
        %vm6187 = vcmp.lt.s32.totalorder %v6165, 4
        %v6188 = vsel %vm6184, %v6168, %v6171
        %v6189 = vsel %vm6187, %v6177, 2102212464
        %v6190 = vsel %vm6186, %v6174, %v6189
        %v6191 = vsel %vm6185, %v6188, %v6190
        %v6192 = vsel %vm6184, %v6171, %v6174
        %v6193 = vsel %vm6187, %v6180, 920167782
        %v6194 = vsel %vm6186, %v6177, %v6193
        %v6195 = vsel %vm6185, %v6192, %v6194
        %v6196 = vsel %vm6184, %v6174, %v6177
        %v6197 = vsel %vm6187, %v6183, 1326507024
        %v6198 = vsel %vm6186, %v6180, %v6197
        %v6199 = vsel %vm6185, %v6196, %v6198
        %v6200 = vshll.u32 %v6160, 8
        %v6201 = vmul.u32.u64.compose %v6200, %v6199
        %v6202 = vextract.low.u32 %v6201
        %v6203 = vextract.high.u32 %v6201
        %v6204 = vmul.u32.u64.compose %v6200, %v6195
        %v6205 = vextract.low.u32 %v6204
        %v6206 = vextract.high.u32 %v6204
        %v6207 = vmul.u32 %v6200, %v6191
        %v6208 = vadd.s32 %v6203, %v6205
        %vm6209 = vc.u32 %v6203, %v6205
        %v6210 = vadd.s32 %v6206, 1
        %v6211 = vsel %vm6209, %v6210, %v6206
        %v6212 = vadd.s32 %v6207, %v6211
        %v6213 = vadd.s32 %v6212, 536870912
        %v6214 = vshrl.u32 %v6213, 30
        %v6215 = vshll.u32 %v6214, 30
        %v6216 = vsub.s32 %v6212, %v6215
        %vm6217 = vcmp.lt.s32.totalorder %v6216, 0
        %v6218 = vsub.s32 0, %v6216
        %v6219 = vsel %vm6217, %v6218, %v6216
        %v6220 = vclz %v6219
        %v6221 = vsub.s32 %v6220, 2
        %vm6222 = vcmp.gt.s32.totalorder 0, %v6221
        %v6223 = vsel %vm6222, 0, %v6221
        %v6224 = vsub.s32 32, %v6223
        %v6225 = vshll.u32 %v6216, %v6223
        %v6226 = vshrl.u32 %v6208, %v6224
        %v6227 = vor.u32 %v6225, %v6226
        %v6228 = vsub.s32 4294967266, %v6223
        %v6229 = vadd.s32 %v6228, 127
        %v6230 = vshll.u32 %v6229, 23
        %v6231 = vor.u32 4788187, %v6230
        %v6232 = vand.u32 2147483647, %v6231
        %v6234 = vcvt.s32.f32 %v6227
        %v6235 = vmul.f32 %v6234, %v6232
        %v6236 = vxor.u32 %v6235, 2147483648
        %v6237 = vsel %vm6154, %v6236, %v6235
        %v6238 = vsub.s32 4, %v6214
        %v6239 = vsel %vm6154, %v6238, %v6214
        %v6240 = vsel %vm6153, %v4163, %v6237
        %v6241 = vsel %vm6153, 0, %v6239
        %v6242 = vcosq.f32.pop %v6240
        %v6243 = vsinq.f32.pop %v6240
        %vm6244 = vweird.f32 %v4163
        %v6245 = vadd.s32 %v6241, 3
        %v6246 = vand.u32 %v6245, 3
        %vm6247 = vcmp.lt.s32.totalorder %v6246, 2
        %vm6248 = vcmp.eq.s32.totalorder %v6246, 0
        %v6249 = vxor.u32 %v6243, 2147483648
        %v6250 = vsel %vm6248, %v6242, %v6249
        %vm6251 = vcmp.eq.s32.totalorder %v6246, 2
        %v6252 = vxor.u32 %v6242, 2147483648
        %v6253 = vsel %vm6251, %v6252, %v6243
        %v6254 = vsel %vm6247, %v6250, %v6253
        %v6255 = vsel %vm6244, nan, %v6254
        %v6256 = vand.u32 2147483647, %v4164
        %vm6257 = vcmp.le.f32.partialorder %v6256, 0.7853982
        %vm6258 = vcmp.lt.s32.totalorder %v4164, 0
        %v6259 = vand.u32 %v4164, 2139095040
        %v6260 = vshrl.u32 %v6259, 23
        %v6261 = vsub.s32 %v6260, 127
        %v6262 = vand.u32 2147483647, %v4164
        %v6263 = vand.u32 %v6262, 8388607
        %v6264 = vor.u32 %v6263, 8388608
        %v6265 = vsub.s32 0, %v6264
        %v6266 = vadd.s32 %v6261, 1
        %vm6267 = vcmp.gt.s32.totalorder %v6266, 0
        %v6268 = vsel %vm6267, %v6266, 0
        %v6269 = vshrl.u32 %v6268, 5
        %v6270 = vand.u32 %v6268, 31
        %v6271 = vsub.s32 32, %v6270
        %v6272 = vshrl.u32 683565275, %v6271
        %v6273 = vshll.u32 683565275, %v6270
        %v6274 = vshrl.u32 2475754826, %v6271
        %v6275 = vor.u32 %v6273, %v6274
        %v6276 = vshll.u32 2475754826, %v6270
        %v6277 = vshrl.u32 2131351028, %v6271
        %v6278 = vor.u32 %v6276, %v6277
        %v6279 = vshll.u32 2131351028, %v6270
        %v6280 = vshrl.u32 2102212464, %v6271
        %v6281 = vor.u32 %v6279, %v6280
        %v6282 = vshll.u32 2102212464, %v6270
        %v6283 = vshrl.u32 920167782, %v6271
        %v6284 = vor.u32 %v6282, %v6283
        %v6285 = vshll.u32 920167782, %v6270
        %v6286 = vshrl.u32 1326507024, %v6271
        %v6287 = vor.u32 %v6285, %v6286
        %vm6288 = vcmp.lt.s32.totalorder %v6269, 1
        %vm6289 = vcmp.lt.s32.totalorder %v6269, 2
        %vm6290 = vcmp.lt.s32.totalorder %v6269, 3
        %vm6291 = vcmp.lt.s32.totalorder %v6269, 4
        %v6292 = vsel %vm6288, %v6272, %v6275
        %v6293 = vsel %vm6291, %v6281, 2102212464
        %v6294 = vsel %vm6290, %v6278, %v6293
        %v6295 = vsel %vm6289, %v6292, %v6294
        %v6296 = vsel %vm6288, %v6275, %v6278
        %v6297 = vsel %vm6291, %v6284, 920167782
        %v6298 = vsel %vm6290, %v6281, %v6297
        %v6299 = vsel %vm6289, %v6296, %v6298
        %v6300 = vsel %vm6288, %v6278, %v6281
        %v6301 = vsel %vm6291, %v6287, 1326507024
        %v6302 = vsel %vm6290, %v6284, %v6301
        %v6303 = vsel %vm6289, %v6300, %v6302
        %v6304 = vshll.u32 %v6264, 8
        %v6305 = vmul.u32.u64.compose %v6304, %v6303
        %v6306 = vextract.low.u32 %v6305
        %v6307 = vextract.high.u32 %v6305
        %v6308 = vmul.u32.u64.compose %v6304, %v6299
        %v6309 = vextract.low.u32 %v6308
        %v6310 = vextract.high.u32 %v6308
        %v6311 = vmul.u32 %v6304, %v6295
        %v6312 = vadd.s32 %v6307, %v6309
        %vm6313 = vc.u32 %v6307, %v6309
        %v6314 = vadd.s32 %v6310, 1
        %v6315 = vsel %vm6313, %v6314, %v6310
        %v6316 = vadd.s32 %v6311, %v6315
        %v6317 = vadd.s32 %v6316, 536870912
        %v6318 = vshrl.u32 %v6317, 30
        %v6319 = vshll.u32 %v6318, 30
        %v6320 = vsub.s32 %v6316, %v6319
        %vm6321 = vcmp.lt.s32.totalorder %v6320, 0
        %v6322 = vsub.s32 0, %v6320
        %v6323 = vsel %vm6321, %v6322, %v6320
        %v6324 = vclz %v6323
        %v6325 = vsub.s32 %v6324, 2
        %vm6326 = vcmp.gt.s32.totalorder 0, %v6325
        %v6327 = vsel %vm6326, 0, %v6325
        %v6328 = vsub.s32 32, %v6327
        %v6329 = vshll.u32 %v6320, %v6327
        %v6330 = vshrl.u32 %v6312, %v6328
        %v6331 = vor.u32 %v6329, %v6330
        %v6332 = vsub.s32 4294967266, %v6327
        %v6333 = vadd.s32 %v6332, 127
        %v6334 = vshll.u32 %v6333, 23
        %v6335 = vor.u32 4788187, %v6334
        %v6336 = vand.u32 2147483647, %v6335
        %v6338 = vcvt.s32.f32 %v6331
        %v6339 = vmul.f32 %v6338, %v6336
        %v6340 = vxor.u32 %v6339, 2147483648
        %v6341 = vsel %vm6258, %v6340, %v6339
        %v6342 = vsub.s32 4, %v6318
        %v6343 = vsel %vm6258, %v6342, %v6318
        %v6344 = vsel %vm6257, %v4164, %v6341
        %v6345 = vsel %vm6257, 0, %v6343
        %v6346 = vcosq.f32.pop %v6344
        %v6347 = vsinq.f32.pop %v6344
        %vm6348 = vweird.f32 %v4164
        %v6349 = vadd.s32 %v6345, 3
        %v6350 = vand.u32 %v6349, 3
        %vm6351 = vcmp.lt.s32.totalorder %v6350, 2
        %vm6352 = vcmp.eq.s32.totalorder %v6350, 0
        %v6353 = vxor.u32 %v6347, 2147483648
        %v6354 = vsel %vm6352, %v6346, %v6353
        %vm6355 = vcmp.eq.s32.totalorder %v6350, 2
        %v6356 = vxor.u32 %v6346, 2147483648
        %v6357 = vsel %vm6355, %v6356, %v6347
        %v6358 = vsel %vm6351, %v6354, %v6357
        %v6359 = vsel %vm6348, nan, %v6358
        %v6360 = vand.u32 2147483647, %v4165
        %vm6361 = vcmp.le.f32.partialorder %v6360, 0.7853982
        %vm6362 = vcmp.lt.s32.totalorder %v4165, 0
        %v6363 = vand.u32 %v4165, 2139095040
        %v6364 = vshrl.u32 %v6363, 23
        %v6365 = vsub.s32 %v6364, 127
        %v6366 = vand.u32 2147483647, %v4165
        %v6367 = vand.u32 %v6366, 8388607
        %v6368 = vor.u32 %v6367, 8388608
        %v6369 = vsub.s32 0, %v6368
        %v6370 = vadd.s32 %v6365, 1
        %vm6371 = vcmp.gt.s32.totalorder %v6370, 0
        %v6372 = vsel %vm6371, %v6370, 0
        %v6373 = vshrl.u32 %v6372, 5
        %v6374 = vand.u32 %v6372, 31
        %v6375 = vsub.s32 32, %v6374
        %v6376 = vshrl.u32 683565275, %v6375
        %v6377 = vshll.u32 683565275, %v6374
        %v6378 = vshrl.u32 2475754826, %v6375
        %v6379 = vor.u32 %v6377, %v6378
        %v6380 = vshll.u32 2475754826, %v6374
        %v6381 = vshrl.u32 2131351028, %v6375
        %v6382 = vor.u32 %v6380, %v6381
        %v6383 = vshll.u32 2131351028, %v6374
        %v6384 = vshrl.u32 2102212464, %v6375
        %v6385 = vor.u32 %v6383, %v6384
        %v6386 = vshll.u32 2102212464, %v6374
        %v6387 = vshrl.u32 920167782, %v6375
        %v6388 = vor.u32 %v6386, %v6387
        %v6389 = vshll.u32 920167782, %v6374
        %v6390 = vshrl.u32 1326507024, %v6375
        %v6391 = vor.u32 %v6389, %v6390
        %vm6392 = vcmp.lt.s32.totalorder %v6373, 1
        %vm6393 = vcmp.lt.s32.totalorder %v6373, 2
        %vm6394 = vcmp.lt.s32.totalorder %v6373, 3
        %vm6395 = vcmp.lt.s32.totalorder %v6373, 4
        %v6396 = vsel %vm6392, %v6376, %v6379
        %v6397 = vsel %vm6395, %v6385, 2102212464
        %v6398 = vsel %vm6394, %v6382, %v6397
        %v6399 = vsel %vm6393, %v6396, %v6398
        %v6400 = vsel %vm6392, %v6379, %v6382
        %v6401 = vsel %vm6395, %v6388, 920167782
        %v6402 = vsel %vm6394, %v6385, %v6401
        %v6403 = vsel %vm6393, %v6400, %v6402
        %v6404 = vsel %vm6392, %v6382, %v6385
        %v6405 = vsel %vm6395, %v6391, 1326507024
        %v6406 = vsel %vm6394, %v6388, %v6405
        %v6407 = vsel %vm6393, %v6404, %v6406
        %v6408 = vshll.u32 %v6368, 8
        %v6409 = vmul.u32.u64.compose %v6408, %v6407
        %v6410 = vextract.low.u32 %v6409
        %v6411 = vextract.high.u32 %v6409
        %v6412 = vmul.u32.u64.compose %v6408, %v6403
        %v6413 = vextract.low.u32 %v6412
        %v6414 = vextract.high.u32 %v6412
        %v6415 = vmul.u32 %v6408, %v6399
        %v6416 = vadd.s32 %v6411, %v6413
        %vm6417 = vc.u32 %v6411, %v6413
        %v6418 = vadd.s32 %v6414, 1
        %v6419 = vsel %vm6417, %v6418, %v6414
        %v6420 = vadd.s32 %v6415, %v6419
        %v6421 = vadd.s32 %v6420, 536870912
        %v6422 = vshrl.u32 %v6421, 30
        %v6423 = vshll.u32 %v6422, 30
        %v6424 = vsub.s32 %v6420, %v6423
        %vm6425 = vcmp.lt.s32.totalorder %v6424, 0
        %v6426 = vsub.s32 0, %v6424
        %v6427 = vsel %vm6425, %v6426, %v6424
        %v6428 = vclz %v6427
        %v6429 = vsub.s32 %v6428, 2
        %vm6430 = vcmp.gt.s32.totalorder 0, %v6429
        %v6431 = vsel %vm6430, 0, %v6429
        %v6432 = vsub.s32 32, %v6431
        %v6433 = vshll.u32 %v6424, %v6431
        %v6434 = vshrl.u32 %v6416, %v6432
        %v6435 = vor.u32 %v6433, %v6434
        %v6436 = vsub.s32 4294967266, %v6431
        %v6437 = vadd.s32 %v6436, 127
        %v6438 = vshll.u32 %v6437, 23
        %v6439 = vor.u32 4788187, %v6438
        %v6440 = vand.u32 2147483647, %v6439
        %v6442 = vcvt.s32.f32 %v6435
        %v6443 = vmul.f32 %v6442, %v6440
        %v6444 = vxor.u32 %v6443, 2147483648
        %v6445 = vsel %vm6362, %v6444, %v6443
        %v6446 = vsub.s32 4, %v6422
        %v6447 = vsel %vm6362, %v6446, %v6422
        %v6448 = vsel %vm6361, %v4165, %v6445
        %v6449 = vsel %vm6361, 0, %v6447
        %v6450 = vcosq.f32.pop %v6448
        %v6451 = vsinq.f32.pop %v6448
        %vm6452 = vweird.f32 %v4165
        %v6453 = vadd.s32 %v6449, 3
        %v6454 = vand.u32 %v6453, 3
        %vm6455 = vcmp.lt.s32.totalorder %v6454, 2
        %vm6456 = vcmp.eq.s32.totalorder %v6454, 0
        %v6457 = vxor.u32 %v6451, 2147483648
        %v6458 = vsel %vm6456, %v6450, %v6457
        %vm6459 = vcmp.eq.s32.totalorder %v6454, 2
        %v6460 = vxor.u32 %v6450, 2147483648
        %v6461 = vsel %vm6459, %v6460, %v6451
        %v6462 = vsel %vm6455, %v6458, %v6461
        %v6463 = vsel %vm6452, nan, %v6462
        %v6464 = vand.u32 2147483647, %v4166
        %vm6465 = vcmp.le.f32.partialorder %v6464, 0.7853982
        %vm6466 = vcmp.lt.s32.totalorder %v4166, 0
        %v6467 = vand.u32 %v4166, 2139095040
        %v6468 = vshrl.u32 %v6467, 23
        %v6469 = vsub.s32 %v6468, 127
        %v6470 = vand.u32 2147483647, %v4166
        %v6471 = vand.u32 %v6470, 8388607
        %v6472 = vor.u32 %v6471, 8388608
        %v6473 = vsub.s32 0, %v6472
        %v6474 = vadd.s32 %v6469, 1
        %vm6475 = vcmp.gt.s32.totalorder %v6474, 0
        %v6476 = vsel %vm6475, %v6474, 0
        %v6477 = vshrl.u32 %v6476, 5
        %v6478 = vand.u32 %v6476, 31
        %v6479 = vsub.s32 32, %v6478
        %v6480 = vshrl.u32 683565275, %v6479
        %v6481 = vshll.u32 683565275, %v6478
        %v6482 = vshrl.u32 2475754826, %v6479
        %v6483 = vor.u32 %v6481, %v6482
        %v6484 = vshll.u32 2475754826, %v6478
        %v6485 = vshrl.u32 2131351028, %v6479
        %v6486 = vor.u32 %v6484, %v6485
        %v6487 = vshll.u32 2131351028, %v6478
        %v6488 = vshrl.u32 2102212464, %v6479
        %v6489 = vor.u32 %v6487, %v6488
        %v6490 = vshll.u32 2102212464, %v6478
        %v6491 = vshrl.u32 920167782, %v6479
        %v6492 = vor.u32 %v6490, %v6491
        %v6493 = vshll.u32 920167782, %v6478
        %v6494 = vshrl.u32 1326507024, %v6479
        %v6495 = vor.u32 %v6493, %v6494
        %vm6496 = vcmp.lt.s32.totalorder %v6477, 1
        %vm6497 = vcmp.lt.s32.totalorder %v6477, 2
        %vm6498 = vcmp.lt.s32.totalorder %v6477, 3
        %vm6499 = vcmp.lt.s32.totalorder %v6477, 4
        %v6500 = vsel %vm6496, %v6480, %v6483
        %v6501 = vsel %vm6499, %v6489, 2102212464
        %v6502 = vsel %vm6498, %v6486, %v6501
        %v6503 = vsel %vm6497, %v6500, %v6502
        %v6504 = vsel %vm6496, %v6483, %v6486
        %v6505 = vsel %vm6499, %v6492, 920167782
        %v6506 = vsel %vm6498, %v6489, %v6505
        %v6507 = vsel %vm6497, %v6504, %v6506
        %v6508 = vsel %vm6496, %v6486, %v6489
        %v6509 = vsel %vm6499, %v6495, 1326507024
        %v6510 = vsel %vm6498, %v6492, %v6509
        %v6511 = vsel %vm6497, %v6508, %v6510
        %v6512 = vshll.u32 %v6472, 8
        %v6513 = vmul.u32.u64.compose %v6512, %v6511
        %v6514 = vextract.low.u32 %v6513
        %v6515 = vextract.high.u32 %v6513
        %v6516 = vmul.u32.u64.compose %v6512, %v6507
        %v6517 = vextract.low.u32 %v6516
        %v6518 = vextract.high.u32 %v6516
        %v6519 = vmul.u32 %v6512, %v6503
        %v6520 = vadd.s32 %v6515, %v6517
        %vm6521 = vc.u32 %v6515, %v6517
        %v6522 = vadd.s32 %v6518, 1
        %v6523 = vsel %vm6521, %v6522, %v6518
        %v6524 = vadd.s32 %v6519, %v6523
        %v6525 = vadd.s32 %v6524, 536870912
        %v6526 = vshrl.u32 %v6525, 30
        %v6527 = vshll.u32 %v6526, 30
        %v6528 = vsub.s32 %v6524, %v6527
        %vm6529 = vcmp.lt.s32.totalorder %v6528, 0
        %v6530 = vsub.s32 0, %v6528
        %v6531 = vsel %vm6529, %v6530, %v6528
        %v6532 = vclz %v6531
        %v6533 = vsub.s32 %v6532, 2
        %vm6534 = vcmp.gt.s32.totalorder 0, %v6533
        %v6535 = vsel %vm6534, 0, %v6533
        %v6536 = vsub.s32 32, %v6535
        %v6537 = vshll.u32 %v6528, %v6535
        %v6538 = vshrl.u32 %v6520, %v6536
        %v6539 = vor.u32 %v6537, %v6538
        %v6540 = vsub.s32 4294967266, %v6535
        %v6541 = vadd.s32 %v6540, 127
        %v6542 = vshll.u32 %v6541, 23
        %v6543 = vor.u32 4788187, %v6542
        %v6544 = vand.u32 2147483647, %v6543
        %v6546 = vcvt.s32.f32 %v6539
        %v6547 = vmul.f32 %v6546, %v6544
        %v6548 = vxor.u32 %v6547, 2147483648
        %v6549 = vsel %vm6466, %v6548, %v6547
        %v6550 = vsub.s32 4, %v6526
        %v6551 = vsel %vm6466, %v6550, %v6526
        %v6552 = vsel %vm6465, %v4166, %v6549
        %v6553 = vsel %vm6465, 0, %v6551
        %v6554 = vcosq.f32.pop %v6552
        %v6555 = vsinq.f32.pop %v6552
        %vm6556 = vweird.f32 %v4166
        %v6557 = vadd.s32 %v6553, 3
        %v6558 = vand.u32 %v6557, 3
        %vm6559 = vcmp.lt.s32.totalorder %v6558, 2
        %vm6560 = vcmp.eq.s32.totalorder %v6558, 0
        %v6561 = vxor.u32 %v6555, 2147483648
        %v6562 = vsel %vm6560, %v6554, %v6561
        %vm6563 = vcmp.eq.s32.totalorder %v6558, 2
        %v6564 = vxor.u32 %v6554, 2147483648
        %v6565 = vsel %vm6563, %v6564, %v6555
        %v6566 = vsel %vm6559, %v6562, %v6565
        %v6567 = vsel %vm6556, nan, %v6566
        %v6568 = vand.u32 2147483647, %v4167
        %vm6569 = vcmp.le.f32.partialorder %v6568, 0.7853982
        %vm6570 = vcmp.lt.s32.totalorder %v4167, 0
        %v6571 = vand.u32 %v4167, 2139095040
        %v6572 = vshrl.u32 %v6571, 23
        %v6573 = vsub.s32 %v6572, 127
        %v6574 = vand.u32 2147483647, %v4167
        %v6575 = vand.u32 %v6574, 8388607
        %v6576 = vor.u32 %v6575, 8388608
        %v6577 = vsub.s32 0, %v6576
        %v6578 = vadd.s32 %v6573, 1
        %vm6579 = vcmp.gt.s32.totalorder %v6578, 0
        %v6580 = vsel %vm6579, %v6578, 0
        %v6581 = vshrl.u32 %v6580, 5
        %v6582 = vand.u32 %v6580, 31
        %v6583 = vsub.s32 32, %v6582
        %v6584 = vshrl.u32 683565275, %v6583
        %v6585 = vshll.u32 683565275, %v6582
        %v6586 = vshrl.u32 2475754826, %v6583
        %v6587 = vor.u32 %v6585, %v6586
        %v6588 = vshll.u32 2475754826, %v6582
        %v6589 = vshrl.u32 2131351028, %v6583
        %v6590 = vor.u32 %v6588, %v6589
        %v6591 = vshll.u32 2131351028, %v6582
        %v6592 = vshrl.u32 2102212464, %v6583
        %v6593 = vor.u32 %v6591, %v6592
        %v6594 = vshll.u32 2102212464, %v6582
        %v6595 = vshrl.u32 920167782, %v6583
        %v6596 = vor.u32 %v6594, %v6595
        %v6597 = vshll.u32 920167782, %v6582
        %v6598 = vshrl.u32 1326507024, %v6583
        %v6599 = vor.u32 %v6597, %v6598
        %vm6600 = vcmp.lt.s32.totalorder %v6581, 1
        %vm6601 = vcmp.lt.s32.totalorder %v6581, 2
        %vm6602 = vcmp.lt.s32.totalorder %v6581, 3
        %vm6603 = vcmp.lt.s32.totalorder %v6581, 4
        %v6604 = vsel %vm6600, %v6584, %v6587
        %v6605 = vsel %vm6603, %v6593, 2102212464
        %v6606 = vsel %vm6602, %v6590, %v6605
        %v6607 = vsel %vm6601, %v6604, %v6606
        %v6608 = vsel %vm6600, %v6587, %v6590
        %v6609 = vsel %vm6603, %v6596, 920167782
        %v6610 = vsel %vm6602, %v6593, %v6609
        %v6611 = vsel %vm6601, %v6608, %v6610
        %v6612 = vsel %vm6600, %v6590, %v6593
        %v6613 = vsel %vm6603, %v6599, 1326507024
        %v6614 = vsel %vm6602, %v6596, %v6613
        %v6615 = vsel %vm6601, %v6612, %v6614
        %v6616 = vshll.u32 %v6576, 8
        %v6617 = vmul.u32.u64.compose %v6616, %v6615
        %v6618 = vextract.low.u32 %v6617
        %v6619 = vextract.high.u32 %v6617
        %v6620 = vmul.u32.u64.compose %v6616, %v6611
        %v6621 = vextract.low.u32 %v6620
        %v6622 = vextract.high.u32 %v6620
        %v6623 = vmul.u32 %v6616, %v6607
        %v6624 = vadd.s32 %v6619, %v6621
        %vm6625 = vc.u32 %v6619, %v6621
        %v6626 = vadd.s32 %v6622, 1
        %v6627 = vsel %vm6625, %v6626, %v6622
        %v6628 = vadd.s32 %v6623, %v6627
        %v6629 = vadd.s32 %v6628, 536870912
        %v6630 = vshrl.u32 %v6629, 30
        %v6631 = vshll.u32 %v6630, 30
        %v6632 = vsub.s32 %v6628, %v6631
        %vm6633 = vcmp.lt.s32.totalorder %v6632, 0
        %v6634 = vsub.s32 0, %v6632
        %v6635 = vsel %vm6633, %v6634, %v6632
        %v6636 = vclz %v6635
        %v6637 = vsub.s32 %v6636, 2
        %vm6638 = vcmp.gt.s32.totalorder 0, %v6637
        %v6639 = vsel %vm6638, 0, %v6637
        %v6640 = vsub.s32 32, %v6639
        %v6641 = vshll.u32 %v6632, %v6639
        %v6642 = vshrl.u32 %v6624, %v6640
        %v6643 = vor.u32 %v6641, %v6642
        %v6644 = vsub.s32 4294967266, %v6639
        %v6645 = vadd.s32 %v6644, 127
        %v6646 = vshll.u32 %v6645, 23
        %v6647 = vor.u32 4788187, %v6646
        %v6648 = vand.u32 2147483647, %v6647
        %v6650 = vcvt.s32.f32 %v6643
        %v6651 = vmul.f32 %v6650, %v6648
        %v6652 = vxor.u32 %v6651, 2147483648
        %v6653 = vsel %vm6570, %v6652, %v6651
        %v6654 = vsub.s32 4, %v6630
        %v6655 = vsel %vm6570, %v6654, %v6630
        %v6656 = vsel %vm6569, %v4167, %v6653
        %v6657 = vsel %vm6569, 0, %v6655
        %v6658 = vcosq.f32.pop %v6656
        %v6659 = vsinq.f32.pop %v6656
        %vm6660 = vweird.f32 %v4167
        %v6661 = vadd.s32 %v6657, 3
        %v6662 = vand.u32 %v6661, 3
        %vm6663 = vcmp.lt.s32.totalorder %v6662, 2
        %vm6664 = vcmp.eq.s32.totalorder %v6662, 0
        %v6665 = vxor.u32 %v6659, 2147483648
        %v6666 = vsel %vm6664, %v6658, %v6665
        %vm6667 = vcmp.eq.s32.totalorder %v6662, 2
        %v6668 = vxor.u32 %v6658, 2147483648
        %v6669 = vsel %vm6667, %v6668, %v6659
        %v6670 = vsel %vm6663, %v6666, %v6669
        %v6671 = vsel %vm6660, nan, %v6670
        %v6672 = vand.u32 2147483647, %v4168
        %vm6673 = vcmp.le.f32.partialorder %v6672, 0.7853982
        %vm6674 = vcmp.lt.s32.totalorder %v4168, 0
        %v6675 = vand.u32 %v4168, 2139095040
        %v6676 = vshrl.u32 %v6675, 23
        %v6677 = vsub.s32 %v6676, 127
        %v6678 = vand.u32 2147483647, %v4168
        %v6679 = vand.u32 %v6678, 8388607
        %v6680 = vor.u32 %v6679, 8388608
        %v6681 = vsub.s32 0, %v6680
        %v6682 = vadd.s32 %v6677, 1
        %vm6683 = vcmp.gt.s32.totalorder %v6682, 0
        %v6684 = vsel %vm6683, %v6682, 0
        %v6685 = vshrl.u32 %v6684, 5
        %v6686 = vand.u32 %v6684, 31
        %v6687 = vsub.s32 32, %v6686
        %v6688 = vshrl.u32 683565275, %v6687
        %v6689 = vshll.u32 683565275, %v6686
        %v6690 = vshrl.u32 2475754826, %v6687
        %v6691 = vor.u32 %v6689, %v6690
        %v6692 = vshll.u32 2475754826, %v6686
        %v6693 = vshrl.u32 2131351028, %v6687
        %v6694 = vor.u32 %v6692, %v6693
        %v6695 = vshll.u32 2131351028, %v6686
        %v6696 = vshrl.u32 2102212464, %v6687
        %v6697 = vor.u32 %v6695, %v6696
        %v6698 = vshll.u32 2102212464, %v6686
        %v6699 = vshrl.u32 920167782, %v6687
        %v6700 = vor.u32 %v6698, %v6699
        %v6701 = vshll.u32 920167782, %v6686
        %v6702 = vshrl.u32 1326507024, %v6687
        %v6703 = vor.u32 %v6701, %v6702
        %vm6704 = vcmp.lt.s32.totalorder %v6685, 1
        %vm6705 = vcmp.lt.s32.totalorder %v6685, 2
        %vm6706 = vcmp.lt.s32.totalorder %v6685, 3
        %vm6707 = vcmp.lt.s32.totalorder %v6685, 4
        %v6708 = vsel %vm6704, %v6688, %v6691
        %v6709 = vsel %vm6707, %v6697, 2102212464
        %v6710 = vsel %vm6706, %v6694, %v6709
        %v6711 = vsel %vm6705, %v6708, %v6710
        %v6712 = vsel %vm6704, %v6691, %v6694
        %v6713 = vsel %vm6707, %v6700, 920167782
        %v6714 = vsel %vm6706, %v6697, %v6713
        %v6715 = vsel %vm6705, %v6712, %v6714
        %v6716 = vsel %vm6704, %v6694, %v6697
        %v6717 = vsel %vm6707, %v6703, 1326507024
        %v6718 = vsel %vm6706, %v6700, %v6717
        %v6719 = vsel %vm6705, %v6716, %v6718
        %v6720 = vshll.u32 %v6680, 8
        %v6721 = vmul.u32.u64.compose %v6720, %v6719
        %v6722 = vextract.low.u32 %v6721
        %v6723 = vextract.high.u32 %v6721
        %v6724 = vmul.u32.u64.compose %v6720, %v6715
        %v6725 = vextract.low.u32 %v6724
        %v6726 = vextract.high.u32 %v6724
        %v6727 = vmul.u32 %v6720, %v6711
        %v6728 = vadd.s32 %v6723, %v6725
        %vm6729 = vc.u32 %v6723, %v6725
        %v6730 = vadd.s32 %v6726, 1
        %v6731 = vsel %vm6729, %v6730, %v6726
        %v6732 = vadd.s32 %v6727, %v6731
        %v6733 = vadd.s32 %v6732, 536870912
        %v6734 = vshrl.u32 %v6733, 30
        %v6735 = vshll.u32 %v6734, 30
        %v6736 = vsub.s32 %v6732, %v6735
        %vm6737 = vcmp.lt.s32.totalorder %v6736, 0
        %v6738 = vsub.s32 0, %v6736
        %v6739 = vsel %vm6737, %v6738, %v6736
        %v6740 = vclz %v6739
        %v6741 = vsub.s32 %v6740, 2
        %vm6742 = vcmp.gt.s32.totalorder 0, %v6741
        %v6743 = vsel %vm6742, 0, %v6741
        %v6744 = vsub.s32 32, %v6743
        %v6745 = vshll.u32 %v6736, %v6743
        %v6746 = vshrl.u32 %v6728, %v6744
        %v6747 = vor.u32 %v6745, %v6746
        %v6748 = vsub.s32 4294967266, %v6743
        %v6749 = vadd.s32 %v6748, 127
        %v6750 = vshll.u32 %v6749, 23
        %v6751 = vor.u32 4788187, %v6750
        %v6752 = vand.u32 2147483647, %v6751
        %v6754 = vcvt.s32.f32 %v6747
        %v6755 = vmul.f32 %v6754, %v6752
        %v6756 = vxor.u32 %v6755, 2147483648
        %v6757 = vsel %vm6674, %v6756, %v6755
        %v6758 = vsub.s32 4, %v6734
        %v6759 = vsel %vm6674, %v6758, %v6734
        %v6760 = vsel %vm6673, %v4168, %v6757
        %v6761 = vsel %vm6673, 0, %v6759
        %v6762 = vcosq.f32.pop %v6760
        %v6763 = vsinq.f32.pop %v6760
        %vm6764 = vweird.f32 %v4168
        %v6765 = vadd.s32 %v6761, 3
        %v6766 = vand.u32 %v6765, 3
        %vm6767 = vcmp.lt.s32.totalorder %v6766, 2
        %vm6768 = vcmp.eq.s32.totalorder %v6766, 0
        %v6769 = vxor.u32 %v6763, 2147483648
        %v6770 = vsel %vm6768, %v6762, %v6769
        %vm6771 = vcmp.eq.s32.totalorder %v6766, 2
        %v6772 = vxor.u32 %v6762, 2147483648
        %v6773 = vsel %vm6771, %v6772, %v6763
        %v6774 = vsel %vm6767, %v6770, %v6773
        %v6775 = vsel %vm6764, nan, %v6774
        %v6776 = vand.u32 2147483647, %v4169
        %vm6777 = vcmp.le.f32.partialorder %v6776, 0.7853982
        %vm6778 = vcmp.lt.s32.totalorder %v4169, 0
        %v6779 = vand.u32 %v4169, 2139095040
        %v6780 = vshrl.u32 %v6779, 23
        %v6781 = vsub.s32 %v6780, 127
        %v6782 = vand.u32 2147483647, %v4169
        %v6783 = vand.u32 %v6782, 8388607
        %v6784 = vor.u32 %v6783, 8388608
        %v6785 = vsub.s32 0, %v6784
        %v6786 = vadd.s32 %v6781, 1
        %vm6787 = vcmp.gt.s32.totalorder %v6786, 0
        %v6788 = vsel %vm6787, %v6786, 0
        %v6789 = vshrl.u32 %v6788, 5
        %v6790 = vand.u32 %v6788, 31
        %v6791 = vsub.s32 32, %v6790
        %v6792 = vshrl.u32 683565275, %v6791
        %v6793 = vshll.u32 683565275, %v6790
        %v6794 = vshrl.u32 2475754826, %v6791
        %v6795 = vor.u32 %v6793, %v6794
        %v6796 = vshll.u32 2475754826, %v6790
        %v6797 = vshrl.u32 2131351028, %v6791
        %v6798 = vor.u32 %v6796, %v6797
        %v6799 = vshll.u32 2131351028, %v6790
        %v6800 = vshrl.u32 2102212464, %v6791
        %v6801 = vor.u32 %v6799, %v6800
        %v6802 = vshll.u32 2102212464, %v6790
        %v6803 = vshrl.u32 920167782, %v6791
        %v6804 = vor.u32 %v6802, %v6803
        %v6805 = vshll.u32 920167782, %v6790
        %v6806 = vshrl.u32 1326507024, %v6791
        %v6807 = vor.u32 %v6805, %v6806
        %vm6808 = vcmp.lt.s32.totalorder %v6789, 1
        %vm6809 = vcmp.lt.s32.totalorder %v6789, 2
        %vm6810 = vcmp.lt.s32.totalorder %v6789, 3
        %vm6811 = vcmp.lt.s32.totalorder %v6789, 4
        %v6812 = vsel %vm6808, %v6792, %v6795
        %v6813 = vsel %vm6811, %v6801, 2102212464
        %v6814 = vsel %vm6810, %v6798, %v6813
        %v6815 = vsel %vm6809, %v6812, %v6814
        %v6816 = vsel %vm6808, %v6795, %v6798
        %v6817 = vsel %vm6811, %v6804, 920167782
        %v6818 = vsel %vm6810, %v6801, %v6817
        %v6819 = vsel %vm6809, %v6816, %v6818
        %v6820 = vsel %vm6808, %v6798, %v6801
        %v6821 = vsel %vm6811, %v6807, 1326507024
        %v6822 = vsel %vm6810, %v6804, %v6821
        %v6823 = vsel %vm6809, %v6820, %v6822
        %v6824 = vshll.u32 %v6784, 8
        %v6825 = vmul.u32.u64.compose %v6824, %v6823
        %v6826 = vextract.low.u32 %v6825
        %v6827 = vextract.high.u32 %v6825
        %v6828 = vmul.u32.u64.compose %v6824, %v6819
        %v6829 = vextract.low.u32 %v6828
        %v6830 = vextract.high.u32 %v6828
        %v6831 = vmul.u32 %v6824, %v6815
        %v6832 = vadd.s32 %v6827, %v6829
        %vm6833 = vc.u32 %v6827, %v6829
        %v6834 = vadd.s32 %v6830, 1
        %v6835 = vsel %vm6833, %v6834, %v6830
        %v6836 = vadd.s32 %v6831, %v6835
        %v6837 = vadd.s32 %v6836, 536870912
        %v6838 = vshrl.u32 %v6837, 30
        %v6839 = vshll.u32 %v6838, 30
        %v6840 = vsub.s32 %v6836, %v6839
        %vm6841 = vcmp.lt.s32.totalorder %v6840, 0
        %v6842 = vsub.s32 0, %v6840
        %v6843 = vsel %vm6841, %v6842, %v6840
        %v6844 = vclz %v6843
        %v6845 = vsub.s32 %v6844, 2
        %vm6846 = vcmp.gt.s32.totalorder 0, %v6845
        %v6847 = vsel %vm6846, 0, %v6845
        %v6848 = vsub.s32 32, %v6847
        %v6849 = vshll.u32 %v6840, %v6847
        %v6850 = vshrl.u32 %v6832, %v6848
        %v6851 = vor.u32 %v6849, %v6850
        %v6852 = vsub.s32 4294967266, %v6847
        %v6853 = vadd.s32 %v6852, 127
        %v6854 = vshll.u32 %v6853, 23
        %v6855 = vor.u32 4788187, %v6854
        %v6856 = vand.u32 2147483647, %v6855
        %v6858 = vcvt.s32.f32 %v6851
        %v6859 = vmul.f32 %v6858, %v6856
        %v6860 = vxor.u32 %v6859, 2147483648
        %v6861 = vsel %vm6778, %v6860, %v6859
        %v6862 = vsub.s32 4, %v6838
        %v6863 = vsel %vm6778, %v6862, %v6838
        %v6864 = vsel %vm6777, %v4169, %v6861
        %v6865 = vsel %vm6777, 0, %v6863
        %v6866 = vcosq.f32.pop %v6864
        %v6867 = vsinq.f32.pop %v6864
        %vm6868 = vweird.f32 %v4169
        %v6869 = vadd.s32 %v6865, 3
        %v6870 = vand.u32 %v6869, 3
        %vm6871 = vcmp.lt.s32.totalorder %v6870, 2
        %vm6872 = vcmp.eq.s32.totalorder %v6870, 0
        %v6873 = vxor.u32 %v6867, 2147483648
        %v6874 = vsel %vm6872, %v6866, %v6873
        %vm6875 = vcmp.eq.s32.totalorder %v6870, 2
        %v6876 = vxor.u32 %v6866, 2147483648
        %v6877 = vsel %vm6875, %v6876, %v6867
        %v6878 = vsel %vm6871, %v6874, %v6877
        %v6879 = vsel %vm6868, nan, %v6878
        %v6880 = vand.u32 2147483647, %v4170
        %vm6881 = vcmp.le.f32.partialorder %v6880, 0.7853982
        %vm6882 = vcmp.lt.s32.totalorder %v4170, 0
        %v6883 = vand.u32 %v4170, 2139095040
        %v6884 = vshrl.u32 %v6883, 23
        %v6885 = vsub.s32 %v6884, 127
        %v6886 = vand.u32 2147483647, %v4170
        %v6887 = vand.u32 %v6886, 8388607
        %v6888 = vor.u32 %v6887, 8388608
        %v6889 = vsub.s32 0, %v6888
        %v6890 = vadd.s32 %v6885, 1
        %vm6891 = vcmp.gt.s32.totalorder %v6890, 0
        %v6892 = vsel %vm6891, %v6890, 0
        %v6893 = vshrl.u32 %v6892, 5
        %v6894 = vand.u32 %v6892, 31
        %v6895 = vsub.s32 32, %v6894
        %v6896 = vshrl.u32 683565275, %v6895
        %v6897 = vshll.u32 683565275, %v6894
        %v6898 = vshrl.u32 2475754826, %v6895
        %v6899 = vor.u32 %v6897, %v6898
        %v6900 = vshll.u32 2475754826, %v6894
        %v6901 = vshrl.u32 2131351028, %v6895
        %v6902 = vor.u32 %v6900, %v6901
        %v6903 = vshll.u32 2131351028, %v6894
        %v6904 = vshrl.u32 2102212464, %v6895
        %v6905 = vor.u32 %v6903, %v6904
        %v6906 = vshll.u32 2102212464, %v6894
        %v6907 = vshrl.u32 920167782, %v6895
        %v6908 = vor.u32 %v6906, %v6907
        %v6909 = vshll.u32 920167782, %v6894
        %v6910 = vshrl.u32 1326507024, %v6895
        %v6911 = vor.u32 %v6909, %v6910
        %vm6912 = vcmp.lt.s32.totalorder %v6893, 1
        %vm6913 = vcmp.lt.s32.totalorder %v6893, 2
        %vm6914 = vcmp.lt.s32.totalorder %v6893, 3
        %vm6915 = vcmp.lt.s32.totalorder %v6893, 4
        %v6916 = vsel %vm6912, %v6896, %v6899
        %v6917 = vsel %vm6915, %v6905, 2102212464
        %v6918 = vsel %vm6914, %v6902, %v6917
        %v6919 = vsel %vm6913, %v6916, %v6918
        %v6920 = vsel %vm6912, %v6899, %v6902
        %v6921 = vsel %vm6915, %v6908, 920167782
        %v6922 = vsel %vm6914, %v6905, %v6921
        %v6923 = vsel %vm6913, %v6920, %v6922
        %v6924 = vsel %vm6912, %v6902, %v6905
        %v6925 = vsel %vm6915, %v6911, 1326507024
        %v6926 = vsel %vm6914, %v6908, %v6925
        %v6927 = vsel %vm6913, %v6924, %v6926
        %v6928 = vshll.u32 %v6888, 8
        %v6929 = vmul.u32.u64.compose %v6928, %v6927
        %v6930 = vextract.low.u32 %v6929
        %v6931 = vextract.high.u32 %v6929
        %v6932 = vmul.u32.u64.compose %v6928, %v6923
        %v6933 = vextract.low.u32 %v6932
        %v6934 = vextract.high.u32 %v6932
        %v6935 = vmul.u32 %v6928, %v6919
        %v6936 = vadd.s32 %v6931, %v6933
        %vm6937 = vc.u32 %v6931, %v6933
        %v6938 = vadd.s32 %v6934, 1
        %v6939 = vsel %vm6937, %v6938, %v6934
        %v6940 = vadd.s32 %v6935, %v6939
        %v6941 = vadd.s32 %v6940, 536870912
        %v6942 = vshrl.u32 %v6941, 30
        %v6943 = vshll.u32 %v6942, 30
        %v6944 = vsub.s32 %v6940, %v6943
        %vm6945 = vcmp.lt.s32.totalorder %v6944, 0
        %v6946 = vsub.s32 0, %v6944
        %v6947 = vsel %vm6945, %v6946, %v6944
        %v6948 = vclz %v6947
        %v6949 = vsub.s32 %v6948, 2
        %vm6950 = vcmp.gt.s32.totalorder 0, %v6949
        %v6951 = vsel %vm6950, 0, %v6949
        %v6952 = vsub.s32 32, %v6951
        %v6953 = vshll.u32 %v6944, %v6951
        %v6954 = vshrl.u32 %v6936, %v6952
        %v6955 = vor.u32 %v6953, %v6954
        %v6956 = vsub.s32 4294967266, %v6951
        %v6957 = vadd.s32 %v6956, 127
        %v6958 = vshll.u32 %v6957, 23
        %v6959 = vor.u32 4788187, %v6958
        %v6960 = vand.u32 2147483647, %v6959
        %v6962 = vcvt.s32.f32 %v6955
        %v6963 = vmul.f32 %v6962, %v6960
        %v6964 = vxor.u32 %v6963, 2147483648
        %v6965 = vsel %vm6882, %v6964, %v6963
        %v6966 = vsub.s32 4, %v6942
        %v6967 = vsel %vm6882, %v6966, %v6942
        %v6968 = vsel %vm6881, %v4170, %v6965
        %v6969 = vsel %vm6881, 0, %v6967
        %v6970 = vcosq.f32.pop %v6968
        %v6971 = vsinq.f32.pop %v6968
        %vm6972 = vweird.f32 %v4170
        %v6973 = vadd.s32 %v6969, 3
        %v6974 = vand.u32 %v6973, 3
        %vm6975 = vcmp.lt.s32.totalorder %v6974, 2
        %vm6976 = vcmp.eq.s32.totalorder %v6974, 0
        %v6977 = vxor.u32 %v6971, 2147483648
        %v6978 = vsel %vm6976, %v6970, %v6977
        %vm6979 = vcmp.eq.s32.totalorder %v6974, 2
        %v6980 = vxor.u32 %v6970, 2147483648
        %v6981 = vsel %vm6979, %v6980, %v6971
        %v6982 = vsel %vm6975, %v6978, %v6981
        %v6983 = vsel %vm6972, nan, %v6982
        %v6984 = vand.u32 2147483647, %v4171
        %vm6985 = vcmp.le.f32.partialorder %v6984, 0.7853982
        %vm6986 = vcmp.lt.s32.totalorder %v4171, 0
        %v6987 = vand.u32 %v4171, 2139095040
        %v6988 = vshrl.u32 %v6987, 23
        %v6989 = vsub.s32 %v6988, 127
        %v6990 = vand.u32 2147483647, %v4171
        %v6991 = vand.u32 %v6990, 8388607
        %v6992 = vor.u32 %v6991, 8388608
        %v6993 = vsub.s32 0, %v6992
        %v6994 = vadd.s32 %v6989, 1
        %vm6995 = vcmp.gt.s32.totalorder %v6994, 0
        %v6996 = vsel %vm6995, %v6994, 0
        %v6997 = vshrl.u32 %v6996, 5
        %v6998 = vand.u32 %v6996, 31
        %v6999 = vsub.s32 32, %v6998
        %v7000 = vshrl.u32 683565275, %v6999
        %v7001 = vshll.u32 683565275, %v6998
        %v7002 = vshrl.u32 2475754826, %v6999
        %v7003 = vor.u32 %v7001, %v7002
        %v7004 = vshll.u32 2475754826, %v6998
        %v7005 = vshrl.u32 2131351028, %v6999
        %v7006 = vor.u32 %v7004, %v7005
        %v7007 = vshll.u32 2131351028, %v6998
        %v7008 = vshrl.u32 2102212464, %v6999
        %v7009 = vor.u32 %v7007, %v7008
        %v7010 = vshll.u32 2102212464, %v6998
        %v7011 = vshrl.u32 920167782, %v6999
        %v7012 = vor.u32 %v7010, %v7011
        %v7013 = vshll.u32 920167782, %v6998
        %v7014 = vshrl.u32 1326507024, %v6999
        %v7015 = vor.u32 %v7013, %v7014
        %vm7016 = vcmp.lt.s32.totalorder %v6997, 1
        %vm7017 = vcmp.lt.s32.totalorder %v6997, 2
        %vm7018 = vcmp.lt.s32.totalorder %v6997, 3
        %vm7019 = vcmp.lt.s32.totalorder %v6997, 4
        %v7020 = vsel %vm7016, %v7000, %v7003
        %v7021 = vsel %vm7019, %v7009, 2102212464
        %v7022 = vsel %vm7018, %v7006, %v7021
        %v7023 = vsel %vm7017, %v7020, %v7022
        %v7024 = vsel %vm7016, %v7003, %v7006
        %v7025 = vsel %vm7019, %v7012, 920167782
        %v7026 = vsel %vm7018, %v7009, %v7025
        %v7027 = vsel %vm7017, %v7024, %v7026
        %v7028 = vsel %vm7016, %v7006, %v7009
        %v7029 = vsel %vm7019, %v7015, 1326507024
        %v7030 = vsel %vm7018, %v7012, %v7029
        %v7031 = vsel %vm7017, %v7028, %v7030
        %v7032 = vshll.u32 %v6992, 8
        %v7033 = vmul.u32.u64.compose %v7032, %v7031
        %v7034 = vextract.low.u32 %v7033
        %v7035 = vextract.high.u32 %v7033
        %v7036 = vmul.u32.u64.compose %v7032, %v7027
        %v7037 = vextract.low.u32 %v7036
        %v7038 = vextract.high.u32 %v7036
        %v7039 = vmul.u32 %v7032, %v7023
        %v7040 = vadd.s32 %v7035, %v7037
        %vm7041 = vc.u32 %v7035, %v7037
        %v7042 = vadd.s32 %v7038, 1
        %v7043 = vsel %vm7041, %v7042, %v7038
        %v7044 = vadd.s32 %v7039, %v7043
        %v7045 = vadd.s32 %v7044, 536870912
        %v7046 = vshrl.u32 %v7045, 30
        %v7047 = vshll.u32 %v7046, 30
        %v7048 = vsub.s32 %v7044, %v7047
        %vm7049 = vcmp.lt.s32.totalorder %v7048, 0
        %v7050 = vsub.s32 0, %v7048
        %v7051 = vsel %vm7049, %v7050, %v7048
        %v7052 = vclz %v7051
        %v7053 = vsub.s32 %v7052, 2
        %vm7054 = vcmp.gt.s32.totalorder 0, %v7053
        %v7055 = vsel %vm7054, 0, %v7053
        %v7056 = vsub.s32 32, %v7055
        %v7057 = vshll.u32 %v7048, %v7055
        %v7058 = vshrl.u32 %v7040, %v7056
        %v7059 = vor.u32 %v7057, %v7058
        %v7060 = vsub.s32 4294967266, %v7055
        %v7061 = vadd.s32 %v7060, 127
        %v7062 = vshll.u32 %v7061, 23
        %v7063 = vor.u32 4788187, %v7062
        %v7064 = vand.u32 2147483647, %v7063
        %v7066 = vcvt.s32.f32 %v7059
        %v7067 = vmul.f32 %v7066, %v7064
        %v7068 = vxor.u32 %v7067, 2147483648
        %v7069 = vsel %vm6986, %v7068, %v7067
        %v7070 = vsub.s32 4, %v7046
        %v7071 = vsel %vm6986, %v7070, %v7046
        %v7072 = vsel %vm6985, %v4171, %v7069
        %v7073 = vsel %vm6985, 0, %v7071
        %v7074 = vcosq.f32.pop %v7072
        %v7075 = vsinq.f32.pop %v7072
        %vm7076 = vweird.f32 %v4171
        %v7077 = vadd.s32 %v7073, 3
        %v7078 = vand.u32 %v7077, 3
        %vm7079 = vcmp.lt.s32.totalorder %v7078, 2
        %vm7080 = vcmp.eq.s32.totalorder %v7078, 0
        %v7081 = vxor.u32 %v7075, 2147483648
        %v7082 = vsel %vm7080, %v7074, %v7081
        %vm7083 = vcmp.eq.s32.totalorder %v7078, 2
        %v7084 = vxor.u32 %v7074, 2147483648
        %v7085 = vsel %vm7083, %v7084, %v7075
        %v7086 = vsel %vm7079, %v7082, %v7085
        %v7087 = vsel %vm7076, nan, %v7086
        %v7088 = vand.u32 2147483647, %v4172
        %vm7089 = vcmp.le.f32.partialorder %v7088, 0.7853982
        %vm7090 = vcmp.lt.s32.totalorder %v4172, 0
        %v7091 = vand.u32 %v4172, 2139095040
        %v7092 = vshrl.u32 %v7091, 23
        %v7093 = vsub.s32 %v7092, 127
        %v7094 = vand.u32 2147483647, %v4172
        %v7095 = vand.u32 %v7094, 8388607
        %v7096 = vor.u32 %v7095, 8388608
        %v7097 = vsub.s32 0, %v7096
        %v7098 = vadd.s32 %v7093, 1
        %vm7099 = vcmp.gt.s32.totalorder %v7098, 0
        %v7100 = vsel %vm7099, %v7098, 0
        %v7101 = vshrl.u32 %v7100, 5
        %v7102 = vand.u32 %v7100, 31
        %v7103 = vsub.s32 32, %v7102
        %v7104 = vshrl.u32 683565275, %v7103
        %v7105 = vshll.u32 683565275, %v7102
        %v7106 = vshrl.u32 2475754826, %v7103
        %v7107 = vor.u32 %v7105, %v7106
        %v7108 = vshll.u32 2475754826, %v7102
        %v7109 = vshrl.u32 2131351028, %v7103
        %v7110 = vor.u32 %v7108, %v7109
        %v7111 = vshll.u32 2131351028, %v7102
        %v7112 = vshrl.u32 2102212464, %v7103
        %v7113 = vor.u32 %v7111, %v7112
        %v7114 = vshll.u32 2102212464, %v7102
        %v7115 = vshrl.u32 920167782, %v7103
        %v7116 = vor.u32 %v7114, %v7115
        %v7117 = vshll.u32 920167782, %v7102
        %v7118 = vshrl.u32 1326507024, %v7103
        %v7119 = vor.u32 %v7117, %v7118
        %vm7120 = vcmp.lt.s32.totalorder %v7101, 1
        %vm7121 = vcmp.lt.s32.totalorder %v7101, 2
        %vm7122 = vcmp.lt.s32.totalorder %v7101, 3
        %vm7123 = vcmp.lt.s32.totalorder %v7101, 4
        %v7124 = vsel %vm7120, %v7104, %v7107
        %v7125 = vsel %vm7123, %v7113, 2102212464
        %v7126 = vsel %vm7122, %v7110, %v7125
        %v7127 = vsel %vm7121, %v7124, %v7126
        %v7128 = vsel %vm7120, %v7107, %v7110
        %v7129 = vsel %vm7123, %v7116, 920167782
        %v7130 = vsel %vm7122, %v7113, %v7129
        %v7131 = vsel %vm7121, %v7128, %v7130
        %v7132 = vsel %vm7120, %v7110, %v7113
        %v7133 = vsel %vm7123, %v7119, 1326507024
        %v7134 = vsel %vm7122, %v7116, %v7133
        %v7135 = vsel %vm7121, %v7132, %v7134
        %v7136 = vshll.u32 %v7096, 8
        %v7137 = vmul.u32.u64.compose %v7136, %v7135
        %v7138 = vextract.low.u32 %v7137
        %v7139 = vextract.high.u32 %v7137
        %v7140 = vmul.u32.u64.compose %v7136, %v7131
        %v7141 = vextract.low.u32 %v7140
        %v7142 = vextract.high.u32 %v7140
        %v7143 = vmul.u32 %v7136, %v7127
        %v7144 = vadd.s32 %v7139, %v7141
        %vm7145 = vc.u32 %v7139, %v7141
        %v7146 = vadd.s32 %v7142, 1
        %v7147 = vsel %vm7145, %v7146, %v7142
        %v7148 = vadd.s32 %v7143, %v7147
        %v7149 = vadd.s32 %v7148, 536870912
        %v7150 = vshrl.u32 %v7149, 30
        %v7151 = vshll.u32 %v7150, 30
        %v7152 = vsub.s32 %v7148, %v7151
        %vm7153 = vcmp.lt.s32.totalorder %v7152, 0
        %v7154 = vsub.s32 0, %v7152
        %v7155 = vsel %vm7153, %v7154, %v7152
        %v7156 = vclz %v7155
        %v7157 = vsub.s32 %v7156, 2
        %vm7158 = vcmp.gt.s32.totalorder 0, %v7157
        %v7159 = vsel %vm7158, 0, %v7157
        %v7160 = vsub.s32 32, %v7159
        %v7161 = vshll.u32 %v7152, %v7159
        %v7162 = vshrl.u32 %v7144, %v7160
        %v7163 = vor.u32 %v7161, %v7162
        %v7164 = vsub.s32 4294967266, %v7159
        %v7165 = vadd.s32 %v7164, 127
        %v7166 = vshll.u32 %v7165, 23
        %v7167 = vor.u32 4788187, %v7166
        %v7168 = vand.u32 2147483647, %v7167
        %v7170 = vcvt.s32.f32 %v7163
        %v7171 = vmul.f32 %v7170, %v7168
        %v7172 = vxor.u32 %v7171, 2147483648
        %v7173 = vsel %vm7090, %v7172, %v7171
        %v7174 = vsub.s32 4, %v7150
        %v7175 = vsel %vm7090, %v7174, %v7150
        %v7176 = vsel %vm7089, %v4172, %v7173
        %v7177 = vsel %vm7089, 0, %v7175
        %v7178 = vcosq.f32.pop %v7176
        %v7179 = vsinq.f32.pop %v7176
        %vm7180 = vweird.f32 %v4172
        %v7181 = vadd.s32 %v7177, 3
        %v7182 = vand.u32 %v7181, 3
        %vm7183 = vcmp.lt.s32.totalorder %v7182, 2
        %vm7184 = vcmp.eq.s32.totalorder %v7182, 0
        %v7185 = vxor.u32 %v7179, 2147483648
        %v7186 = vsel %vm7184, %v7178, %v7185
        %vm7187 = vcmp.eq.s32.totalorder %v7182, 2
        %v7188 = vxor.u32 %v7178, 2147483648
        %v7189 = vsel %vm7187, %v7188, %v7179
        %v7190 = vsel %vm7183, %v7186, %v7189
        %v7191 = vsel %vm7180, nan, %v7190
        %v7192 = vand.u32 2147483647, %v4173
        %vm7193 = vcmp.le.f32.partialorder %v7192, 0.7853982
        %vm7194 = vcmp.lt.s32.totalorder %v4173, 0
        %v7195 = vand.u32 %v4173, 2139095040
        %v7196 = vshrl.u32 %v7195, 23
        %v7197 = vsub.s32 %v7196, 127
        %v7198 = vand.u32 2147483647, %v4173
        %v7199 = vand.u32 %v7198, 8388607
        %v7200 = vor.u32 %v7199, 8388608
        %v7201 = vsub.s32 0, %v7200
        %v7202 = vadd.s32 %v7197, 1
        %vm7203 = vcmp.gt.s32.totalorder %v7202, 0
        %v7204 = vsel %vm7203, %v7202, 0
        %v7205 = vshrl.u32 %v7204, 5
        %v7206 = vand.u32 %v7204, 31
        %v7207 = vsub.s32 32, %v7206
        %v7208 = vshrl.u32 683565275, %v7207
        %v7209 = vshll.u32 683565275, %v7206
        %v7210 = vshrl.u32 2475754826, %v7207
        %v7211 = vor.u32 %v7209, %v7210
        %v7212 = vshll.u32 2475754826, %v7206
        %v7213 = vshrl.u32 2131351028, %v7207
        %v7214 = vor.u32 %v7212, %v7213
        %v7215 = vshll.u32 2131351028, %v7206
        %v7216 = vshrl.u32 2102212464, %v7207
        %v7217 = vor.u32 %v7215, %v7216
        %v7218 = vshll.u32 2102212464, %v7206
        %v7219 = vshrl.u32 920167782, %v7207
        %v7220 = vor.u32 %v7218, %v7219
        %v7221 = vshll.u32 920167782, %v7206
        %v7222 = vshrl.u32 1326507024, %v7207
        %v7223 = vor.u32 %v7221, %v7222
        %vm7224 = vcmp.lt.s32.totalorder %v7205, 1
        %vm7225 = vcmp.lt.s32.totalorder %v7205, 2
        %vm7226 = vcmp.lt.s32.totalorder %v7205, 3
        %vm7227 = vcmp.lt.s32.totalorder %v7205, 4
        %v7228 = vsel %vm7224, %v7208, %v7211
        %v7229 = vsel %vm7227, %v7217, 2102212464
        %v7230 = vsel %vm7226, %v7214, %v7229
        %v7231 = vsel %vm7225, %v7228, %v7230
        %v7232 = vsel %vm7224, %v7211, %v7214
        %v7233 = vsel %vm7227, %v7220, 920167782
        %v7234 = vsel %vm7226, %v7217, %v7233
        %v7235 = vsel %vm7225, %v7232, %v7234
        %v7236 = vsel %vm7224, %v7214, %v7217
        %v7237 = vsel %vm7227, %v7223, 1326507024
        %v7238 = vsel %vm7226, %v7220, %v7237
        %v7239 = vsel %vm7225, %v7236, %v7238
        %v7240 = vshll.u32 %v7200, 8
        %v7241 = vmul.u32.u64.compose %v7240, %v7239
        %v7242 = vextract.low.u32 %v7241
        %v7243 = vextract.high.u32 %v7241
        %v7244 = vmul.u32.u64.compose %v7240, %v7235
        %v7245 = vextract.low.u32 %v7244
        %v7246 = vextract.high.u32 %v7244
        %v7247 = vmul.u32 %v7240, %v7231
        %v7248 = vadd.s32 %v7243, %v7245
        %vm7249 = vc.u32 %v7243, %v7245
        %v7250 = vadd.s32 %v7246, 1
        %v7251 = vsel %vm7249, %v7250, %v7246
        %v7252 = vadd.s32 %v7247, %v7251
        %v7253 = vadd.s32 %v7252, 536870912
        %v7254 = vshrl.u32 %v7253, 30
        %v7255 = vshll.u32 %v7254, 30
        %v7256 = vsub.s32 %v7252, %v7255
        %vm7257 = vcmp.lt.s32.totalorder %v7256, 0
        %v7258 = vsub.s32 0, %v7256
        %v7259 = vsel %vm7257, %v7258, %v7256
        %v7260 = vclz %v7259
        %v7261 = vsub.s32 %v7260, 2
        %vm7262 = vcmp.gt.s32.totalorder 0, %v7261
        %v7263 = vsel %vm7262, 0, %v7261
        %v7264 = vsub.s32 32, %v7263
        %v7265 = vshll.u32 %v7256, %v7263
        %v7266 = vshrl.u32 %v7248, %v7264
        %v7267 = vor.u32 %v7265, %v7266
        %v7268 = vsub.s32 4294967266, %v7263
        %v7269 = vadd.s32 %v7268, 127
        %v7270 = vshll.u32 %v7269, 23
        %v7271 = vor.u32 4788187, %v7270
        %v7272 = vand.u32 2147483647, %v7271
        %v7274 = vcvt.s32.f32 %v7267
        %v7275 = vmul.f32 %v7274, %v7272
        %v7276 = vxor.u32 %v7275, 2147483648
        %v7277 = vsel %vm7194, %v7276, %v7275
        %v7278 = vsub.s32 4, %v7254
        %v7279 = vsel %vm7194, %v7278, %v7254
        %v7280 = vsel %vm7193, %v4173, %v7277
        %v7281 = vsel %vm7193, 0, %v7279
        %v7282 = vcosq.f32.pop %v7280
        %v7283 = vsinq.f32.pop %v7280
        %vm7284 = vweird.f32 %v4173
        %v7285 = vadd.s32 %v7281, 3
        %v7286 = vand.u32 %v7285, 3
        %vm7287 = vcmp.lt.s32.totalorder %v7286, 2
        %vm7288 = vcmp.eq.s32.totalorder %v7286, 0
        %v7289 = vxor.u32 %v7283, 2147483648
        %v7290 = vsel %vm7288, %v7282, %v7289
        %vm7291 = vcmp.eq.s32.totalorder %v7286, 2
        %v7292 = vxor.u32 %v7282, 2147483648
        %v7293 = vsel %vm7291, %v7292, %v7283
        %v7294 = vsel %vm7287, %v7290, %v7293
        %v7295 = vsel %vm7284, nan, %v7294
        %v7296 = vand.u32 2147483647, %v4174
        %vm7297 = vcmp.le.f32.partialorder %v7296, 0.7853982
        %vm7298 = vcmp.lt.s32.totalorder %v4174, 0
        %v7299 = vand.u32 %v4174, 2139095040
        %v7300 = vshrl.u32 %v7299, 23
        %v7301 = vsub.s32 %v7300, 127
        %v7302 = vand.u32 2147483647, %v4174
        %v7303 = vand.u32 %v7302, 8388607
        %v7304 = vor.u32 %v7303, 8388608
        %v7305 = vsub.s32 0, %v7304
        %v7306 = vadd.s32 %v7301, 1
        %vm7307 = vcmp.gt.s32.totalorder %v7306, 0
        %v7308 = vsel %vm7307, %v7306, 0
        %v7309 = vshrl.u32 %v7308, 5
        %v7310 = vand.u32 %v7308, 31
        %v7311 = vsub.s32 32, %v7310
        %v7312 = vshrl.u32 683565275, %v7311
        %v7313 = vshll.u32 683565275, %v7310
        %v7314 = vshrl.u32 2475754826, %v7311
        %v7315 = vor.u32 %v7313, %v7314
        %v7316 = vshll.u32 2475754826, %v7310
        %v7317 = vshrl.u32 2131351028, %v7311
        %v7318 = vor.u32 %v7316, %v7317
        %v7319 = vshll.u32 2131351028, %v7310
        %v7320 = vshrl.u32 2102212464, %v7311
        %v7321 = vor.u32 %v7319, %v7320
        %v7322 = vshll.u32 2102212464, %v7310
        %v7323 = vshrl.u32 920167782, %v7311
        %v7324 = vor.u32 %v7322, %v7323
        %v7325 = vshll.u32 920167782, %v7310
        %v7326 = vshrl.u32 1326507024, %v7311
        %v7327 = vor.u32 %v7325, %v7326
        %vm7328 = vcmp.lt.s32.totalorder %v7309, 1
        %vm7329 = vcmp.lt.s32.totalorder %v7309, 2
        %vm7330 = vcmp.lt.s32.totalorder %v7309, 3
        %vm7331 = vcmp.lt.s32.totalorder %v7309, 4
        %v7332 = vsel %vm7328, %v7312, %v7315
        %v7333 = vsel %vm7331, %v7321, 2102212464
        %v7334 = vsel %vm7330, %v7318, %v7333
        %v7335 = vsel %vm7329, %v7332, %v7334
        %v7336 = vsel %vm7328, %v7315, %v7318
        %v7337 = vsel %vm7331, %v7324, 920167782
        %v7338 = vsel %vm7330, %v7321, %v7337
        %v7339 = vsel %vm7329, %v7336, %v7338
        %v7340 = vsel %vm7328, %v7318, %v7321
        %v7341 = vsel %vm7331, %v7327, 1326507024
        %v7342 = vsel %vm7330, %v7324, %v7341
        %v7343 = vsel %vm7329, %v7340, %v7342
        %v7344 = vshll.u32 %v7304, 8
        %v7345 = vmul.u32.u64.compose %v7344, %v7343
        %v7346 = vextract.low.u32 %v7345
        %v7347 = vextract.high.u32 %v7345
        %v7348 = vmul.u32.u64.compose %v7344, %v7339
        %v7349 = vextract.low.u32 %v7348
        %v7350 = vextract.high.u32 %v7348
        %v7351 = vmul.u32 %v7344, %v7335
        %v7352 = vadd.s32 %v7347, %v7349
        %vm7353 = vc.u32 %v7347, %v7349
        %v7354 = vadd.s32 %v7350, 1
        %v7355 = vsel %vm7353, %v7354, %v7350
        %v7356 = vadd.s32 %v7351, %v7355
        %v7357 = vadd.s32 %v7356, 536870912
        %v7358 = vshrl.u32 %v7357, 30
        %v7359 = vshll.u32 %v7358, 30
        %v7360 = vsub.s32 %v7356, %v7359
        %vm7361 = vcmp.lt.s32.totalorder %v7360, 0
        %v7362 = vsub.s32 0, %v7360
        %v7363 = vsel %vm7361, %v7362, %v7360
        %v7364 = vclz %v7363
        %v7365 = vsub.s32 %v7364, 2
        %vm7366 = vcmp.gt.s32.totalorder 0, %v7365
        %v7367 = vsel %vm7366, 0, %v7365
        %v7368 = vsub.s32 32, %v7367
        %v7369 = vshll.u32 %v7360, %v7367
        %v7370 = vshrl.u32 %v7352, %v7368
        %v7371 = vor.u32 %v7369, %v7370
        %v7372 = vsub.s32 4294967266, %v7367
        %v7373 = vadd.s32 %v7372, 127
        %v7374 = vshll.u32 %v7373, 23
        %v7375 = vor.u32 4788187, %v7374
        %v7376 = vand.u32 2147483647, %v7375
        %v7378 = vcvt.s32.f32 %v7371
        %v7379 = vmul.f32 %v7378, %v7376
        %v7380 = vxor.u32 %v7379, 2147483648
        %v7381 = vsel %vm7298, %v7380, %v7379
        %v7382 = vsub.s32 4, %v7358
        %v7383 = vsel %vm7298, %v7382, %v7358
        %v7384 = vsel %vm7297, %v4174, %v7381
        %v7385 = vsel %vm7297, 0, %v7383
        %v7386 = vcosq.f32.pop %v7384
        %v7387 = vsinq.f32.pop %v7384
        %vm7388 = vweird.f32 %v4174
        %v7389 = vadd.s32 %v7385, 3
        %v7390 = vand.u32 %v7389, 3
        %vm7391 = vcmp.lt.s32.totalorder %v7390, 2
        %vm7392 = vcmp.eq.s32.totalorder %v7390, 0
        %v7393 = vxor.u32 %v7387, 2147483648
        %v7394 = vsel %vm7392, %v7386, %v7393
        %vm7395 = vcmp.eq.s32.totalorder %v7390, 2
        %v7396 = vxor.u32 %v7386, 2147483648
        %v7397 = vsel %vm7395, %v7396, %v7387
        %v7398 = vsel %vm7391, %v7394, %v7397
        %v7399 = vsel %vm7388, nan, %v7398
        %v7400 = vand.u32 2147483647, %v4175
        %vm7401 = vcmp.le.f32.partialorder %v7400, 0.7853982
        %vm7402 = vcmp.lt.s32.totalorder %v4175, 0
        %v7403 = vand.u32 %v4175, 2139095040
        %v7404 = vshrl.u32 %v7403, 23
        %v7405 = vsub.s32 %v7404, 127
        %v7406 = vand.u32 2147483647, %v4175
        %v7407 = vand.u32 %v7406, 8388607
        %v7408 = vor.u32 %v7407, 8388608
        %v7409 = vsub.s32 0, %v7408
        %v7410 = vadd.s32 %v7405, 1
        %vm7411 = vcmp.gt.s32.totalorder %v7410, 0
        %v7412 = vsel %vm7411, %v7410, 0
        %v7413 = vshrl.u32 %v7412, 5
        %v7414 = vand.u32 %v7412, 31
        %v7415 = vsub.s32 32, %v7414
        %v7416 = vshrl.u32 683565275, %v7415
        %v7417 = vshll.u32 683565275, %v7414
        %v7418 = vshrl.u32 2475754826, %v7415
        %v7419 = vor.u32 %v7417, %v7418
        %v7420 = vshll.u32 2475754826, %v7414
        %v7421 = vshrl.u32 2131351028, %v7415
        %v7422 = vor.u32 %v7420, %v7421
        %v7423 = vshll.u32 2131351028, %v7414
        %v7424 = vshrl.u32 2102212464, %v7415
        %v7425 = vor.u32 %v7423, %v7424
        %v7426 = vshll.u32 2102212464, %v7414
        %v7427 = vshrl.u32 920167782, %v7415
        %v7428 = vor.u32 %v7426, %v7427
        %v7429 = vshll.u32 920167782, %v7414
        %v7430 = vshrl.u32 1326507024, %v7415
        %v7431 = vor.u32 %v7429, %v7430
        %vm7432 = vcmp.lt.s32.totalorder %v7413, 1
        %vm7433 = vcmp.lt.s32.totalorder %v7413, 2
        %vm7434 = vcmp.lt.s32.totalorder %v7413, 3
        %vm7435 = vcmp.lt.s32.totalorder %v7413, 4
        %v7436 = vsel %vm7432, %v7416, %v7419
        %v7437 = vsel %vm7435, %v7425, 2102212464
        %v7438 = vsel %vm7434, %v7422, %v7437
        %v7439 = vsel %vm7433, %v7436, %v7438
        %v7440 = vsel %vm7432, %v7419, %v7422
        %v7441 = vsel %vm7435, %v7428, 920167782
        %v7442 = vsel %vm7434, %v7425, %v7441
        %v7443 = vsel %vm7433, %v7440, %v7442
        %v7444 = vsel %vm7432, %v7422, %v7425
        %v7445 = vsel %vm7435, %v7431, 1326507024
        %v7446 = vsel %vm7434, %v7428, %v7445
        %v7447 = vsel %vm7433, %v7444, %v7446
        %v7448 = vshll.u32 %v7408, 8
        %v7449 = vmul.u32.u64.compose %v7448, %v7447
        %v7450 = vextract.low.u32 %v7449
        %v7451 = vextract.high.u32 %v7449
        %v7452 = vmul.u32.u64.compose %v7448, %v7443
        %v7453 = vextract.low.u32 %v7452
        %v7454 = vextract.high.u32 %v7452
        %v7455 = vmul.u32 %v7448, %v7439
        %v7456 = vadd.s32 %v7451, %v7453
        %vm7457 = vc.u32 %v7451, %v7453
        %v7458 = vadd.s32 %v7454, 1
        %v7459 = vsel %vm7457, %v7458, %v7454
        %v7460 = vadd.s32 %v7455, %v7459
        %v7461 = vadd.s32 %v7460, 536870912
        %v7462 = vshrl.u32 %v7461, 30
        %v7463 = vshll.u32 %v7462, 30
        %v7464 = vsub.s32 %v7460, %v7463
        %vm7465 = vcmp.lt.s32.totalorder %v7464, 0
        %v7466 = vsub.s32 0, %v7464
        %v7467 = vsel %vm7465, %v7466, %v7464
        %v7468 = vclz %v7467
        %v7469 = vsub.s32 %v7468, 2
        %vm7470 = vcmp.gt.s32.totalorder 0, %v7469
        %v7471 = vsel %vm7470, 0, %v7469
        %v7472 = vsub.s32 32, %v7471
        %v7473 = vshll.u32 %v7464, %v7471
        %v7474 = vshrl.u32 %v7456, %v7472
        %v7475 = vor.u32 %v7473, %v7474
        %v7476 = vsub.s32 4294967266, %v7471
        %v7477 = vadd.s32 %v7476, 127
        %v7478 = vshll.u32 %v7477, 23
        %v7479 = vor.u32 4788187, %v7478
        %v7480 = vand.u32 2147483647, %v7479
        %v7482 = vcvt.s32.f32 %v7475
        %v7483 = vmul.f32 %v7482, %v7480
        %v7484 = vxor.u32 %v7483, 2147483648
        %v7485 = vsel %vm7402, %v7484, %v7483
        %v7486 = vsub.s32 4, %v7462
        %v7487 = vsel %vm7402, %v7486, %v7462
        %v7488 = vsel %vm7401, %v4175, %v7485
        %v7489 = vsel %vm7401, 0, %v7487
        %v7490 = vcosq.f32.pop %v7488
        %v7491 = vsinq.f32.pop %v7488
        %vm7492 = vweird.f32 %v4175
        %v7493 = vadd.s32 %v7489, 3
        %v7494 = vand.u32 %v7493, 3
        %vm7495 = vcmp.lt.s32.totalorder %v7494, 2
        %vm7496 = vcmp.eq.s32.totalorder %v7494, 0
        %v7497 = vxor.u32 %v7491, 2147483648
        %v7498 = vsel %vm7496, %v7490, %v7497
        %vm7499 = vcmp.eq.s32.totalorder %v7494, 2
        %v7500 = vxor.u32 %v7490, 2147483648
        %v7501 = vsel %vm7499, %v7500, %v7491
        %v7502 = vsel %vm7495, %v7498, %v7501
        %v7503 = vsel %vm7492, nan, %v7502
        %7504 = vst [vmem:[%s220] sm:$0xff] %v711
        %7505 = vst [vmem:[%s220 + $0x10] sm:$0xff] %v815
        %7506 = vst [vmem:[%s220 + $0x20] sm:$0xff] %v919
        %7507 = vst [vmem:[%s220 + $0x30] sm:$0xff] %v1023
        %7508 = vst [vmem:[%s220 + $0x40] sm:$0xff] %v1127
        %7509 = vst [vmem:[%s220 + $0x50] sm:$0xff] %v1231
        %7510 = vst [vmem:[%s220 + $0x60] sm:$0xff] %v1335
        %7511 = vst [vmem:[%s220 + $0x70] sm:$0xff] %v1439
        %7512 = vst [vmem:[%s220 + $0x80] sm:$0xff] %v1543
        %7513 = vst [vmem:[%s220 + $0x90] sm:$0xff] %v1647
        %7514 = vst [vmem:[%s220 + $0xa0] sm:$0xff] %v1751
        %7515 = vst [vmem:[%s220 + $0xb0] sm:$0xff] %v1855
        %7516 = vst [vmem:[%s220 + $0xc0] sm:$0xff] %v1959
        %7517 = vst [vmem:[%s220 + $0xd0] sm:$0xff] %v2063
        %7518 = vst [vmem:[%s220 + $0xe0] sm:$0xff] %v2167
        %7519 = vst [vmem:[%s220 + $0xf0] sm:$0xff] %v2271
        %7520 = vst [vmem:[%s220 + $0x100] sm:$0xff] %v2375
        %7521 = vst [vmem:[%s220 + $0x110] sm:$0xff] %v2479
        %7522 = vst [vmem:[%s220 + $0x120] sm:$0xff] %v2583
        %7523 = vst [vmem:[%s220 + $0x130] sm:$0xff] %v2687
        %7524 = vst [vmem:[%s220 + $0x140] sm:$0xff] %v2791
        %7525 = vst [vmem:[%s220 + $0x150] sm:$0xff] %v2895
        %7526 = vst [vmem:[%s220 + $0x160] sm:$0xff] %v2999
        %7527 = vst [vmem:[%s220 + $0x170] sm:$0xff] %v3103
        %7528 = vst [vmem:[%s220 + $0x180] sm:$0xff] %v3207
        %7529 = vst [vmem:[%s220 + $0x190] sm:$0xff] %v3311
        %7530 = vst [vmem:[%s220 + $0x1a0] sm:$0xff] %v3415
        %7531 = vst [vmem:[%s220 + $0x1b0] sm:$0xff] %v3519
        %7532 = vst [vmem:[%s220 + $0x1c0] sm:$0xff] %v3623
        %7533 = vst [vmem:[%s220 + $0x1d0] sm:$0xff] %v3727
        %7534 = vst [vmem:[%s220 + $0x1e0] sm:$0xff] %v3831
        %7535 = vst [vmem:[%s220 + $0x1f0] sm:$0xff] %v3935
        %7536 = vst [vmem:[%s220 + $0x8] sm:$0xff] %v4279
        %7537 = vst [vmem:[%s220 + $0x18] sm:$0xff] %v4383
        %7538 = vst [vmem:[%s220 + $0x28] sm:$0xff] %v4487
        %7539 = vst [vmem:[%s220 + $0x38] sm:$0xff] %v4591
        %7540 = vst [vmem:[%s220 + $0x48] sm:$0xff] %v4695
        %7541 = vst [vmem:[%s220 + $0x58] sm:$0xff] %v4799
        %7542 = vst [vmem:[%s220 + $0x68] sm:$0xff] %v4903
        %7543 = vst [vmem:[%s220 + $0x78] sm:$0xff] %v5007
        %7544 = vst [vmem:[%s220 + $0x88] sm:$0xff] %v5111
        %7545 = vst [vmem:[%s220 + $0x98] sm:$0xff] %v5215
        %7546 = vst [vmem:[%s220 + $0xa8] sm:$0xff] %v5319
        %7547 = vst [vmem:[%s220 + $0xb8] sm:$0xff] %v5423
        %7548 = vst [vmem:[%s220 + $0xc8] sm:$0xff] %v5527
        %7549 = vst [vmem:[%s220 + $0xd8] sm:$0xff] %v5631
        %7550 = vst [vmem:[%s220 + $0xe8] sm:$0xff] %v5735
        %7551 = vst [vmem:[%s220 + $0xf8] sm:$0xff] %v5839
        %7552 = vst [vmem:[%s220 + $0x108] sm:$0xff] %v5943
        %7553 = vst [vmem:[%s220 + $0x118] sm:$0xff] %v6047
        %7554 = vst [vmem:[%s220 + $0x128] sm:$0xff] %v6151
        %7555 = vst [vmem:[%s220 + $0x138] sm:$0xff] %v6255
        %7556 = vst [vmem:[%s220 + $0x148] sm:$0xff] %v6359
        %7557 = vst [vmem:[%s220 + $0x158] sm:$0xff] %v6463
        %7558 = vst [vmem:[%s220 + $0x168] sm:$0xff] %v6567
        %7559 = vst [vmem:[%s220 + $0x178] sm:$0xff] %v6671
        %7560 = vst [vmem:[%s220 + $0x188] sm:$0xff] %v6775
        %7561 = vst [vmem:[%s220 + $0x198] sm:$0xff] %v6879
        %7562 = vst [vmem:[%s220 + $0x1a8] sm:$0xff] %v6983
        %7563 = vst [vmem:[%s220 + $0x1b8] sm:$0xff] %v7087
        %7564 = vst [vmem:[%s220 + $0x1c8] sm:$0xff] %v7191
        %7565 = vst [vmem:[%s220 + $0x1d8] sm:$0xff] %v7295
        %7566 = vst [vmem:[%s220 + $0x1e8] sm:$0xff] %v7399
        %7567 = vst [vmem:[%s220 + $0x1f8] sm:$0xff] %v7503
        %s7568 = sand.u32 %s134, 1
        %s7569 = scalar_lea.sflag [#allocation3], %s7568
        %s7570 = sand.u32 %s134, 1
        %s7571 = smul.addr %s7570, 512
        %s7572 = scalar_lea.vmem [#allocation2], %s7571
        // Predicated region
        $region37: #{position_embedding_sine.1} parent=35 // pred_check
          %p7573 = pneg %p144
        $region38: #{position_embedding_sine.1} parent=35 // pred_check_branch
          %7575 = sbr.rel (%p7573) target = $region40
        $region39: #{position_embedding_sine.1} parent=35 // pred_region
          %s7576 = smul.u32 16, %s23
          %s7578 = ssub.s32 8192, 8192
          %7579 = vsyncadd %s7569, %s7578
          %s7580 = smul.addr %s7576, 4
          %s7581 = smul.addr %s22, 64
          %s7582 = sadd.s32 %s7580, %s7581
          %s7583 = smul.addr %s7582, 128
          %s7584 = scalar_lea.hbm %s4, %s7583
          %s7585 = sshll.u32 %s7572, 4
          %s7586 = int_to_ptr.vmem [resolvable:$true] %s7585
          %7591 = dma.vmem_to_hbm [thread:$0]  %s7586, 8192, %s7584, %s7569, 256, 256, 16
        $region40: #{position_embedding_sine.1} parent=35 // pred_fallthru
          _
      $region36: #{position_embedding_sine.1} parent=5 // pred_fallthru
        _
      %p7592 = scmp.le.s32.totalorder 2, %s13
      // Predicated region
      $region41: #{position_embedding_sine.1} parent=5 // pred_check
        %p7593 = pneg %p7592
      $region42: #{position_embedding_sine.1} parent=5 // pred_check_branch
        %7595 = sbr.rel (%p7593) target = $region44
      $region43: #{position_embedding_sine.1} parent=5 // pred_region
        %s7596 = ssub.s32 %s13, 2
        // Predicated region
        $region45: #{position_embedding_sine.1} parent=43 // pred_check
          %p7597 = pneg %p150
        $region46: #{position_embedding_sine.1} parent=43 // pred_check_branch
          %7599 = sbr.rel (%p7597) target = $region48
        $region47: #{position_embedding_sine.1} parent=43 // pred_region
          %s7600 = sand.u32 %s135, 1
          %s7601 = scalar_lea.sflag [#allocation3], %s7600
          %s7602 = sand.u32 %s135, 1
          %s7603 = smul.addr %s7602, 512
          %s7604 = scalar_lea.vmem [#allocation2], %s7603
          %7605 = dma.done %s7601, 8192
        $region48: #{position_embedding_sine.1} parent=43 // pred_fallthru
          _
      $region44: #{position_embedding_sine.1} parent=5 // pred_fallthru
        _
    $region6: #{position_embedding_sine.1} parent=1 // loop_footer
      %s17 = sadd.s32 1, %s13
    $region7: #{position_embedding_sine.1} parent=1 // loop_footer_branch
      %12 = sbr.rel target = $region3
    $region8: #{position_embedding_sine.1} parent=1 // loop_exit
      _
    %7606 = vsyncpa [#allocation3], 1
    %s7607 = scalar_lea.sflag [#allocation3], 1
    %7608 = vsyncpa %s7607, 1

</llo_original>
